<compile_context>
chip_gen: v5e
topology: v5e:2x2
jax: 0.10.0
libtpu: 0.0.40
codegen_flags: <defaults>
</compile_context>

<pallas_src>
import numpy as np

import jax
import jax.numpy as jnp
from jax.experimental import pallas as pl
from jax.experimental.pallas import tpu as pltpu


_BN_EPS = 1e-5
_LEAK = 0.2


# --------------------- layer plan (mirrors Encoder.__init__) ----------------


def _encoder_plan(isize, nc, ndf, extralayers):
    assert isize % 16 == 0, "isize has to be a multiple of 16"
    layers = [dict(k=4, s=2, p=1, cin=nc, cout=ndf, bn=False, hin=isize)]
    csize, cndf = isize // 2, ndf
    for _ in range(extralayers):
        layers.append(dict(k=3, s=1, p=1, cin=cndf, cout=cndf, bn=True, hin=csize))
    while csize > 4:
        layers.append(dict(k=4, s=2, p=1, cin=cndf, cout=2 * cndf, bn=True,
                           hin=csize))
        cndf *= 2
        csize //= 2
    for L in layers:
        L["hout"] = (L["hin"] + 2 * L["p"] - L["k"]) // L["s"] + 1
        base = L["hin"] + 2 * L["p"] - L["k"] + 1       # stride-1 output extent
        extra = (-base) % 8                             # keep collapses 8-aligned
        L["hp"] = L["hin"] + 2 * L["p"] + extra         # padded extent kept in VMEM
        L["ohf"] = base + extra                         # full-res (stride-1) extent
        L["sel"] = (L["s"] != 1) or (extra != 0)        # needs subsample selector
    return layers, cndf


# ------------------------------ host-side prep ------------------------------


def _prep_conv_w(w):
    """PyTorch (cout, cin, kh, kw) -> per-tap (kh*kw, cin, cout)."""
    cout, cin, kh, kw = w.shape
    return jnp.transpose(w, (2, 3, 1, 0)).reshape(kh * kw, cin, cout)


def _subsample_selector(n, ohf, oh, s):
    """0/1 matrix picking the stride-s output grid out of the stride-1 grid."""
    sel = np.zeros((n * oh * oh, n * ohf * ohf), np.float32)
    for b in range(n):
        for r in range(oh):
            for c in range(oh):
                sel[b * oh * oh + r * oh + c,
                    b * ohf * ohf + (s * r) * ohf + (s * c)] = 1.0
    return jnp.asarray(sel)


# -------------------------------- NetD model --------------------------------


def init_netd_params(key, nc=3, ndf=8, isize=16, extralayers=1):
    """Deterministic synthetic weights with the shapes NetD's __init__ implies."""
    layers, final_c = _encoder_plan(isize, nc, ndf, extralayers)

    def nrm(k, shape, scale=0.05):
        return scale * jax.random.normal(k, shape, jnp.float32)

    keys = jax.random.split(key, 3 * len(layers) + 1)
    params = {
        "w0": nrm(keys[0], (layers[0]["cout"], layers[0]["cin"], 4, 4)),
        "extras": [],
        "pyramids": [],
        "w_cls": nrm(keys[-1], (1, final_c, 4, 4)),
    }
    for idx, L in enumerate(layers[1:], start=1):
        d = {
            "w": nrm(keys[3 * idx], (L["cout"], L["cin"], L["k"], L["k"])),
            "g": 1.0 + nrm(keys[3 * idx + 1], (L["cout"],), 0.1),
            "b": nrm(keys[3 * idx + 2], (L["cout"],), 0.1),
        }
        (params["extras"] if idx <= extralayers else params["pyramids"]).append(d)
    return params


def netd_forward(params, x):
    """x: (N, nc, isize, isize) NCHW.  Returns (classifier (N,), features NCHW)."""
    n, nc, isize, _ = x.shape
    ndf = params["w0"].shape[0]
    extralayers = len(params["extras"])
    layers, final_c = _encoder_plan(isize, nc, ndf, extralayers)
    final_hw = layers[-1]["hout"]
    n_layers = len(layers)

    # classifier is a full-window 4x4 conv over the 4x4 feature map (=> 1x1 out)
    assert final_hw == 4 and params["w_cls"].shape == (1, final_c, 4, 4), (
        final_hw, params["w_cls"].shape)

    # ---- host-side prep (tiny one-off XLA ops) ----
    x_nhwc = jnp.transpose(x, (0, 2, 3, 1)).astype(jnp.float32)
    p_lo = layers[0]["p"]
    p_hi = layers[0]["hp"] - isize - p_lo
    xpad = jnp.pad(x_nhwc, ((0, 0), (p_lo, p_hi), (p_lo, p_hi), (0, 0)))

    layer_params = ([{"w": params["w0"]}] + list(params["extras"])
                    + list(params["pyramids"]))
    assert len(layer_params) == n_layers

    inputs = [xpad]
    for L, lp in zip(layers, layer_params):
        inputs.append(_prep_conv_w(lp["w"].astype(jnp.float32)))
        if L["bn"]:
            inputs.append(lp["g"].reshape(1, -1).astype(jnp.float32))
            inputs.append(lp["b"].reshape(1, -1).astype(jnp.float32))
        if L["sel"]:
            inputs.append(_subsample_selector(n, L["ohf"], L["hout"], L["s"]))
    wcls = jnp.transpose(params["w_cls"][0].astype(jnp.float32),
                         (1, 2, 0)).reshape(final_hw * final_hw, final_c)
    inputs.append(wcls)

    # VMEM scratch holding the zero-padded input of every conv after the first;
    # all intermediate activations stay on-chip.
    scratch = [pltpu.VMEM((n, L["hp"], L["hp"], L["cin"]), jnp.float32)
               for L in layers[1:]]

    # ---------------------- the single fused kernel ----------------------
    def kernel(*refs):
        it = iter(refs)
        src = next(it)                                  # padded NHWC input
        lrefs = []
        for L in layers:
            w = next(it)
            g = next(it) if L["bn"] else None
            b = next(it) if L["bn"] else None
            sref = next(it) if L["sel"] else None
            lrefs.append((w, g, b, sref))
        wcls_ref = next(it)
        feat_ref = next(it)                             # out: (n*4*4, final_c)
        cls_ref = next(it)                              # out: (n, 1)
        pad_refs = list(it)                             # per-layer padded scratch

        def conv_full(src_ref, w_ref, L):
            # stride-1 conv over the padded input as a sum over kernel taps;
            # each tap is a small MXU matmul on the (rows, channels) slab.
            k, cin, cout, ohf = L["k"], L["cin"], L["cout"], L["ohf"]
            m = n * ohf * ohf
            acc = jnp.zeros((m, cout), jnp.float32)
            for i in range(k):
                for j in range(k):
                    win = src_ref[:, pl.ds(i, ohf), pl.ds(j, ohf), :]
                    acc = acc + jnp.dot(win.reshape(m, cin), w_ref[i * k + j],
                                        preferred_element_type=jnp.float32)
            return acc

        for li, L in enumerate(layers):
            w_ref, g_ref, b_ref, sel_ref = lrefs[li]
            oh, cout = L["hout"], L["cout"]
            y = conv_full(src, w_ref, L)
            if sel_ref is not None:                     # pick strided output grid
                y = jnp.dot(sel_ref[...], y, preferred_element_type=jnp.float32)
            if L["bn"]:
                # BatchNorm2d, training-mode batch statistics (biased variance).
                mean = jnp.mean(y, axis=0, keepdims=True)
                d = y - mean
                var = jnp.mean(d * d, axis=0, keepdims=True)
                y = d * jax.lax.rsqrt(var + _BN_EPS) * g_ref[...] + b_ref[...]
            y = jnp.where(y >= 0, y, _LEAK * y)         # LeakyReLU(0.2)

            if li + 1 < n_layers:
                nxt = layers[li + 1]
                pad_ref = pad_refs[li]
                pad_ref[...] = jnp.zeros_like(pad_ref)  # zero halo + alignment pad
                pad_ref[:, pl.ds(nxt["p"], oh), pl.ds(nxt["p"], oh), :] = (
                    y.reshape(n, oh, oh, cout))
                src = pad_ref
            else:
                feat_ref[...] = y                       # features, (n*hw*hw, c)
                # classifier head: full-window conv == per-image dot product over
                # (h, w, c).  VPU multiply + reductions, fused sigmoid (EUP).
                elem = y.reshape(n, oh * oh, cout) * wcls_ref[...]
                rowsum = jnp.sum(elem, axis=2, keepdims=True)       # (n, hw, 1)
                cls_ref[...] = jax.nn.sigmoid(jnp.sum(rowsum, axis=1))  # (n, 1)

    out_shape = (
        jax.ShapeDtypeStruct((n * final_hw * final_hw, final_c), jnp.float32),
        jax.ShapeDtypeStruct((n, 1), jnp.float32),
    )
    feat_flat, cls = pl.pallas_call(
        kernel,
        out_shape=out_shape,
        scratch_shapes=scratch,
    )(*inputs)

    features = jnp.transpose(feat_flat.reshape(n, final_hw, final_hw, final_c),
                             (0, 3, 1, 2))              # NCHW, PyTorch parity
    classifier = cls.reshape(-1)
    return classifier, features


# ------------------------- pure-XLA reference (check) ------------------------


def netd_reference(params, x):
    hi = jax.lax.Precision.HIGHEST

    def conv(t, w, stride, pad):
        return jax.lax.conv_general_dilated(
            t, w, (stride, stride), [(pad, pad), (pad, pad)],
            dimension_numbers=("NCHW", "OIHW", "NCHW"), precision=hi)

    def bn(t, g, b):
        mean = jnp.mean(t, axis=(0, 2, 3), keepdims=True)
        var = jnp.mean((t - mean) ** 2, axis=(0, 2, 3), keepdims=True)
        tn = (t - mean) * jax.lax.rsqrt(var + _BN_EPS)
        return tn * g.reshape(1, -1, 1, 1) + b.reshape(1, -1, 1, 1)

    def lrelu(t):
        return jnp.where(t >= 0, t, _LEAK * t)

    y = lrelu(conv(x, params["w0"], 2, 1))
    for d in params["extras"]:
        y = lrelu(bn(conv(y, d["w"], 1, 1), d["g"], d["b"]))
    for d in params["pyramids"]:
        y = lrelu(bn(conv(y, d["w"], 2, 1), d["g"], d["b"]))
    features = y
    cls = jax.nn.sigmoid(conv(features, params["w_cls"], 1, 0)).reshape(-1)
    return cls, features


# ------------------------------------ main -----------------------------------

if __name__ == "__main__":
    key = jax.random.PRNGKey(0)
    k_param, k_x = jax.random.split(key)

    N, NC, ISIZE, NDF, EXTRA = 2, 3, 16, 8, 1
    params = init_netd_params(k_param, nc=NC, ndf=NDF, isize=ISIZE,
                              extralayers=EXTRA)
    x = jax.random.normal(k_x, (N, NC, ISIZE, ISIZE), jnp.float32)

    classifier, features = jax.jit(netd_forward)(params, x)
    jax.block_until_ready((classifier, features))

    assert classifier.shape == (N,), classifier.shape
    assert features.shape == (N, 2 * NDF, 4, 4), features.shape
    assert bool(jnp.all(jnp.isfinite(features)))
    assert bool(jnp.all((classifier >= 0.0) & (classifier <= 1.0)))

    # verify against a pure-XLA reference (tolerance generous enough to admit
    # different MXU accumulation order / precision, tight enough to catch any
    # real indexing or semantics bug)
    cls_xla, feat_xla = jax.jit(netd_reference)(params, x)
    feat_err = float(jnp.max(jnp.abs(features - feat_xla)))
    cls_err = float(jnp.max(jnp.abs(classifier - cls_xla)))
    assert feat_err < 2e-2, f"features mismatch: max abs err {feat_err}"
    assert cls_err < 2e-2, f"classifier mismatch: max abs err {cls_err}"

    print("KERNEL_OK")
</pallas_src>

<mosaic_0001>
module attributes {stable_mosaic.version = 11 : i64} {
  func.func @kernel(%arg0: memref<2x19x19x3xf32, #tpu.memory_space<vmem>>, %arg1: memref<16x3x8xf32, #tpu.memory_space<vmem>>, %arg2: memref<128x512xf32, #tpu.memory_space<vmem>>, %arg3: memref<9x8x8xf32, #tpu.memory_space<vmem>>, %arg4: memref<1x8xf32, #tpu.memory_space<vmem>>, %arg5: memref<1x8xf32, #tpu.memory_space<vmem>>, %arg6: memref<16x8x16xf32, #tpu.memory_space<vmem>>, %arg7: memref<1x16xf32, #tpu.memory_space<vmem>>, %arg8: memref<1x16xf32, #tpu.memory_space<vmem>>, %arg9: memref<32x128xf32, #tpu.memory_space<vmem>>, %arg10: memref<16x16xf32, #tpu.memory_space<vmem>>, %arg11: memref<32x16xf32, #tpu.memory_space<vmem>>, %arg12: memref<2x1xf32, #tpu.memory_space<vmem>>, %arg13: memref<2x10x10x8xf32, #tpu.memory_space<vmem>>, %arg14: memref<2x11x11x8xf32, #tpu.memory_space<vmem>>) attributes {dimension_semantics = [], scalar_prefetch = 0 : i64, scratch_operands = 2 : i64, tpu.core_type = #tpu.core_type<tc>} {
    %cst = arith.constant 0.000000e+00 : f32
    %0 = vector.broadcast %cst : f32 to vector<512x8xf32>
    %c0 = arith.constant 0 : index
    %c0_0 = arith.constant 0 : index
    %c0_1 = arith.constant 0 : index
    %c0_2 = arith.constant 0 : index
    %1 = vector.load %arg0[%c0, %c0_0, %c0_1, %c0_2] : memref<2x19x19x3xf32, #tpu.memory_space<vmem>>, vector<2x16x16x3xf32>
    %2 = vector.shape_cast %1 : vector<2x16x16x3xf32> to vector<512x3xf32>
    %c0_3 = arith.constant 0 : index
    %c0_4 = arith.constant 0 : index
    %c0_5 = arith.constant 0 : index
    %3 = vector.load %arg1[%c0_3, %c0_4, %c0_5] : memref<16x3x8xf32, #tpu.memory_space<vmem>>, vector<1x3x8xf32>
    %4 = vector.shape_cast %3 : vector<1x3x8xf32> to vector<3x8xf32>
    %cst_6 = arith.constant dense<0.000000e+00> : vector<512x8xf32>
    %5 = tpu.matmul %2, %4, %cst_6 {dimension_numbers = #tpu.dot_dimension_numbers<[1], [0], [0], [1], [0, 0, 1, 1], [], []>} : vector<512x3xf32>, vector<3x8xf32>, vector<512x8xf32> -> vector<512x8xf32>
    %6 = arith.addf %0, %5 : vector<512x8xf32>
    %c0_7 = arith.constant 0 : index
    %c0_8 = arith.constant 0 : index
    %c1 = arith.constant 1 : index
    %c0_9 = arith.constant 0 : index
    %7 = vector.load %arg0[%c0_7, %c0_8, %c1, %c0_9] : memref<2x19x19x3xf32, #tpu.memory_space<vmem>>, vector<2x16x16x3xf32>
    %8 = vector.shape_cast %7 : vector<2x16x16x3xf32> to vector<512x3xf32>
    %c1_10 = arith.constant 1 : index
    %c0_11 = arith.constant 0 : index
    %c0_12 = arith.constant 0 : index
    %9 = vector.load %arg1[%c1_10, %c0_11, %c0_12] : memref<16x3x8xf32, #tpu.memory_space<vmem>>, vector<1x3x8xf32>
    %10 = vector.shape_cast %9 : vector<1x3x8xf32> to vector<3x8xf32>
    %cst_13 = arith.constant dense<0.000000e+00> : vector<512x8xf32>
    %11 = tpu.matmul %8, %10, %cst_13 {dimension_numbers = #tpu.dot_dimension_numbers<[1], [0], [0], [1], [0, 0, 1, 1], [], []>} : vector<512x3xf32>, vector<3x8xf32>, vector<512x8xf32> -> vector<512x8xf32>
    %12 = arith.addf %6, %11 : vector<512x8xf32>
    %c0_14 = arith.constant 0 : index
    %c0_15 = arith.constant 0 : index
    %c2 = arith.constant 2 : index
    %c0_16 = arith.constant 0 : index
    %13 = vector.load %arg0[%c0_14, %c0_15, %c2, %c0_16] : memref<2x19x19x3xf32, #tpu.memory_space<vmem>>, vector<2x16x16x3xf32>
    %14 = vector.shape_cast %13 : vector<2x16x16x3xf32> to vector<512x3xf32>
    %c2_17 = arith.constant 2 : index
    %c0_18 = arith.constant 0 : index
    %c0_19 = arith.constant 0 : index
    %15 = vector.load %arg1[%c2_17, %c0_18, %c0_19] : memref<16x3x8xf32, #tpu.memory_space<vmem>>, vector<1x3x8xf32>
    %16 = vector.shape_cast %15 : vector<1x3x8xf32> to vector<3x8xf32>
    %cst_20 = arith.constant dense<0.000000e+00> : vector<512x8xf32>
    %17 = tpu.matmul %14, %16, %cst_20 {dimension_numbers = #tpu.dot_dimension_numbers<[1], [0], [0], [1], [0, 0, 1, 1], [], []>} : vector<512x3xf32>, vector<3x8xf32>, vector<512x8xf32> -> vector<512x8xf32>
    %18 = arith.addf %12, %17 : vector<512x8xf32>
    %c0_21 = arith.constant 0 : index
    %c0_22 = arith.constant 0 : index
    %c3 = arith.constant 3 : index
    %c0_23 = arith.constant 0 : index
    %19 = vector.load %arg0[%c0_21, %c0_22, %c3, %c0_23] : memref<2x19x19x3xf32, #tpu.memory_space<vmem>>, vector<2x16x16x3xf32>
    %20 = vector.shape_cast %19 : vector<2x16x16x3xf32> to vector<512x3xf32>
    %c3_24 = arith.constant 3 : index
    %c0_25 = arith.constant 0 : index
    %c0_26 = arith.constant 0 : index
    %21 = vector.load %arg1[%c3_24, %c0_25, %c0_26] : memref<16x3x8xf32, #tpu.memory_space<vmem>>, vector<1x3x8xf32>
    %22 = vector.shape_cast %21 : vector<1x3x8xf32> to vector<3x8xf32>
    %cst_27 = arith.constant dense<0.000000e+00> : vector<512x8xf32>
    %23 = tpu.matmul %20, %22, %cst_27 {dimension_numbers = #tpu.dot_dimension_numbers<[1], [0], [0], [1], [0, 0, 1, 1], [], []>} : vector<512x3xf32>, vector<3x8xf32>, vector<512x8xf32> -> vector<512x8xf32>
    %24 = arith.addf %18, %23 : vector<512x8xf32>
    %c0_28 = arith.constant 0 : index
    %c1_29 = arith.constant 1 : index
    %c0_30 = arith.constant 0 : index
    %c0_31 = arith.constant 0 : index
    %25 = vector.load %arg0[%c0_28, %c1_29, %c0_30, %c0_31] : memref<2x19x19x3xf32, #tpu.memory_space<vmem>>, vector<2x16x16x3xf32>
    %26 = vector.shape_cast %25 : vector<2x16x16x3xf32> to vector<512x3xf32>
    %c4 = arith.constant 4 : index
    %c0_32 = arith.constant 0 : index
    %c0_33 = arith.constant 0 : index
    %27 = vector.load %arg1[%c4, %c0_32, %c0_33] : memref<16x3x8xf32, #tpu.memory_space<vmem>>, vector<1x3x8xf32>
    %28 = vector.shape_cast %27 : vector<1x3x8xf32> to vector<3x8xf32>
    %cst_34 = arith.constant dense<0.000000e+00> : vector<512x8xf32>
    %29 = tpu.matmul %26, %28, %cst_34 {dimension_numbers = #tpu.dot_dimension_numbers<[1], [0], [0], [1], [0, 0, 1, 1], [], []>} : vector<512x3xf32>, vector<3x8xf32>, vector<512x8xf32> -> vector<512x8xf32>
    %30 = arith.addf %24, %29 : vector<512x8xf32>
    %c0_35 = arith.constant 0 : index
    %c1_36 = arith.constant 1 : index
    %c1_37 = arith.constant 1 : index
    %c0_38 = arith.constant 0 : index
    %31 = vector.load %arg0[%c0_35, %c1_36, %c1_37, %c0_38] : memref<2x19x19x3xf32, #tpu.memory_space<vmem>>, vector<2x16x16x3xf32>
    %32 = vector.shape_cast %31 : vector<2x16x16x3xf32> to vector<512x3xf32>
    %c5 = arith.constant 5 : index
    %c0_39 = arith.constant 0 : index
    %c0_40 = arith.constant 0 : index
    %33 = vector.load %arg1[%c5, %c0_39, %c0_40] : memref<16x3x8xf32, #tpu.memory_space<vmem>>, vector<1x3x8xf32>
    %34 = vector.shape_cast %33 : vector<1x3x8xf32> to vector<3x8xf32>
    %cst_41 = arith.constant dense<0.000000e+00> : vector<512x8xf32>
    %35 = tpu.matmul %32, %34, %cst_41 {dimension_numbers = #tpu.dot_dimension_numbers<[1], [0], [0], [1], [0, 0, 1, 1], [], []>} : vector<512x3xf32>, vector<3x8xf32>, vector<512x8xf32> -> vector<512x8xf32>
    %36 = arith.addf %30, %35 : vector<512x8xf32>
    %c0_42 = arith.constant 0 : index
    %c1_43 = arith.constant 1 : index
    %c2_44 = arith.constant 2 : index
    %c0_45 = arith.constant 0 : index
    %37 = vector.load %arg0[%c0_42, %c1_43, %c2_44, %c0_45] : memref<2x19x19x3xf32, #tpu.memory_space<vmem>>, vector<2x16x16x3xf32>
    %38 = vector.shape_cast %37 : vector<2x16x16x3xf32> to vector<512x3xf32>
    %c6 = arith.constant 6 : index
    %c0_46 = arith.constant 0 : index
    %c0_47 = arith.constant 0 : index
    %39 = vector.load %arg1[%c6, %c0_46, %c0_47] : memref<16x3x8xf32, #tpu.memory_space<vmem>>, vector<1x3x8xf32>
    %40 = vector.shape_cast %39 : vector<1x3x8xf32> to vector<3x8xf32>
    %cst_48 = arith.constant dense<0.000000e+00> : vector<512x8xf32>
    %41 = tpu.matmul %38, %40, %cst_48 {dimension_numbers = #tpu.dot_dimension_numbers<[1], [0], [0], [1], [0, 0, 1, 1], [], []>} : vector<512x3xf32>, vector<3x8xf32>, vector<512x8xf32> -> vector<512x8xf32>
    %42 = arith.addf %36, %41 : vector<512x8xf32>
    %c0_49 = arith.constant 0 : index
    %c1_50 = arith.constant 1 : index
    %c3_51 = arith.constant 3 : index
    %c0_52 = arith.constant 0 : index
    %43 = vector.load %arg0[%c0_49, %c1_50, %c3_51, %c0_52] : memref<2x19x19x3xf32, #tpu.memory_space<vmem>>, vector<2x16x16x3xf32>
    %44 = vector.shape_cast %43 : vector<2x16x16x3xf32> to vector<512x3xf32>
    %c7 = arith.constant 7 : index
    %c0_53 = arith.constant 0 : index
    %c0_54 = arith.constant 0 : index
    %45 = vector.load %arg1[%c7, %c0_53, %c0_54] : memref<16x3x8xf32, #tpu.memory_space<vmem>>, vector<1x3x8xf32>
    %46 = vector.shape_cast %45 : vector<1x3x8xf32> to vector<3x8xf32>
    %cst_55 = arith.constant dense<0.000000e+00> : vector<512x8xf32>
    %47 = tpu.matmul %44, %46, %cst_55 {dimension_numbers = #tpu.dot_dimension_numbers<[1], [0], [0], [1], [0, 0, 1, 1], [], []>} : vector<512x3xf32>, vector<3x8xf32>, vector<512x8xf32> -> vector<512x8xf32>
    %48 = arith.addf %42, %47 : vector<512x8xf32>
    %c0_56 = arith.constant 0 : index
    %c2_57 = arith.constant 2 : index
    %c0_58 = arith.constant 0 : index
    %c0_59 = arith.constant 0 : index
    %49 = vector.load %arg0[%c0_56, %c2_57, %c0_58, %c0_59] : memref<2x19x19x3xf32, #tpu.memory_space<vmem>>, vector<2x16x16x3xf32>
    %50 = vector.shape_cast %49 : vector<2x16x16x3xf32> to vector<512x3xf32>
    %c8 = arith.constant 8 : index
    %c0_60 = arith.constant 0 : index
    %c0_61 = arith.constant 0 : index
    %51 = vector.load %arg1[%c8, %c0_60, %c0_61] : memref<16x3x8xf32, #tpu.memory_space<vmem>>, vector<1x3x8xf32>
    %52 = vector.shape_cast %51 : vector<1x3x8xf32> to vector<3x8xf32>
    %cst_62 = arith.constant dense<0.000000e+00> : vector<512x8xf32>
    %53 = tpu.matmul %50, %52, %cst_62 {dimension_numbers = #tpu.dot_dimension_numbers<[1], [0], [0], [1], [0, 0, 1, 1], [], []>} : vector<512x3xf32>, vector<3x8xf32>, vector<512x8xf32> -> vector<512x8xf32>
    %54 = arith.addf %48, %53 : vector<512x8xf32>
    %c0_63 = arith.constant 0 : index
    %c2_64 = arith.constant 2 : index
    %c1_65 = arith.constant 1 : index
    %c0_66 = arith.constant 0 : index
    %55 = vector.load %arg0[%c0_63, %c2_64, %c1_65, %c0_66] : memref<2x19x19x3xf32, #tpu.memory_space<vmem>>, vector<2x16x16x3xf32>
    %56 = vector.shape_cast %55 : vector<2x16x16x3xf32> to vector<512x3xf32>
    %c9 = arith.constant 9 : index
    %c0_67 = arith.constant 0 : index
    %c0_68 = arith.constant 0 : index
    %57 = vector.load %arg1[%c9, %c0_67, %c0_68] : memref<16x3x8xf32, #tpu.memory_space<vmem>>, vector<1x3x8xf32>
    %58 = vector.shape_cast %57 : vector<1x3x8xf32> to vector<3x8xf32>
    %cst_69 = arith.constant dense<0.000000e+00> : vector<512x8xf32>
    %59 = tpu.matmul %56, %58, %cst_69 {dimension_numbers = #tpu.dot_dimension_numbers<[1], [0], [0], [1], [0, 0, 1, 1], [], []>} : vector<512x3xf32>, vector<3x8xf32>, vector<512x8xf32> -> vector<512x8xf32>
    %60 = arith.addf %54, %59 : vector<512x8xf32>
    %c0_70 = arith.constant 0 : index
    %c2_71 = arith.constant 2 : index
    %c2_72 = arith.constant 2 : index
    %c0_73 = arith.constant 0 : index
    %61 = vector.load %arg0[%c0_70, %c2_71, %c2_72, %c0_73] : memref<2x19x19x3xf32, #tpu.memory_space<vmem>>, vector<2x16x16x3xf32>
    %62 = vector.shape_cast %61 : vector<2x16x16x3xf32> to vector<512x3xf32>
    %c10 = arith.constant 10 : index
    %c0_74 = arith.constant 0 : index
    %c0_75 = arith.constant 0 : index
    %63 = vector.load %arg1[%c10, %c0_74, %c0_75] : memref<16x3x8xf32, #tpu.memory_space<vmem>>, vector<1x3x8xf32>
    %64 = vector.shape_cast %63 : vector<1x3x8xf32> to vector<3x8xf32>
    %cst_76 = arith.constant dense<0.000000e+00> : vector<512x8xf32>
    %65 = tpu.matmul %62, %64, %cst_76 {dimension_numbers = #tpu.dot_dimension_numbers<[1], [0], [0], [1], [0, 0, 1, 1], [], []>} : vector<512x3xf32>, vector<3x8xf32>, vector<512x8xf32> -> vector<512x8xf32>
    %66 = arith.addf %60, %65 : vector<512x8xf32>
    %c0_77 = arith.constant 0 : index
    %c2_78 = arith.constant 2 : index
    %c3_79 = arith.constant 3 : index
    %c0_80 = arith.constant 0 : index
    %67 = vector.load %arg0[%c0_77, %c2_78, %c3_79, %c0_80] : memref<2x19x19x3xf32, #tpu.memory_space<vmem>>, vector<2x16x16x3xf32>
    %68 = vector.shape_cast %67 : vector<2x16x16x3xf32> to vector<512x3xf32>
    %c11 = arith.constant 11 : index
    %c0_81 = arith.constant 0 : index
    %c0_82 = arith.constant 0 : index
    %69 = vector.load %arg1[%c11, %c0_81, %c0_82] : memref<16x3x8xf32, #tpu.memory_space<vmem>>, vector<1x3x8xf32>
    %70 = vector.shape_cast %69 : vector<1x3x8xf32> to vector<3x8xf32>
    %cst_83 = arith.constant dense<0.000000e+00> : vector<512x8xf32>
    %71 = tpu.matmul %68, %70, %cst_83 {dimension_numbers = #tpu.dot_dimension_numbers<[1], [0], [0], [1], [0, 0, 1, 1], [], []>} : vector<512x3xf32>, vector<3x8xf32>, vector<512x8xf32> -> vector<512x8xf32>
    %72 = arith.addf %66, %71 : vector<512x8xf32>
    %c0_84 = arith.constant 0 : index
    %c3_85 = arith.constant 3 : index
    %c0_86 = arith.constant 0 : index
    %c0_87 = arith.constant 0 : index
    %73 = vector.load %arg0[%c0_84, %c3_85, %c0_86, %c0_87] : memref<2x19x19x3xf32, #tpu.memory_space<vmem>>, vector<2x16x16x3xf32>
    %74 = vector.shape_cast %73 : vector<2x16x16x3xf32> to vector<512x3xf32>
    %c12 = arith.constant 12 : index
    %c0_88 = arith.constant 0 : index
    %c0_89 = arith.constant 0 : index
    %75 = vector.load %arg1[%c12, %c0_88, %c0_89] : memref<16x3x8xf32, #tpu.memory_space<vmem>>, vector<1x3x8xf32>
    %76 = vector.shape_cast %75 : vector<1x3x8xf32> to vector<3x8xf32>
    %cst_90 = arith.constant dense<0.000000e+00> : vector<512x8xf32>
    %77 = tpu.matmul %74, %76, %cst_90 {dimension_numbers = #tpu.dot_dimension_numbers<[1], [0], [0], [1], [0, 0, 1, 1], [], []>} : vector<512x3xf32>, vector<3x8xf32>, vector<512x8xf32> -> vector<512x8xf32>
    %78 = arith.addf %72, %77 : vector<512x8xf32>
    %c0_91 = arith.constant 0 : index
    %c3_92 = arith.constant 3 : index
    %c1_93 = arith.constant 1 : index
    %c0_94 = arith.constant 0 : index
    %79 = vector.load %arg0[%c0_91, %c3_92, %c1_93, %c0_94] : memref<2x19x19x3xf32, #tpu.memory_space<vmem>>, vector<2x16x16x3xf32>
    %80 = vector.shape_cast %79 : vector<2x16x16x3xf32> to vector<512x3xf32>
    %c13 = arith.constant 13 : index
    %c0_95 = arith.constant 0 : index
    %c0_96 = arith.constant 0 : index
    %81 = vector.load %arg1[%c13, %c0_95, %c0_96] : memref<16x3x8xf32, #tpu.memory_space<vmem>>, vector<1x3x8xf32>
    %82 = vector.shape_cast %81 : vector<1x3x8xf32> to vector<3x8xf32>
    %cst_97 = arith.constant dense<0.000000e+00> : vector<512x8xf32>
    %83 = tpu.matmul %80, %82, %cst_97 {dimension_numbers = #tpu.dot_dimension_numbers<[1], [0], [0], [1], [0, 0, 1, 1], [], []>} : vector<512x3xf32>, vector<3x8xf32>, vector<512x8xf32> -> vector<512x8xf32>
    %84 = arith.addf %78, %83 : vector<512x8xf32>
    %c0_98 = arith.constant 0 : index
    %c3_99 = arith.constant 3 : index
    %c2_100 = arith.constant 2 : index
    %c0_101 = arith.constant 0 : index
    %85 = vector.load %arg0[%c0_98, %c3_99, %c2_100, %c0_101] : memref<2x19x19x3xf32, #tpu.memory_space<vmem>>, vector<2x16x16x3xf32>
    %86 = vector.shape_cast %85 : vector<2x16x16x3xf32> to vector<512x3xf32>
    %c14 = arith.constant 14 : index
    %c0_102 = arith.constant 0 : index
    %c0_103 = arith.constant 0 : index
    %87 = vector.load %arg1[%c14, %c0_102, %c0_103] : memref<16x3x8xf32, #tpu.memory_space<vmem>>, vector<1x3x8xf32>
    %88 = vector.shape_cast %87 : vector<1x3x8xf32> to vector<3x8xf32>
    %cst_104 = arith.constant dense<0.000000e+00> : vector<512x8xf32>
    %89 = tpu.matmul %86, %88, %cst_104 {dimension_numbers = #tpu.dot_dimension_numbers<[1], [0], [0], [1], [0, 0, 1, 1], [], []>} : vector<512x3xf32>, vector<3x8xf32>, vector<512x8xf32> -> vector<512x8xf32>
    %90 = arith.addf %84, %89 : vector<512x8xf32>
    %c0_105 = arith.constant 0 : index
    %c3_106 = arith.constant 3 : index
    %c3_107 = arith.constant 3 : index
    %c0_108 = arith.constant 0 : index
    %91 = vector.load %arg0[%c0_105, %c3_106, %c3_107, %c0_108] : memref<2x19x19x3xf32, #tpu.memory_space<vmem>>, vector<2x16x16x3xf32>
    %92 = vector.shape_cast %91 : vector<2x16x16x3xf32> to vector<512x3xf32>
    %c15 = arith.constant 15 : index
    %c0_109 = arith.constant 0 : index
    %c0_110 = arith.constant 0 : index
    %93 = vector.load %arg1[%c15, %c0_109, %c0_110] : memref<16x3x8xf32, #tpu.memory_space<vmem>>, vector<1x3x8xf32>
    %94 = vector.shape_cast %93 : vector<1x3x8xf32> to vector<3x8xf32>
    %cst_111 = arith.constant dense<0.000000e+00> : vector<512x8xf32>
    %95 = tpu.matmul %92, %94, %cst_111 {dimension_numbers = #tpu.dot_dimension_numbers<[1], [0], [0], [1], [0, 0, 1, 1], [], []>} : vector<512x3xf32>, vector<3x8xf32>, vector<512x8xf32> -> vector<512x8xf32>
    %96 = arith.addf %90, %95 : vector<512x8xf32>
    %c0_112 = arith.constant 0 : index
    %c0_113 = arith.constant 0 : index
    %97 = vector.load %arg2[%c0_112, %c0_113] : memref<128x512xf32, #tpu.memory_space<vmem>>, vector<128x512xf32>
    %cst_114 = arith.constant dense<0.000000e+00> : vector<128x8xf32>
    %98 = tpu.matmul %97, %96, %cst_114 {dimension_numbers = #tpu.dot_dimension_numbers<[1], [0], [0], [1], [0, 0, 1, 1], [], []>} : vector<128x512xf32>, vector<512x8xf32>, vector<128x8xf32> -> vector<128x8xf32>
    %cst_115 = arith.constant 0.000000e+00 : f32
    %99 = vector.broadcast %cst_115 : f32 to vector<128x8xf32>
    %100 = arith.cmpf oge, %98, %99 : vector<128x8xf32>
    %cst_116 = arith.constant 2.000000e-01 : f32
    %101 = vector.broadcast %cst_116 : f32 to vector<128x8xf32>
    %102 = arith.mulf %101, %98 : vector<128x8xf32>
    %103 = arith.select %100, %98, %102 : vector<128x8xi1>, vector<128x8xf32>
    %cst_117 = arith.constant 0.000000e+00 : f32
    %104 = vector.broadcast %cst_117 : f32 to vector<2x10x10x8xf32>
    %c0_118 = arith.constant 0 : index
    %c0_119 = arith.constant 0 : index
    %c0_120 = arith.constant 0 : index
    %c0_121 = arith.constant 0 : index
    %105 = vector.load %arg13[%c0_118, %c0_119, %c0_120, %c0_121] : memref<2x10x10x8xf32, #tpu.memory_space<vmem>>, vector<2x10x10x8xf32>
    tpu.vector_store %arg13[%c0_118, %c0_119, %c0_120, %c0_121], %104 {strides = array<i32>} : memref<2x10x10x8xf32, #tpu.memory_space<vmem>>, vector<2x10x10x8xf32>,
    %106 = vector.shape_cast %103 : vector<128x8xf32> to vector<2x8x8x8xf32>
    %c0_122 = arith.constant 0 : index
    %c1_123 = arith.constant 1 : index
    %c1_124 = arith.constant 1 : index
    %c0_125 = arith.constant 0 : index
    %107 = vector.load %arg13[%c0_122, %c1_123, %c1_124, %c0_125] : memref<2x10x10x8xf32, #tpu.memory_space<vmem>>, vector<2x8x8x8xf32>
    tpu.vector_store %arg13[%c0_122, %c1_123, %c1_124, %c0_125], %106 {strides = array<i32>} : memref<2x10x10x8xf32, #tpu.memory_space<vmem>>, vector<2x8x8x8xf32>,
    %cst_126 = arith.constant 0.000000e+00 : f32
    %108 = vector.broadcast %cst_126 : f32 to vector<128x8xf32>
    %c0_127 = arith.constant 0 : index
    %c0_128 = arith.constant 0 : index
    %c0_129 = arith.constant 0 : index
    %c0_130 = arith.constant 0 : index
    %109 = vector.load %arg13[%c0_127, %c0_128, %c0_129, %c0_130] : memref<2x10x10x8xf32, #tpu.memory_space<vmem>>, vector<2x8x8x8xf32>
    %110 = vector.shape_cast %109 : vector<2x8x8x8xf32> to vector<128x8xf32>
    %c0_131 = arith.constant 0 : index
    %c0_132 = arith.constant 0 : index
    %c0_133 = arith.constant 0 : index
    %111 = vector.load %arg3[%c0_131, %c0_132, %c0_133] : memref<9x8x8xf32, #tpu.memory_space<vmem>>, vector<1x8x8xf32>
    %112 = vector.shape_cast %111 : vector<1x8x8xf32> to vector<8x8xf32>
    %cst_134 = arith.constant dense<0.000000e+00> : vector<128x8xf32>
    %113 = tpu.matmul %110, %112, %cst_134 {dimension_numbers = #tpu.dot_dimension_numbers<[1], [0], [0], [1], [0, 0, 1, 1], [], []>} : vector<128x8xf32>, vector<8x8xf32>, vector<128x8xf32> -> vector<128x8xf32>
    %114 = arith.addf %108, %113 : vector<128x8xf32>
    %c0_135 = arith.constant 0 : index
    %c0_136 = arith.constant 0 : index
    %c1_137 = arith.constant 1 : index
    %c0_138 = arith.constant 0 : index
    %115 = vector.load %arg13[%c0_135, %c0_136, %c1_137, %c0_138] : memref<2x10x10x8xf32, #tpu.memory_space<vmem>>, vector<2x8x8x8xf32>
    %116 = vector.shape_cast %115 : vector<2x8x8x8xf32> to vector<128x8xf32>
    %c1_139 = arith.constant 1 : index
    %c0_140 = arith.constant 0 : index
    %c0_141 = arith.constant 0 : index
    %117 = vector.load %arg3[%c1_139, %c0_140, %c0_141] : memref<9x8x8xf32, #tpu.memory_space<vmem>>, vector<1x8x8xf32>
    %118 = vector.shape_cast %117 : vector<1x8x8xf32> to vector<8x8xf32>
    %cst_142 = arith.constant dense<0.000000e+00> : vector<128x8xf32>
    %119 = tpu.matmul %116, %118, %cst_142 {dimension_numbers = #tpu.dot_dimension_numbers<[1], [0], [0], [1], [0, 0, 1, 1], [], []>} : vector<128x8xf32>, vector<8x8xf32>, vector<128x8xf32> -> vector<128x8xf32>
    %120 = arith.addf %114, %119 : vector<128x8xf32>
    %c0_143 = arith.constant 0 : index
    %c0_144 = arith.constant 0 : index
    %c2_145 = arith.constant 2 : index
    %c0_146 = arith.constant 0 : index
    %121 = vector.load %arg13[%c0_143, %c0_144, %c2_145, %c0_146] : memref<2x10x10x8xf32, #tpu.memory_space<vmem>>, vector<2x8x8x8xf32>
    %122 = vector.shape_cast %121 : vector<2x8x8x8xf32> to vector<128x8xf32>
    %c2_147 = arith.constant 2 : index
    %c0_148 = arith.constant 0 : index
    %c0_149 = arith.constant 0 : index
    %123 = vector.load %arg3[%c2_147, %c0_148, %c0_149] : memref<9x8x8xf32, #tpu.memory_space<vmem>>, vector<1x8x8xf32>
    %124 = vector.shape_cast %123 : vector<1x8x8xf32> to vector<8x8xf32>
    %cst_150 = arith.constant dense<0.000000e+00> : vector<128x8xf32>
    %125 = tpu.matmul %122, %124, %cst_150 {dimension_numbers = #tpu.dot_dimension_numbers<[1], [0], [0], [1], [0, 0, 1, 1], [], []>} : vector<128x8xf32>, vector<8x8xf32>, vector<128x8xf32> -> vector<128x8xf32>
    %126 = arith.addf %120, %125 : vector<128x8xf32>
    %c0_151 = arith.constant 0 : index
    %c1_152 = arith.constant 1 : index
    %c0_153 = arith.constant 0 : index
    %c0_154 = arith.constant 0 : index
    %127 = vector.load %arg13[%c0_151, %c1_152, %c0_153, %c0_154] : memref<2x10x10x8xf32, #tpu.memory_space<vmem>>, vector<2x8x8x8xf32>
    %128 = vector.shape_cast %127 : vector<2x8x8x8xf32> to vector<128x8xf32>
    %c3_155 = arith.constant 3 : index
    %c0_156 = arith.constant 0 : index
    %c0_157 = arith.constant 0 : index
    %129 = vector.load %arg3[%c3_155, %c0_156, %c0_157] : memref<9x8x8xf32, #tpu.memory_space<vmem>>, vector<1x8x8xf32>
    %130 = vector.shape_cast %129 : vector<1x8x8xf32> to vector<8x8xf32>
    %cst_158 = arith.constant dense<0.000000e+00> : vector<128x8xf32>
    %131 = tpu.matmul %128, %130, %cst_158 {dimension_numbers = #tpu.dot_dimension_numbers<[1], [0], [0], [1], [0, 0, 1, 1], [], []>} : vector<128x8xf32>, vector<8x8xf32>, vector<128x8xf32> -> vector<128x8xf32>
    %132 = arith.addf %126, %131 : vector<128x8xf32>
    %c0_159 = arith.constant 0 : index
    %c1_160 = arith.constant 1 : index
    %c1_161 = arith.constant 1 : index
    %c0_162 = arith.constant 0 : index
    %133 = vector.load %arg13[%c0_159, %c1_160, %c1_161, %c0_162] : memref<2x10x10x8xf32, #tpu.memory_space<vmem>>, vector<2x8x8x8xf32>
    %134 = vector.shape_cast %133 : vector<2x8x8x8xf32> to vector<128x8xf32>
    %c4_163 = arith.constant 4 : index
    %c0_164 = arith.constant 0 : index
    %c0_165 = arith.constant 0 : index
    %135 = vector.load %arg3[%c4_163, %c0_164, %c0_165] : memref<9x8x8xf32, #tpu.memory_space<vmem>>, vector<1x8x8xf32>
    %136 = vector.shape_cast %135 : vector<1x8x8xf32> to vector<8x8xf32>
    %cst_166 = arith.constant dense<0.000000e+00> : vector<128x8xf32>
    %137 = tpu.matmul %134, %136, %cst_166 {dimension_numbers = #tpu.dot_dimension_numbers<[1], [0], [0], [1], [0, 0, 1, 1], [], []>} : vector<128x8xf32>, vector<8x8xf32>, vector<128x8xf32> -> vector<128x8xf32>
    %138 = arith.addf %132, %137 : vector<128x8xf32>
    %c0_167 = arith.constant 0 : index
    %c1_168 = arith.constant 1 : index
    %c2_169 = arith.constant 2 : index
    %c0_170 = arith.constant 0 : index
    %139 = vector.load %arg13[%c0_167, %c1_168, %c2_169, %c0_170] : memref<2x10x10x8xf32, #tpu.memory_space<vmem>>, vector<2x8x8x8xf32>
    %140 = vector.shape_cast %139 : vector<2x8x8x8xf32> to vector<128x8xf32>
    %c5_171 = arith.constant 5 : index
    %c0_172 = arith.constant 0 : index
    %c0_173 = arith.constant 0 : index
    %141 = vector.load %arg3[%c5_171, %c0_172, %c0_173] : memref<9x8x8xf32, #tpu.memory_space<vmem>>, vector<1x8x8xf32>
    %142 = vector.shape_cast %141 : vector<1x8x8xf32> to vector<8x8xf32>
    %cst_174 = arith.constant dense<0.000000e+00> : vector<128x8xf32>
    %143 = tpu.matmul %140, %142, %cst_174 {dimension_numbers = #tpu.dot_dimension_numbers<[1], [0], [0], [1], [0, 0, 1, 1], [], []>} : vector<128x8xf32>, vector<8x8xf32>, vector<128x8xf32> -> vector<128x8xf32>
    %144 = arith.addf %138, %143 : vector<128x8xf32>
    %c0_175 = arith.constant 0 : index
    %c2_176 = arith.constant 2 : index
    %c0_177 = arith.constant 0 : index
    %c0_178 = arith.constant 0 : index
    %145 = vector.load %arg13[%c0_175, %c2_176, %c0_177, %c0_178] : memref<2x10x10x8xf32, #tpu.memory_space<vmem>>, vector<2x8x8x8xf32>
    %146 = vector.shape_cast %145 : vector<2x8x8x8xf32> to vector<128x8xf32>
    %c6_179 = arith.constant 6 : index
    %c0_180 = arith.constant 0 : index
    %c0_181 = arith.constant 0 : index
    %147 = vector.load %arg3[%c6_179, %c0_180, %c0_181] : memref<9x8x8xf32, #tpu.memory_space<vmem>>, vector<1x8x8xf32>
    %148 = vector.shape_cast %147 : vector<1x8x8xf32> to vector<8x8xf32>
    %cst_182 = arith.constant dense<0.000000e+00> : vector<128x8xf32>
    %149 = tpu.matmul %146, %148, %cst_182 {dimension_numbers = #tpu.dot_dimension_numbers<[1], [0], [0], [1], [0, 0, 1, 1], [], []>} : vector<128x8xf32>, vector<8x8xf32>, vector<128x8xf32> -> vector<128x8xf32>
    %150 = arith.addf %144, %149 : vector<128x8xf32>
    %c0_183 = arith.constant 0 : index
    %c2_184 = arith.constant 2 : index
    %c1_185 = arith.constant 1 : index
    %c0_186 = arith.constant 0 : index
    %151 = vector.load %arg13[%c0_183, %c2_184, %c1_185, %c0_186] : memref<2x10x10x8xf32, #tpu.memory_space<vmem>>, vector<2x8x8x8xf32>
    %152 = vector.shape_cast %151 : vector<2x8x8x8xf32> to vector<128x8xf32>
    %c7_187 = arith.constant 7 : index
    %c0_188 = arith.constant 0 : index
    %c0_189 = arith.constant 0 : index
    %153 = vector.load %arg3[%c7_187, %c0_188, %c0_189] : memref<9x8x8xf32, #tpu.memory_space<vmem>>, vector<1x8x8xf32>
    %154 = vector.shape_cast %153 : vector<1x8x8xf32> to vector<8x8xf32>
    %cst_190 = arith.constant dense<0.000000e+00> : vector<128x8xf32>
    %155 = tpu.matmul %152, %154, %cst_190 {dimension_numbers = #tpu.dot_dimension_numbers<[1], [0], [0], [1], [0, 0, 1, 1], [], []>} : vector<128x8xf32>, vector<8x8xf32>, vector<128x8xf32> -> vector<128x8xf32>
    %156 = arith.addf %150, %155 : vector<128x8xf32>
    %c0_191 = arith.constant 0 : index
    %c2_192 = arith.constant 2 : index
    %c2_193 = arith.constant 2 : index
    %c0_194 = arith.constant 0 : index
    %157 = vector.load %arg13[%c0_191, %c2_192, %c2_193, %c0_194] : memref<2x10x10x8xf32, #tpu.memory_space<vmem>>, vector<2x8x8x8xf32>
    %158 = vector.shape_cast %157 : vector<2x8x8x8xf32> to vector<128x8xf32>
    %c8_195 = arith.constant 8 : index
    %c0_196 = arith.constant 0 : index
    %c0_197 = arith.constant 0 : index
    %159 = vector.load %arg3[%c8_195, %c0_196, %c0_197] : memref<9x8x8xf32, #tpu.memory_space<vmem>>, vector<1x8x8xf32>
    %160 = vector.shape_cast %159 : vector<1x8x8xf32> to vector<8x8xf32>
    %cst_198 = arith.constant dense<0.000000e+00> : vector<128x8xf32>
    %161 = tpu.matmul %158, %160, %cst_198 {dimension_numbers = #tpu.dot_dimension_numbers<[1], [0], [0], [1], [0, 0, 1, 1], [], []>} : vector<128x8xf32>, vector<8x8xf32>, vector<128x8xf32> -> vector<128x8xf32>
    %162 = arith.addf %156, %161 : vector<128x8xf32>
    %cst_199 = arith.constant dense<0.000000e+00> : vector<8xf32>
    %163 = vector.multi_reduction <add>, %162, %cst_199 [0] : vector<128x8xf32> to vector<8xf32>
    %164 = vector.shape_cast %163 : vector<8xf32> to vector<1x8xf32>
    %cst_200 = arith.constant 1.280000e+02 : f32
    %165 = vector.broadcast %cst_200 : f32 to vector<1x8xf32>
    %166 = arith.divf %164, %165 : vector<1x8xf32>
    %167 = vector.broadcast %166 : vector<1x8xf32> to vector<128x8xf32>
    %168 = arith.subf %162, %167 : vector<128x8xf32>
    %169 = arith.mulf %168, %168 : vector<128x8xf32>
    %cst_201 = arith.constant dense<0.000000e+00> : vector<8xf32>
    %170 = vector.multi_reduction <add>, %169, %cst_201 [0] : vector<128x8xf32> to vector<8xf32>
    %171 = vector.shape_cast %170 : vector<8xf32> to vector<1x8xf32>
    %cst_202 = arith.constant 1.280000e+02 : f32
    %172 = vector.broadcast %cst_202 : f32 to vector<1x8xf32>
    %173 = arith.divf %171, %172 : vector<1x8xf32>
    %cst_203 = arith.constant 9.99999974E-6 : f32
    %174 = vector.broadcast %cst_203 : f32 to vector<1x8xf32>
    %175 = arith.addf %173, %174 : vector<1x8xf32>
    %176 = math.rsqrt %175 : vector<1x8xf32>
    %177 = vector.broadcast %176 : vector<1x8xf32> to vector<128x8xf32>
    %178 = arith.mulf %168, %177 : vector<128x8xf32>
    %c0_204 = arith.constant 0 : index
    %c0_205 = arith.constant 0 : index
    %179 = vector.load %arg4[%c0_204, %c0_205] : memref<1x8xf32, #tpu.memory_space<vmem>>, vector<1x8xf32>
    %180 = vector.broadcast %179 : vector<1x8xf32> to vector<128x8xf32>
    %181 = arith.mulf %178, %180 : vector<128x8xf32>
    %c0_206 = arith.constant 0 : index
    %c0_207 = arith.constant 0 : index
    %182 = vector.load %arg5[%c0_206, %c0_207] : memref<1x8xf32, #tpu.memory_space<vmem>>, vector<1x8xf32>
    %183 = vector.broadcast %182 : vector<1x8xf32> to vector<128x8xf32>
    %184 = arith.addf %181, %183 : vector<128x8xf32>
    %cst_208 = arith.constant 0.000000e+00 : f32
    %185 = vector.broadcast %cst_208 : f32 to vector<128x8xf32>
    %186 = arith.cmpf oge, %184, %185 : vector<128x8xf32>
    %cst_209 = arith.constant 2.000000e-01 : f32
    %187 = vector.broadcast %cst_209 : f32 to vector<128x8xf32>
    %188 = arith.mulf %187, %184 : vector<128x8xf32>
    %189 = arith.select %186, %184, %188 : vector<128x8xi1>, vector<128x8xf32>
    %cst_210 = arith.constant 0.000000e+00 : f32
    %190 = vector.broadcast %cst_210 : f32 to vector<2x11x11x8xf32>
    %c0_211 = arith.constant 0 : index
    %c0_212 = arith.constant 0 : index
    %c0_213 = arith.constant 0 : index
    %c0_214 = arith.constant 0 : index
    %191 = vector.load %arg14[%c0_211, %c0_212, %c0_213, %c0_214] : memref<2x11x11x8xf32, #tpu.memory_space<vmem>>, vector<2x11x11x8xf32>
    tpu.vector_store %arg14[%c0_211, %c0_212, %c0_213, %c0_214], %190 {strides = array<i32>} : memref<2x11x11x8xf32, #tpu.memory_space<vmem>>, vector<2x11x11x8xf32>,
    %192 = vector.shape_cast %189 : vector<128x8xf32> to vector<2x8x8x8xf32>
    %c0_215 = arith.constant 0 : index
    %c1_216 = arith.constant 1 : index
    %c1_217 = arith.constant 1 : index
    %c0_218 = arith.constant 0 : index
    %193 = vector.load %arg14[%c0_215, %c1_216, %c1_217, %c0_218] : memref<2x11x11x8xf32, #tpu.memory_space<vmem>>, vector<2x8x8x8xf32>
    tpu.vector_store %arg14[%c0_215, %c1_216, %c1_217, %c0_218], %192 {strides = array<i32>} : memref<2x11x11x8xf32, #tpu.memory_space<vmem>>, vector<2x8x8x8xf32>,
    %cst_219 = arith.constant 0.000000e+00 : f32
    %194 = vector.broadcast %cst_219 : f32 to vector<128x16xf32>
    %c0_220 = arith.constant 0 : index
    %c0_221 = arith.constant 0 : index
    %c0_222 = arith.constant 0 : index
    %c0_223 = arith.constant 0 : index
    %195 = vector.load %arg14[%c0_220, %c0_221, %c0_222, %c0_223] : memref<2x11x11x8xf32, #tpu.memory_space<vmem>>, vector<2x8x8x8xf32>
    %196 = vector.shape_cast %195 : vector<2x8x8x8xf32> to vector<128x8xf32>
    %c0_224 = arith.constant 0 : index
    %c0_225 = arith.constant 0 : index
    %c0_226 = arith.constant 0 : index
    %197 = vector.load %arg6[%c0_224, %c0_225, %c0_226] : memref<16x8x16xf32, #tpu.memory_space<vmem>>, vector<1x8x16xf32>
    %198 = vector.shape_cast %197 : vector<1x8x16xf32> to vector<8x16xf32>
    %cst_227 = arith.constant dense<0.000000e+00> : vector<128x16xf32>
    %199 = tpu.matmul %196, %198, %cst_227 {dimension_numbers = #tpu.dot_dimension_numbers<[1], [0], [0], [1], [0, 0, 1, 1], [], []>} : vector<128x8xf32>, vector<8x16xf32>, vector<128x16xf32> -> vector<128x16xf32>
    %200 = arith.addf %194, %199 : vector<128x16xf32>
    %c0_228 = arith.constant 0 : index
    %c0_229 = arith.constant 0 : index
    %c1_230 = arith.constant 1 : index
    %c0_231 = arith.constant 0 : index
    %201 = vector.load %arg14[%c0_228, %c0_229, %c1_230, %c0_231] : memref<2x11x11x8xf32, #tpu.memory_space<vmem>>, vector<2x8x8x8xf32>
    %202 = vector.shape_cast %201 : vector<2x8x8x8xf32> to vector<128x8xf32>
    %c1_232 = arith.constant 1 : index
    %c0_233 = arith.constant 0 : index
    %c0_234 = arith.constant 0 : index
    %203 = vector.load %arg6[%c1_232, %c0_233, %c0_234] : memref<16x8x16xf32, #tpu.memory_space<vmem>>, vector<1x8x16xf32>
    %204 = vector.shape_cast %203 : vector<1x8x16xf32> to vector<8x16xf32>
    %cst_235 = arith.constant dense<0.000000e+00> : vector<128x16xf32>
    %205 = tpu.matmul %202, %204, %cst_235 {dimension_numbers = #tpu.dot_dimension_numbers<[1], [0], [0], [1], [0, 0, 1, 1], [], []>} : vector<128x8xf32>, vector<8x16xf32>, vector<128x16xf32> -> vector<128x16xf32>
    %206 = arith.addf %200, %205 : vector<128x16xf32>
    %c0_236 = arith.constant 0 : index
    %c0_237 = arith.constant 0 : index
    %c2_238 = arith.constant 2 : index
    %c0_239 = arith.constant 0 : index
    %207 = vector.load %arg14[%c0_236, %c0_237, %c2_238, %c0_239] : memref<2x11x11x8xf32, #tpu.memory_space<vmem>>, vector<2x8x8x8xf32>
    %208 = vector.shape_cast %207 : vector<2x8x8x8xf32> to vector<128x8xf32>
    %c2_240 = arith.constant 2 : index
    %c0_241 = arith.constant 0 : index
    %c0_242 = arith.constant 0 : index
    %209 = vector.load %arg6[%c2_240, %c0_241, %c0_242] : memref<16x8x16xf32, #tpu.memory_space<vmem>>, vector<1x8x16xf32>
    %210 = vector.shape_cast %209 : vector<1x8x16xf32> to vector<8x16xf32>
    %cst_243 = arith.constant dense<0.000000e+00> : vector<128x16xf32>
    %211 = tpu.matmul %208, %210, %cst_243 {dimension_numbers = #tpu.dot_dimension_numbers<[1], [0], [0], [1], [0, 0, 1, 1], [], []>} : vector<128x8xf32>, vector<8x16xf32>, vector<128x16xf32> -> vector<128x16xf32>
    %212 = arith.addf %206, %211 : vector<128x16xf32>
    %c0_244 = arith.constant 0 : index
    %c0_245 = arith.constant 0 : index
    %c3_246 = arith.constant 3 : index
    %c0_247 = arith.constant 0 : index
    %213 = vector.load %arg14[%c0_244, %c0_245, %c3_246, %c0_247] : memref<2x11x11x8xf32, #tpu.memory_space<vmem>>, vector<2x8x8x8xf32>
    %214 = vector.shape_cast %213 : vector<2x8x8x8xf32> to vector<128x8xf32>
    %c3_248 = arith.constant 3 : index
    %c0_249 = arith.constant 0 : index
    %c0_250 = arith.constant 0 : index
    %215 = vector.load %arg6[%c3_248, %c0_249, %c0_250] : memref<16x8x16xf32, #tpu.memory_space<vmem>>, vector<1x8x16xf32>
    %216 = vector.shape_cast %215 : vector<1x8x16xf32> to vector<8x16xf32>
    %cst_251 = arith.constant dense<0.000000e+00> : vector<128x16xf32>
    %217 = tpu.matmul %214, %216, %cst_251 {dimension_numbers = #tpu.dot_dimension_numbers<[1], [0], [0], [1], [0, 0, 1, 1], [], []>} : vector<128x8xf32>, vector<8x16xf32>, vector<128x16xf32> -> vector<128x16xf32>
    %218 = arith.addf %212, %217 : vector<128x16xf32>
    %c0_252 = arith.constant 0 : index
    %c1_253 = arith.constant 1 : index
    %c0_254 = arith.constant 0 : index
    %c0_255 = arith.constant 0 : index
    %219 = vector.load %arg14[%c0_252, %c1_253, %c0_254, %c0_255] : memref<2x11x11x8xf32, #tpu.memory_space<vmem>>, vector<2x8x8x8xf32>
    %220 = vector.shape_cast %219 : vector<2x8x8x8xf32> to vector<128x8xf32>
    %c4_256 = arith.constant 4 : index
    %c0_257 = arith.constant 0 : index
    %c0_258 = arith.constant 0 : index
    %221 = vector.load %arg6[%c4_256, %c0_257, %c0_258] : memref<16x8x16xf32, #tpu.memory_space<vmem>>, vector<1x8x16xf32>
    %222 = vector.shape_cast %221 : vector<1x8x16xf32> to vector<8x16xf32>
    %cst_259 = arith.constant dense<0.000000e+00> : vector<128x16xf32>
    %223 = tpu.matmul %220, %222, %cst_259 {dimension_numbers = #tpu.dot_dimension_numbers<[1], [0], [0], [1], [0, 0, 1, 1], [], []>} : vector<128x8xf32>, vector<8x16xf32>, vector<128x16xf32> -> vector<128x16xf32>
    %224 = arith.addf %218, %223 : vector<128x16xf32>
    %c0_260 = arith.constant 0 : index
    %c1_261 = arith.constant 1 : index
    %c1_262 = arith.constant 1 : index
    %c0_263 = arith.constant 0 : index
    %225 = vector.load %arg14[%c0_260, %c1_261, %c1_262, %c0_263] : memref<2x11x11x8xf32, #tpu.memory_space<vmem>>, vector<2x8x8x8xf32>
    %226 = vector.shape_cast %225 : vector<2x8x8x8xf32> to vector<128x8xf32>
    %c5_264 = arith.constant 5 : index
    %c0_265 = arith.constant 0 : index
    %c0_266 = arith.constant 0 : index
    %227 = vector.load %arg6[%c5_264, %c0_265, %c0_266] : memref<16x8x16xf32, #tpu.memory_space<vmem>>, vector<1x8x16xf32>
    %228 = vector.shape_cast %227 : vector<1x8x16xf32> to vector<8x16xf32>
    %cst_267 = arith.constant dense<0.000000e+00> : vector<128x16xf32>
    %229 = tpu.matmul %226, %228, %cst_267 {dimension_numbers = #tpu.dot_dimension_numbers<[1], [0], [0], [1], [0, 0, 1, 1], [], []>} : vector<128x8xf32>, vector<8x16xf32>, vector<128x16xf32> -> vector<128x16xf32>
    %230 = arith.addf %224, %229 : vector<128x16xf32>
    %c0_268 = arith.constant 0 : index
    %c1_269 = arith.constant 1 : index
    %c2_270 = arith.constant 2 : index
    %c0_271 = arith.constant 0 : index
    %231 = vector.load %arg14[%c0_268, %c1_269, %c2_270, %c0_271] : memref<2x11x11x8xf32, #tpu.memory_space<vmem>>, vector<2x8x8x8xf32>
    %232 = vector.shape_cast %231 : vector<2x8x8x8xf32> to vector<128x8xf32>
    %c6_272 = arith.constant 6 : index
    %c0_273 = arith.constant 0 : index
    %c0_274 = arith.constant 0 : index
    %233 = vector.load %arg6[%c6_272, %c0_273, %c0_274] : memref<16x8x16xf32, #tpu.memory_space<vmem>>, vector<1x8x16xf32>
    %234 = vector.shape_cast %233 : vector<1x8x16xf32> to vector<8x16xf32>
    %cst_275 = arith.constant dense<0.000000e+00> : vector<128x16xf32>
    %235 = tpu.matmul %232, %234, %cst_275 {dimension_numbers = #tpu.dot_dimension_numbers<[1], [0], [0], [1], [0, 0, 1, 1], [], []>} : vector<128x8xf32>, vector<8x16xf32>, vector<128x16xf32> -> vector<128x16xf32>
    %236 = arith.addf %230, %235 : vector<128x16xf32>
    %c0_276 = arith.constant 0 : index
    %c1_277 = arith.constant 1 : index
    %c3_278 = arith.constant 3 : index
    %c0_279 = arith.constant 0 : index
    %237 = vector.load %arg14[%c0_276, %c1_277, %c3_278, %c0_279] : memref<2x11x11x8xf32, #tpu.memory_space<vmem>>, vector<2x8x8x8xf32>
    %238 = vector.shape_cast %237 : vector<2x8x8x8xf32> to vector<128x8xf32>
    %c7_280 = arith.constant 7 : index
    %c0_281 = arith.constant 0 : index
    %c0_282 = arith.constant 0 : index
    %239 = vector.load %arg6[%c7_280, %c0_281, %c0_282] : memref<16x8x16xf32, #tpu.memory_space<vmem>>, vector<1x8x16xf32>
    %240 = vector.shape_cast %239 : vector<1x8x16xf32> to vector<8x16xf32>
    %cst_283 = arith.constant dense<0.000000e+00> : vector<128x16xf32>
    %241 = tpu.matmul %238, %240, %cst_283 {dimension_numbers = #tpu.dot_dimension_numbers<[1], [0], [0], [1], [0, 0, 1, 1], [], []>} : vector<128x8xf32>, vector<8x16xf32>, vector<128x16xf32> -> vector<128x16xf32>
    %242 = arith.addf %236, %241 : vector<128x16xf32>
    %c0_284 = arith.constant 0 : index
    %c2_285 = arith.constant 2 : index
    %c0_286 = arith.constant 0 : index
    %c0_287 = arith.constant 0 : index
    %243 = vector.load %arg14[%c0_284, %c2_285, %c0_286, %c0_287] : memref<2x11x11x8xf32, #tpu.memory_space<vmem>>, vector<2x8x8x8xf32>
    %244 = vector.shape_cast %243 : vector<2x8x8x8xf32> to vector<128x8xf32>
    %c8_288 = arith.constant 8 : index
    %c0_289 = arith.constant 0 : index
    %c0_290 = arith.constant 0 : index
    %245 = vector.load %arg6[%c8_288, %c0_289, %c0_290] : memref<16x8x16xf32, #tpu.memory_space<vmem>>, vector<1x8x16xf32>
    %246 = vector.shape_cast %245 : vector<1x8x16xf32> to vector<8x16xf32>
    %cst_291 = arith.constant dense<0.000000e+00> : vector<128x16xf32>
    %247 = tpu.matmul %244, %246, %cst_291 {dimension_numbers = #tpu.dot_dimension_numbers<[1], [0], [0], [1], [0, 0, 1, 1], [], []>} : vector<128x8xf32>, vector<8x16xf32>, vector<128x16xf32> -> vector<128x16xf32>
    %248 = arith.addf %242, %247 : vector<128x16xf32>
    %c0_292 = arith.constant 0 : index
    %c2_293 = arith.constant 2 : index
    %c1_294 = arith.constant 1 : index
    %c0_295 = arith.constant 0 : index
    %249 = vector.load %arg14[%c0_292, %c2_293, %c1_294, %c0_295] : memref<2x11x11x8xf32, #tpu.memory_space<vmem>>, vector<2x8x8x8xf32>
    %250 = vector.shape_cast %249 : vector<2x8x8x8xf32> to vector<128x8xf32>
    %c9_296 = arith.constant 9 : index
    %c0_297 = arith.constant 0 : index
    %c0_298 = arith.constant 0 : index
    %251 = vector.load %arg6[%c9_296, %c0_297, %c0_298] : memref<16x8x16xf32, #tpu.memory_space<vmem>>, vector<1x8x16xf32>
    %252 = vector.shape_cast %251 : vector<1x8x16xf32> to vector<8x16xf32>
    %cst_299 = arith.constant dense<0.000000e+00> : vector<128x16xf32>
    %253 = tpu.matmul %250, %252, %cst_299 {dimension_numbers = #tpu.dot_dimension_numbers<[1], [0], [0], [1], [0, 0, 1, 1], [], []>} : vector<128x8xf32>, vector<8x16xf32>, vector<128x16xf32> -> vector<128x16xf32>
    %254 = arith.addf %248, %253 : vector<128x16xf32>
    %c0_300 = arith.constant 0 : index
    %c2_301 = arith.constant 2 : index
    %c2_302 = arith.constant 2 : index
    %c0_303 = arith.constant 0 : index
    %255 = vector.load %arg14[%c0_300, %c2_301, %c2_302, %c0_303] : memref<2x11x11x8xf32, #tpu.memory_space<vmem>>, vector<2x8x8x8xf32>
    %256 = vector.shape_cast %255 : vector<2x8x8x8xf32> to vector<128x8xf32>
    %c10_304 = arith.constant 10 : index
    %c0_305 = arith.constant 0 : index
    %c0_306 = arith.constant 0 : index
    %257 = vector.load %arg6[%c10_304, %c0_305, %c0_306] : memref<16x8x16xf32, #tpu.memory_space<vmem>>, vector<1x8x16xf32>
    %258 = vector.shape_cast %257 : vector<1x8x16xf32> to vector<8x16xf32>
    %cst_307 = arith.constant dense<0.000000e+00> : vector<128x16xf32>
    %259 = tpu.matmul %256, %258, %cst_307 {dimension_numbers = #tpu.dot_dimension_numbers<[1], [0], [0], [1], [0, 0, 1, 1], [], []>} : vector<128x8xf32>, vector<8x16xf32>, vector<128x16xf32> -> vector<128x16xf32>
    %260 = arith.addf %254, %259 : vector<128x16xf32>
    %c0_308 = arith.constant 0 : index
    %c2_309 = arith.constant 2 : index
    %c3_310 = arith.constant 3 : index
    %c0_311 = arith.constant 0 : index
    %261 = vector.load %arg14[%c0_308, %c2_309, %c3_310, %c0_311] : memref<2x11x11x8xf32, #tpu.memory_space<vmem>>, vector<2x8x8x8xf32>
    %262 = vector.shape_cast %261 : vector<2x8x8x8xf32> to vector<128x8xf32>
    %c11_312 = arith.constant 11 : index
    %c0_313 = arith.constant 0 : index
    %c0_314 = arith.constant 0 : index
    %263 = vector.load %arg6[%c11_312, %c0_313, %c0_314] : memref<16x8x16xf32, #tpu.memory_space<vmem>>, vector<1x8x16xf32>
    %264 = vector.shape_cast %263 : vector<1x8x16xf32> to vector<8x16xf32>
    %cst_315 = arith.constant dense<0.000000e+00> : vector<128x16xf32>
    %265 = tpu.matmul %262, %264, %cst_315 {dimension_numbers = #tpu.dot_dimension_numbers<[1], [0], [0], [1], [0, 0, 1, 1], [], []>} : vector<128x8xf32>, vector<8x16xf32>, vector<128x16xf32> -> vector<128x16xf32>
    %266 = arith.addf %260, %265 : vector<128x16xf32>
    %c0_316 = arith.constant 0 : index
    %c3_317 = arith.constant 3 : index
    %c0_318 = arith.constant 0 : index
    %c0_319 = arith.constant 0 : index
    %267 = vector.load %arg14[%c0_316, %c3_317, %c0_318, %c0_319] : memref<2x11x11x8xf32, #tpu.memory_space<vmem>>, vector<2x8x8x8xf32>
    %268 = vector.shape_cast %267 : vector<2x8x8x8xf32> to vector<128x8xf32>
    %c12_320 = arith.constant 12 : index
    %c0_321 = arith.constant 0 : index
    %c0_322 = arith.constant 0 : index
    %269 = vector.load %arg6[%c12_320, %c0_321, %c0_322] : memref<16x8x16xf32, #tpu.memory_space<vmem>>, vector<1x8x16xf32>
    %270 = vector.shape_cast %269 : vector<1x8x16xf32> to vector<8x16xf32>
    %cst_323 = arith.constant dense<0.000000e+00> : vector<128x16xf32>
    %271 = tpu.matmul %268, %270, %cst_323 {dimension_numbers = #tpu.dot_dimension_numbers<[1], [0], [0], [1], [0, 0, 1, 1], [], []>} : vector<128x8xf32>, vector<8x16xf32>, vector<128x16xf32> -> vector<128x16xf32>
    %272 = arith.addf %266, %271 : vector<128x16xf32>
    %c0_324 = arith.constant 0 : index
    %c3_325 = arith.constant 3 : index
    %c1_326 = arith.constant 1 : index
    %c0_327 = arith.constant 0 : index
    %273 = vector.load %arg14[%c0_324, %c3_325, %c1_326, %c0_327] : memref<2x11x11x8xf32, #tpu.memory_space<vmem>>, vector<2x8x8x8xf32>
    %274 = vector.shape_cast %273 : vector<2x8x8x8xf32> to vector<128x8xf32>
    %c13_328 = arith.constant 13 : index
    %c0_329 = arith.constant 0 : index
    %c0_330 = arith.constant 0 : index
    %275 = vector.load %arg6[%c13_328, %c0_329, %c0_330] : memref<16x8x16xf32, #tpu.memory_space<vmem>>, vector<1x8x16xf32>
    %276 = vector.shape_cast %275 : vector<1x8x16xf32> to vector<8x16xf32>
    %cst_331 = arith.constant dense<0.000000e+00> : vector<128x16xf32>
    %277 = tpu.matmul %274, %276, %cst_331 {dimension_numbers = #tpu.dot_dimension_numbers<[1], [0], [0], [1], [0, 0, 1, 1], [], []>} : vector<128x8xf32>, vector<8x16xf32>, vector<128x16xf32> -> vector<128x16xf32>
    %278 = arith.addf %272, %277 : vector<128x16xf32>
    %c0_332 = arith.constant 0 : index
    %c3_333 = arith.constant 3 : index
    %c2_334 = arith.constant 2 : index
    %c0_335 = arith.constant 0 : index
    %279 = vector.load %arg14[%c0_332, %c3_333, %c2_334, %c0_335] : memref<2x11x11x8xf32, #tpu.memory_space<vmem>>, vector<2x8x8x8xf32>
    %280 = vector.shape_cast %279 : vector<2x8x8x8xf32> to vector<128x8xf32>
    %c14_336 = arith.constant 14 : index
    %c0_337 = arith.constant 0 : index
    %c0_338 = arith.constant 0 : index
    %281 = vector.load %arg6[%c14_336, %c0_337, %c0_338] : memref<16x8x16xf32, #tpu.memory_space<vmem>>, vector<1x8x16xf32>
    %282 = vector.shape_cast %281 : vector<1x8x16xf32> to vector<8x16xf32>
    %cst_339 = arith.constant dense<0.000000e+00> : vector<128x16xf32>
    %283 = tpu.matmul %280, %282, %cst_339 {dimension_numbers = #tpu.dot_dimension_numbers<[1], [0], [0], [1], [0, 0, 1, 1], [], []>} : vector<128x8xf32>, vector<8x16xf32>, vector<128x16xf32> -> vector<128x16xf32>
    %284 = arith.addf %278, %283 : vector<128x16xf32>
    %c0_340 = arith.constant 0 : index
    %c3_341 = arith.constant 3 : index
    %c3_342 = arith.constant 3 : index
    %c0_343 = arith.constant 0 : index
    %285 = vector.load %arg14[%c0_340, %c3_341, %c3_342, %c0_343] : memref<2x11x11x8xf32, #tpu.memory_space<vmem>>, vector<2x8x8x8xf32>
    %286 = vector.shape_cast %285 : vector<2x8x8x8xf32> to vector<128x8xf32>
    %c15_344 = arith.constant 15 : index
    %c0_345 = arith.constant 0 : index
    %c0_346 = arith.constant 0 : index
    %287 = vector.load %arg6[%c15_344, %c0_345, %c0_346] : memref<16x8x16xf32, #tpu.memory_space<vmem>>, vector<1x8x16xf32>
    %288 = vector.shape_cast %287 : vector<1x8x16xf32> to vector<8x16xf32>
    %cst_347 = arith.constant dense<0.000000e+00> : vector<128x16xf32>
    %289 = tpu.matmul %286, %288, %cst_347 {dimension_numbers = #tpu.dot_dimension_numbers<[1], [0], [0], [1], [0, 0, 1, 1], [], []>} : vector<128x8xf32>, vector<8x16xf32>, vector<128x16xf32> -> vector<128x16xf32>
    %290 = arith.addf %284, %289 : vector<128x16xf32>
    %c0_348 = arith.constant 0 : index
    %c0_349 = arith.constant 0 : index
    %291 = vector.load %arg9[%c0_348, %c0_349] : memref<32x128xf32, #tpu.memory_space<vmem>>, vector<32x128xf32>
    %cst_350 = arith.constant dense<0.000000e+00> : vector<32x16xf32>
    %292 = tpu.matmul %291, %290, %cst_350 {dimension_numbers = #tpu.dot_dimension_numbers<[1], [0], [0], [1], [0, 0, 1, 1], [], []>} : vector<32x128xf32>, vector<128x16xf32>, vector<32x16xf32> -> vector<32x16xf32>
    %cst_351 = arith.constant dense<0.000000e+00> : vector<16xf32>
    %293 = vector.multi_reduction <add>, %292, %cst_351 [0] : vector<32x16xf32> to vector<16xf32>
    %294 = vector.shape_cast %293 : vector<16xf32> to vector<1x16xf32>
    %cst_352 = arith.constant 3.200000e+01 : f32
    %295 = vector.broadcast %cst_352 : f32 to vector<1x16xf32>
    %296 = arith.divf %294, %295 : vector<1x16xf32>
    %297 = vector.broadcast %296 : vector<1x16xf32> to vector<32x16xf32>
    %298 = arith.subf %292, %297 : vector<32x16xf32>
    %299 = arith.mulf %298, %298 : vector<32x16xf32>
    %cst_353 = arith.constant dense<0.000000e+00> : vector<16xf32>
    %300 = vector.multi_reduction <add>, %299, %cst_353 [0] : vector<32x16xf32> to vector<16xf32>
    %301 = vector.shape_cast %300 : vector<16xf32> to vector<1x16xf32>
    %cst_354 = arith.constant 3.200000e+01 : f32
    %302 = vector.broadcast %cst_354 : f32 to vector<1x16xf32>
    %303 = arith.divf %301, %302 : vector<1x16xf32>
    %cst_355 = arith.constant 9.99999974E-6 : f32
    %304 = vector.broadcast %cst_355 : f32 to vector<1x16xf32>
    %305 = arith.addf %303, %304 : vector<1x16xf32>
    %306 = math.rsqrt %305 : vector<1x16xf32>
    %307 = vector.broadcast %306 : vector<1x16xf32> to vector<32x16xf32>
    %308 = arith.mulf %298, %307 : vector<32x16xf32>
    %c0_356 = arith.constant 0 : index
    %c0_357 = arith.constant 0 : index
    %309 = vector.load %arg7[%c0_356, %c0_357] : memref<1x16xf32, #tpu.memory_space<vmem>>, vector<1x16xf32>
    %310 = vector.broadcast %309 : vector<1x16xf32> to vector<32x16xf32>
    %311 = arith.mulf %308, %310 : vector<32x16xf32>
    %c0_358 = arith.constant 0 : index
    %c0_359 = arith.constant 0 : index
    %312 = vector.load %arg8[%c0_358, %c0_359] : memref<1x16xf32, #tpu.memory_space<vmem>>, vector<1x16xf32>
    %313 = vector.broadcast %312 : vector<1x16xf32> to vector<32x16xf32>
    %314 = arith.addf %311, %313 : vector<32x16xf32>
    %cst_360 = arith.constant 0.000000e+00 : f32
    %315 = vector.broadcast %cst_360 : f32 to vector<32x16xf32>
    %316 = arith.cmpf oge, %314, %315 : vector<32x16xf32>
    %cst_361 = arith.constant 2.000000e-01 : f32
    %317 = vector.broadcast %cst_361 : f32 to vector<32x16xf32>
    %318 = arith.mulf %317, %314 : vector<32x16xf32>
    %319 = arith.select %316, %314, %318 : vector<32x16xi1>, vector<32x16xf32>
    %c0_362 = arith.constant 0 : index
    %c0_363 = arith.constant 0 : index
    %320 = vector.load %arg11[%c0_362, %c0_363] : memref<32x16xf32, #tpu.memory_space<vmem>>, vector<32x16xf32>
    tpu.vector_store %arg11[%c0_362, %c0_363], %319 {strides = array<i32>} : memref<32x16xf32, #tpu.memory_space<vmem>>, vector<32x16xf32>,
    %321 = vector.shape_cast %319 : vector<32x16xf32> to vector<2x16x16xf32>
    %c0_364 = arith.constant 0 : index
    %c0_365 = arith.constant 0 : index
    %322 = vector.load %arg10[%c0_364, %c0_365] : memref<16x16xf32, #tpu.memory_space<vmem>>, vector<16x16xf32>
    %323 = vector.shape_cast %322 : vector<16x16xf32> to vector<1x16x16xf32>
    %324 = vector.broadcast %323 : vector<1x16x16xf32> to vector<2x16x16xf32>
    %325 = arith.mulf %321, %324 : vector<2x16x16xf32>
    %cst_366 = arith.constant dense<0.000000e+00> : vector<2x16xf32>
    %326 = vector.multi_reduction <add>, %325, %cst_366 [2] : vector<2x16x16xf32> to vector<2x16xf32>
    %327 = vector.shape_cast %326 : vector<2x16xf32> to vector<2x16x1xf32>
    %cst_367 = arith.constant dense<0.000000e+00> : vector<2x1xf32>
    %328 = vector.multi_reduction <add>, %327, %cst_367 [1] : vector<2x16x1xf32> to vector<2x1xf32>
    %329 = arith.negf %328 : vector<2x1xf32>
    %330 = math.exp %329 : vector<2x1xf32>
    %cst_368 = arith.constant 1.000000e+00 : f32
    %331 = vector.broadcast %cst_368 : f32 to vector<2x1xf32>
    %332 = arith.addf %331, %330 : vector<2x1xf32>
    %333 = arith.divf %331, %332 : vector<2x1xf32>
    %c0_369 = arith.constant 0 : index
    %c0_370 = arith.constant 0 : index
    %334 = vector.load %arg12[%c0_369, %c0_370] : memref<2x1xf32, #tpu.memory_space<vmem>>, vector<2x1xf32>
    tpu.vector_store %arg12[%c0_369, %c0_370], %333 {strides = array<i32>} : memref<2x1xf32, #tpu.memory_space<vmem>>, vector<2x1xf32>,
    return
  }
}

</mosaic_0001>

<llo_original>
// kernel: netd_forward.1
$region0: #{netd_forward.1}
  #allocation0 [shape = 'u32[]', space=smem, size = 0x4, offset = 0x4, fixed_abs, tag = 'smem constant byte address 0x4 - core index']
  #allocation1 [shape = 'u32[72,128]{1,0:T(1,128)}', space=vmem, size = 0x9000, scoped, tag = 'internal scratch']
  #allocation2 [shape = 'f32[2,10,10,8]{3,2,1,0:T(8,128)}', space=vmem, size = 0x28000, scoped, tag = 'scratch operand']
  #allocation3 [shape = 'f32[2,11,11,8]{3,2,1,0:T(8,128)}', space=vmem, size = 0x2c000, scoped, tag = 'scratch operand']
  %s0 = inlined_call_operand.vmem [shape: f32[2,19,19,3], index: 0, kind: input, shape index: {}]
  %s1 = inlined_call_operand.vmem [shape: f32[16,3,8], index: 1, kind: input, shape index: {}]
  %s2 = inlined_call_operand.vmem [shape: f32[128,512], index: 2, kind: input, shape index: {}]
  %s3 = inlined_call_operand.vmem [shape: f32[9,8,8], index: 3, kind: input, shape index: {}]
  %s4 = inlined_call_operand.vmem [shape: f32[1,8], index: 4, kind: input, shape index: {}]
  %s5 = inlined_call_operand.vmem [shape: f32[1,8], index: 5, kind: input, shape index: {}]
  %s6 = inlined_call_operand.vmem [shape: f32[16,8,16], index: 6, kind: input, shape index: {}]
  %s7 = inlined_call_operand.vmem [shape: f32[1,16], index: 7, kind: input, shape index: {}]
  %s8 = inlined_call_operand.vmem [shape: f32[1,16], index: 8, kind: input, shape index: {}]
  %s9 = inlined_call_operand.vmem [shape: f32[32,128], index: 9, kind: input, shape index: {}]
  %s10 = inlined_call_operand.vmem [shape: f32[16,16], index: 10, kind: input, shape index: {}]
  %s11 = inlined_call_operand.hbm [shape: f32[32,16], index: 11, kind: output, shape index: {0}]
  %s12 = inlined_call_operand.vmem [shape: f32[2,1], index: 12, kind: output, shape index: {1}]
  %13 = xla_tuple %s11, %s12
  %s14 = sld [smem:[#allocation0]]
  $region62: #{netd_forward.1} parent=0
    _
  %s16 = ssub.s32 1, %s14
  %s17 = scalar_select 0, %s16, %s14
  $region1: #{netd_forward.1} parent=0
    #allocation4 [shape = 'u8[16384]{0}', space=vmem, size = 0x4000, scoped, tag = 'output window, operand 0, single buffered']
    #allocation5 [shape = 's32[1]{0}', space=sflag, size = 0x4, scoped, tag = 'scoped memory for netd_forward.1']
    %18 = vsyncpa [#allocation5], 0
    // Predicated region
    $region2: #{netd_forward.1} parent=1 // pred_check
      _
    $region3: #{netd_forward.1} parent=1 // pred_check_branch
      %20 = sbr.rel (0) target = $region5
    $region4: #{netd_forward.1} parent=1 // pred_region
      _
    $region5: #{netd_forward.1} parent=1 // pred_fallthru
      _
    // Predicated region
    $region6: #{netd_forward.1} parent=1 // pred_check
      _
    $region7: #{netd_forward.1} parent=1 // pred_check_branch
      %22 = sbr.rel (0) target = $region9
    $region8: #{netd_forward.1} parent=1 // pred_region
      _
    $region9: #{netd_forward.1} parent=1 // pred_fallthru
      _
    // Predicated region
    $region10: #{netd_forward.1} parent=1 // pred_check
      _
    $region11: #{netd_forward.1} parent=1 // pred_check_branch
      %24 = sbr.rel (0) target = $region13
    $region12: #{netd_forward.1} parent=1 // pred_region
      _
    $region13: #{netd_forward.1} parent=1 // pred_fallthru
      _
    // Predicated region
    $region14: #{netd_forward.1} parent=1 // pred_check
      _
    $region15: #{netd_forward.1} parent=1 // pred_check_branch
      %26 = sbr.rel (0) target = $region17
    $region16: #{netd_forward.1} parent=1 // pred_region
      _
    $region17: #{netd_forward.1} parent=1 // pred_fallthru
      _
    // Predicated region
    $region18: #{netd_forward.1} parent=1 // pred_check
      _
    $region19: #{netd_forward.1} parent=1 // pred_check_branch
      %28 = sbr.rel (0) target = $region21
    $region20: #{netd_forward.1} parent=1 // pred_region
      _
    $region21: #{netd_forward.1} parent=1 // pred_fallthru
      _
    // Predicated region
    $region22: #{netd_forward.1} parent=1 // pred_check
      _
    $region23: #{netd_forward.1} parent=1 // pred_check_branch
      %30 = sbr.rel (0) target = $region25
    $region24: #{netd_forward.1} parent=1 // pred_region
      _
    $region25: #{netd_forward.1} parent=1 // pred_fallthru
      _
    // Predicated region
    $region26: #{netd_forward.1} parent=1 // pred_check
      _
    $region27: #{netd_forward.1} parent=1 // pred_check_branch
      %32 = sbr.rel (0) target = $region29
    $region28: #{netd_forward.1} parent=1 // pred_region
      _
    $region29: #{netd_forward.1} parent=1 // pred_fallthru
      _
    // Predicated region
    $region30: #{netd_forward.1} parent=1 // pred_check
      _
    $region31: #{netd_forward.1} parent=1 // pred_check_branch
      %34 = sbr.rel (0) target = $region33
    $region32: #{netd_forward.1} parent=1 // pred_region
      _
    $region33: #{netd_forward.1} parent=1 // pred_fallthru
      _
    // Predicated region
    $region34: #{netd_forward.1} parent=1 // pred_check
      _
    $region35: #{netd_forward.1} parent=1 // pred_check_branch
      %36 = sbr.rel (0) target = $region37
    $region36: #{netd_forward.1} parent=1 // pred_region
      _
    $region37: #{netd_forward.1} parent=1 // pred_fallthru
      _
    // Predicated region
    $region38: #{netd_forward.1} parent=1 // pred_check
      _
    $region39: #{netd_forward.1} parent=1 // pred_check_branch
      %38 = sbr.rel (0) target = $region41
    $region40: #{netd_forward.1} parent=1 // pred_region
      _
    $region41: #{netd_forward.1} parent=1 // pred_fallthru
      _
    // Predicated region
    $region42: #{netd_forward.1} parent=1 // pred_check
      _
    $region43: #{netd_forward.1} parent=1 // pred_check_branch
      %40 = sbr.rel (0) target = $region45
    $region44: #{netd_forward.1} parent=1 // pred_region
      _
    $region45: #{netd_forward.1} parent=1 // pred_fallthru
      _
    %v41 = vld [vmem:[%s0] sm:$0xff]
    %v42 = vld [vmem:[%s0 + $0x8] sm:$0xff]
    %v43 = vld [vmem:[%s0 + $0x18] sm:$0xff]
    %v44 = vld [vmem:[%s0 + $0x20] sm:$0xff]
    %v45 = vld [vmem:[%s0 + $0x30] sm:$0xff]
    %v46 = vld [vmem:[%s0 + $0x38] sm:$0xff]
    %v47 = vld [vmem:[%s0 + $0x48] sm:$0xff]
    %v48 = vld [vmem:[%s0 + $0x50] sm:$0xff]
    %v49 = vld [vmem:[%s0 + $0x60] sm:$0xff]
    %v50 = vld [vmem:[%s0 + $0x68] sm:$0xff]
    %v51 = vld [vmem:[%s0 + $0x78] sm:$0xff]
    %v52 = vld [vmem:[%s0 + $0x80] sm:$0xff]
    %v53 = vld [vmem:[%s0 + $0x90] sm:$0xff]
    %v54 = vld [vmem:[%s0 + $0x98] sm:$0xff]
    %v55 = vld [vmem:[%s0 + $0xa8] sm:$0xff]
    %v56 = vld [vmem:[%s0 + $0xb0] sm:$0xff]
    %v57 = vld [vmem:[%s0 + $0xc0] sm:$0xff]
    %v58 = vld [vmem:[%s0 + $0xc8] sm:$0xff]
    %v59 = vld [vmem:[%s0 + $0xd8] sm:$0xff]
    %v60 = vld [vmem:[%s0 + $0xe0] sm:$0xff]
    %v61 = vld [vmem:[%s0 + $0xf0] sm:$0xff]
    %v62 = vld [vmem:[%s0 + $0xf8] sm:$0xff]
    %v63 = vld [vmem:[%s0 + $0x108] sm:$0xff]
    %v64 = vld [vmem:[%s0 + $0x110] sm:$0xff]
    %v65 = vld [vmem:[%s0 + $0x120] sm:$0xff]
    %v66 = vld [vmem:[%s0 + $0x128] sm:$0xff]
    %v67 = vld [vmem:[%s0 + $0x138] sm:$0xff]
    %v68 = vld [vmem:[%s0 + $0x140] sm:$0xff]
    %v69 = vld [vmem:[%s0 + $0x150] sm:$0xff]
    %v70 = vld [vmem:[%s0 + $0x158] sm:$0xff]
    %v71 = vld [vmem:[%s0 + $0x168] sm:$0xff]
    %v72 = vld [vmem:[%s0 + $0x170] sm:$0xff]
    %v73 = vld [vmem:[%s0 + $0x1c8] sm:$0xff]
    %v74 = vld [vmem:[%s0 + $0x1d0] sm:$0xff]
    %v75 = vld [vmem:[%s0 + $0x1e0] sm:$0xff]
    %v76 = vld [vmem:[%s0 + $0x1e8] sm:$0xff]
    %v77 = vld [vmem:[%s0 + $0x1f8] sm:$0xff]
    %v78 = vld [vmem:[%s0 + $0x200] sm:$0xff]
    %v79 = vld [vmem:[%s0 + $0x210] sm:$0xff]
    %v80 = vld [vmem:[%s0 + $0x218] sm:$0xff]
    %v81 = vld [vmem:[%s0 + $0x228] sm:$0xff]
    %v82 = vld [vmem:[%s0 + $0x230] sm:$0xff]
    %v83 = vld [vmem:[%s0 + $0x240] sm:$0xff]
    %v84 = vld [vmem:[%s0 + $0x248] sm:$0xff]
    %v85 = vld [vmem:[%s0 + $0x258] sm:$0xff]
    %v86 = vld [vmem:[%s0 + $0x260] sm:$0xff]
    %v87 = vld [vmem:[%s0 + $0x270] sm:$0xff]
    %v88 = vld [vmem:[%s0 + $0x278] sm:$0xff]
    %v89 = vld [vmem:[%s0 + $0x288] sm:$0xff]
    %v90 = vld [vmem:[%s0 + $0x290] sm:$0xff]
    %v91 = vld [vmem:[%s0 + $0x2a0] sm:$0xff]
    %v92 = vld [vmem:[%s0 + $0x2a8] sm:$0xff]
    %v93 = vld [vmem:[%s0 + $0x2b8] sm:$0xff]
    %v94 = vld [vmem:[%s0 + $0x2c0] sm:$0xff]
    %v95 = vld [vmem:[%s0 + $0x2d0] sm:$0xff]
    %v96 = vld [vmem:[%s0 + $0x2d8] sm:$0xff]
    %v97 = vld [vmem:[%s0 + $0x2e8] sm:$0xff]
    %v98 = vld [vmem:[%s0 + $0x2f0] sm:$0xff]
    %v99 = vld [vmem:[%s0 + $0x300] sm:$0xff]
    %v100 = vld [vmem:[%s0 + $0x308] sm:$0xff]
    %v101 = vld [vmem:[%s0 + $0x318] sm:$0xff]
    %v102 = vld [vmem:[%s0 + $0x320] sm:$0xff]
    %v103 = vld [vmem:[%s0 + $0x330] sm:$0xff]
    %v104 = vld [vmem:[%s0 + $0x338] sm:$0xff]
    %v105 = vld [vmem:[%s1] sm:$0x7]
    %v106 = vld [vmem:[%s0 + $0x1] sm:$0xff]
    %v107 = vld [vmem:[%s0 + $0x9] sm:$0xff]
    %v108 = vld [vmem:[%s0 + $0x19] sm:$0xff]
    %v109 = vld [vmem:[%s0 + $0x21] sm:$0xff]
    %v110 = vld [vmem:[%s0 + $0x31] sm:$0xff]
    %v111 = vld [vmem:[%s0 + $0x39] sm:$0xff]
    %v112 = vld [vmem:[%s0 + $0x49] sm:$0xff]
    %v113 = vld [vmem:[%s0 + $0x51] sm:$0xff]
    %v114 = vld [vmem:[%s0 + $0x61] sm:$0xff]
    %v115 = vld [vmem:[%s0 + $0x69] sm:$0xff]
    %v116 = vld [vmem:[%s0 + $0x79] sm:$0xff]
    %v117 = vld [vmem:[%s0 + $0x81] sm:$0xff]
    %v118 = vld [vmem:[%s0 + $0x91] sm:$0xff]
    %v119 = vld [vmem:[%s0 + $0x99] sm:$0xff]
    %v120 = vld [vmem:[%s0 + $0xa9] sm:$0xff]
    %v121 = vld [vmem:[%s0 + $0xb1] sm:$0xff]
    %v122 = vld [vmem:[%s0 + $0xc1] sm:$0xff]
    %v123 = vld [vmem:[%s0 + $0xc9] sm:$0xff]
    %v124 = vld [vmem:[%s0 + $0xd9] sm:$0xff]
    %v125 = vld [vmem:[%s0 + $0xe1] sm:$0xff]
    %v126 = vld [vmem:[%s0 + $0xf1] sm:$0xff]
    %v127 = vld [vmem:[%s0 + $0xf9] sm:$0xff]
    %v128 = vld [vmem:[%s0 + $0x109] sm:$0xff]
    %v129 = vld [vmem:[%s0 + $0x111] sm:$0xff]
    %v130 = vld [vmem:[%s0 + $0x121] sm:$0xff]
    %v131 = vld [vmem:[%s0 + $0x129] sm:$0xff]
    %v132 = vld [vmem:[%s0 + $0x139] sm:$0xff]
    %v133 = vld [vmem:[%s0 + $0x141] sm:$0xff]
    %v134 = vld [vmem:[%s0 + $0x151] sm:$0xff]
    %v135 = vld [vmem:[%s0 + $0x159] sm:$0xff]
    %v136 = vld [vmem:[%s0 + $0x169] sm:$0xff]
    %v137 = vld [vmem:[%s0 + $0x171] sm:$0xff]
    %v138 = vld [vmem:[%s0 + $0x1c9] sm:$0xff]
    %v139 = vld [vmem:[%s0 + $0x1d1] sm:$0xff]
    %v140 = vld [vmem:[%s0 + $0x1e1] sm:$0xff]
    %v141 = vld [vmem:[%s0 + $0x1e9] sm:$0xff]
    %v142 = vld [vmem:[%s0 + $0x1f9] sm:$0xff]
    %v143 = vld [vmem:[%s0 + $0x201] sm:$0xff]
    %v144 = vld [vmem:[%s0 + $0x211] sm:$0xff]
    %v145 = vld [vmem:[%s0 + $0x219] sm:$0xff]
    %v146 = vld [vmem:[%s0 + $0x229] sm:$0xff]
    %v147 = vld [vmem:[%s0 + $0x231] sm:$0xff]
    %v148 = vld [vmem:[%s0 + $0x241] sm:$0xff]
    %v149 = vld [vmem:[%s0 + $0x249] sm:$0xff]
    %v150 = vld [vmem:[%s0 + $0x259] sm:$0xff]
    %v151 = vld [vmem:[%s0 + $0x261] sm:$0xff]
    %v152 = vld [vmem:[%s0 + $0x271] sm:$0xff]
    %v153 = vld [vmem:[%s0 + $0x279] sm:$0xff]
    %v154 = vld [vmem:[%s0 + $0x289] sm:$0xff]
    %v155 = vld [vmem:[%s0 + $0x291] sm:$0xff]
    %v156 = vld [vmem:[%s0 + $0x2a1] sm:$0xff]
    %v157 = vld [vmem:[%s0 + $0x2a9] sm:$0xff]
    %v158 = vld [vmem:[%s0 + $0x2b9] sm:$0xff]
    %v159 = vld [vmem:[%s0 + $0x2c1] sm:$0xff]
    %v160 = vld [vmem:[%s0 + $0x2d1] sm:$0xff]
    %v161 = vld [vmem:[%s0 + $0x2d9] sm:$0xff]
    %v162 = vld [vmem:[%s0 + $0x2e9] sm:$0xff]
    %v163 = vld [vmem:[%s0 + $0x2f1] sm:$0xff]
    %v164 = vld [vmem:[%s0 + $0x301] sm:$0xff]
    %v165 = vld [vmem:[%s0 + $0x309] sm:$0xff]
    %v166 = vld [vmem:[%s0 + $0x319] sm:$0xff]
    %v167 = vld [vmem:[%s0 + $0x321] sm:$0xff]
    %v168 = vld [vmem:[%s0 + $0x331] sm:$0xff]
    %v169 = vld [vmem:[%s0 + $0x339] sm:$0xff]
    %s170 = scalar_lea.vmem %s1, 4
    %v171 = vld [vmem:[%s170] sm:$0x7]
    %vm172 = vcmask 23552
    %v174 = vsel %vm172, %v106, 0
    %v177 = vsel %vm172, %v107, 0
    %v180 = vsel %vm172, %v108, 0
    %v183 = vsel %vm172, %v109, 0
    %v186 = vsel %vm172, %v110, 0
    %v189 = vsel %vm172, %v111, 0
    %v192 = vsel %vm172, %v112, 0
    %v195 = vsel %vm172, %v113, 0
    %v198 = vsel %vm172, %v114, 0
    %v201 = vsel %vm172, %v115, 0
    %v204 = vsel %vm172, %v116, 0
    %v207 = vsel %vm172, %v117, 0
    %v210 = vsel %vm172, %v118, 0
    %v213 = vsel %vm172, %v119, 0
    %v216 = vsel %vm172, %v120, 0
    %v219 = vsel %vm172, %v121, 0
    %v222 = vsel %vm172, %v122, 0
    %v225 = vsel %vm172, %v123, 0
    %v228 = vsel %vm172, %v124, 0
    %v231 = vsel %vm172, %v125, 0
    %v234 = vsel %vm172, %v126, 0
    %v237 = vsel %vm172, %v127, 0
    %v240 = vsel %vm172, %v128, 0
    %v243 = vsel %vm172, %v129, 0
    %v246 = vsel %vm172, %v130, 0
    %v249 = vsel %vm172, %v131, 0
    %v252 = vsel %vm172, %v132, 0
    %v255 = vsel %vm172, %v133, 0
    %v258 = vsel %vm172, %v134, 0
    %v261 = vsel %vm172, %v135, 0
    %v264 = vsel %vm172, %v136, 0
    %v267 = vsel %vm172, %v137, 0
    %v270 = vsel %vm172, %v138, 0
    %v273 = vsel %vm172, %v139, 0
    %v276 = vsel %vm172, %v140, 0
    %v279 = vsel %vm172, %v141, 0
    %v282 = vsel %vm172, %v142, 0
    %v285 = vsel %vm172, %v143, 0
    %v288 = vsel %vm172, %v144, 0
    %v291 = vsel %vm172, %v145, 0
    %v294 = vsel %vm172, %v146, 0
    %v297 = vsel %vm172, %v147, 0
    %v300 = vsel %vm172, %v148, 0
    %v303 = vsel %vm172, %v149, 0
    %v306 = vsel %vm172, %v150, 0
    %v309 = vsel %vm172, %v151, 0
    %v312 = vsel %vm172, %v152, 0
    %v315 = vsel %vm172, %v153, 0
    %v318 = vsel %vm172, %v154, 0
    %v321 = vsel %vm172, %v155, 0
    %v324 = vsel %vm172, %v156, 0
    %v327 = vsel %vm172, %v157, 0
    %v330 = vsel %vm172, %v158, 0
    %v333 = vsel %vm172, %v159, 0
    %v336 = vsel %vm172, %v160, 0
    %v339 = vsel %vm172, %v161, 0
    %v342 = vsel %vm172, %v162, 0
    %v345 = vsel %vm172, %v163, 0
    %v348 = vsel %vm172, %v164, 0
    %v351 = vsel %vm172, %v165, 0
    %v354 = vsel %vm172, %v166, 0
    %v357 = vsel %vm172, %v167, 0
    %v360 = vsel %vm172, %v168, 0
    %v363 = vsel %vm172, %v169, 0
    %vm365 = vcmask 1042432
    %v367 = vsel %vm365, %v171, 0
    %369 = vmatpush.msra.mxu0 0.0
    %370 = vmatpush.msra.mxu0 0.0
    %371 = vmatpush.msra.mxu0 0.0
    %372 = vmatpush.msra.mxu0 0.0
    %373 = vmatpush.msra.mxu0 0.0
    %374 = vmatpush.msra.mxu0 0.0
    %375 = vmatpush.msra.mxu0 0.0
    %376 = vmatpush.msra.mxu0 0.0
    %377 = vmatpush.msra.mxu0 0.0
    %378 = vmatpush.msra.mxu0 0.0
    %379 = vmatpush.msra.mxu0 0.0
    %380 = vmatpush.msra.mxu0 0.0
    %381 = vmatpush.msra.mxu0 0.0
    %382 = vmatpush.msra.mxu0 0.0
    %383 = vmatpush.msra.mxu0 0.0
    %384 = vmatpush.msra.mxu0 %v367
    %385 = vmatmul.f32.gmra.mxu0 %v174
    %v386 = vpop.f32.mrf.mxu0
    %v387 = vadd.f32 0.0, %v386
    %388 = vmatmul.f32.gmra.mxu0 %v177
    %v389 = vpop.f32.mrf.mxu0
    %v390 = vadd.f32 0.0, %v389
    %391 = vmatmul.f32.gmra.mxu0 %v180
    %v392 = vpop.f32.mrf.mxu0
    %v393 = vadd.f32 0.0, %v392
    %394 = vmatmul.f32.gmra.mxu0 %v183
    %v395 = vpop.f32.mrf.mxu0
    %v396 = vadd.f32 0.0, %v395
    %397 = vmatmul.f32.gmra.mxu0 %v186
    %v398 = vpop.f32.mrf.mxu0
    %v399 = vadd.f32 0.0, %v398
    %400 = vmatmul.f32.gmra.mxu0 %v189
    %v401 = vpop.f32.mrf.mxu0
    %v402 = vadd.f32 0.0, %v401
    %403 = vmatmul.f32.gmra.mxu0 %v192
    %v404 = vpop.f32.mrf.mxu0
    %v405 = vadd.f32 0.0, %v404
    %406 = vmatmul.f32.gmra.mxu0 %v195
    %v407 = vpop.f32.mrf.mxu0
    %v408 = vadd.f32 0.0, %v407
    %409 = vmatmul.f32.gmra.mxu0 %v198
    %v410 = vpop.f32.mrf.mxu0
    %v411 = vadd.f32 0.0, %v410
    %412 = vmatmul.f32.gmra.mxu0 %v201
    %v413 = vpop.f32.mrf.mxu0
    %v414 = vadd.f32 0.0, %v413
    %415 = vmatmul.f32.gmra.mxu0 %v204
    %v416 = vpop.f32.mrf.mxu0
    %v417 = vadd.f32 0.0, %v416
    %418 = vmatmul.f32.gmra.mxu0 %v207
    %v419 = vpop.f32.mrf.mxu0
    %v420 = vadd.f32 0.0, %v419
    %421 = vmatmul.f32.gmra.mxu0 %v210
    %v422 = vpop.f32.mrf.mxu0
    %v423 = vadd.f32 0.0, %v422
    %424 = vmatmul.f32.gmra.mxu0 %v213
    %v425 = vpop.f32.mrf.mxu0
    %v426 = vadd.f32 0.0, %v425
    %427 = vmatmul.f32.gmra.mxu0 %v216
    %v428 = vpop.f32.mrf.mxu0
    %v429 = vadd.f32 0.0, %v428
    %430 = vmatmul.f32.gmra.mxu0 %v219
    %v431 = vpop.f32.mrf.mxu0
    %v432 = vadd.f32 0.0, %v431
    %433 = vmatmul.f32.gmra.mxu0 %v222
    %v434 = vpop.f32.mrf.mxu0
    %v435 = vadd.f32 0.0, %v434
    %436 = vmatmul.f32.gmra.mxu0 %v225
    %v437 = vpop.f32.mrf.mxu0
    %v438 = vadd.f32 0.0, %v437
    %439 = vmatmul.f32.gmra.mxu0 %v228
    %v440 = vpop.f32.mrf.mxu0
    %v441 = vadd.f32 0.0, %v440
    %442 = vmatmul.f32.gmra.mxu0 %v231
    %v443 = vpop.f32.mrf.mxu0
    %v444 = vadd.f32 0.0, %v443
    %445 = vmatmul.f32.gmra.mxu0 %v234
    %v446 = vpop.f32.mrf.mxu0
    %v447 = vadd.f32 0.0, %v446
    %448 = vmatmul.f32.gmra.mxu0 %v237
    %v449 = vpop.f32.mrf.mxu0
    %v450 = vadd.f32 0.0, %v449
    %451 = vmatmul.f32.gmra.mxu0 %v240
    %v452 = vpop.f32.mrf.mxu0
    %v453 = vadd.f32 0.0, %v452
    %454 = vmatmul.f32.gmra.mxu0 %v243
    %v455 = vpop.f32.mrf.mxu0
    %v456 = vadd.f32 0.0, %v455
    %457 = vmatmul.f32.gmra.mxu0 %v246
    %v458 = vpop.f32.mrf.mxu0
    %v459 = vadd.f32 0.0, %v458
    %460 = vmatmul.f32.gmra.mxu0 %v249
    %v461 = vpop.f32.mrf.mxu0
    %v462 = vadd.f32 0.0, %v461
    %463 = vmatmul.f32.gmra.mxu0 %v252
    %v464 = vpop.f32.mrf.mxu0
    %v465 = vadd.f32 0.0, %v464
    %466 = vmatmul.f32.gmra.mxu0 %v255
    %v467 = vpop.f32.mrf.mxu0
    %v468 = vadd.f32 0.0, %v467
    %469 = vmatmul.f32.gmra.mxu0 %v258
    %v470 = vpop.f32.mrf.mxu0
    %v471 = vadd.f32 0.0, %v470
    %472 = vmatmul.f32.gmra.mxu0 %v261
    %v473 = vpop.f32.mrf.mxu0
    %v474 = vadd.f32 0.0, %v473
    %475 = vmatmul.f32.gmra.mxu0 %v264
    %v476 = vpop.f32.mrf.mxu0
    %v477 = vadd.f32 0.0, %v476
    %478 = vmatmul.f32.gmra.mxu0 %v267
    %v479 = vpop.f32.mrf.mxu0
    %v480 = vadd.f32 0.0, %v479
    %481 = vmatmul.f32.gmra.mxu0 %v270
    %v482 = vpop.f32.mrf.mxu0
    %v483 = vadd.f32 0.0, %v482
    %484 = vmatmul.f32.gmra.mxu0 %v273
    %v485 = vpop.f32.mrf.mxu0
    %v486 = vadd.f32 0.0, %v485
    %487 = vmatmul.f32.gmra.mxu0 %v276
    %v488 = vpop.f32.mrf.mxu0
    %v489 = vadd.f32 0.0, %v488
    %490 = vmatmul.f32.gmra.mxu0 %v279
    %v491 = vpop.f32.mrf.mxu0
    %v492 = vadd.f32 0.0, %v491
    %493 = vmatmul.f32.gmra.mxu0 %v282
    %v494 = vpop.f32.mrf.mxu0
    %v495 = vadd.f32 0.0, %v494
    %496 = vmatmul.f32.gmra.mxu0 %v285
    %v497 = vpop.f32.mrf.mxu0
    %v498 = vadd.f32 0.0, %v497
    %499 = vmatmul.f32.gmra.mxu0 %v288
    %v500 = vpop.f32.mrf.mxu0
    %v501 = vadd.f32 0.0, %v500
    %502 = vmatmul.f32.gmra.mxu0 %v291
    %v503 = vpop.f32.mrf.mxu0
    %v504 = vadd.f32 0.0, %v503
    %505 = vmatmul.f32.gmra.mxu0 %v294
    %v506 = vpop.f32.mrf.mxu0
    %v507 = vadd.f32 0.0, %v506
    %508 = vmatmul.f32.gmra.mxu0 %v297
    %v509 = vpop.f32.mrf.mxu0
    %v510 = vadd.f32 0.0, %v509
    %511 = vmatmul.f32.gmra.mxu0 %v300
    %v512 = vpop.f32.mrf.mxu0
    %v513 = vadd.f32 0.0, %v512
    %514 = vmatmul.f32.gmra.mxu0 %v303
    %v515 = vpop.f32.mrf.mxu0
    %v516 = vadd.f32 0.0, %v515
    %517 = vmatmul.f32.gmra.mxu0 %v306
    %v518 = vpop.f32.mrf.mxu0
    %v519 = vadd.f32 0.0, %v518
    %520 = vmatmul.f32.gmra.mxu0 %v309
    %v521 = vpop.f32.mrf.mxu0
    %v522 = vadd.f32 0.0, %v521
    %523 = vmatmul.f32.gmra.mxu0 %v312
    %v524 = vpop.f32.mrf.mxu0
    %v525 = vadd.f32 0.0, %v524
    %526 = vmatmul.f32.gmra.mxu0 %v315
    %v527 = vpop.f32.mrf.mxu0
    %v528 = vadd.f32 0.0, %v527
    %529 = vmatmul.f32.gmra.mxu0 %v318
    %v530 = vpop.f32.mrf.mxu0
    %v531 = vadd.f32 0.0, %v530
    %532 = vmatmul.f32.gmra.mxu0 %v321
    %v533 = vpop.f32.mrf.mxu0
    %v534 = vadd.f32 0.0, %v533
    %535 = vmatmul.f32.gmra.mxu0 %v324
    %v536 = vpop.f32.mrf.mxu0
    %v537 = vadd.f32 0.0, %v536
    %538 = vmatmul.f32.gmra.mxu0 %v327
    %v539 = vpop.f32.mrf.mxu0
    %v540 = vadd.f32 0.0, %v539
    %541 = vmatmul.f32.gmra.mxu0 %v330
    %v542 = vpop.f32.mrf.mxu0
    %v543 = vadd.f32 0.0, %v542
    %544 = vmatmul.f32.gmra.mxu0 %v333
    %v545 = vpop.f32.mrf.mxu0
    %v546 = vadd.f32 0.0, %v545
    %547 = vmatmul.f32.gmra.mxu0 %v336
    %v548 = vpop.f32.mrf.mxu0
    %v549 = vadd.f32 0.0, %v548
    %550 = vmatmul.f32.gmra.mxu0 %v339
    %v551 = vpop.f32.mrf.mxu0
    %v552 = vadd.f32 0.0, %v551
    %553 = vmatmul.f32.gmra.mxu0 %v342
    %v554 = vpop.f32.mrf.mxu0
    %v555 = vadd.f32 0.0, %v554
    %556 = vmatmul.f32.gmra.mxu0 %v345
    %v557 = vpop.f32.mrf.mxu0
    %v558 = vadd.f32 0.0, %v557
    %559 = vmatmul.f32.gmra.mxu0 %v348
    %v560 = vpop.f32.mrf.mxu0
    %v561 = vadd.f32 0.0, %v560
    %562 = vmatmul.f32.gmra.mxu0 %v351
    %v563 = vpop.f32.mrf.mxu0
    %v564 = vadd.f32 0.0, %v563
    %565 = vmatmul.f32.gmra.mxu0 %v354
    %v566 = vpop.f32.mrf.mxu0
    %v567 = vadd.f32 0.0, %v566
    %568 = vmatmul.f32.gmra.mxu0 %v357
    %v569 = vpop.f32.mrf.mxu0
    %v570 = vadd.f32 0.0, %v569
    %571 = vmatmul.f32.gmra.mxu0 %v360
    %v572 = vpop.f32.mrf.mxu0
    %v573 = vadd.f32 0.0, %v572
    %574 = vmatmul.f32.gmra.mxu0 %v363
    %v575 = vpop.f32.mrf.mxu0
    %v576 = vadd.f32 0.0, %v575
    %577 = vdwg.mxu0
    %v579 = vsel %vm172, %v41, 0
    %v582 = vsel %vm172, %v42, 0
    %v585 = vsel %vm172, %v43, 0
    %v588 = vsel %vm172, %v44, 0
    %v591 = vsel %vm172, %v45, 0
    %v594 = vsel %vm172, %v46, 0
    %v597 = vsel %vm172, %v47, 0
    %v600 = vsel %vm172, %v48, 0
    %v603 = vsel %vm172, %v49, 0
    %v606 = vsel %vm172, %v50, 0
    %v609 = vsel %vm172, %v51, 0
    %v612 = vsel %vm172, %v52, 0
    %v615 = vsel %vm172, %v53, 0
    %v618 = vsel %vm172, %v54, 0
    %v621 = vsel %vm172, %v55, 0
    %v624 = vsel %vm172, %v56, 0
    %v627 = vsel %vm172, %v57, 0
    %v630 = vsel %vm172, %v58, 0
    %v633 = vsel %vm172, %v59, 0
    %v636 = vsel %vm172, %v60, 0
    %v639 = vsel %vm172, %v61, 0
    %v642 = vsel %vm172, %v62, 0
    %v645 = vsel %vm172, %v63, 0
    %v648 = vsel %vm172, %v64, 0
    %v651 = vsel %vm172, %v65, 0
    %v654 = vsel %vm172, %v66, 0
    %v657 = vsel %vm172, %v67, 0
    %v660 = vsel %vm172, %v68, 0
    %v663 = vsel %vm172, %v69, 0
    %v666 = vsel %vm172, %v70, 0
    %v669 = vsel %vm172, %v71, 0
    %v672 = vsel %vm172, %v72, 0
    %v675 = vsel %vm172, %v73, 0
    %v678 = vsel %vm172, %v74, 0
    %v681 = vsel %vm172, %v75, 0
    %v684 = vsel %vm172, %v76, 0
    %v687 = vsel %vm172, %v77, 0
    %v690 = vsel %vm172, %v78, 0
    %v693 = vsel %vm172, %v79, 0
    %v696 = vsel %vm172, %v80, 0
    %v699 = vsel %vm172, %v81, 0
    %v702 = vsel %vm172, %v82, 0
    %v705 = vsel %vm172, %v83, 0
    %v708 = vsel %vm172, %v84, 0
    %v711 = vsel %vm172, %v85, 0
    %v714 = vsel %vm172, %v86, 0
    %v717 = vsel %vm172, %v87, 0
    %v720 = vsel %vm172, %v88, 0
    %v723 = vsel %vm172, %v89, 0
    %v726 = vsel %vm172, %v90, 0
    %v729 = vsel %vm172, %v91, 0
    %v732 = vsel %vm172, %v92, 0
    %v735 = vsel %vm172, %v93, 0
    %v738 = vsel %vm172, %v94, 0
    %v741 = vsel %vm172, %v95, 0
    %v744 = vsel %vm172, %v96, 0
    %v747 = vsel %vm172, %v97, 0
    %v750 = vsel %vm172, %v98, 0
    %v753 = vsel %vm172, %v99, 0
    %v756 = vsel %vm172, %v100, 0
    %v759 = vsel %vm172, %v101, 0
    %v762 = vsel %vm172, %v102, 0
    %v765 = vsel %vm172, %v103, 0
    %v768 = vsel %vm172, %v104, 0
    %v771 = vsel %vm365, %v105, 0
    %773 = vmatpush.msra.mxu0 0.0
    %774 = vmatpush.msra.mxu0 0.0
    %775 = vmatpush.msra.mxu0 0.0
    %776 = vmatpush.msra.mxu0 0.0
    %777 = vmatpush.msra.mxu0 0.0
    %778 = vmatpush.msra.mxu0 0.0
    %779 = vmatpush.msra.mxu0 0.0
    %780 = vmatpush.msra.mxu0 0.0
    %781 = vmatpush.msra.mxu0 0.0
    %782 = vmatpush.msra.mxu0 0.0
    %783 = vmatpush.msra.mxu0 0.0
    %784 = vmatpush.msra.mxu0 0.0
    %785 = vmatpush.msra.mxu0 0.0
    %786 = vmatpush.msra.mxu0 0.0
    %787 = vmatpush.msra.mxu0 0.0
    %788 = vmatpush.msra.mxu0 %v771
    %789 = vmatmul.f32.gmra.mxu0 %v579
    %v790 = vpop.f32.mrf.mxu0
    %v791 = vadd.f32 %v387, %v790
    %792 = vmatmul.f32.gmra.mxu0 %v582
    %v793 = vpop.f32.mrf.mxu0
    %v794 = vadd.f32 %v390, %v793
    %795 = vmatmul.f32.gmra.mxu0 %v585
    %v796 = vpop.f32.mrf.mxu0
    %v797 = vadd.f32 %v393, %v796
    %798 = vmatmul.f32.gmra.mxu0 %v588
    %v799 = vpop.f32.mrf.mxu0
    %v800 = vadd.f32 %v396, %v799
    %801 = vmatmul.f32.gmra.mxu0 %v591
    %v802 = vpop.f32.mrf.mxu0
    %v803 = vadd.f32 %v399, %v802
    %804 = vmatmul.f32.gmra.mxu0 %v594
    %v805 = vpop.f32.mrf.mxu0
    %v806 = vadd.f32 %v402, %v805
    %807 = vmatmul.f32.gmra.mxu0 %v597
    %v808 = vpop.f32.mrf.mxu0
    %v809 = vadd.f32 %v405, %v808
    %810 = vmatmul.f32.gmra.mxu0 %v600
    %v811 = vpop.f32.mrf.mxu0
    %v812 = vadd.f32 %v408, %v811
    %813 = vmatmul.f32.gmra.mxu0 %v603
    %v814 = vpop.f32.mrf.mxu0
    %v815 = vadd.f32 %v411, %v814
    %816 = vmatmul.f32.gmra.mxu0 %v606
    %v817 = vpop.f32.mrf.mxu0
    %v818 = vadd.f32 %v414, %v817
    %819 = vmatmul.f32.gmra.mxu0 %v609
    %v820 = vpop.f32.mrf.mxu0
    %v821 = vadd.f32 %v417, %v820
    %822 = vmatmul.f32.gmra.mxu0 %v612
    %v823 = vpop.f32.mrf.mxu0
    %v824 = vadd.f32 %v420, %v823
    %825 = vmatmul.f32.gmra.mxu0 %v615
    %v826 = vpop.f32.mrf.mxu0
    %v827 = vadd.f32 %v423, %v826
    %828 = vmatmul.f32.gmra.mxu0 %v618
    %v829 = vpop.f32.mrf.mxu0
    %v830 = vadd.f32 %v426, %v829
    %831 = vmatmul.f32.gmra.mxu0 %v621
    %v832 = vpop.f32.mrf.mxu0
    %v833 = vadd.f32 %v429, %v832
    %834 = vmatmul.f32.gmra.mxu0 %v624
    %v835 = vpop.f32.mrf.mxu0
    %v836 = vadd.f32 %v432, %v835
    %837 = vmatmul.f32.gmra.mxu0 %v627
    %v838 = vpop.f32.mrf.mxu0
    %v839 = vadd.f32 %v435, %v838
    %840 = vmatmul.f32.gmra.mxu0 %v630
    %v841 = vpop.f32.mrf.mxu0
    %v842 = vadd.f32 %v438, %v841
    %843 = vmatmul.f32.gmra.mxu0 %v633
    %v844 = vpop.f32.mrf.mxu0
    %v845 = vadd.f32 %v441, %v844
    %846 = vmatmul.f32.gmra.mxu0 %v636
    %v847 = vpop.f32.mrf.mxu0
    %v848 = vadd.f32 %v444, %v847
    %849 = vmatmul.f32.gmra.mxu0 %v639
    %v850 = vpop.f32.mrf.mxu0
    %v851 = vadd.f32 %v447, %v850
    %852 = vmatmul.f32.gmra.mxu0 %v642
    %v853 = vpop.f32.mrf.mxu0
    %v854 = vadd.f32 %v450, %v853
    %855 = vmatmul.f32.gmra.mxu0 %v645
    %v856 = vpop.f32.mrf.mxu0
    %v857 = vadd.f32 %v453, %v856
    %858 = vmatmul.f32.gmra.mxu0 %v648
    %v859 = vpop.f32.mrf.mxu0
    %v860 = vadd.f32 %v456, %v859
    %861 = vmatmul.f32.gmra.mxu0 %v651
    %v862 = vpop.f32.mrf.mxu0
    %v863 = vadd.f32 %v459, %v862
    %864 = vmatmul.f32.gmra.mxu0 %v654
    %v865 = vpop.f32.mrf.mxu0
    %v866 = vadd.f32 %v462, %v865
    %867 = vmatmul.f32.gmra.mxu0 %v657
    %v868 = vpop.f32.mrf.mxu0
    %v869 = vadd.f32 %v465, %v868
    %870 = vmatmul.f32.gmra.mxu0 %v660
    %v871 = vpop.f32.mrf.mxu0
    %v872 = vadd.f32 %v468, %v871
    %873 = vmatmul.f32.gmra.mxu0 %v663
    %v874 = vpop.f32.mrf.mxu0
    %v875 = vadd.f32 %v471, %v874
    %876 = vmatmul.f32.gmra.mxu0 %v666
    %v877 = vpop.f32.mrf.mxu0
    %v878 = vadd.f32 %v474, %v877
    %879 = vmatmul.f32.gmra.mxu0 %v669
    %v880 = vpop.f32.mrf.mxu0
    %v881 = vadd.f32 %v477, %v880
    %882 = vmatmul.f32.gmra.mxu0 %v672
    %v883 = vpop.f32.mrf.mxu0
    %v884 = vadd.f32 %v480, %v883
    %885 = vmatmul.f32.gmra.mxu0 %v675
    %v886 = vpop.f32.mrf.mxu0
    %v887 = vadd.f32 %v483, %v886
    %888 = vmatmul.f32.gmra.mxu0 %v678
    %v889 = vpop.f32.mrf.mxu0
    %v890 = vadd.f32 %v486, %v889
    %891 = vmatmul.f32.gmra.mxu0 %v681
    %v892 = vpop.f32.mrf.mxu0
    %v893 = vadd.f32 %v489, %v892
    %894 = vmatmul.f32.gmra.mxu0 %v684
    %v895 = vpop.f32.mrf.mxu0
    %v896 = vadd.f32 %v492, %v895
    %897 = vmatmul.f32.gmra.mxu0 %v687
    %v898 = vpop.f32.mrf.mxu0
    %v899 = vadd.f32 %v495, %v898
    %900 = vmatmul.f32.gmra.mxu0 %v690
    %v901 = vpop.f32.mrf.mxu0
    %v902 = vadd.f32 %v498, %v901
    %903 = vmatmul.f32.gmra.mxu0 %v693
    %v904 = vpop.f32.mrf.mxu0
    %v905 = vadd.f32 %v501, %v904
    %906 = vmatmul.f32.gmra.mxu0 %v696
    %v907 = vpop.f32.mrf.mxu0
    %v908 = vadd.f32 %v504, %v907
    %909 = vmatmul.f32.gmra.mxu0 %v699
    %v910 = vpop.f32.mrf.mxu0
    %v911 = vadd.f32 %v507, %v910
    %912 = vmatmul.f32.gmra.mxu0 %v702
    %v913 = vpop.f32.mrf.mxu0
    %v914 = vadd.f32 %v510, %v913
    %915 = vmatmul.f32.gmra.mxu0 %v705
    %v916 = vpop.f32.mrf.mxu0
    %v917 = vadd.f32 %v513, %v916
    %918 = vmatmul.f32.gmra.mxu0 %v708
    %v919 = vpop.f32.mrf.mxu0
    %v920 = vadd.f32 %v516, %v919
    %921 = vmatmul.f32.gmra.mxu0 %v711
    %v922 = vpop.f32.mrf.mxu0
    %v923 = vadd.f32 %v519, %v922
    %924 = vmatmul.f32.gmra.mxu0 %v714
    %v925 = vpop.f32.mrf.mxu0
    %v926 = vadd.f32 %v522, %v925
    %927 = vmatmul.f32.gmra.mxu0 %v717
    %v928 = vpop.f32.mrf.mxu0
    %v929 = vadd.f32 %v525, %v928
    %930 = vmatmul.f32.gmra.mxu0 %v720
    %v931 = vpop.f32.mrf.mxu0
    %v932 = vadd.f32 %v528, %v931
    %933 = vmatmul.f32.gmra.mxu0 %v723
    %v934 = vpop.f32.mrf.mxu0
    %v935 = vadd.f32 %v531, %v934
    %936 = vmatmul.f32.gmra.mxu0 %v726
    %v937 = vpop.f32.mrf.mxu0
    %v938 = vadd.f32 %v534, %v937
    %939 = vmatmul.f32.gmra.mxu0 %v729
    %v940 = vpop.f32.mrf.mxu0
    %v941 = vadd.f32 %v537, %v940
    %942 = vmatmul.f32.gmra.mxu0 %v732
    %v943 = vpop.f32.mrf.mxu0
    %v944 = vadd.f32 %v540, %v943
    %945 = vmatmul.f32.gmra.mxu0 %v735
    %v946 = vpop.f32.mrf.mxu0
    %v947 = vadd.f32 %v543, %v946
    %948 = vmatmul.f32.gmra.mxu0 %v738
    %v949 = vpop.f32.mrf.mxu0
    %v950 = vadd.f32 %v546, %v949
    %951 = vmatmul.f32.gmra.mxu0 %v741
    %v952 = vpop.f32.mrf.mxu0
    %v953 = vadd.f32 %v549, %v952
    %954 = vmatmul.f32.gmra.mxu0 %v744
    %v955 = vpop.f32.mrf.mxu0
    %v956 = vadd.f32 %v552, %v955
    %957 = vmatmul.f32.gmra.mxu0 %v747
    %v958 = vpop.f32.mrf.mxu0
    %v959 = vadd.f32 %v555, %v958
    %960 = vmatmul.f32.gmra.mxu0 %v750
    %v961 = vpop.f32.mrf.mxu0
    %v962 = vadd.f32 %v558, %v961
    %963 = vmatmul.f32.gmra.mxu0 %v753
    %v964 = vpop.f32.mrf.mxu0
    %v965 = vadd.f32 %v561, %v964
    %966 = vmatmul.f32.gmra.mxu0 %v756
    %v967 = vpop.f32.mrf.mxu0
    %v968 = vadd.f32 %v564, %v967
    %969 = vmatmul.f32.gmra.mxu0 %v759
    %v970 = vpop.f32.mrf.mxu0
    %v971 = vadd.f32 %v567, %v970
    %972 = vmatmul.f32.gmra.mxu0 %v762
    %v973 = vpop.f32.mrf.mxu0
    %v974 = vadd.f32 %v570, %v973
    %975 = vmatmul.f32.gmra.mxu0 %v765
    %v976 = vpop.f32.mrf.mxu0
    %v977 = vadd.f32 %v573, %v976
    %978 = vmatmul.f32.gmra.mxu0 %v768
    %v979 = vpop.f32.mrf.mxu0
    %v980 = vadd.f32 %v576, %v979
    %981 = vdwg.mxu0
    %v982 = vld [vmem:[%s0 + $0x2] sm:$0xff]
    %v983 = vld [vmem:[%s0 + $0xa] sm:$0xff]
    %v984 = vld [vmem:[%s0 + $0x1a] sm:$0xff]
    %v985 = vld [vmem:[%s0 + $0x22] sm:$0xff]
    %v986 = vld [vmem:[%s0 + $0x32] sm:$0xff]
    %v987 = vld [vmem:[%s0 + $0x3a] sm:$0xff]
    %v988 = vld [vmem:[%s0 + $0x4a] sm:$0xff]
    %v989 = vld [vmem:[%s0 + $0x52] sm:$0xff]
    %v990 = vld [vmem:[%s0 + $0x62] sm:$0xff]
    %v991 = vld [vmem:[%s0 + $0x6a] sm:$0xff]
    %v992 = vld [vmem:[%s0 + $0x7a] sm:$0xff]
    %v993 = vld [vmem:[%s0 + $0x82] sm:$0xff]
    %v994 = vld [vmem:[%s0 + $0x92] sm:$0xff]
    %v995 = vld [vmem:[%s0 + $0x9a] sm:$0xff]
    %v996 = vld [vmem:[%s0 + $0xaa] sm:$0xff]
    %v997 = vld [vmem:[%s0 + $0xb2] sm:$0xff]
    %v998 = vld [vmem:[%s0 + $0xc2] sm:$0xff]
    %v999 = vld [vmem:[%s0 + $0xca] sm:$0xff]
    %v1000 = vld [vmem:[%s0 + $0xda] sm:$0xff]
    %v1001 = vld [vmem:[%s0 + $0xe2] sm:$0xff]
    %v1002 = vld [vmem:[%s0 + $0xf2] sm:$0xff]
    %v1003 = vld [vmem:[%s0 + $0xfa] sm:$0xff]
    %v1004 = vld [vmem:[%s0 + $0x10a] sm:$0xff]
    %v1005 = vld [vmem:[%s0 + $0x112] sm:$0xff]
    %v1006 = vld [vmem:[%s0 + $0x122] sm:$0xff]
    %v1007 = vld [vmem:[%s0 + $0x12a] sm:$0xff]
    %v1008 = vld [vmem:[%s0 + $0x13a] sm:$0xff]
    %v1009 = vld [vmem:[%s0 + $0x142] sm:$0xff]
    %v1010 = vld [vmem:[%s0 + $0x152] sm:$0xff]
    %v1011 = vld [vmem:[%s0 + $0x15a] sm:$0xff]
    %v1012 = vld [vmem:[%s0 + $0x16a] sm:$0xff]
    %v1013 = vld [vmem:[%s0 + $0x172] sm:$0xff]
    %v1014 = vld [vmem:[%s0 + $0x1ca] sm:$0xff]
    %v1015 = vld [vmem:[%s0 + $0x1d2] sm:$0xff]
    %v1016 = vld [vmem:[%s0 + $0x1e2] sm:$0xff]
    %v1017 = vld [vmem:[%s0 + $0x1ea] sm:$0xff]
    %v1018 = vld [vmem:[%s0 + $0x1fa] sm:$0xff]
    %v1019 = vld [vmem:[%s0 + $0x202] sm:$0xff]
    %v1020 = vld [vmem:[%s0 + $0x212] sm:$0xff]
    %v1021 = vld [vmem:[%s0 + $0x21a] sm:$0xff]
    %v1022 = vld [vmem:[%s0 + $0x22a] sm:$0xff]
    %v1023 = vld [vmem:[%s0 + $0x232] sm:$0xff]
    %v1024 = vld [vmem:[%s0 + $0x242] sm:$0xff]
    %v1025 = vld [vmem:[%s0 + $0x24a] sm:$0xff]
    %v1026 = vld [vmem:[%s0 + $0x25a] sm:$0xff]
    %v1027 = vld [vmem:[%s0 + $0x262] sm:$0xff]
    %v1028 = vld [vmem:[%s0 + $0x272] sm:$0xff]
    %v1029 = vld [vmem:[%s0 + $0x27a] sm:$0xff]
    %v1030 = vld [vmem:[%s0 + $0x28a] sm:$0xff]
    %v1031 = vld [vmem:[%s0 + $0x292] sm:$0xff]
    %v1032 = vld [vmem:[%s0 + $0x2a2] sm:$0xff]
    %v1033 = vld [vmem:[%s0 + $0x2aa] sm:$0xff]
    %v1034 = vld [vmem:[%s0 + $0x2ba] sm:$0xff]
    %v1035 = vld [vmem:[%s0 + $0x2c2] sm:$0xff]
    %v1036 = vld [vmem:[%s0 + $0x2d2] sm:$0xff]
    %v1037 = vld [vmem:[%s0 + $0x2da] sm:$0xff]
    %v1038 = vld [vmem:[%s0 + $0x2ea] sm:$0xff]
    %v1039 = vld [vmem:[%s0 + $0x2f2] sm:$0xff]
    %v1040 = vld [vmem:[%s0 + $0x302] sm:$0xff]
    %v1041 = vld [vmem:[%s0 + $0x30a] sm:$0xff]
    %v1042 = vld [vmem:[%s0 + $0x31a] sm:$0xff]
    %v1043 = vld [vmem:[%s0 + $0x322] sm:$0xff]
    %v1044 = vld [vmem:[%s0 + $0x332] sm:$0xff]
    %v1045 = vld [vmem:[%s0 + $0x33a] sm:$0xff]
    %s1046 = scalar_lea.vmem %s1, 8
    %v1047 = vld [vmem:[%s1046] sm:$0x7]
    %v1049 = vsel %vm172, %v982, 0
    %v1052 = vsel %vm172, %v983, 0
    %v1055 = vsel %vm172, %v984, 0
    %v1058 = vsel %vm172, %v985, 0
    %v1061 = vsel %vm172, %v986, 0
    %v1064 = vsel %vm172, %v987, 0
    %v1067 = vsel %vm172, %v988, 0
    %v1070 = vsel %vm172, %v989, 0
    %v1073 = vsel %vm172, %v990, 0
    %v1076 = vsel %vm172, %v991, 0
    %v1079 = vsel %vm172, %v992, 0
    %v1082 = vsel %vm172, %v993, 0
    %v1085 = vsel %vm172, %v994, 0
    %v1088 = vsel %vm172, %v995, 0
    %v1091 = vsel %vm172, %v996, 0
    %v1094 = vsel %vm172, %v997, 0
    %v1097 = vsel %vm172, %v998, 0
    %v1100 = vsel %vm172, %v999, 0
    %v1103 = vsel %vm172, %v1000, 0
    %v1106 = vsel %vm172, %v1001, 0
    %v1109 = vsel %vm172, %v1002, 0
    %v1112 = vsel %vm172, %v1003, 0
    %v1115 = vsel %vm172, %v1004, 0
    %v1118 = vsel %vm172, %v1005, 0
    %v1121 = vsel %vm172, %v1006, 0
    %v1124 = vsel %vm172, %v1007, 0
    %v1127 = vsel %vm172, %v1008, 0
    %v1130 = vsel %vm172, %v1009, 0
    %v1133 = vsel %vm172, %v1010, 0
    %v1136 = vsel %vm172, %v1011, 0
    %v1139 = vsel %vm172, %v1012, 0
    %v1142 = vsel %vm172, %v1013, 0
    %v1145 = vsel %vm172, %v1014, 0
    %v1148 = vsel %vm172, %v1015, 0
    %v1151 = vsel %vm172, %v1016, 0
    %v1154 = vsel %vm172, %v1017, 0
    %v1157 = vsel %vm172, %v1018, 0
    %v1160 = vsel %vm172, %v1019, 0
    %v1163 = vsel %vm172, %v1020, 0
    %v1166 = vsel %vm172, %v1021, 0
    %v1169 = vsel %vm172, %v1022, 0
    %v1172 = vsel %vm172, %v1023, 0
    %v1175 = vsel %vm172, %v1024, 0
    %v1178 = vsel %vm172, %v1025, 0
    %v1181 = vsel %vm172, %v1026, 0
    %v1184 = vsel %vm172, %v1027, 0
    %v1187 = vsel %vm172, %v1028, 0
    %v1190 = vsel %vm172, %v1029, 0
    %v1193 = vsel %vm172, %v1030, 0
    %v1196 = vsel %vm172, %v1031, 0
    %v1199 = vsel %vm172, %v1032, 0
    %v1202 = vsel %vm172, %v1033, 0
    %v1205 = vsel %vm172, %v1034, 0
    %v1208 = vsel %vm172, %v1035, 0
    %v1211 = vsel %vm172, %v1036, 0
    %v1214 = vsel %vm172, %v1037, 0
    %v1217 = vsel %vm172, %v1038, 0
    %v1220 = vsel %vm172, %v1039, 0
    %v1223 = vsel %vm172, %v1040, 0
    %v1226 = vsel %vm172, %v1041, 0
    %v1229 = vsel %vm172, %v1042, 0
    %v1232 = vsel %vm172, %v1043, 0
    %v1235 = vsel %vm172, %v1044, 0
    %v1238 = vsel %vm172, %v1045, 0
    %v1241 = vsel %vm365, %v1047, 0
    %1243 = vmatpush.msra.mxu0 0.0
    %1244 = vmatpush.msra.mxu0 0.0
    %1245 = vmatpush.msra.mxu0 0.0
    %1246 = vmatpush.msra.mxu0 0.0
    %1247 = vmatpush.msra.mxu0 0.0
    %1248 = vmatpush.msra.mxu0 0.0
    %1249 = vmatpush.msra.mxu0 0.0
    %1250 = vmatpush.msra.mxu0 0.0
    %1251 = vmatpush.msra.mxu0 0.0
    %1252 = vmatpush.msra.mxu0 0.0
    %1253 = vmatpush.msra.mxu0 0.0
    %1254 = vmatpush.msra.mxu0 0.0
    %1255 = vmatpush.msra.mxu0 0.0
    %1256 = vmatpush.msra.mxu0 0.0
    %1257 = vmatpush.msra.mxu0 0.0
    %1258 = vmatpush.msra.mxu0 %v1241
    %1259 = vmatmul.f32.gmra.mxu0 %v1049
    %v1260 = vpop.f32.mrf.mxu0
    %v1261 = vadd.f32 0.0, %v1260
    %1262 = vmatmul.f32.gmra.mxu0 %v1052
    %v1263 = vpop.f32.mrf.mxu0
    %v1264 = vadd.f32 0.0, %v1263
    %1265 = vmatmul.f32.gmra.mxu0 %v1055
    %v1266 = vpop.f32.mrf.mxu0
    %v1267 = vadd.f32 0.0, %v1266
    %1268 = vmatmul.f32.gmra.mxu0 %v1058
    %v1269 = vpop.f32.mrf.mxu0
    %v1270 = vadd.f32 0.0, %v1269
    %1271 = vmatmul.f32.gmra.mxu0 %v1061
    %v1272 = vpop.f32.mrf.mxu0
    %v1273 = vadd.f32 0.0, %v1272
    %1274 = vmatmul.f32.gmra.mxu0 %v1064
    %v1275 = vpop.f32.mrf.mxu0
    %v1276 = vadd.f32 0.0, %v1275
    %1277 = vmatmul.f32.gmra.mxu0 %v1067
    %v1278 = vpop.f32.mrf.mxu0
    %v1279 = vadd.f32 0.0, %v1278
    %1280 = vmatmul.f32.gmra.mxu0 %v1070
    %v1281 = vpop.f32.mrf.mxu0
    %v1282 = vadd.f32 0.0, %v1281
    %1283 = vmatmul.f32.gmra.mxu0 %v1073
    %v1284 = vpop.f32.mrf.mxu0
    %v1285 = vadd.f32 0.0, %v1284
    %1286 = vmatmul.f32.gmra.mxu0 %v1076
    %v1287 = vpop.f32.mrf.mxu0
    %v1288 = vadd.f32 0.0, %v1287
    %1289 = vmatmul.f32.gmra.mxu0 %v1079
    %v1290 = vpop.f32.mrf.mxu0
    %v1291 = vadd.f32 0.0, %v1290
    %1292 = vmatmul.f32.gmra.mxu0 %v1082
    %v1293 = vpop.f32.mrf.mxu0
    %v1294 = vadd.f32 0.0, %v1293
    %1295 = vmatmul.f32.gmra.mxu0 %v1085
    %v1296 = vpop.f32.mrf.mxu0
    %v1297 = vadd.f32 0.0, %v1296
    %1298 = vmatmul.f32.gmra.mxu0 %v1088
    %v1299 = vpop.f32.mrf.mxu0
    %v1300 = vadd.f32 0.0, %v1299
    %1301 = vmatmul.f32.gmra.mxu0 %v1091
    %v1302 = vpop.f32.mrf.mxu0
    %v1303 = vadd.f32 0.0, %v1302
    %1304 = vmatmul.f32.gmra.mxu0 %v1094
    %v1305 = vpop.f32.mrf.mxu0
    %v1306 = vadd.f32 0.0, %v1305
    %1307 = vmatmul.f32.gmra.mxu0 %v1097
    %v1308 = vpop.f32.mrf.mxu0
    %v1309 = vadd.f32 0.0, %v1308
    %1310 = vmatmul.f32.gmra.mxu0 %v1100
    %v1311 = vpop.f32.mrf.mxu0
    %v1312 = vadd.f32 0.0, %v1311
    %1313 = vmatmul.f32.gmra.mxu0 %v1103
    %v1314 = vpop.f32.mrf.mxu0
    %v1315 = vadd.f32 0.0, %v1314
    %1316 = vmatmul.f32.gmra.mxu0 %v1106
    %v1317 = vpop.f32.mrf.mxu0
    %v1318 = vadd.f32 0.0, %v1317
    %1319 = vmatmul.f32.gmra.mxu0 %v1109
    %v1320 = vpop.f32.mrf.mxu0
    %v1321 = vadd.f32 0.0, %v1320
    %1322 = vmatmul.f32.gmra.mxu0 %v1112
    %v1323 = vpop.f32.mrf.mxu0
    %v1324 = vadd.f32 0.0, %v1323
    %1325 = vmatmul.f32.gmra.mxu0 %v1115
    %v1326 = vpop.f32.mrf.mxu0
    %v1327 = vadd.f32 0.0, %v1326
    %1328 = vmatmul.f32.gmra.mxu0 %v1118
    %v1329 = vpop.f32.mrf.mxu0
    %v1330 = vadd.f32 0.0, %v1329
    %1331 = vmatmul.f32.gmra.mxu0 %v1121
    %v1332 = vpop.f32.mrf.mxu0
    %v1333 = vadd.f32 0.0, %v1332
    %1334 = vmatmul.f32.gmra.mxu0 %v1124
    %v1335 = vpop.f32.mrf.mxu0
    %v1336 = vadd.f32 0.0, %v1335
    %1337 = vmatmul.f32.gmra.mxu0 %v1127
    %v1338 = vpop.f32.mrf.mxu0
    %v1339 = vadd.f32 0.0, %v1338
    %1340 = vmatmul.f32.gmra.mxu0 %v1130
    %v1341 = vpop.f32.mrf.mxu0
    %v1342 = vadd.f32 0.0, %v1341
    %1343 = vmatmul.f32.gmra.mxu0 %v1133
    %v1344 = vpop.f32.mrf.mxu0
    %v1345 = vadd.f32 0.0, %v1344
    %1346 = vmatmul.f32.gmra.mxu0 %v1136
    %v1347 = vpop.f32.mrf.mxu0
    %v1348 = vadd.f32 0.0, %v1347
    %1349 = vmatmul.f32.gmra.mxu0 %v1139
    %v1350 = vpop.f32.mrf.mxu0
    %v1351 = vadd.f32 0.0, %v1350
    %1352 = vmatmul.f32.gmra.mxu0 %v1142
    %v1353 = vpop.f32.mrf.mxu0
    %v1354 = vadd.f32 0.0, %v1353
    %1355 = vmatmul.f32.gmra.mxu0 %v1145
    %v1356 = vpop.f32.mrf.mxu0
    %v1357 = vadd.f32 0.0, %v1356
    %1358 = vmatmul.f32.gmra.mxu0 %v1148
    %v1359 = vpop.f32.mrf.mxu0
    %v1360 = vadd.f32 0.0, %v1359
    %1361 = vmatmul.f32.gmra.mxu0 %v1151
    %v1362 = vpop.f32.mrf.mxu0
    %v1363 = vadd.f32 0.0, %v1362
    %1364 = vmatmul.f32.gmra.mxu0 %v1154
    %v1365 = vpop.f32.mrf.mxu0
    %v1366 = vadd.f32 0.0, %v1365
    %1367 = vmatmul.f32.gmra.mxu0 %v1157
    %v1368 = vpop.f32.mrf.mxu0
    %v1369 = vadd.f32 0.0, %v1368
    %1370 = vmatmul.f32.gmra.mxu0 %v1160
    %v1371 = vpop.f32.mrf.mxu0
    %v1372 = vadd.f32 0.0, %v1371
    %1373 = vmatmul.f32.gmra.mxu0 %v1163
    %v1374 = vpop.f32.mrf.mxu0
    %v1375 = vadd.f32 0.0, %v1374
    %1376 = vmatmul.f32.gmra.mxu0 %v1166
    %v1377 = vpop.f32.mrf.mxu0
    %v1378 = vadd.f32 0.0, %v1377
    %1379 = vmatmul.f32.gmra.mxu0 %v1169
    %v1380 = vpop.f32.mrf.mxu0
    %v1381 = vadd.f32 0.0, %v1380
    %1382 = vmatmul.f32.gmra.mxu0 %v1172
    %v1383 = vpop.f32.mrf.mxu0
    %v1384 = vadd.f32 0.0, %v1383
    %1385 = vmatmul.f32.gmra.mxu0 %v1175
    %v1386 = vpop.f32.mrf.mxu0
    %v1387 = vadd.f32 0.0, %v1386
    %1388 = vmatmul.f32.gmra.mxu0 %v1178
    %v1389 = vpop.f32.mrf.mxu0
    %v1390 = vadd.f32 0.0, %v1389
    %1391 = vmatmul.f32.gmra.mxu0 %v1181
    %v1392 = vpop.f32.mrf.mxu0
    %v1393 = vadd.f32 0.0, %v1392
    %1394 = vmatmul.f32.gmra.mxu0 %v1184
    %v1395 = vpop.f32.mrf.mxu0
    %v1396 = vadd.f32 0.0, %v1395
    %1397 = vmatmul.f32.gmra.mxu0 %v1187
    %v1398 = vpop.f32.mrf.mxu0
    %v1399 = vadd.f32 0.0, %v1398
    %1400 = vmatmul.f32.gmra.mxu0 %v1190
    %v1401 = vpop.f32.mrf.mxu0
    %v1402 = vadd.f32 0.0, %v1401
    %1403 = vmatmul.f32.gmra.mxu0 %v1193
    %v1404 = vpop.f32.mrf.mxu0
    %v1405 = vadd.f32 0.0, %v1404
    %1406 = vmatmul.f32.gmra.mxu0 %v1196
    %v1407 = vpop.f32.mrf.mxu0
    %v1408 = vadd.f32 0.0, %v1407
    %1409 = vmatmul.f32.gmra.mxu0 %v1199
    %v1410 = vpop.f32.mrf.mxu0
    %v1411 = vadd.f32 0.0, %v1410
    %1412 = vmatmul.f32.gmra.mxu0 %v1202
    %v1413 = vpop.f32.mrf.mxu0
    %v1414 = vadd.f32 0.0, %v1413
    %1415 = vmatmul.f32.gmra.mxu0 %v1205
    %v1416 = vpop.f32.mrf.mxu0
    %v1417 = vadd.f32 0.0, %v1416
    %1418 = vmatmul.f32.gmra.mxu0 %v1208
    %v1419 = vpop.f32.mrf.mxu0
    %v1420 = vadd.f32 0.0, %v1419
    %1421 = vmatmul.f32.gmra.mxu0 %v1211
    %v1422 = vpop.f32.mrf.mxu0
    %v1423 = vadd.f32 0.0, %v1422
    %1424 = vmatmul.f32.gmra.mxu0 %v1214
    %v1425 = vpop.f32.mrf.mxu0
    %v1426 = vadd.f32 0.0, %v1425
    %1427 = vmatmul.f32.gmra.mxu0 %v1217
    %v1428 = vpop.f32.mrf.mxu0
    %v1429 = vadd.f32 0.0, %v1428
    %1430 = vmatmul.f32.gmra.mxu0 %v1220
    %v1431 = vpop.f32.mrf.mxu0
    %v1432 = vadd.f32 0.0, %v1431
    %1433 = vmatmul.f32.gmra.mxu0 %v1223
    %v1434 = vpop.f32.mrf.mxu0
    %v1435 = vadd.f32 0.0, %v1434
    %1436 = vmatmul.f32.gmra.mxu0 %v1226
    %v1437 = vpop.f32.mrf.mxu0
    %v1438 = vadd.f32 0.0, %v1437
    %1439 = vmatmul.f32.gmra.mxu0 %v1229
    %v1440 = vpop.f32.mrf.mxu0
    %v1441 = vadd.f32 0.0, %v1440
    %1442 = vmatmul.f32.gmra.mxu0 %v1232
    %v1443 = vpop.f32.mrf.mxu0
    %v1444 = vadd.f32 0.0, %v1443
    %1445 = vmatmul.f32.gmra.mxu0 %v1235
    %v1446 = vpop.f32.mrf.mxu0
    %v1447 = vadd.f32 0.0, %v1446
    %1448 = vmatmul.f32.gmra.mxu0 %v1238
    %v1449 = vpop.f32.mrf.mxu0
    %v1450 = vadd.f32 0.0, %v1449
    %1451 = vdwg.mxu0
    %v1452 = vadd.f32 %v791, %v1261
    %v1453 = vadd.f32 %v794, %v1264
    %v1454 = vadd.f32 %v797, %v1267
    %v1455 = vadd.f32 %v800, %v1270
    %v1456 = vadd.f32 %v803, %v1273
    %v1457 = vadd.f32 %v806, %v1276
    %v1458 = vadd.f32 %v809, %v1279
    %v1459 = vadd.f32 %v812, %v1282
    %v1460 = vadd.f32 %v815, %v1285
    %v1461 = vadd.f32 %v818, %v1288
    %v1462 = vadd.f32 %v821, %v1291
    %v1463 = vadd.f32 %v824, %v1294
    %v1464 = vadd.f32 %v827, %v1297
    %v1465 = vadd.f32 %v830, %v1300
    %v1466 = vadd.f32 %v833, %v1303
    %v1467 = vadd.f32 %v836, %v1306
    %v1468 = vadd.f32 %v839, %v1309
    %v1469 = vadd.f32 %v842, %v1312
    %v1470 = vadd.f32 %v845, %v1315
    %v1471 = vadd.f32 %v848, %v1318
    %v1472 = vadd.f32 %v851, %v1321
    %v1473 = vadd.f32 %v854, %v1324
    %v1474 = vadd.f32 %v857, %v1327
    %v1475 = vadd.f32 %v860, %v1330
    %v1476 = vadd.f32 %v863, %v1333
    %v1477 = vadd.f32 %v866, %v1336
    %v1478 = vadd.f32 %v869, %v1339
    %v1479 = vadd.f32 %v872, %v1342
    %v1480 = vadd.f32 %v875, %v1345
    %v1481 = vadd.f32 %v878, %v1348
    %v1482 = vadd.f32 %v881, %v1351
    %v1483 = vadd.f32 %v884, %v1354
    %v1484 = vadd.f32 %v887, %v1357
    %v1485 = vadd.f32 %v890, %v1360
    %v1486 = vadd.f32 %v893, %v1363
    %v1487 = vadd.f32 %v896, %v1366
    %v1488 = vadd.f32 %v899, %v1369
    %v1489 = vadd.f32 %v902, %v1372
    %v1490 = vadd.f32 %v905, %v1375
    %v1491 = vadd.f32 %v908, %v1378
    %v1492 = vadd.f32 %v911, %v1381
    %v1493 = vadd.f32 %v914, %v1384
    %v1494 = vadd.f32 %v917, %v1387
    %v1495 = vadd.f32 %v920, %v1390
    %v1496 = vadd.f32 %v923, %v1393
    %v1497 = vadd.f32 %v926, %v1396
    %v1498 = vadd.f32 %v929, %v1399
    %v1499 = vadd.f32 %v932, %v1402
    %v1500 = vadd.f32 %v935, %v1405
    %v1501 = vadd.f32 %v938, %v1408
    %v1502 = vadd.f32 %v941, %v1411
    %v1503 = vadd.f32 %v944, %v1414
    %v1504 = vadd.f32 %v947, %v1417
    %v1505 = vadd.f32 %v950, %v1420
    %v1506 = vadd.f32 %v953, %v1423
    %v1507 = vadd.f32 %v956, %v1426
    %v1508 = vadd.f32 %v959, %v1429
    %v1509 = vadd.f32 %v962, %v1432
    %v1510 = vadd.f32 %v965, %v1435
    %v1511 = vadd.f32 %v968, %v1438
    %v1512 = vadd.f32 %v971, %v1441
    %v1513 = vadd.f32 %v974, %v1444
    %v1514 = vadd.f32 %v977, %v1447
    %v1515 = vadd.f32 %v980, %v1450
    %v1516 = vld [vmem:[%s0 + $0x3] sm:$0xff]
    %v1517 = vld [vmem:[%s0 + $0xb] sm:$0xff]
    %v1518 = vld [vmem:[%s0 + $0x1b] sm:$0xff]
    %v1519 = vld [vmem:[%s0 + $0x23] sm:$0xff]
    %v1520 = vld [vmem:[%s0 + $0x33] sm:$0xff]
    %v1521 = vld [vmem:[%s0 + $0x3b] sm:$0xff]
    %v1522 = vld [vmem:[%s0 + $0x4b] sm:$0xff]
    %v1523 = vld [vmem:[%s0 + $0x53] sm:$0xff]
    %v1524 = vld [vmem:[%s0 + $0x63] sm:$0xff]
    %v1525 = vld [vmem:[%s0 + $0x6b] sm:$0xff]
    %v1526 = vld [vmem:[%s0 + $0x7b] sm:$0xff]
    %v1527 = vld [vmem:[%s0 + $0x83] sm:$0xff]
    %v1528 = vld [vmem:[%s0 + $0x93] sm:$0xff]
    %v1529 = vld [vmem:[%s0 + $0x9b] sm:$0xff]
    %v1530 = vld [vmem:[%s0 + $0xab] sm:$0xff]
    %v1531 = vld [vmem:[%s0 + $0xb3] sm:$0xff]
    %v1532 = vld [vmem:[%s0 + $0xc3] sm:$0xff]
    %v1533 = vld [vmem:[%s0 + $0xcb] sm:$0xff]
    %v1534 = vld [vmem:[%s0 + $0xdb] sm:$0xff]
    %v1535 = vld [vmem:[%s0 + $0xe3] sm:$0xff]
    %v1536 = vld [vmem:[%s0 + $0xf3] sm:$0xff]
    %v1537 = vld [vmem:[%s0 + $0xfb] sm:$0xff]
    %v1538 = vld [vmem:[%s0 + $0x10b] sm:$0xff]
    %v1539 = vld [vmem:[%s0 + $0x113] sm:$0xff]
    %v1540 = vld [vmem:[%s0 + $0x123] sm:$0xff]
    %v1541 = vld [vmem:[%s0 + $0x12b] sm:$0xff]
    %v1542 = vld [vmem:[%s0 + $0x13b] sm:$0xff]
    %v1543 = vld [vmem:[%s0 + $0x143] sm:$0xff]
    %v1544 = vld [vmem:[%s0 + $0x153] sm:$0xff]
    %v1545 = vld [vmem:[%s0 + $0x15b] sm:$0xff]
    %v1546 = vld [vmem:[%s0 + $0x16b] sm:$0xff]
    %v1547 = vld [vmem:[%s0 + $0x173] sm:$0xff]
    %v1548 = vld [vmem:[%s0 + $0x1cb] sm:$0xff]
    %v1549 = vld [vmem:[%s0 + $0x1d3] sm:$0xff]
    %v1550 = vld [vmem:[%s0 + $0x1e3] sm:$0xff]
    %v1551 = vld [vmem:[%s0 + $0x1eb] sm:$0xff]
    %v1552 = vld [vmem:[%s0 + $0x1fb] sm:$0xff]
    %v1553 = vld [vmem:[%s0 + $0x203] sm:$0xff]
    %v1554 = vld [vmem:[%s0 + $0x213] sm:$0xff]
    %v1555 = vld [vmem:[%s0 + $0x21b] sm:$0xff]
    %v1556 = vld [vmem:[%s0 + $0x22b] sm:$0xff]
    %v1557 = vld [vmem:[%s0 + $0x233] sm:$0xff]
    %v1558 = vld [vmem:[%s0 + $0x243] sm:$0xff]
    %v1559 = vld [vmem:[%s0 + $0x24b] sm:$0xff]
    %v1560 = vld [vmem:[%s0 + $0x25b] sm:$0xff]
    %v1561 = vld [vmem:[%s0 + $0x263] sm:$0xff]
    %v1562 = vld [vmem:[%s0 + $0x273] sm:$0xff]
    %v1563 = vld [vmem:[%s0 + $0x27b] sm:$0xff]
    %v1564 = vld [vmem:[%s0 + $0x28b] sm:$0xff]
    %v1565 = vld [vmem:[%s0 + $0x293] sm:$0xff]
    %v1566 = vld [vmem:[%s0 + $0x2a3] sm:$0xff]
    %v1567 = vld [vmem:[%s0 + $0x2ab] sm:$0xff]
    %v1568 = vld [vmem:[%s0 + $0x2bb] sm:$0xff]
    %v1569 = vld [vmem:[%s0 + $0x2c3] sm:$0xff]
    %v1570 = vld [vmem:[%s0 + $0x2d3] sm:$0xff]
    %v1571 = vld [vmem:[%s0 + $0x2db] sm:$0xff]
    %v1572 = vld [vmem:[%s0 + $0x2eb] sm:$0xff]
    %v1573 = vld [vmem:[%s0 + $0x2f3] sm:$0xff]
    %v1574 = vld [vmem:[%s0 + $0x303] sm:$0xff]
    %v1575 = vld [vmem:[%s0 + $0x30b] sm:$0xff]
    %v1576 = vld [vmem:[%s0 + $0x31b] sm:$0xff]
    %v1577 = vld [vmem:[%s0 + $0x323] sm:$0xff]
    %v1578 = vld [vmem:[%s0 + $0x333] sm:$0xff]
    %v1579 = vld [vmem:[%s0 + $0x33b] sm:$0xff]
    %s1580 = scalar_lea.vmem %s1, 12
    %v1581 = vld [vmem:[%s1580] sm:$0x7]
    %v1583 = vsel %vm172, %v1516, 0
    %v1586 = vsel %vm172, %v1517, 0
    %v1589 = vsel %vm172, %v1518, 0
    %v1592 = vsel %vm172, %v1519, 0
    %v1595 = vsel %vm172, %v1520, 0
    %v1598 = vsel %vm172, %v1521, 0
    %v1601 = vsel %vm172, %v1522, 0
    %v1604 = vsel %vm172, %v1523, 0
    %v1607 = vsel %vm172, %v1524, 0
    %v1610 = vsel %vm172, %v1525, 0
    %v1613 = vsel %vm172, %v1526, 0
    %v1616 = vsel %vm172, %v1527, 0
    %v1619 = vsel %vm172, %v1528, 0
    %v1622 = vsel %vm172, %v1529, 0
    %v1625 = vsel %vm172, %v1530, 0
    %v1628 = vsel %vm172, %v1531, 0
    %v1631 = vsel %vm172, %v1532, 0
    %v1634 = vsel %vm172, %v1533, 0
    %v1637 = vsel %vm172, %v1534, 0
    %v1640 = vsel %vm172, %v1535, 0
    %v1643 = vsel %vm172, %v1536, 0
    %v1646 = vsel %vm172, %v1537, 0
    %v1649 = vsel %vm172, %v1538, 0
    %v1652 = vsel %vm172, %v1539, 0
    %v1655 = vsel %vm172, %v1540, 0
    %v1658 = vsel %vm172, %v1541, 0
    %v1661 = vsel %vm172, %v1542, 0
    %v1664 = vsel %vm172, %v1543, 0
    %v1667 = vsel %vm172, %v1544, 0
    %v1670 = vsel %vm172, %v1545, 0
    %v1673 = vsel %vm172, %v1546, 0
    %v1676 = vsel %vm172, %v1547, 0
    %v1679 = vsel %vm172, %v1548, 0
    %v1682 = vsel %vm172, %v1549, 0
    %v1685 = vsel %vm172, %v1550, 0
    %v1688 = vsel %vm172, %v1551, 0
    %v1691 = vsel %vm172, %v1552, 0
    %v1694 = vsel %vm172, %v1553, 0
    %v1697 = vsel %vm172, %v1554, 0
    %v1700 = vsel %vm172, %v1555, 0
    %v1703 = vsel %vm172, %v1556, 0
    %v1706 = vsel %vm172, %v1557, 0
    %v1709 = vsel %vm172, %v1558, 0
    %v1712 = vsel %vm172, %v1559, 0
    %v1715 = vsel %vm172, %v1560, 0
    %v1718 = vsel %vm172, %v1561, 0
    %v1721 = vsel %vm172, %v1562, 0
    %v1724 = vsel %vm172, %v1563, 0
    %v1727 = vsel %vm172, %v1564, 0
    %v1730 = vsel %vm172, %v1565, 0
    %v1733 = vsel %vm172, %v1566, 0
    %v1736 = vsel %vm172, %v1567, 0
    %v1739 = vsel %vm172, %v1568, 0
    %v1742 = vsel %vm172, %v1569, 0
    %v1745 = vsel %vm172, %v1570, 0
    %v1748 = vsel %vm172, %v1571, 0
    %v1751 = vsel %vm172, %v1572, 0
    %v1754 = vsel %vm172, %v1573, 0
    %v1757 = vsel %vm172, %v1574, 0
    %v1760 = vsel %vm172, %v1575, 0
    %v1763 = vsel %vm172, %v1576, 0
    %v1766 = vsel %vm172, %v1577, 0
    %v1769 = vsel %vm172, %v1578, 0
    %v1772 = vsel %vm172, %v1579, 0
    %v1775 = vsel %vm365, %v1581, 0
    %1777 = vmatpush.msra.mxu0 0.0
    %1778 = vmatpush.msra.mxu0 0.0
    %1779 = vmatpush.msra.mxu0 0.0
    %1780 = vmatpush.msra.mxu0 0.0
    %1781 = vmatpush.msra.mxu0 0.0
    %1782 = vmatpush.msra.mxu0 0.0
    %1783 = vmatpush.msra.mxu0 0.0
    %1784 = vmatpush.msra.mxu0 0.0
    %1785 = vmatpush.msra.mxu0 0.0
    %1786 = vmatpush.msra.mxu0 0.0
    %1787 = vmatpush.msra.mxu0 0.0
    %1788 = vmatpush.msra.mxu0 0.0
    %1789 = vmatpush.msra.mxu0 0.0
    %1790 = vmatpush.msra.mxu0 0.0
    %1791 = vmatpush.msra.mxu0 0.0
    %1792 = vmatpush.msra.mxu0 %v1775
    %1793 = vmatmul.f32.gmra.mxu0 %v1583
    %v1794 = vpop.f32.mrf.mxu0
    %v1795 = vadd.f32 0.0, %v1794
    %1796 = vmatmul.f32.gmra.mxu0 %v1586
    %v1797 = vpop.f32.mrf.mxu0
    %v1798 = vadd.f32 0.0, %v1797
    %1799 = vmatmul.f32.gmra.mxu0 %v1589
    %v1800 = vpop.f32.mrf.mxu0
    %v1801 = vadd.f32 0.0, %v1800
    %1802 = vmatmul.f32.gmra.mxu0 %v1592
    %v1803 = vpop.f32.mrf.mxu0
    %v1804 = vadd.f32 0.0, %v1803
    %1805 = vmatmul.f32.gmra.mxu0 %v1595
    %v1806 = vpop.f32.mrf.mxu0
    %v1807 = vadd.f32 0.0, %v1806
    %1808 = vmatmul.f32.gmra.mxu0 %v1598
    %v1809 = vpop.f32.mrf.mxu0
    %v1810 = vadd.f32 0.0, %v1809
    %1811 = vmatmul.f32.gmra.mxu0 %v1601
    %v1812 = vpop.f32.mrf.mxu0
    %v1813 = vadd.f32 0.0, %v1812
    %1814 = vmatmul.f32.gmra.mxu0 %v1604
    %v1815 = vpop.f32.mrf.mxu0
    %v1816 = vadd.f32 0.0, %v1815
    %1817 = vmatmul.f32.gmra.mxu0 %v1607
    %v1818 = vpop.f32.mrf.mxu0
    %v1819 = vadd.f32 0.0, %v1818
    %1820 = vmatmul.f32.gmra.mxu0 %v1610
    %v1821 = vpop.f32.mrf.mxu0
    %v1822 = vadd.f32 0.0, %v1821
    %1823 = vmatmul.f32.gmra.mxu0 %v1613
    %v1824 = vpop.f32.mrf.mxu0
    %v1825 = vadd.f32 0.0, %v1824
    %1826 = vmatmul.f32.gmra.mxu0 %v1616
    %v1827 = vpop.f32.mrf.mxu0
    %v1828 = vadd.f32 0.0, %v1827
    %1829 = vmatmul.f32.gmra.mxu0 %v1619
    %v1830 = vpop.f32.mrf.mxu0
    %v1831 = vadd.f32 0.0, %v1830
    %1832 = vmatmul.f32.gmra.mxu0 %v1622
    %v1833 = vpop.f32.mrf.mxu0
    %v1834 = vadd.f32 0.0, %v1833
    %1835 = vmatmul.f32.gmra.mxu0 %v1625
    %v1836 = vpop.f32.mrf.mxu0
    %v1837 = vadd.f32 0.0, %v1836
    %1838 = vmatmul.f32.gmra.mxu0 %v1628
    %v1839 = vpop.f32.mrf.mxu0
    %v1840 = vadd.f32 0.0, %v1839
    %1841 = vmatmul.f32.gmra.mxu0 %v1631
    %v1842 = vpop.f32.mrf.mxu0
    %v1843 = vadd.f32 0.0, %v1842
    %1844 = vmatmul.f32.gmra.mxu0 %v1634
    %v1845 = vpop.f32.mrf.mxu0
    %v1846 = vadd.f32 0.0, %v1845
    %1847 = vmatmul.f32.gmra.mxu0 %v1637
    %v1848 = vpop.f32.mrf.mxu0
    %v1849 = vadd.f32 0.0, %v1848
    %1850 = vmatmul.f32.gmra.mxu0 %v1640
    %v1851 = vpop.f32.mrf.mxu0
    %v1852 = vadd.f32 0.0, %v1851
    %1853 = vmatmul.f32.gmra.mxu0 %v1643
    %v1854 = vpop.f32.mrf.mxu0
    %v1855 = vadd.f32 0.0, %v1854
    %1856 = vmatmul.f32.gmra.mxu0 %v1646
    %v1857 = vpop.f32.mrf.mxu0
    %v1858 = vadd.f32 0.0, %v1857
    %1859 = vmatmul.f32.gmra.mxu0 %v1649
    %v1860 = vpop.f32.mrf.mxu0
    %v1861 = vadd.f32 0.0, %v1860
    %1862 = vmatmul.f32.gmra.mxu0 %v1652
    %v1863 = vpop.f32.mrf.mxu0
    %v1864 = vadd.f32 0.0, %v1863
    %1865 = vmatmul.f32.gmra.mxu0 %v1655
    %v1866 = vpop.f32.mrf.mxu0
    %v1867 = vadd.f32 0.0, %v1866
    %1868 = vmatmul.f32.gmra.mxu0 %v1658
    %v1869 = vpop.f32.mrf.mxu0
    %v1870 = vadd.f32 0.0, %v1869
    %1871 = vmatmul.f32.gmra.mxu0 %v1661
    %v1872 = vpop.f32.mrf.mxu0
    %v1873 = vadd.f32 0.0, %v1872
    %1874 = vmatmul.f32.gmra.mxu0 %v1664
    %v1875 = vpop.f32.mrf.mxu0
    %v1876 = vadd.f32 0.0, %v1875
    %1877 = vmatmul.f32.gmra.mxu0 %v1667
    %v1878 = vpop.f32.mrf.mxu0
    %v1879 = vadd.f32 0.0, %v1878
    %1880 = vmatmul.f32.gmra.mxu0 %v1670
    %v1881 = vpop.f32.mrf.mxu0
    %v1882 = vadd.f32 0.0, %v1881
    %1883 = vmatmul.f32.gmra.mxu0 %v1673
    %v1884 = vpop.f32.mrf.mxu0
    %v1885 = vadd.f32 0.0, %v1884
    %1886 = vmatmul.f32.gmra.mxu0 %v1676
    %v1887 = vpop.f32.mrf.mxu0
    %v1888 = vadd.f32 0.0, %v1887
    %1889 = vmatmul.f32.gmra.mxu0 %v1679
    %v1890 = vpop.f32.mrf.mxu0
    %v1891 = vadd.f32 0.0, %v1890
    %1892 = vmatmul.f32.gmra.mxu0 %v1682
    %v1893 = vpop.f32.mrf.mxu0
    %v1894 = vadd.f32 0.0, %v1893
    %1895 = vmatmul.f32.gmra.mxu0 %v1685
    %v1896 = vpop.f32.mrf.mxu0
    %v1897 = vadd.f32 0.0, %v1896
    %1898 = vmatmul.f32.gmra.mxu0 %v1688
    %v1899 = vpop.f32.mrf.mxu0
    %v1900 = vadd.f32 0.0, %v1899
    %1901 = vmatmul.f32.gmra.mxu0 %v1691
    %v1902 = vpop.f32.mrf.mxu0
    %v1903 = vadd.f32 0.0, %v1902
    %1904 = vmatmul.f32.gmra.mxu0 %v1694
    %v1905 = vpop.f32.mrf.mxu0
    %v1906 = vadd.f32 0.0, %v1905
    %1907 = vmatmul.f32.gmra.mxu0 %v1697
    %v1908 = vpop.f32.mrf.mxu0
    %v1909 = vadd.f32 0.0, %v1908
    %1910 = vmatmul.f32.gmra.mxu0 %v1700
    %v1911 = vpop.f32.mrf.mxu0
    %v1912 = vadd.f32 0.0, %v1911
    %1913 = vmatmul.f32.gmra.mxu0 %v1703
    %v1914 = vpop.f32.mrf.mxu0
    %v1915 = vadd.f32 0.0, %v1914
    %1916 = vmatmul.f32.gmra.mxu0 %v1706
    %v1917 = vpop.f32.mrf.mxu0
    %v1918 = vadd.f32 0.0, %v1917
    %1919 = vmatmul.f32.gmra.mxu0 %v1709
    %v1920 = vpop.f32.mrf.mxu0
    %v1921 = vadd.f32 0.0, %v1920
    %1922 = vmatmul.f32.gmra.mxu0 %v1712
    %v1923 = vpop.f32.mrf.mxu0
    %v1924 = vadd.f32 0.0, %v1923
    %1925 = vmatmul.f32.gmra.mxu0 %v1715
    %v1926 = vpop.f32.mrf.mxu0
    %v1927 = vadd.f32 0.0, %v1926
    %1928 = vmatmul.f32.gmra.mxu0 %v1718
    %v1929 = vpop.f32.mrf.mxu0
    %v1930 = vadd.f32 0.0, %v1929
    %1931 = vmatmul.f32.gmra.mxu0 %v1721
    %v1932 = vpop.f32.mrf.mxu0
    %v1933 = vadd.f32 0.0, %v1932
    %1934 = vmatmul.f32.gmra.mxu0 %v1724
    %v1935 = vpop.f32.mrf.mxu0
    %v1936 = vadd.f32 0.0, %v1935
    %1937 = vmatmul.f32.gmra.mxu0 %v1727
    %v1938 = vpop.f32.mrf.mxu0
    %v1939 = vadd.f32 0.0, %v1938
    %1940 = vmatmul.f32.gmra.mxu0 %v1730
    %v1941 = vpop.f32.mrf.mxu0
    %v1942 = vadd.f32 0.0, %v1941
    %1943 = vmatmul.f32.gmra.mxu0 %v1733
    %v1944 = vpop.f32.mrf.mxu0
    %v1945 = vadd.f32 0.0, %v1944
    %1946 = vmatmul.f32.gmra.mxu0 %v1736
    %v1947 = vpop.f32.mrf.mxu0
    %v1948 = vadd.f32 0.0, %v1947
    %1949 = vmatmul.f32.gmra.mxu0 %v1739
    %v1950 = vpop.f32.mrf.mxu0
    %v1951 = vadd.f32 0.0, %v1950
    %1952 = vmatmul.f32.gmra.mxu0 %v1742
    %v1953 = vpop.f32.mrf.mxu0
    %v1954 = vadd.f32 0.0, %v1953
    %1955 = vmatmul.f32.gmra.mxu0 %v1745
    %v1956 = vpop.f32.mrf.mxu0
    %v1957 = vadd.f32 0.0, %v1956
    %1958 = vmatmul.f32.gmra.mxu0 %v1748
    %v1959 = vpop.f32.mrf.mxu0
    %v1960 = vadd.f32 0.0, %v1959
    %1961 = vmatmul.f32.gmra.mxu0 %v1751
    %v1962 = vpop.f32.mrf.mxu0
    %v1963 = vadd.f32 0.0, %v1962
    %1964 = vmatmul.f32.gmra.mxu0 %v1754
    %v1965 = vpop.f32.mrf.mxu0
    %v1966 = vadd.f32 0.0, %v1965
    %1967 = vmatmul.f32.gmra.mxu0 %v1757
    %v1968 = vpop.f32.mrf.mxu0
    %v1969 = vadd.f32 0.0, %v1968
    %1970 = vmatmul.f32.gmra.mxu0 %v1760
    %v1971 = vpop.f32.mrf.mxu0
    %v1972 = vadd.f32 0.0, %v1971
    %1973 = vmatmul.f32.gmra.mxu0 %v1763
    %v1974 = vpop.f32.mrf.mxu0
    %v1975 = vadd.f32 0.0, %v1974
    %1976 = vmatmul.f32.gmra.mxu0 %v1766
    %v1977 = vpop.f32.mrf.mxu0
    %v1978 = vadd.f32 0.0, %v1977
    %1979 = vmatmul.f32.gmra.mxu0 %v1769
    %v1980 = vpop.f32.mrf.mxu0
    %v1981 = vadd.f32 0.0, %v1980
    %1982 = vmatmul.f32.gmra.mxu0 %v1772
    %v1983 = vpop.f32.mrf.mxu0
    %v1984 = vadd.f32 0.0, %v1983
    %1985 = vdwg.mxu0
    %v1986 = vadd.f32 %v1452, %v1795
    %v1987 = vadd.f32 %v1453, %v1798
    %v1988 = vadd.f32 %v1454, %v1801
    %v1989 = vadd.f32 %v1455, %v1804
    %v1990 = vadd.f32 %v1456, %v1807
    %v1991 = vadd.f32 %v1457, %v1810
    %v1992 = vadd.f32 %v1458, %v1813
    %v1993 = vadd.f32 %v1459, %v1816
    %v1994 = vadd.f32 %v1460, %v1819
    %v1995 = vadd.f32 %v1461, %v1822
    %v1996 = vadd.f32 %v1462, %v1825
    %v1997 = vadd.f32 %v1463, %v1828
    %v1998 = vadd.f32 %v1464, %v1831
    %v1999 = vadd.f32 %v1465, %v1834
    %v2000 = vadd.f32 %v1466, %v1837
    %v2001 = vadd.f32 %v1467, %v1840
    %v2002 = vadd.f32 %v1468, %v1843
    %v2003 = vadd.f32 %v1469, %v1846
    %v2004 = vadd.f32 %v1470, %v1849
    %v2005 = vadd.f32 %v1471, %v1852
    %v2006 = vadd.f32 %v1472, %v1855
    %v2007 = vadd.f32 %v1473, %v1858
    %v2008 = vadd.f32 %v1474, %v1861
    %v2009 = vadd.f32 %v1475, %v1864
    %v2010 = vadd.f32 %v1476, %v1867
    %v2011 = vadd.f32 %v1477, %v1870
    %v2012 = vadd.f32 %v1478, %v1873
    %v2013 = vadd.f32 %v1479, %v1876
    %v2014 = vadd.f32 %v1480, %v1879
    %v2015 = vadd.f32 %v1481, %v1882
    %v2016 = vadd.f32 %v1482, %v1885
    %v2017 = vadd.f32 %v1483, %v1888
    %v2018 = vadd.f32 %v1484, %v1891
    %v2019 = vadd.f32 %v1485, %v1894
    %v2020 = vadd.f32 %v1486, %v1897
    %v2021 = vadd.f32 %v1487, %v1900
    %v2022 = vadd.f32 %v1488, %v1903
    %v2023 = vadd.f32 %v1489, %v1906
    %v2024 = vadd.f32 %v1490, %v1909
    %v2025 = vadd.f32 %v1491, %v1912
    %v2026 = vadd.f32 %v1492, %v1915
    %v2027 = vadd.f32 %v1493, %v1918
    %v2028 = vadd.f32 %v1494, %v1921
    %v2029 = vadd.f32 %v1495, %v1924
    %v2030 = vadd.f32 %v1496, %v1927
    %v2031 = vadd.f32 %v1497, %v1930
    %v2032 = vadd.f32 %v1498, %v1933
    %v2033 = vadd.f32 %v1499, %v1936
    %v2034 = vadd.f32 %v1500, %v1939
    %v2035 = vadd.f32 %v1501, %v1942
    %v2036 = vadd.f32 %v1502, %v1945
    %v2037 = vadd.f32 %v1503, %v1948
    %v2038 = vadd.f32 %v1504, %v1951
    %v2039 = vadd.f32 %v1505, %v1954
    %v2040 = vadd.f32 %v1506, %v1957
    %v2041 = vadd.f32 %v1507, %v1960
    %v2042 = vadd.f32 %v1508, %v1963
    %v2043 = vadd.f32 %v1509, %v1966
    %v2044 = vadd.f32 %v1510, %v1969
    %v2045 = vadd.f32 %v1511, %v1972
    %v2046 = vadd.f32 %v1512, %v1975
    %v2047 = vadd.f32 %v1513, %v1978
    %v2048 = vadd.f32 %v1514, %v1981
    %v2049 = vadd.f32 %v1515, %v1984
    %s2050 = scalar_lea.vmem %s0, 24
    %v2051 = vld [vmem:[%s2050] sm:$0xff]
    %v2052 = vld [vmem:[%s2050 + $0x8] sm:$0xff]
    %v2053 = vld [vmem:[%s2050 + $0x18] sm:$0xff]
    %v2054 = vld [vmem:[%s2050 + $0x20] sm:$0xff]
    %v2055 = vld [vmem:[%s2050 + $0x30] sm:$0xff]
    %v2056 = vld [vmem:[%s2050 + $0x38] sm:$0xff]
    %v2057 = vld [vmem:[%s2050 + $0x48] sm:$0xff]
    %v2058 = vld [vmem:[%s2050 + $0x50] sm:$0xff]
    %v2059 = vld [vmem:[%s2050 + $0x60] sm:$0xff]
    %v2060 = vld [vmem:[%s2050 + $0x68] sm:$0xff]
    %v2061 = vld [vmem:[%s2050 + $0x78] sm:$0xff]
    %v2062 = vld [vmem:[%s2050 + $0x80] sm:$0xff]
    %v2063 = vld [vmem:[%s2050 + $0x90] sm:$0xff]
    %v2064 = vld [vmem:[%s2050 + $0x98] sm:$0xff]
    %v2065 = vld [vmem:[%s2050 + $0xa8] sm:$0xff]
    %v2066 = vld [vmem:[%s2050 + $0xb0] sm:$0xff]
    %v2067 = vld [vmem:[%s2050 + $0xc0] sm:$0xff]
    %v2068 = vld [vmem:[%s2050 + $0xc8] sm:$0xff]
    %v2069 = vld [vmem:[%s2050 + $0xd8] sm:$0xff]
    %v2070 = vld [vmem:[%s2050 + $0xe0] sm:$0xff]
    %v2071 = vld [vmem:[%s2050 + $0xf0] sm:$0xff]
    %v2072 = vld [vmem:[%s2050 + $0xf8] sm:$0xff]
    %v2073 = vld [vmem:[%s2050 + $0x108] sm:$0xff]
    %v2074 = vld [vmem:[%s2050 + $0x110] sm:$0xff]
    %v2075 = vld [vmem:[%s2050 + $0x120] sm:$0xff]
    %v2076 = vld [vmem:[%s2050 + $0x128] sm:$0xff]
    %v2077 = vld [vmem:[%s2050 + $0x138] sm:$0xff]
    %v2078 = vld [vmem:[%s2050 + $0x140] sm:$0xff]
    %v2079 = vld [vmem:[%s2050 + $0x150] sm:$0xff]
    %v2080 = vld [vmem:[%s2050 + $0x158] sm:$0xff]
    %v2081 = vld [vmem:[%s2050 + $0x168] sm:$0xff]
    %v2082 = vld [vmem:[%s2050 + $0x170] sm:$0xff]
    %v2083 = vld [vmem:[%s2050 + $0x1c8] sm:$0xff]
    %v2084 = vld [vmem:[%s2050 + $0x1d0] sm:$0xff]
    %v2085 = vld [vmem:[%s2050 + $0x1e0] sm:$0xff]
    %v2086 = vld [vmem:[%s2050 + $0x1e8] sm:$0xff]
    %v2087 = vld [vmem:[%s2050 + $0x1f8] sm:$0xff]
    %v2088 = vld [vmem:[%s2050 + $0x200] sm:$0xff]
    %v2089 = vld [vmem:[%s2050 + $0x210] sm:$0xff]
    %v2090 = vld [vmem:[%s2050 + $0x218] sm:$0xff]
    %v2091 = vld [vmem:[%s2050 + $0x228] sm:$0xff]
    %v2092 = vld [vmem:[%s2050 + $0x230] sm:$0xff]
    %v2093 = vld [vmem:[%s2050 + $0x240] sm:$0xff]
    %v2094 = vld [vmem:[%s2050 + $0x248] sm:$0xff]
    %v2095 = vld [vmem:[%s2050 + $0x258] sm:$0xff]
    %v2096 = vld [vmem:[%s2050 + $0x260] sm:$0xff]
    %v2097 = vld [vmem:[%s2050 + $0x270] sm:$0xff]
    %v2098 = vld [vmem:[%s2050 + $0x278] sm:$0xff]
    %v2099 = vld [vmem:[%s2050 + $0x288] sm:$0xff]
    %v2100 = vld [vmem:[%s2050 + $0x290] sm:$0xff]
    %v2101 = vld [vmem:[%s2050 + $0x2a0] sm:$0xff]
    %v2102 = vld [vmem:[%s2050 + $0x2a8] sm:$0xff]
    %v2103 = vld [vmem:[%s2050 + $0x2b8] sm:$0xff]
    %v2104 = vld [vmem:[%s2050 + $0x2c0] sm:$0xff]
    %v2105 = vld [vmem:[%s2050 + $0x2d0] sm:$0xff]
    %v2106 = vld [vmem:[%s2050 + $0x2d8] sm:$0xff]
    %v2107 = vld [vmem:[%s2050 + $0x2e8] sm:$0xff]
    %v2108 = vld [vmem:[%s2050 + $0x2f0] sm:$0xff]
    %v2109 = vld [vmem:[%s2050 + $0x300] sm:$0xff]
    %v2110 = vld [vmem:[%s2050 + $0x308] sm:$0xff]
    %v2111 = vld [vmem:[%s2050 + $0x318] sm:$0xff]
    %v2112 = vld [vmem:[%s2050 + $0x320] sm:$0xff]
    %v2113 = vld [vmem:[%s2050 + $0x330] sm:$0xff]
    %v2114 = vld [vmem:[%s2050 + $0x338] sm:$0xff]
    %s2115 = scalar_lea.vmem %s1, 16
    %v2116 = vld [vmem:[%s2115] sm:$0x7]
    %v2118 = vsel %vm172, %v2051, 0
    %v2121 = vsel %vm172, %v2052, 0
    %v2124 = vsel %vm172, %v2053, 0
    %v2127 = vsel %vm172, %v2054, 0
    %v2130 = vsel %vm172, %v2055, 0
    %v2133 = vsel %vm172, %v2056, 0
    %v2136 = vsel %vm172, %v2057, 0
    %v2139 = vsel %vm172, %v2058, 0
    %v2142 = vsel %vm172, %v2059, 0
    %v2145 = vsel %vm172, %v2060, 0
    %v2148 = vsel %vm172, %v2061, 0
    %v2151 = vsel %vm172, %v2062, 0
    %v2154 = vsel %vm172, %v2063, 0
    %v2157 = vsel %vm172, %v2064, 0
    %v2160 = vsel %vm172, %v2065, 0
    %v2163 = vsel %vm172, %v2066, 0
    %v2166 = vsel %vm172, %v2067, 0
    %v2169 = vsel %vm172, %v2068, 0
    %v2172 = vsel %vm172, %v2069, 0
    %v2175 = vsel %vm172, %v2070, 0
    %v2178 = vsel %vm172, %v2071, 0
    %v2181 = vsel %vm172, %v2072, 0
    %v2184 = vsel %vm172, %v2073, 0
    %v2187 = vsel %vm172, %v2074, 0
    %v2190 = vsel %vm172, %v2075, 0
    %v2193 = vsel %vm172, %v2076, 0
    %v2196 = vsel %vm172, %v2077, 0
    %v2199 = vsel %vm172, %v2078, 0
    %v2202 = vsel %vm172, %v2079, 0
    %v2205 = vsel %vm172, %v2080, 0
    %v2208 = vsel %vm172, %v2081, 0
    %v2211 = vsel %vm172, %v2082, 0
    %v2214 = vsel %vm172, %v2083, 0
    %v2217 = vsel %vm172, %v2084, 0
    %v2220 = vsel %vm172, %v2085, 0
    %v2223 = vsel %vm172, %v2086, 0
    %v2226 = vsel %vm172, %v2087, 0
    %v2229 = vsel %vm172, %v2088, 0
    %v2232 = vsel %vm172, %v2089, 0
    %v2235 = vsel %vm172, %v2090, 0
    %v2238 = vsel %vm172, %v2091, 0
    %v2241 = vsel %vm172, %v2092, 0
    %v2244 = vsel %vm172, %v2093, 0
    %v2247 = vsel %vm172, %v2094, 0
    %v2250 = vsel %vm172, %v2095, 0
    %v2253 = vsel %vm172, %v2096, 0
    %v2256 = vsel %vm172, %v2097, 0
    %v2259 = vsel %vm172, %v2098, 0
    %v2262 = vsel %vm172, %v2099, 0
    %v2265 = vsel %vm172, %v2100, 0
    %v2268 = vsel %vm172, %v2101, 0
    %v2271 = vsel %vm172, %v2102, 0
    %v2274 = vsel %vm172, %v2103, 0
    %v2277 = vsel %vm172, %v2104, 0
    %v2280 = vsel %vm172, %v2105, 0
    %v2283 = vsel %vm172, %v2106, 0
    %v2286 = vsel %vm172, %v2107, 0
    %v2289 = vsel %vm172, %v2108, 0
    %v2292 = vsel %vm172, %v2109, 0
    %v2295 = vsel %vm172, %v2110, 0
    %v2298 = vsel %vm172, %v2111, 0
    %v2301 = vsel %vm172, %v2112, 0
    %v2304 = vsel %vm172, %v2113, 0
    %v2307 = vsel %vm172, %v2114, 0
    %v2310 = vsel %vm365, %v2116, 0
    %2312 = vmatpush.msra.mxu0 0.0
    %2313 = vmatpush.msra.mxu0 0.0
    %2314 = vmatpush.msra.mxu0 0.0
    %2315 = vmatpush.msra.mxu0 0.0
    %2316 = vmatpush.msra.mxu0 0.0
    %2317 = vmatpush.msra.mxu0 0.0
    %2318 = vmatpush.msra.mxu0 0.0
    %2319 = vmatpush.msra.mxu0 0.0
    %2320 = vmatpush.msra.mxu0 0.0
    %2321 = vmatpush.msra.mxu0 0.0
    %2322 = vmatpush.msra.mxu0 0.0
    %2323 = vmatpush.msra.mxu0 0.0
    %2324 = vmatpush.msra.mxu0 0.0
    %2325 = vmatpush.msra.mxu0 0.0
    %2326 = vmatpush.msra.mxu0 0.0
    %2327 = vmatpush.msra.mxu0 %v2310
    %2328 = vmatmul.f32.gmra.mxu0 %v2118
    %v2329 = vpop.f32.mrf.mxu0
    %v2330 = vadd.f32 0.0, %v2329
    %2331 = vmatmul.f32.gmra.mxu0 %v2121
    %v2332 = vpop.f32.mrf.mxu0
    %v2333 = vadd.f32 0.0, %v2332
    %2334 = vmatmul.f32.gmra.mxu0 %v2124
    %v2335 = vpop.f32.mrf.mxu0
    %v2336 = vadd.f32 0.0, %v2335
    %2337 = vmatmul.f32.gmra.mxu0 %v2127
    %v2338 = vpop.f32.mrf.mxu0
    %v2339 = vadd.f32 0.0, %v2338
    %2340 = vmatmul.f32.gmra.mxu0 %v2130
    %v2341 = vpop.f32.mrf.mxu0
    %v2342 = vadd.f32 0.0, %v2341
    %2343 = vmatmul.f32.gmra.mxu0 %v2133
    %v2344 = vpop.f32.mrf.mxu0
    %v2345 = vadd.f32 0.0, %v2344
    %2346 = vmatmul.f32.gmra.mxu0 %v2136
    %v2347 = vpop.f32.mrf.mxu0
    %v2348 = vadd.f32 0.0, %v2347
    %2349 = vmatmul.f32.gmra.mxu0 %v2139
    %v2350 = vpop.f32.mrf.mxu0
    %v2351 = vadd.f32 0.0, %v2350
    %2352 = vmatmul.f32.gmra.mxu0 %v2142
    %v2353 = vpop.f32.mrf.mxu0
    %v2354 = vadd.f32 0.0, %v2353
    %2355 = vmatmul.f32.gmra.mxu0 %v2145
    %v2356 = vpop.f32.mrf.mxu0
    %v2357 = vadd.f32 0.0, %v2356
    %2358 = vmatmul.f32.gmra.mxu0 %v2148
    %v2359 = vpop.f32.mrf.mxu0
    %v2360 = vadd.f32 0.0, %v2359
    %2361 = vmatmul.f32.gmra.mxu0 %v2151
    %v2362 = vpop.f32.mrf.mxu0
    %v2363 = vadd.f32 0.0, %v2362
    %2364 = vmatmul.f32.gmra.mxu0 %v2154
    %v2365 = vpop.f32.mrf.mxu0
    %v2366 = vadd.f32 0.0, %v2365
    %2367 = vmatmul.f32.gmra.mxu0 %v2157
    %v2368 = vpop.f32.mrf.mxu0
    %v2369 = vadd.f32 0.0, %v2368
    %2370 = vmatmul.f32.gmra.mxu0 %v2160
    %v2371 = vpop.f32.mrf.mxu0
    %v2372 = vadd.f32 0.0, %v2371
    %2373 = vmatmul.f32.gmra.mxu0 %v2163
    %v2374 = vpop.f32.mrf.mxu0
    %v2375 = vadd.f32 0.0, %v2374
    %2376 = vmatmul.f32.gmra.mxu0 %v2166
    %v2377 = vpop.f32.mrf.mxu0
    %v2378 = vadd.f32 0.0, %v2377
    %2379 = vmatmul.f32.gmra.mxu0 %v2169
    %v2380 = vpop.f32.mrf.mxu0
    %v2381 = vadd.f32 0.0, %v2380
    %2382 = vmatmul.f32.gmra.mxu0 %v2172
    %v2383 = vpop.f32.mrf.mxu0
    %v2384 = vadd.f32 0.0, %v2383
    %2385 = vmatmul.f32.gmra.mxu0 %v2175
    %v2386 = vpop.f32.mrf.mxu0
    %v2387 = vadd.f32 0.0, %v2386
    %2388 = vmatmul.f32.gmra.mxu0 %v2178
    %v2389 = vpop.f32.mrf.mxu0
    %v2390 = vadd.f32 0.0, %v2389
    %2391 = vmatmul.f32.gmra.mxu0 %v2181
    %v2392 = vpop.f32.mrf.mxu0
    %v2393 = vadd.f32 0.0, %v2392
    %2394 = vmatmul.f32.gmra.mxu0 %v2184
    %v2395 = vpop.f32.mrf.mxu0
    %v2396 = vadd.f32 0.0, %v2395
    %2397 = vmatmul.f32.gmra.mxu0 %v2187
    %v2398 = vpop.f32.mrf.mxu0
    %v2399 = vadd.f32 0.0, %v2398
    %2400 = vmatmul.f32.gmra.mxu0 %v2190
    %v2401 = vpop.f32.mrf.mxu0
    %v2402 = vadd.f32 0.0, %v2401
    %2403 = vmatmul.f32.gmra.mxu0 %v2193
    %v2404 = vpop.f32.mrf.mxu0
    %v2405 = vadd.f32 0.0, %v2404
    %2406 = vmatmul.f32.gmra.mxu0 %v2196
    %v2407 = vpop.f32.mrf.mxu0
    %v2408 = vadd.f32 0.0, %v2407
    %2409 = vmatmul.f32.gmra.mxu0 %v2199
    %v2410 = vpop.f32.mrf.mxu0
    %v2411 = vadd.f32 0.0, %v2410
    %2412 = vmatmul.f32.gmra.mxu0 %v2202
    %v2413 = vpop.f32.mrf.mxu0
    %v2414 = vadd.f32 0.0, %v2413
    %2415 = vmatmul.f32.gmra.mxu0 %v2205
    %v2416 = vpop.f32.mrf.mxu0
    %v2417 = vadd.f32 0.0, %v2416
    %2418 = vmatmul.f32.gmra.mxu0 %v2208
    %v2419 = vpop.f32.mrf.mxu0
    %v2420 = vadd.f32 0.0, %v2419
    %2421 = vmatmul.f32.gmra.mxu0 %v2211
    %v2422 = vpop.f32.mrf.mxu0
    %v2423 = vadd.f32 0.0, %v2422
    %2424 = vmatmul.f32.gmra.mxu0 %v2214
    %v2425 = vpop.f32.mrf.mxu0
    %v2426 = vadd.f32 0.0, %v2425
    %2427 = vmatmul.f32.gmra.mxu0 %v2217
    %v2428 = vpop.f32.mrf.mxu0
    %v2429 = vadd.f32 0.0, %v2428
    %2430 = vmatmul.f32.gmra.mxu0 %v2220
    %v2431 = vpop.f32.mrf.mxu0
    %v2432 = vadd.f32 0.0, %v2431
    %2433 = vmatmul.f32.gmra.mxu0 %v2223
    %v2434 = vpop.f32.mrf.mxu0
    %v2435 = vadd.f32 0.0, %v2434
    %2436 = vmatmul.f32.gmra.mxu0 %v2226
    %v2437 = vpop.f32.mrf.mxu0
    %v2438 = vadd.f32 0.0, %v2437
    %2439 = vmatmul.f32.gmra.mxu0 %v2229
    %v2440 = vpop.f32.mrf.mxu0
    %v2441 = vadd.f32 0.0, %v2440
    %2442 = vmatmul.f32.gmra.mxu0 %v2232
    %v2443 = vpop.f32.mrf.mxu0
    %v2444 = vadd.f32 0.0, %v2443
    %2445 = vmatmul.f32.gmra.mxu0 %v2235
    %v2446 = vpop.f32.mrf.mxu0
    %v2447 = vadd.f32 0.0, %v2446
    %2448 = vmatmul.f32.gmra.mxu0 %v2238
    %v2449 = vpop.f32.mrf.mxu0
    %v2450 = vadd.f32 0.0, %v2449
    %2451 = vmatmul.f32.gmra.mxu0 %v2241
    %v2452 = vpop.f32.mrf.mxu0
    %v2453 = vadd.f32 0.0, %v2452
    %2454 = vmatmul.f32.gmra.mxu0 %v2244
    %v2455 = vpop.f32.mrf.mxu0
    %v2456 = vadd.f32 0.0, %v2455
    %2457 = vmatmul.f32.gmra.mxu0 %v2247
    %v2458 = vpop.f32.mrf.mxu0
    %v2459 = vadd.f32 0.0, %v2458
    %2460 = vmatmul.f32.gmra.mxu0 %v2250
    %v2461 = vpop.f32.mrf.mxu0
    %v2462 = vadd.f32 0.0, %v2461
    %2463 = vmatmul.f32.gmra.mxu0 %v2253
    %v2464 = vpop.f32.mrf.mxu0
    %v2465 = vadd.f32 0.0, %v2464
    %2466 = vmatmul.f32.gmra.mxu0 %v2256
    %v2467 = vpop.f32.mrf.mxu0
    %v2468 = vadd.f32 0.0, %v2467
    %2469 = vmatmul.f32.gmra.mxu0 %v2259
    %v2470 = vpop.f32.mrf.mxu0
    %v2471 = vadd.f32 0.0, %v2470
    %2472 = vmatmul.f32.gmra.mxu0 %v2262
    %v2473 = vpop.f32.mrf.mxu0
    %v2474 = vadd.f32 0.0, %v2473
    %2475 = vmatmul.f32.gmra.mxu0 %v2265
    %v2476 = vpop.f32.mrf.mxu0
    %v2477 = vadd.f32 0.0, %v2476
    %2478 = vmatmul.f32.gmra.mxu0 %v2268
    %v2479 = vpop.f32.mrf.mxu0
    %v2480 = vadd.f32 0.0, %v2479
    %2481 = vmatmul.f32.gmra.mxu0 %v2271
    %v2482 = vpop.f32.mrf.mxu0
    %v2483 = vadd.f32 0.0, %v2482
    %2484 = vmatmul.f32.gmra.mxu0 %v2274
    %v2485 = vpop.f32.mrf.mxu0
    %v2486 = vadd.f32 0.0, %v2485
    %2487 = vmatmul.f32.gmra.mxu0 %v2277
    %v2488 = vpop.f32.mrf.mxu0
    %v2489 = vadd.f32 0.0, %v2488
    %2490 = vmatmul.f32.gmra.mxu0 %v2280
    %v2491 = vpop.f32.mrf.mxu0
    %v2492 = vadd.f32 0.0, %v2491
    %2493 = vmatmul.f32.gmra.mxu0 %v2283
    %v2494 = vpop.f32.mrf.mxu0
    %v2495 = vadd.f32 0.0, %v2494
    %2496 = vmatmul.f32.gmra.mxu0 %v2286
    %v2497 = vpop.f32.mrf.mxu0
    %v2498 = vadd.f32 0.0, %v2497
    %2499 = vmatmul.f32.gmra.mxu0 %v2289
    %v2500 = vpop.f32.mrf.mxu0
    %v2501 = vadd.f32 0.0, %v2500
    %2502 = vmatmul.f32.gmra.mxu0 %v2292
    %v2503 = vpop.f32.mrf.mxu0
    %v2504 = vadd.f32 0.0, %v2503
    %2505 = vmatmul.f32.gmra.mxu0 %v2295
    %v2506 = vpop.f32.mrf.mxu0
    %v2507 = vadd.f32 0.0, %v2506
    %2508 = vmatmul.f32.gmra.mxu0 %v2298
    %v2509 = vpop.f32.mrf.mxu0
    %v2510 = vadd.f32 0.0, %v2509
    %2511 = vmatmul.f32.gmra.mxu0 %v2301
    %v2512 = vpop.f32.mrf.mxu0
    %v2513 = vadd.f32 0.0, %v2512
    %2514 = vmatmul.f32.gmra.mxu0 %v2304
    %v2515 = vpop.f32.mrf.mxu0
    %v2516 = vadd.f32 0.0, %v2515
    %2517 = vmatmul.f32.gmra.mxu0 %v2307
    %v2518 = vpop.f32.mrf.mxu0
    %v2519 = vadd.f32 0.0, %v2518
    %2520 = vdwg.mxu0
    %v2521 = vadd.f32 %v1986, %v2330
    %v2522 = vadd.f32 %v1987, %v2333
    %v2523 = vadd.f32 %v1988, %v2336
    %v2524 = vadd.f32 %v1989, %v2339
    %v2525 = vadd.f32 %v1990, %v2342
    %v2526 = vadd.f32 %v1991, %v2345
    %v2527 = vadd.f32 %v1992, %v2348
    %v2528 = vadd.f32 %v1993, %v2351
    %v2529 = vadd.f32 %v1994, %v2354
    %v2530 = vadd.f32 %v1995, %v2357
    %v2531 = vadd.f32 %v1996, %v2360
    %v2532 = vadd.f32 %v1997, %v2363
    %v2533 = vadd.f32 %v1998, %v2366
    %v2534 = vadd.f32 %v1999, %v2369
    %v2535 = vadd.f32 %v2000, %v2372
    %v2536 = vadd.f32 %v2001, %v2375
    %v2537 = vadd.f32 %v2002, %v2378
    %v2538 = vadd.f32 %v2003, %v2381
    %v2539 = vadd.f32 %v2004, %v2384
    %v2540 = vadd.f32 %v2005, %v2387
    %v2541 = vadd.f32 %v2006, %v2390
    %v2542 = vadd.f32 %v2007, %v2393
    %v2543 = vadd.f32 %v2008, %v2396
    %v2544 = vadd.f32 %v2009, %v2399
    %v2545 = vadd.f32 %v2010, %v2402
    %v2546 = vadd.f32 %v2011, %v2405
    %v2547 = vadd.f32 %v2012, %v2408
    %v2548 = vadd.f32 %v2013, %v2411
    %v2549 = vadd.f32 %v2014, %v2414
    %v2550 = vadd.f32 %v2015, %v2417
    %v2551 = vadd.f32 %v2016, %v2420
    %v2552 = vadd.f32 %v2017, %v2423
    %v2553 = vadd.f32 %v2018, %v2426
    %v2554 = vadd.f32 %v2019, %v2429
    %v2555 = vadd.f32 %v2020, %v2432
    %v2556 = vadd.f32 %v2021, %v2435
    %v2557 = vadd.f32 %v2022, %v2438
    %v2558 = vadd.f32 %v2023, %v2441
    %v2559 = vadd.f32 %v2024, %v2444
    %v2560 = vadd.f32 %v2025, %v2447
    %v2561 = vadd.f32 %v2026, %v2450
    %v2562 = vadd.f32 %v2027, %v2453
    %v2563 = vadd.f32 %v2028, %v2456
    %v2564 = vadd.f32 %v2029, %v2459
    %v2565 = vadd.f32 %v2030, %v2462
    %v2566 = vadd.f32 %v2031, %v2465
    %v2567 = vadd.f32 %v2032, %v2468
    %v2568 = vadd.f32 %v2033, %v2471
    %v2569 = vadd.f32 %v2034, %v2474
    %v2570 = vadd.f32 %v2035, %v2477
    %v2571 = vadd.f32 %v2036, %v2480
    %v2572 = vadd.f32 %v2037, %v2483
    %v2573 = vadd.f32 %v2038, %v2486
    %v2574 = vadd.f32 %v2039, %v2489
    %v2575 = vadd.f32 %v2040, %v2492
    %v2576 = vadd.f32 %v2041, %v2495
    %v2577 = vadd.f32 %v2042, %v2498
    %v2578 = vadd.f32 %v2043, %v2501
    %v2579 = vadd.f32 %v2044, %v2504
    %v2580 = vadd.f32 %v2045, %v2507
    %v2581 = vadd.f32 %v2046, %v2510
    %v2582 = vadd.f32 %v2047, %v2513
    %v2583 = vadd.f32 %v2048, %v2516
    %v2584 = vadd.f32 %v2049, %v2519
    %v2585 = vld [vmem:[%s2050 + $0x1] sm:$0xff]
    %v2586 = vld [vmem:[%s2050 + $0x9] sm:$0xff]
    %v2587 = vld [vmem:[%s2050 + $0x19] sm:$0xff]
    %v2588 = vld [vmem:[%s2050 + $0x21] sm:$0xff]
    %v2589 = vld [vmem:[%s2050 + $0x31] sm:$0xff]
    %v2590 = vld [vmem:[%s2050 + $0x39] sm:$0xff]
    %v2591 = vld [vmem:[%s2050 + $0x49] sm:$0xff]
    %v2592 = vld [vmem:[%s2050 + $0x51] sm:$0xff]
    %v2593 = vld [vmem:[%s2050 + $0x61] sm:$0xff]
    %v2594 = vld [vmem:[%s2050 + $0x69] sm:$0xff]
    %v2595 = vld [vmem:[%s2050 + $0x79] sm:$0xff]
    %v2596 = vld [vmem:[%s2050 + $0x81] sm:$0xff]
    %v2597 = vld [vmem:[%s2050 + $0x91] sm:$0xff]
    %v2598 = vld [vmem:[%s2050 + $0x99] sm:$0xff]
    %v2599 = vld [vmem:[%s2050 + $0xa9] sm:$0xff]
    %v2600 = vld [vmem:[%s2050 + $0xb1] sm:$0xff]
    %v2601 = vld [vmem:[%s2050 + $0xc1] sm:$0xff]
    %v2602 = vld [vmem:[%s2050 + $0xc9] sm:$0xff]
    %v2603 = vld [vmem:[%s2050 + $0xd9] sm:$0xff]
    %v2604 = vld [vmem:[%s2050 + $0xe1] sm:$0xff]
    %v2605 = vld [vmem:[%s2050 + $0xf1] sm:$0xff]
    %v2606 = vld [vmem:[%s2050 + $0xf9] sm:$0xff]
    %v2607 = vld [vmem:[%s2050 + $0x109] sm:$0xff]
    %v2608 = vld [vmem:[%s2050 + $0x111] sm:$0xff]
    %v2609 = vld [vmem:[%s2050 + $0x121] sm:$0xff]
    %v2610 = vld [vmem:[%s2050 + $0x129] sm:$0xff]
    %v2611 = vld [vmem:[%s2050 + $0x139] sm:$0xff]
    %v2612 = vld [vmem:[%s2050 + $0x141] sm:$0xff]
    %v2613 = vld [vmem:[%s2050 + $0x151] sm:$0xff]
    %v2614 = vld [vmem:[%s2050 + $0x159] sm:$0xff]
    %v2615 = vld [vmem:[%s2050 + $0x169] sm:$0xff]
    %v2616 = vld [vmem:[%s2050 + $0x171] sm:$0xff]
    %v2617 = vld [vmem:[%s2050 + $0x1c9] sm:$0xff]
    %v2618 = vld [vmem:[%s2050 + $0x1d1] sm:$0xff]
    %v2619 = vld [vmem:[%s2050 + $0x1e1] sm:$0xff]
    %v2620 = vld [vmem:[%s2050 + $0x1e9] sm:$0xff]
    %v2621 = vld [vmem:[%s2050 + $0x1f9] sm:$0xff]
    %v2622 = vld [vmem:[%s2050 + $0x201] sm:$0xff]
    %v2623 = vld [vmem:[%s2050 + $0x211] sm:$0xff]
    %v2624 = vld [vmem:[%s2050 + $0x219] sm:$0xff]
    %v2625 = vld [vmem:[%s2050 + $0x229] sm:$0xff]
    %v2626 = vld [vmem:[%s2050 + $0x231] sm:$0xff]
    %v2627 = vld [vmem:[%s2050 + $0x241] sm:$0xff]
    %v2628 = vld [vmem:[%s2050 + $0x249] sm:$0xff]
    %v2629 = vld [vmem:[%s2050 + $0x259] sm:$0xff]
    %v2630 = vld [vmem:[%s2050 + $0x261] sm:$0xff]
    %v2631 = vld [vmem:[%s2050 + $0x271] sm:$0xff]
    %v2632 = vld [vmem:[%s2050 + $0x279] sm:$0xff]
    %v2633 = vld [vmem:[%s2050 + $0x289] sm:$0xff]
    %v2634 = vld [vmem:[%s2050 + $0x291] sm:$0xff]
    %v2635 = vld [vmem:[%s2050 + $0x2a1] sm:$0xff]
    %v2636 = vld [vmem:[%s2050 + $0x2a9] sm:$0xff]
    %v2637 = vld [vmem:[%s2050 + $0x2b9] sm:$0xff]
    %v2638 = vld [vmem:[%s2050 + $0x2c1] sm:$0xff]
    %v2639 = vld [vmem:[%s2050 + $0x2d1] sm:$0xff]
    %v2640 = vld [vmem:[%s2050 + $0x2d9] sm:$0xff]
    %v2641 = vld [vmem:[%s2050 + $0x2e9] sm:$0xff]
    %v2642 = vld [vmem:[%s2050 + $0x2f1] sm:$0xff]
    %v2643 = vld [vmem:[%s2050 + $0x301] sm:$0xff]
    %v2644 = vld [vmem:[%s2050 + $0x309] sm:$0xff]
    %v2645 = vld [vmem:[%s2050 + $0x319] sm:$0xff]
    %v2646 = vld [vmem:[%s2050 + $0x321] sm:$0xff]
    %v2647 = vld [vmem:[%s2050 + $0x331] sm:$0xff]
    %v2648 = vld [vmem:[%s2050 + $0x339] sm:$0xff]
    %s2649 = scalar_lea.vmem %s1, 20
    %v2650 = vld [vmem:[%s2649] sm:$0x7]
    %v2652 = vsel %vm172, %v2585, 0
    %v2655 = vsel %vm172, %v2586, 0
    %v2658 = vsel %vm172, %v2587, 0
    %v2661 = vsel %vm172, %v2588, 0
    %v2664 = vsel %vm172, %v2589, 0
    %v2667 = vsel %vm172, %v2590, 0
    %v2670 = vsel %vm172, %v2591, 0
    %v2673 = vsel %vm172, %v2592, 0
    %v2676 = vsel %vm172, %v2593, 0
    %v2679 = vsel %vm172, %v2594, 0
    %v2682 = vsel %vm172, %v2595, 0
    %v2685 = vsel %vm172, %v2596, 0
    %v2688 = vsel %vm172, %v2597, 0
    %v2691 = vsel %vm172, %v2598, 0
    %v2694 = vsel %vm172, %v2599, 0
    %v2697 = vsel %vm172, %v2600, 0
    %v2700 = vsel %vm172, %v2601, 0
    %v2703 = vsel %vm172, %v2602, 0
    %v2706 = vsel %vm172, %v2603, 0
    %v2709 = vsel %vm172, %v2604, 0
    %v2712 = vsel %vm172, %v2605, 0
    %v2715 = vsel %vm172, %v2606, 0
    %v2718 = vsel %vm172, %v2607, 0
    %v2721 = vsel %vm172, %v2608, 0
    %v2724 = vsel %vm172, %v2609, 0
    %v2727 = vsel %vm172, %v2610, 0
    %v2730 = vsel %vm172, %v2611, 0
    %v2733 = vsel %vm172, %v2612, 0
    %v2736 = vsel %vm172, %v2613, 0
    %v2739 = vsel %vm172, %v2614, 0
    %v2742 = vsel %vm172, %v2615, 0
    %v2745 = vsel %vm172, %v2616, 0
    %v2748 = vsel %vm172, %v2617, 0
    %v2751 = vsel %vm172, %v2618, 0
    %v2754 = vsel %vm172, %v2619, 0
    %v2757 = vsel %vm172, %v2620, 0
    %v2760 = vsel %vm172, %v2621, 0
    %v2763 = vsel %vm172, %v2622, 0
    %v2766 = vsel %vm172, %v2623, 0
    %v2769 = vsel %vm172, %v2624, 0
    %v2772 = vsel %vm172, %v2625, 0
    %v2775 = vsel %vm172, %v2626, 0
    %v2778 = vsel %vm172, %v2627, 0
    %v2781 = vsel %vm172, %v2628, 0
    %v2784 = vsel %vm172, %v2629, 0
    %v2787 = vsel %vm172, %v2630, 0
    %v2790 = vsel %vm172, %v2631, 0
    %v2793 = vsel %vm172, %v2632, 0
    %v2796 = vsel %vm172, %v2633, 0
    %v2799 = vsel %vm172, %v2634, 0
    %v2802 = vsel %vm172, %v2635, 0
    %v2805 = vsel %vm172, %v2636, 0
    %v2808 = vsel %vm172, %v2637, 0
    %v2811 = vsel %vm172, %v2638, 0
    %v2814 = vsel %vm172, %v2639, 0
    %v2817 = vsel %vm172, %v2640, 0
    %v2820 = vsel %vm172, %v2641, 0
    %v2823 = vsel %vm172, %v2642, 0
    %v2826 = vsel %vm172, %v2643, 0
    %v2829 = vsel %vm172, %v2644, 0
    %v2832 = vsel %vm172, %v2645, 0
    %v2835 = vsel %vm172, %v2646, 0
    %v2838 = vsel %vm172, %v2647, 0
    %v2841 = vsel %vm172, %v2648, 0
    %v2844 = vsel %vm365, %v2650, 0
    %2846 = vmatpush.msra.mxu0 0.0
    %2847 = vmatpush.msra.mxu0 0.0
    %2848 = vmatpush.msra.mxu0 0.0
    %2849 = vmatpush.msra.mxu0 0.0
    %2850 = vmatpush.msra.mxu0 0.0
    %2851 = vmatpush.msra.mxu0 0.0
    %2852 = vmatpush.msra.mxu0 0.0
    %2853 = vmatpush.msra.mxu0 0.0
    %2854 = vmatpush.msra.mxu0 0.0
    %2855 = vmatpush.msra.mxu0 0.0
    %2856 = vmatpush.msra.mxu0 0.0
    %2857 = vmatpush.msra.mxu0 0.0
    %2858 = vmatpush.msra.mxu0 0.0
    %2859 = vmatpush.msra.mxu0 0.0
    %2860 = vmatpush.msra.mxu0 0.0
    %2861 = vmatpush.msra.mxu0 %v2844
    %2862 = vmatmul.f32.gmra.mxu0 %v2652
    %v2863 = vpop.f32.mrf.mxu0
    %v2864 = vadd.f32 0.0, %v2863
    %2865 = vmatmul.f32.gmra.mxu0 %v2655
    %v2866 = vpop.f32.mrf.mxu0
    %v2867 = vadd.f32 0.0, %v2866
    %2868 = vmatmul.f32.gmra.mxu0 %v2658
    %v2869 = vpop.f32.mrf.mxu0
    %v2870 = vadd.f32 0.0, %v2869
    %2871 = vmatmul.f32.gmra.mxu0 %v2661
    %v2872 = vpop.f32.mrf.mxu0
    %v2873 = vadd.f32 0.0, %v2872
    %2874 = vmatmul.f32.gmra.mxu0 %v2664
    %v2875 = vpop.f32.mrf.mxu0
    %v2876 = vadd.f32 0.0, %v2875
    %2877 = vmatmul.f32.gmra.mxu0 %v2667
    %v2878 = vpop.f32.mrf.mxu0
    %v2879 = vadd.f32 0.0, %v2878
    %2880 = vmatmul.f32.gmra.mxu0 %v2670
    %v2881 = vpop.f32.mrf.mxu0
    %v2882 = vadd.f32 0.0, %v2881
    %2883 = vmatmul.f32.gmra.mxu0 %v2673
    %v2884 = vpop.f32.mrf.mxu0
    %v2885 = vadd.f32 0.0, %v2884
    %2886 = vmatmul.f32.gmra.mxu0 %v2676
    %v2887 = vpop.f32.mrf.mxu0
    %v2888 = vadd.f32 0.0, %v2887
    %2889 = vmatmul.f32.gmra.mxu0 %v2679
    %v2890 = vpop.f32.mrf.mxu0
    %v2891 = vadd.f32 0.0, %v2890
    %2892 = vmatmul.f32.gmra.mxu0 %v2682
    %v2893 = vpop.f32.mrf.mxu0
    %v2894 = vadd.f32 0.0, %v2893
    %2895 = vmatmul.f32.gmra.mxu0 %v2685
    %v2896 = vpop.f32.mrf.mxu0
    %v2897 = vadd.f32 0.0, %v2896
    %2898 = vmatmul.f32.gmra.mxu0 %v2688
    %v2899 = vpop.f32.mrf.mxu0
    %v2900 = vadd.f32 0.0, %v2899
    %2901 = vmatmul.f32.gmra.mxu0 %v2691
    %v2902 = vpop.f32.mrf.mxu0
    %v2903 = vadd.f32 0.0, %v2902
    %2904 = vmatmul.f32.gmra.mxu0 %v2694
    %v2905 = vpop.f32.mrf.mxu0
    %v2906 = vadd.f32 0.0, %v2905
    %2907 = vmatmul.f32.gmra.mxu0 %v2697
    %v2908 = vpop.f32.mrf.mxu0
    %v2909 = vadd.f32 0.0, %v2908
    %2910 = vmatmul.f32.gmra.mxu0 %v2700
    %v2911 = vpop.f32.mrf.mxu0
    %v2912 = vadd.f32 0.0, %v2911
    %2913 = vmatmul.f32.gmra.mxu0 %v2703
    %v2914 = vpop.f32.mrf.mxu0
    %v2915 = vadd.f32 0.0, %v2914
    %2916 = vmatmul.f32.gmra.mxu0 %v2706
    %v2917 = vpop.f32.mrf.mxu0
    %v2918 = vadd.f32 0.0, %v2917
    %2919 = vmatmul.f32.gmra.mxu0 %v2709
    %v2920 = vpop.f32.mrf.mxu0
    %v2921 = vadd.f32 0.0, %v2920
    %2922 = vmatmul.f32.gmra.mxu0 %v2712
    %v2923 = vpop.f32.mrf.mxu0
    %v2924 = vadd.f32 0.0, %v2923
    %2925 = vmatmul.f32.gmra.mxu0 %v2715
    %v2926 = vpop.f32.mrf.mxu0
    %v2927 = vadd.f32 0.0, %v2926
    %2928 = vmatmul.f32.gmra.mxu0 %v2718
    %v2929 = vpop.f32.mrf.mxu0
    %v2930 = vadd.f32 0.0, %v2929
    %2931 = vmatmul.f32.gmra.mxu0 %v2721
    %v2932 = vpop.f32.mrf.mxu0
    %v2933 = vadd.f32 0.0, %v2932
    %2934 = vmatmul.f32.gmra.mxu0 %v2724
    %v2935 = vpop.f32.mrf.mxu0
    %v2936 = vadd.f32 0.0, %v2935
    %2937 = vmatmul.f32.gmra.mxu0 %v2727
    %v2938 = vpop.f32.mrf.mxu0
    %v2939 = vadd.f32 0.0, %v2938
    %2940 = vmatmul.f32.gmra.mxu0 %v2730
    %v2941 = vpop.f32.mrf.mxu0
    %v2942 = vadd.f32 0.0, %v2941
    %2943 = vmatmul.f32.gmra.mxu0 %v2733
    %v2944 = vpop.f32.mrf.mxu0
    %v2945 = vadd.f32 0.0, %v2944
    %2946 = vmatmul.f32.gmra.mxu0 %v2736
    %v2947 = vpop.f32.mrf.mxu0
    %v2948 = vadd.f32 0.0, %v2947
    %2949 = vmatmul.f32.gmra.mxu0 %v2739
    %v2950 = vpop.f32.mrf.mxu0
    %v2951 = vadd.f32 0.0, %v2950
    %2952 = vmatmul.f32.gmra.mxu0 %v2742
    %v2953 = vpop.f32.mrf.mxu0
    %v2954 = vadd.f32 0.0, %v2953
    %2955 = vmatmul.f32.gmra.mxu0 %v2745
    %v2956 = vpop.f32.mrf.mxu0
    %v2957 = vadd.f32 0.0, %v2956
    %2958 = vmatmul.f32.gmra.mxu0 %v2748
    %v2959 = vpop.f32.mrf.mxu0
    %v2960 = vadd.f32 0.0, %v2959
    %2961 = vmatmul.f32.gmra.mxu0 %v2751
    %v2962 = vpop.f32.mrf.mxu0
    %v2963 = vadd.f32 0.0, %v2962
    %2964 = vmatmul.f32.gmra.mxu0 %v2754
    %v2965 = vpop.f32.mrf.mxu0
    %v2966 = vadd.f32 0.0, %v2965
    %2967 = vmatmul.f32.gmra.mxu0 %v2757
    %v2968 = vpop.f32.mrf.mxu0
    %v2969 = vadd.f32 0.0, %v2968
    %2970 = vmatmul.f32.gmra.mxu0 %v2760
    %v2971 = vpop.f32.mrf.mxu0
    %v2972 = vadd.f32 0.0, %v2971
    %2973 = vmatmul.f32.gmra.mxu0 %v2763
    %v2974 = vpop.f32.mrf.mxu0
    %v2975 = vadd.f32 0.0, %v2974
    %2976 = vmatmul.f32.gmra.mxu0 %v2766
    %v2977 = vpop.f32.mrf.mxu0
    %v2978 = vadd.f32 0.0, %v2977
    %2979 = vmatmul.f32.gmra.mxu0 %v2769
    %v2980 = vpop.f32.mrf.mxu0
    %v2981 = vadd.f32 0.0, %v2980
    %2982 = vmatmul.f32.gmra.mxu0 %v2772
    %v2983 = vpop.f32.mrf.mxu0
    %v2984 = vadd.f32 0.0, %v2983
    %2985 = vmatmul.f32.gmra.mxu0 %v2775
    %v2986 = vpop.f32.mrf.mxu0
    %v2987 = vadd.f32 0.0, %v2986
    %2988 = vmatmul.f32.gmra.mxu0 %v2778
    %v2989 = vpop.f32.mrf.mxu0
    %v2990 = vadd.f32 0.0, %v2989
    %2991 = vmatmul.f32.gmra.mxu0 %v2781
    %v2992 = vpop.f32.mrf.mxu0
    %v2993 = vadd.f32 0.0, %v2992
    %2994 = vmatmul.f32.gmra.mxu0 %v2784
    %v2995 = vpop.f32.mrf.mxu0
    %v2996 = vadd.f32 0.0, %v2995
    %2997 = vmatmul.f32.gmra.mxu0 %v2787
    %v2998 = vpop.f32.mrf.mxu0
    %v2999 = vadd.f32 0.0, %v2998
    %3000 = vmatmul.f32.gmra.mxu0 %v2790
    %v3001 = vpop.f32.mrf.mxu0
    %v3002 = vadd.f32 0.0, %v3001
    %3003 = vmatmul.f32.gmra.mxu0 %v2793
    %v3004 = vpop.f32.mrf.mxu0
    %v3005 = vadd.f32 0.0, %v3004
    %3006 = vmatmul.f32.gmra.mxu0 %v2796
    %v3007 = vpop.f32.mrf.mxu0
    %v3008 = vadd.f32 0.0, %v3007
    %3009 = vmatmul.f32.gmra.mxu0 %v2799
    %v3010 = vpop.f32.mrf.mxu0
    %v3011 = vadd.f32 0.0, %v3010
    %3012 = vmatmul.f32.gmra.mxu0 %v2802
    %v3013 = vpop.f32.mrf.mxu0
    %v3014 = vadd.f32 0.0, %v3013
    %3015 = vmatmul.f32.gmra.mxu0 %v2805
    %v3016 = vpop.f32.mrf.mxu0
    %v3017 = vadd.f32 0.0, %v3016
    %3018 = vmatmul.f32.gmra.mxu0 %v2808
    %v3019 = vpop.f32.mrf.mxu0
    %v3020 = vadd.f32 0.0, %v3019
    %3021 = vmatmul.f32.gmra.mxu0 %v2811
    %v3022 = vpop.f32.mrf.mxu0
    %v3023 = vadd.f32 0.0, %v3022
    %3024 = vmatmul.f32.gmra.mxu0 %v2814
    %v3025 = vpop.f32.mrf.mxu0
    %v3026 = vadd.f32 0.0, %v3025
    %3027 = vmatmul.f32.gmra.mxu0 %v2817
    %v3028 = vpop.f32.mrf.mxu0
    %v3029 = vadd.f32 0.0, %v3028
    %3030 = vmatmul.f32.gmra.mxu0 %v2820
    %v3031 = vpop.f32.mrf.mxu0
    %v3032 = vadd.f32 0.0, %v3031
    %3033 = vmatmul.f32.gmra.mxu0 %v2823
    %v3034 = vpop.f32.mrf.mxu0
    %v3035 = vadd.f32 0.0, %v3034
    %3036 = vmatmul.f32.gmra.mxu0 %v2826
    %v3037 = vpop.f32.mrf.mxu0
    %v3038 = vadd.f32 0.0, %v3037
    %3039 = vmatmul.f32.gmra.mxu0 %v2829
    %v3040 = vpop.f32.mrf.mxu0
    %v3041 = vadd.f32 0.0, %v3040
    %3042 = vmatmul.f32.gmra.mxu0 %v2832
    %v3043 = vpop.f32.mrf.mxu0
    %v3044 = vadd.f32 0.0, %v3043
    %3045 = vmatmul.f32.gmra.mxu0 %v2835
    %v3046 = vpop.f32.mrf.mxu0
    %v3047 = vadd.f32 0.0, %v3046
    %3048 = vmatmul.f32.gmra.mxu0 %v2838
    %v3049 = vpop.f32.mrf.mxu0
    %v3050 = vadd.f32 0.0, %v3049
    %3051 = vmatmul.f32.gmra.mxu0 %v2841
    %v3052 = vpop.f32.mrf.mxu0
    %v3053 = vadd.f32 0.0, %v3052
    %3054 = vdwg.mxu0
    %v3055 = vadd.f32 %v2521, %v2864
    %v3056 = vadd.f32 %v2522, %v2867
    %v3057 = vadd.f32 %v2523, %v2870
    %v3058 = vadd.f32 %v2524, %v2873
    %v3059 = vadd.f32 %v2525, %v2876
    %v3060 = vadd.f32 %v2526, %v2879
    %v3061 = vadd.f32 %v2527, %v2882
    %v3062 = vadd.f32 %v2528, %v2885
    %v3063 = vadd.f32 %v2529, %v2888
    %v3064 = vadd.f32 %v2530, %v2891
    %v3065 = vadd.f32 %v2531, %v2894
    %v3066 = vadd.f32 %v2532, %v2897
    %v3067 = vadd.f32 %v2533, %v2900
    %v3068 = vadd.f32 %v2534, %v2903
    %v3069 = vadd.f32 %v2535, %v2906
    %v3070 = vadd.f32 %v2536, %v2909
    %v3071 = vadd.f32 %v2537, %v2912
    %v3072 = vadd.f32 %v2538, %v2915
    %v3073 = vadd.f32 %v2539, %v2918
    %v3074 = vadd.f32 %v2540, %v2921
    %v3075 = vadd.f32 %v2541, %v2924
    %v3076 = vadd.f32 %v2542, %v2927
    %v3077 = vadd.f32 %v2543, %v2930
    %v3078 = vadd.f32 %v2544, %v2933
    %v3079 = vadd.f32 %v2545, %v2936
    %v3080 = vadd.f32 %v2546, %v2939
    %v3081 = vadd.f32 %v2547, %v2942
    %v3082 = vadd.f32 %v2548, %v2945
    %v3083 = vadd.f32 %v2549, %v2948
    %v3084 = vadd.f32 %v2550, %v2951
    %v3085 = vadd.f32 %v2551, %v2954
    %v3086 = vadd.f32 %v2552, %v2957
    %v3087 = vadd.f32 %v2553, %v2960
    %v3088 = vadd.f32 %v2554, %v2963
    %v3089 = vadd.f32 %v2555, %v2966
    %v3090 = vadd.f32 %v2556, %v2969
    %v3091 = vadd.f32 %v2557, %v2972
    %v3092 = vadd.f32 %v2558, %v2975
    %v3093 = vadd.f32 %v2559, %v2978
    %v3094 = vadd.f32 %v2560, %v2981
    %v3095 = vadd.f32 %v2561, %v2984
    %v3096 = vadd.f32 %v2562, %v2987
    %v3097 = vadd.f32 %v2563, %v2990
    %v3098 = vadd.f32 %v2564, %v2993
    %v3099 = vadd.f32 %v2565, %v2996
    %v3100 = vadd.f32 %v2566, %v2999
    %v3101 = vadd.f32 %v2567, %v3002
    %v3102 = vadd.f32 %v2568, %v3005
    %v3103 = vadd.f32 %v2569, %v3008
    %v3104 = vadd.f32 %v2570, %v3011
    %v3105 = vadd.f32 %v2571, %v3014
    %v3106 = vadd.f32 %v2572, %v3017
    %v3107 = vadd.f32 %v2573, %v3020
    %v3108 = vadd.f32 %v2574, %v3023
    %v3109 = vadd.f32 %v2575, %v3026
    %v3110 = vadd.f32 %v2576, %v3029
    %v3111 = vadd.f32 %v2577, %v3032
    %v3112 = vadd.f32 %v2578, %v3035
    %v3113 = vadd.f32 %v2579, %v3038
    %v3114 = vadd.f32 %v2580, %v3041
    %v3115 = vadd.f32 %v2581, %v3044
    %v3116 = vadd.f32 %v2582, %v3047
    %v3117 = vadd.f32 %v2583, %v3050
    %v3118 = vadd.f32 %v2584, %v3053
    %v3119 = vld [vmem:[%s2050 + $0x2] sm:$0xff]
    %v3120 = vld [vmem:[%s2050 + $0xa] sm:$0xff]
    %v3121 = vld [vmem:[%s2050 + $0x1a] sm:$0xff]
    %v3122 = vld [vmem:[%s2050 + $0x22] sm:$0xff]
    %v3123 = vld [vmem:[%s2050 + $0x32] sm:$0xff]
    %v3124 = vld [vmem:[%s2050 + $0x3a] sm:$0xff]
    %v3125 = vld [vmem:[%s2050 + $0x4a] sm:$0xff]
    %v3126 = vld [vmem:[%s2050 + $0x52] sm:$0xff]
    %v3127 = vld [vmem:[%s2050 + $0x62] sm:$0xff]
    %v3128 = vld [vmem:[%s2050 + $0x6a] sm:$0xff]
    %v3129 = vld [vmem:[%s2050 + $0x7a] sm:$0xff]
    %v3130 = vld [vmem:[%s2050 + $0x82] sm:$0xff]
    %v3131 = vld [vmem:[%s2050 + $0x92] sm:$0xff]
    %v3132 = vld [vmem:[%s2050 + $0x9a] sm:$0xff]
    %v3133 = vld [vmem:[%s2050 + $0xaa] sm:$0xff]
    %v3134 = vld [vmem:[%s2050 + $0xb2] sm:$0xff]
    %v3135 = vld [vmem:[%s2050 + $0xc2] sm:$0xff]
    %v3136 = vld [vmem:[%s2050 + $0xca] sm:$0xff]
    %v3137 = vld [vmem:[%s2050 + $0xda] sm:$0xff]
    %v3138 = vld [vmem:[%s2050 + $0xe2] sm:$0xff]
    %v3139 = vld [vmem:[%s2050 + $0xf2] sm:$0xff]
    %v3140 = vld [vmem:[%s2050 + $0xfa] sm:$0xff]
    %v3141 = vld [vmem:[%s2050 + $0x10a] sm:$0xff]
    %v3142 = vld [vmem:[%s2050 + $0x112] sm:$0xff]
    %v3143 = vld [vmem:[%s2050 + $0x122] sm:$0xff]
    %v3144 = vld [vmem:[%s2050 + $0x12a] sm:$0xff]
    %v3145 = vld [vmem:[%s2050 + $0x13a] sm:$0xff]
    %v3146 = vld [vmem:[%s2050 + $0x142] sm:$0xff]
    %v3147 = vld [vmem:[%s2050 + $0x152] sm:$0xff]
    %v3148 = vld [vmem:[%s2050 + $0x15a] sm:$0xff]
    %v3149 = vld [vmem:[%s2050 + $0x16a] sm:$0xff]
    %v3150 = vld [vmem:[%s2050 + $0x172] sm:$0xff]
    %v3151 = vld [vmem:[%s2050 + $0x1ca] sm:$0xff]
    %v3152 = vld [vmem:[%s2050 + $0x1d2] sm:$0xff]
    %v3153 = vld [vmem:[%s2050 + $0x1e2] sm:$0xff]
    %v3154 = vld [vmem:[%s2050 + $0x1ea] sm:$0xff]
    %v3155 = vld [vmem:[%s2050 + $0x1fa] sm:$0xff]
    %v3156 = vld [vmem:[%s2050 + $0x202] sm:$0xff]
    %v3157 = vld [vmem:[%s2050 + $0x212] sm:$0xff]
    %v3158 = vld [vmem:[%s2050 + $0x21a] sm:$0xff]
    %v3159 = vld [vmem:[%s2050 + $0x22a] sm:$0xff]
    %v3160 = vld [vmem:[%s2050 + $0x232] sm:$0xff]
    %v3161 = vld [vmem:[%s2050 + $0x242] sm:$0xff]
    %v3162 = vld [vmem:[%s2050 + $0x24a] sm:$0xff]
    %v3163 = vld [vmem:[%s2050 + $0x25a] sm:$0xff]
    %v3164 = vld [vmem:[%s2050 + $0x262] sm:$0xff]
    %v3165 = vld [vmem:[%s2050 + $0x272] sm:$0xff]
    %v3166 = vld [vmem:[%s2050 + $0x27a] sm:$0xff]
    %v3167 = vld [vmem:[%s2050 + $0x28a] sm:$0xff]
    %v3168 = vld [vmem:[%s2050 + $0x292] sm:$0xff]
    %v3169 = vld [vmem:[%s2050 + $0x2a2] sm:$0xff]
    %v3170 = vld [vmem:[%s2050 + $0x2aa] sm:$0xff]
    %v3171 = vld [vmem:[%s2050 + $0x2ba] sm:$0xff]
    %v3172 = vld [vmem:[%s2050 + $0x2c2] sm:$0xff]
    %v3173 = vld [vmem:[%s2050 + $0x2d2] sm:$0xff]
    %v3174 = vld [vmem:[%s2050 + $0x2da] sm:$0xff]
    %v3175 = vld [vmem:[%s2050 + $0x2ea] sm:$0xff]
    %v3176 = vld [vmem:[%s2050 + $0x2f2] sm:$0xff]
    %v3177 = vld [vmem:[%s2050 + $0x302] sm:$0xff]
    %v3178 = vld [vmem:[%s2050 + $0x30a] sm:$0xff]
    %v3179 = vld [vmem:[%s2050 + $0x31a] sm:$0xff]
    %v3180 = vld [vmem:[%s2050 + $0x322] sm:$0xff]
    %v3181 = vld [vmem:[%s2050 + $0x332] sm:$0xff]
    %v3182 = vld [vmem:[%s2050 + $0x33a] sm:$0xff]
    %s3183 = scalar_lea.vmem %s1, 24
    %v3184 = vld [vmem:[%s3183] sm:$0x7]
    %v3186 = vsel %vm172, %v3119, 0
    %v3189 = vsel %vm172, %v3120, 0
    %v3192 = vsel %vm172, %v3121, 0
    %v3195 = vsel %vm172, %v3122, 0
    %v3198 = vsel %vm172, %v3123, 0
    %v3201 = vsel %vm172, %v3124, 0
    %v3204 = vsel %vm172, %v3125, 0
    %v3207 = vsel %vm172, %v3126, 0
    %v3210 = vsel %vm172, %v3127, 0
    %v3213 = vsel %vm172, %v3128, 0
    %v3216 = vsel %vm172, %v3129, 0
    %v3219 = vsel %vm172, %v3130, 0
    %v3222 = vsel %vm172, %v3131, 0
    %v3225 = vsel %vm172, %v3132, 0
    %v3228 = vsel %vm172, %v3133, 0
    %v3231 = vsel %vm172, %v3134, 0
    %v3234 = vsel %vm172, %v3135, 0
    %v3237 = vsel %vm172, %v3136, 0
    %v3240 = vsel %vm172, %v3137, 0
    %v3243 = vsel %vm172, %v3138, 0
    %v3246 = vsel %vm172, %v3139, 0
    %v3249 = vsel %vm172, %v3140, 0
    %v3252 = vsel %vm172, %v3141, 0
    %v3255 = vsel %vm172, %v3142, 0
    %v3258 = vsel %vm172, %v3143, 0
    %v3261 = vsel %vm172, %v3144, 0
    %v3264 = vsel %vm172, %v3145, 0
    %v3267 = vsel %vm172, %v3146, 0
    %v3270 = vsel %vm172, %v3147, 0
    %v3273 = vsel %vm172, %v3148, 0
    %v3276 = vsel %vm172, %v3149, 0
    %v3279 = vsel %vm172, %v3150, 0
    %v3282 = vsel %vm172, %v3151, 0
    %v3285 = vsel %vm172, %v3152, 0
    %v3288 = vsel %vm172, %v3153, 0
    %v3291 = vsel %vm172, %v3154, 0
    %v3294 = vsel %vm172, %v3155, 0
    %v3297 = vsel %vm172, %v3156, 0
    %v3300 = vsel %vm172, %v3157, 0
    %v3303 = vsel %vm172, %v3158, 0
    %v3306 = vsel %vm172, %v3159, 0
    %v3309 = vsel %vm172, %v3160, 0
    %v3312 = vsel %vm172, %v3161, 0
    %v3315 = vsel %vm172, %v3162, 0
    %v3318 = vsel %vm172, %v3163, 0
    %v3321 = vsel %vm172, %v3164, 0
    %v3324 = vsel %vm172, %v3165, 0
    %v3327 = vsel %vm172, %v3166, 0
    %v3330 = vsel %vm172, %v3167, 0
    %v3333 = vsel %vm172, %v3168, 0
    %v3336 = vsel %vm172, %v3169, 0
    %v3339 = vsel %vm172, %v3170, 0
    %v3342 = vsel %vm172, %v3171, 0
    %v3345 = vsel %vm172, %v3172, 0
    %v3348 = vsel %vm172, %v3173, 0
    %v3351 = vsel %vm172, %v3174, 0
    %v3354 = vsel %vm172, %v3175, 0
    %v3357 = vsel %vm172, %v3176, 0
    %v3360 = vsel %vm172, %v3177, 0
    %v3363 = vsel %vm172, %v3178, 0
    %v3366 = vsel %vm172, %v3179, 0
    %v3369 = vsel %vm172, %v3180, 0
    %v3372 = vsel %vm172, %v3181, 0
    %v3375 = vsel %vm172, %v3182, 0
    %v3378 = vsel %vm365, %v3184, 0
    %3380 = vmatpush.msra.mxu0 0.0
    %3381 = vmatpush.msra.mxu0 0.0
    %3382 = vmatpush.msra.mxu0 0.0
    %3383 = vmatpush.msra.mxu0 0.0
    %3384 = vmatpush.msra.mxu0 0.0
    %3385 = vmatpush.msra.mxu0 0.0
    %3386 = vmatpush.msra.mxu0 0.0
    %3387 = vmatpush.msra.mxu0 0.0
    %3388 = vmatpush.msra.mxu0 0.0
    %3389 = vmatpush.msra.mxu0 0.0
    %3390 = vmatpush.msra.mxu0 0.0
    %3391 = vmatpush.msra.mxu0 0.0
    %3392 = vmatpush.msra.mxu0 0.0
    %3393 = vmatpush.msra.mxu0 0.0
    %3394 = vmatpush.msra.mxu0 0.0
    %3395 = vmatpush.msra.mxu0 %v3378
    %3396 = vmatmul.f32.gmra.mxu0 %v3186
    %v3397 = vpop.f32.mrf.mxu0
    %v3398 = vadd.f32 0.0, %v3397
    %3399 = vmatmul.f32.gmra.mxu0 %v3189
    %v3400 = vpop.f32.mrf.mxu0
    %v3401 = vadd.f32 0.0, %v3400
    %3402 = vmatmul.f32.gmra.mxu0 %v3192
    %v3403 = vpop.f32.mrf.mxu0
    %v3404 = vadd.f32 0.0, %v3403
    %3405 = vmatmul.f32.gmra.mxu0 %v3195
    %v3406 = vpop.f32.mrf.mxu0
    %v3407 = vadd.f32 0.0, %v3406
    %3408 = vmatmul.f32.gmra.mxu0 %v3198
    %v3409 = vpop.f32.mrf.mxu0
    %v3410 = vadd.f32 0.0, %v3409
    %3411 = vmatmul.f32.gmra.mxu0 %v3201
    %v3412 = vpop.f32.mrf.mxu0
    %v3413 = vadd.f32 0.0, %v3412
    %3414 = vmatmul.f32.gmra.mxu0 %v3204
    %v3415 = vpop.f32.mrf.mxu0
    %v3416 = vadd.f32 0.0, %v3415
    %3417 = vmatmul.f32.gmra.mxu0 %v3207
    %v3418 = vpop.f32.mrf.mxu0
    %v3419 = vadd.f32 0.0, %v3418
    %3420 = vmatmul.f32.gmra.mxu0 %v3210
    %v3421 = vpop.f32.mrf.mxu0
    %v3422 = vadd.f32 0.0, %v3421
    %3423 = vmatmul.f32.gmra.mxu0 %v3213
    %v3424 = vpop.f32.mrf.mxu0
    %v3425 = vadd.f32 0.0, %v3424
    %3426 = vmatmul.f32.gmra.mxu0 %v3216
    %v3427 = vpop.f32.mrf.mxu0
    %v3428 = vadd.f32 0.0, %v3427
    %3429 = vmatmul.f32.gmra.mxu0 %v3219
    %v3430 = vpop.f32.mrf.mxu0
    %v3431 = vadd.f32 0.0, %v3430
    %3432 = vmatmul.f32.gmra.mxu0 %v3222
    %v3433 = vpop.f32.mrf.mxu0
    %v3434 = vadd.f32 0.0, %v3433
    %3435 = vmatmul.f32.gmra.mxu0 %v3225
    %v3436 = vpop.f32.mrf.mxu0
    %v3437 = vadd.f32 0.0, %v3436
    %3438 = vmatmul.f32.gmra.mxu0 %v3228
    %v3439 = vpop.f32.mrf.mxu0
    %v3440 = vadd.f32 0.0, %v3439
    %3441 = vmatmul.f32.gmra.mxu0 %v3231
    %v3442 = vpop.f32.mrf.mxu0
    %v3443 = vadd.f32 0.0, %v3442
    %3444 = vmatmul.f32.gmra.mxu0 %v3234
    %v3445 = vpop.f32.mrf.mxu0
    %v3446 = vadd.f32 0.0, %v3445
    %3447 = vmatmul.f32.gmra.mxu0 %v3237
    %v3448 = vpop.f32.mrf.mxu0
    %v3449 = vadd.f32 0.0, %v3448
    %3450 = vmatmul.f32.gmra.mxu0 %v3240
    %v3451 = vpop.f32.mrf.mxu0
    %v3452 = vadd.f32 0.0, %v3451
    %3453 = vmatmul.f32.gmra.mxu0 %v3243
    %v3454 = vpop.f32.mrf.mxu0
    %v3455 = vadd.f32 0.0, %v3454
    %3456 = vmatmul.f32.gmra.mxu0 %v3246
    %v3457 = vpop.f32.mrf.mxu0
    %v3458 = vadd.f32 0.0, %v3457
    %3459 = vmatmul.f32.gmra.mxu0 %v3249
    %v3460 = vpop.f32.mrf.mxu0
    %v3461 = vadd.f32 0.0, %v3460
    %3462 = vmatmul.f32.gmra.mxu0 %v3252
    %v3463 = vpop.f32.mrf.mxu0
    %v3464 = vadd.f32 0.0, %v3463
    %3465 = vmatmul.f32.gmra.mxu0 %v3255
    %v3466 = vpop.f32.mrf.mxu0
    %v3467 = vadd.f32 0.0, %v3466
    %3468 = vmatmul.f32.gmra.mxu0 %v3258
    %v3469 = vpop.f32.mrf.mxu0
    %v3470 = vadd.f32 0.0, %v3469
    %3471 = vmatmul.f32.gmra.mxu0 %v3261
    %v3472 = vpop.f32.mrf.mxu0
    %v3473 = vadd.f32 0.0, %v3472
    %3474 = vmatmul.f32.gmra.mxu0 %v3264
    %v3475 = vpop.f32.mrf.mxu0
    %v3476 = vadd.f32 0.0, %v3475
    %3477 = vmatmul.f32.gmra.mxu0 %v3267
    %v3478 = vpop.f32.mrf.mxu0
    %v3479 = vadd.f32 0.0, %v3478
    %3480 = vmatmul.f32.gmra.mxu0 %v3270
    %v3481 = vpop.f32.mrf.mxu0
    %v3482 = vadd.f32 0.0, %v3481
    %3483 = vmatmul.f32.gmra.mxu0 %v3273
    %v3484 = vpop.f32.mrf.mxu0
    %v3485 = vadd.f32 0.0, %v3484
    %3486 = vmatmul.f32.gmra.mxu0 %v3276
    %v3487 = vpop.f32.mrf.mxu0
    %v3488 = vadd.f32 0.0, %v3487
    %3489 = vmatmul.f32.gmra.mxu0 %v3279
    %v3490 = vpop.f32.mrf.mxu0
    %v3491 = vadd.f32 0.0, %v3490
    %3492 = vmatmul.f32.gmra.mxu0 %v3282
    %v3493 = vpop.f32.mrf.mxu0
    %v3494 = vadd.f32 0.0, %v3493
    %3495 = vmatmul.f32.gmra.mxu0 %v3285
    %v3496 = vpop.f32.mrf.mxu0
    %v3497 = vadd.f32 0.0, %v3496
    %3498 = vmatmul.f32.gmra.mxu0 %v3288
    %v3499 = vpop.f32.mrf.mxu0
    %v3500 = vadd.f32 0.0, %v3499
    %3501 = vmatmul.f32.gmra.mxu0 %v3291
    %v3502 = vpop.f32.mrf.mxu0
    %v3503 = vadd.f32 0.0, %v3502
    %3504 = vmatmul.f32.gmra.mxu0 %v3294
    %v3505 = vpop.f32.mrf.mxu0
    %v3506 = vadd.f32 0.0, %v3505
    %3507 = vmatmul.f32.gmra.mxu0 %v3297
    %v3508 = vpop.f32.mrf.mxu0
    %v3509 = vadd.f32 0.0, %v3508
    %3510 = vmatmul.f32.gmra.mxu0 %v3300
    %v3511 = vpop.f32.mrf.mxu0
    %v3512 = vadd.f32 0.0, %v3511
    %3513 = vmatmul.f32.gmra.mxu0 %v3303
    %v3514 = vpop.f32.mrf.mxu0
    %v3515 = vadd.f32 0.0, %v3514
    %3516 = vmatmul.f32.gmra.mxu0 %v3306
    %v3517 = vpop.f32.mrf.mxu0
    %v3518 = vadd.f32 0.0, %v3517
    %3519 = vmatmul.f32.gmra.mxu0 %v3309
    %v3520 = vpop.f32.mrf.mxu0
    %v3521 = vadd.f32 0.0, %v3520
    %3522 = vmatmul.f32.gmra.mxu0 %v3312
    %v3523 = vpop.f32.mrf.mxu0
    %v3524 = vadd.f32 0.0, %v3523
    %3525 = vmatmul.f32.gmra.mxu0 %v3315
    %v3526 = vpop.f32.mrf.mxu0
    %v3527 = vadd.f32 0.0, %v3526
    %3528 = vmatmul.f32.gmra.mxu0 %v3318
    %v3529 = vpop.f32.mrf.mxu0
    %v3530 = vadd.f32 0.0, %v3529
    %3531 = vmatmul.f32.gmra.mxu0 %v3321
    %v3532 = vpop.f32.mrf.mxu0
    %v3533 = vadd.f32 0.0, %v3532
    %3534 = vmatmul.f32.gmra.mxu0 %v3324
    %v3535 = vpop.f32.mrf.mxu0
    %v3536 = vadd.f32 0.0, %v3535
    %3537 = vmatmul.f32.gmra.mxu0 %v3327
    %v3538 = vpop.f32.mrf.mxu0
    %v3539 = vadd.f32 0.0, %v3538
    %3540 = vmatmul.f32.gmra.mxu0 %v3330
    %v3541 = vpop.f32.mrf.mxu0
    %v3542 = vadd.f32 0.0, %v3541
    %3543 = vmatmul.f32.gmra.mxu0 %v3333
    %v3544 = vpop.f32.mrf.mxu0
    %v3545 = vadd.f32 0.0, %v3544
    %3546 = vmatmul.f32.gmra.mxu0 %v3336
    %v3547 = vpop.f32.mrf.mxu0
    %v3548 = vadd.f32 0.0, %v3547
    %3549 = vmatmul.f32.gmra.mxu0 %v3339
    %v3550 = vpop.f32.mrf.mxu0
    %v3551 = vadd.f32 0.0, %v3550
    %3552 = vmatmul.f32.gmra.mxu0 %v3342
    %v3553 = vpop.f32.mrf.mxu0
    %v3554 = vadd.f32 0.0, %v3553
    %3555 = vmatmul.f32.gmra.mxu0 %v3345
    %v3556 = vpop.f32.mrf.mxu0
    %v3557 = vadd.f32 0.0, %v3556
    %3558 = vmatmul.f32.gmra.mxu0 %v3348
    %v3559 = vpop.f32.mrf.mxu0
    %v3560 = vadd.f32 0.0, %v3559
    %3561 = vmatmul.f32.gmra.mxu0 %v3351
    %v3562 = vpop.f32.mrf.mxu0
    %v3563 = vadd.f32 0.0, %v3562
    %3564 = vmatmul.f32.gmra.mxu0 %v3354
    %v3565 = vpop.f32.mrf.mxu0
    %v3566 = vadd.f32 0.0, %v3565
    %3567 = vmatmul.f32.gmra.mxu0 %v3357
    %v3568 = vpop.f32.mrf.mxu0
    %v3569 = vadd.f32 0.0, %v3568
    %3570 = vmatmul.f32.gmra.mxu0 %v3360
    %v3571 = vpop.f32.mrf.mxu0
    %v3572 = vadd.f32 0.0, %v3571
    %3573 = vmatmul.f32.gmra.mxu0 %v3363
    %v3574 = vpop.f32.mrf.mxu0
    %v3575 = vadd.f32 0.0, %v3574
    %3576 = vmatmul.f32.gmra.mxu0 %v3366
    %v3577 = vpop.f32.mrf.mxu0
    %v3578 = vadd.f32 0.0, %v3577
    %3579 = vmatmul.f32.gmra.mxu0 %v3369
    %v3580 = vpop.f32.mrf.mxu0
    %v3581 = vadd.f32 0.0, %v3580
    %3582 = vmatmul.f32.gmra.mxu0 %v3372
    %v3583 = vpop.f32.mrf.mxu0
    %v3584 = vadd.f32 0.0, %v3583
    %3585 = vmatmul.f32.gmra.mxu0 %v3375
    %v3586 = vpop.f32.mrf.mxu0
    %v3587 = vadd.f32 0.0, %v3586
    %3588 = vdwg.mxu0
    %v3589 = vadd.f32 %v3055, %v3398
    %v3590 = vadd.f32 %v3056, %v3401
    %v3591 = vadd.f32 %v3057, %v3404
    %v3592 = vadd.f32 %v3058, %v3407
    %v3593 = vadd.f32 %v3059, %v3410
    %v3594 = vadd.f32 %v3060, %v3413
    %v3595 = vadd.f32 %v3061, %v3416
    %v3596 = vadd.f32 %v3062, %v3419
    %v3597 = vadd.f32 %v3063, %v3422
    %v3598 = vadd.f32 %v3064, %v3425
    %v3599 = vadd.f32 %v3065, %v3428
    %v3600 = vadd.f32 %v3066, %v3431
    %v3601 = vadd.f32 %v3067, %v3434
    %v3602 = vadd.f32 %v3068, %v3437
    %v3603 = vadd.f32 %v3069, %v3440
    %v3604 = vadd.f32 %v3070, %v3443
    %v3605 = vadd.f32 %v3071, %v3446
    %v3606 = vadd.f32 %v3072, %v3449
    %v3607 = vadd.f32 %v3073, %v3452
    %v3608 = vadd.f32 %v3074, %v3455
    %v3609 = vadd.f32 %v3075, %v3458
    %v3610 = vadd.f32 %v3076, %v3461
    %v3611 = vadd.f32 %v3077, %v3464
    %v3612 = vadd.f32 %v3078, %v3467
    %v3613 = vadd.f32 %v3079, %v3470
    %v3614 = vadd.f32 %v3080, %v3473
    %v3615 = vadd.f32 %v3081, %v3476
    %v3616 = vadd.f32 %v3082, %v3479
    %v3617 = vadd.f32 %v3083, %v3482
    %v3618 = vadd.f32 %v3084, %v3485
    %v3619 = vadd.f32 %v3085, %v3488
    %v3620 = vadd.f32 %v3086, %v3491
    %v3621 = vadd.f32 %v3087, %v3494
    %v3622 = vadd.f32 %v3088, %v3497
    %v3623 = vadd.f32 %v3089, %v3500
    %v3624 = vadd.f32 %v3090, %v3503
    %v3625 = vadd.f32 %v3091, %v3506
    %v3626 = vadd.f32 %v3092, %v3509
    %v3627 = vadd.f32 %v3093, %v3512
    %v3628 = vadd.f32 %v3094, %v3515
    %v3629 = vadd.f32 %v3095, %v3518
    %v3630 = vadd.f32 %v3096, %v3521
    %v3631 = vadd.f32 %v3097, %v3524
    %v3632 = vadd.f32 %v3098, %v3527
    %v3633 = vadd.f32 %v3099, %v3530
    %v3634 = vadd.f32 %v3100, %v3533
    %v3635 = vadd.f32 %v3101, %v3536
    %v3636 = vadd.f32 %v3102, %v3539
    %v3637 = vadd.f32 %v3103, %v3542
    %v3638 = vadd.f32 %v3104, %v3545
    %v3639 = vadd.f32 %v3105, %v3548
    %v3640 = vadd.f32 %v3106, %v3551
    %v3641 = vadd.f32 %v3107, %v3554
    %v3642 = vadd.f32 %v3108, %v3557
    %v3643 = vadd.f32 %v3109, %v3560
    %v3644 = vadd.f32 %v3110, %v3563
    %v3645 = vadd.f32 %v3111, %v3566
    %v3646 = vadd.f32 %v3112, %v3569
    %v3647 = vadd.f32 %v3113, %v3572
    %v3648 = vadd.f32 %v3114, %v3575
    %v3649 = vadd.f32 %v3115, %v3578
    %v3650 = vadd.f32 %v3116, %v3581
    %v3651 = vadd.f32 %v3117, %v3584
    %v3652 = vadd.f32 %v3118, %v3587
    %v3653 = vld [vmem:[%s2050 + $0x3] sm:$0xff]
    %v3654 = vld [vmem:[%s2050 + $0xb] sm:$0xff]
    %v3655 = vld [vmem:[%s2050 + $0x1b] sm:$0xff]
    %v3656 = vld [vmem:[%s2050 + $0x23] sm:$0xff]
    %v3657 = vld [vmem:[%s2050 + $0x33] sm:$0xff]
    %v3658 = vld [vmem:[%s2050 + $0x3b] sm:$0xff]
    %v3659 = vld [vmem:[%s2050 + $0x4b] sm:$0xff]
    %v3660 = vld [vmem:[%s2050 + $0x53] sm:$0xff]
    %v3661 = vld [vmem:[%s2050 + $0x63] sm:$0xff]
    %v3662 = vld [vmem:[%s2050 + $0x6b] sm:$0xff]
    %v3663 = vld [vmem:[%s2050 + $0x7b] sm:$0xff]
    %v3664 = vld [vmem:[%s2050 + $0x83] sm:$0xff]
    %v3665 = vld [vmem:[%s2050 + $0x93] sm:$0xff]
    %v3666 = vld [vmem:[%s2050 + $0x9b] sm:$0xff]
    %v3667 = vld [vmem:[%s2050 + $0xab] sm:$0xff]
    %v3668 = vld [vmem:[%s2050 + $0xb3] sm:$0xff]
    %v3669 = vld [vmem:[%s2050 + $0xc3] sm:$0xff]
    %v3670 = vld [vmem:[%s2050 + $0xcb] sm:$0xff]
    %v3671 = vld [vmem:[%s2050 + $0xdb] sm:$0xff]
    %v3672 = vld [vmem:[%s2050 + $0xe3] sm:$0xff]
    %v3673 = vld [vmem:[%s2050 + $0xf3] sm:$0xff]
    %v3674 = vld [vmem:[%s2050 + $0xfb] sm:$0xff]
    %v3675 = vld [vmem:[%s2050 + $0x10b] sm:$0xff]
    %v3676 = vld [vmem:[%s2050 + $0x113] sm:$0xff]
    %v3677 = vld [vmem:[%s2050 + $0x123] sm:$0xff]
    %v3678 = vld [vmem:[%s2050 + $0x12b] sm:$0xff]
    %v3679 = vld [vmem:[%s2050 + $0x13b] sm:$0xff]
    %v3680 = vld [vmem:[%s2050 + $0x143] sm:$0xff]
    %v3681 = vld [vmem:[%s2050 + $0x153] sm:$0xff]
    %v3682 = vld [vmem:[%s2050 + $0x15b] sm:$0xff]
    %v3683 = vld [vmem:[%s2050 + $0x16b] sm:$0xff]
    %v3684 = vld [vmem:[%s2050 + $0x173] sm:$0xff]
    %v3685 = vld [vmem:[%s2050 + $0x1cb] sm:$0xff]
    %v3686 = vld [vmem:[%s2050 + $0x1d3] sm:$0xff]
    %v3687 = vld [vmem:[%s2050 + $0x1e3] sm:$0xff]
    %v3688 = vld [vmem:[%s2050 + $0x1eb] sm:$0xff]
    %v3689 = vld [vmem:[%s2050 + $0x1fb] sm:$0xff]
    %v3690 = vld [vmem:[%s2050 + $0x203] sm:$0xff]
    %v3691 = vld [vmem:[%s2050 + $0x213] sm:$0xff]
    %v3692 = vld [vmem:[%s2050 + $0x21b] sm:$0xff]
    %v3693 = vld [vmem:[%s2050 + $0x22b] sm:$0xff]
    %v3694 = vld [vmem:[%s2050 + $0x233] sm:$0xff]
    %v3695 = vld [vmem:[%s2050 + $0x243] sm:$0xff]
    %v3696 = vld [vmem:[%s2050 + $0x24b] sm:$0xff]
    %v3697 = vld [vmem:[%s2050 + $0x25b] sm:$0xff]
    %v3698 = vld [vmem:[%s2050 + $0x263] sm:$0xff]
    %v3699 = vld [vmem:[%s2050 + $0x273] sm:$0xff]
    %v3700 = vld [vmem:[%s2050 + $0x27b] sm:$0xff]
    %v3701 = vld [vmem:[%s2050 + $0x28b] sm:$0xff]
    %v3702 = vld [vmem:[%s2050 + $0x293] sm:$0xff]
    %v3703 = vld [vmem:[%s2050 + $0x2a3] sm:$0xff]
    %v3704 = vld [vmem:[%s2050 + $0x2ab] sm:$0xff]
    %v3705 = vld [vmem:[%s2050 + $0x2bb] sm:$0xff]
    %v3706 = vld [vmem:[%s2050 + $0x2c3] sm:$0xff]
    %v3707 = vld [vmem:[%s2050 + $0x2d3] sm:$0xff]
    %v3708 = vld [vmem:[%s2050 + $0x2db] sm:$0xff]
    %v3709 = vld [vmem:[%s2050 + $0x2eb] sm:$0xff]
    %v3710 = vld [vmem:[%s2050 + $0x2f3] sm:$0xff]
    %v3711 = vld [vmem:[%s2050 + $0x303] sm:$0xff]
    %v3712 = vld [vmem:[%s2050 + $0x30b] sm:$0xff]
    %v3713 = vld [vmem:[%s2050 + $0x31b] sm:$0xff]
    %v3714 = vld [vmem:[%s2050 + $0x323] sm:$0xff]
    %v3715 = vld [vmem:[%s2050 + $0x333] sm:$0xff]
    %v3716 = vld [vmem:[%s2050 + $0x33b] sm:$0xff]
    %s3717 = scalar_lea.vmem %s1, 28
    %v3718 = vld [vmem:[%s3717] sm:$0x7]
    %v3720 = vsel %vm172, %v3653, 0
    %v3723 = vsel %vm172, %v3654, 0
    %v3726 = vsel %vm172, %v3655, 0
    %v3729 = vsel %vm172, %v3656, 0
    %v3732 = vsel %vm172, %v3657, 0
    %v3735 = vsel %vm172, %v3658, 0
    %v3738 = vsel %vm172, %v3659, 0
    %v3741 = vsel %vm172, %v3660, 0
    %v3744 = vsel %vm172, %v3661, 0
    %v3747 = vsel %vm172, %v3662, 0
    %v3750 = vsel %vm172, %v3663, 0
    %v3753 = vsel %vm172, %v3664, 0
    %v3756 = vsel %vm172, %v3665, 0
    %v3759 = vsel %vm172, %v3666, 0
    %v3762 = vsel %vm172, %v3667, 0
    %v3765 = vsel %vm172, %v3668, 0
    %v3768 = vsel %vm172, %v3669, 0
    %v3771 = vsel %vm172, %v3670, 0
    %v3774 = vsel %vm172, %v3671, 0
    %v3777 = vsel %vm172, %v3672, 0
    %v3780 = vsel %vm172, %v3673, 0
    %v3783 = vsel %vm172, %v3674, 0
    %v3786 = vsel %vm172, %v3675, 0
    %v3789 = vsel %vm172, %v3676, 0
    %v3792 = vsel %vm172, %v3677, 0
    %v3795 = vsel %vm172, %v3678, 0
    %v3798 = vsel %vm172, %v3679, 0
    %v3801 = vsel %vm172, %v3680, 0
    %v3804 = vsel %vm172, %v3681, 0
    %v3807 = vsel %vm172, %v3682, 0
    %v3810 = vsel %vm172, %v3683, 0
    %v3813 = vsel %vm172, %v3684, 0
    %v3816 = vsel %vm172, %v3685, 0
    %v3819 = vsel %vm172, %v3686, 0
    %v3822 = vsel %vm172, %v3687, 0
    %v3825 = vsel %vm172, %v3688, 0
    %v3828 = vsel %vm172, %v3689, 0
    %v3831 = vsel %vm172, %v3690, 0
    %v3834 = vsel %vm172, %v3691, 0
    %v3837 = vsel %vm172, %v3692, 0
    %v3840 = vsel %vm172, %v3693, 0
    %v3843 = vsel %vm172, %v3694, 0
    %v3846 = vsel %vm172, %v3695, 0
    %v3849 = vsel %vm172, %v3696, 0
    %v3852 = vsel %vm172, %v3697, 0
    %v3855 = vsel %vm172, %v3698, 0
    %v3858 = vsel %vm172, %v3699, 0
    %v3861 = vsel %vm172, %v3700, 0
    %v3864 = vsel %vm172, %v3701, 0
    %v3867 = vsel %vm172, %v3702, 0
    %v3870 = vsel %vm172, %v3703, 0
    %v3873 = vsel %vm172, %v3704, 0
    %v3876 = vsel %vm172, %v3705, 0
    %v3879 = vsel %vm172, %v3706, 0
    %v3882 = vsel %vm172, %v3707, 0
    %v3885 = vsel %vm172, %v3708, 0
    %v3888 = vsel %vm172, %v3709, 0
    %v3891 = vsel %vm172, %v3710, 0
    %v3894 = vsel %vm172, %v3711, 0
    %v3897 = vsel %vm172, %v3712, 0
    %v3900 = vsel %vm172, %v3713, 0
    %v3903 = vsel %vm172, %v3714, 0
    %v3906 = vsel %vm172, %v3715, 0
    %v3909 = vsel %vm172, %v3716, 0
    %v3912 = vsel %vm365, %v3718, 0
    %3914 = vmatpush.msra.mxu0 0.0
    %3915 = vmatpush.msra.mxu0 0.0
    %3916 = vmatpush.msra.mxu0 0.0
    %3917 = vmatpush.msra.mxu0 0.0
    %3918 = vmatpush.msra.mxu0 0.0
    %3919 = vmatpush.msra.mxu0 0.0
    %3920 = vmatpush.msra.mxu0 0.0
    %3921 = vmatpush.msra.mxu0 0.0
    %3922 = vmatpush.msra.mxu0 0.0
    %3923 = vmatpush.msra.mxu0 0.0
    %3924 = vmatpush.msra.mxu0 0.0
    %3925 = vmatpush.msra.mxu0 0.0
    %3926 = vmatpush.msra.mxu0 0.0
    %3927 = vmatpush.msra.mxu0 0.0
    %3928 = vmatpush.msra.mxu0 0.0
    %3929 = vmatpush.msra.mxu0 %v3912
    %3930 = vmatmul.f32.gmra.mxu0 %v3720
    %v3931 = vpop.f32.mrf.mxu0
    %v3932 = vadd.f32 0.0, %v3931
    %3933 = vmatmul.f32.gmra.mxu0 %v3723
    %v3934 = vpop.f32.mrf.mxu0
    %v3935 = vadd.f32 0.0, %v3934
    %3936 = vmatmul.f32.gmra.mxu0 %v3726
    %v3937 = vpop.f32.mrf.mxu0
    %v3938 = vadd.f32 0.0, %v3937
    %3939 = vmatmul.f32.gmra.mxu0 %v3729
    %v3940 = vpop.f32.mrf.mxu0
    %v3941 = vadd.f32 0.0, %v3940
    %3942 = vmatmul.f32.gmra.mxu0 %v3732
    %v3943 = vpop.f32.mrf.mxu0
    %v3944 = vadd.f32 0.0, %v3943
    %3945 = vmatmul.f32.gmra.mxu0 %v3735
    %v3946 = vpop.f32.mrf.mxu0
    %v3947 = vadd.f32 0.0, %v3946
    %3948 = vmatmul.f32.gmra.mxu0 %v3738
    %v3949 = vpop.f32.mrf.mxu0
    %v3950 = vadd.f32 0.0, %v3949
    %3951 = vmatmul.f32.gmra.mxu0 %v3741
    %v3952 = vpop.f32.mrf.mxu0
    %v3953 = vadd.f32 0.0, %v3952
    %3954 = vmatmul.f32.gmra.mxu0 %v3744
    %v3955 = vpop.f32.mrf.mxu0
    %v3956 = vadd.f32 0.0, %v3955
    %3957 = vmatmul.f32.gmra.mxu0 %v3747
    %v3958 = vpop.f32.mrf.mxu0
    %v3959 = vadd.f32 0.0, %v3958
    %3960 = vmatmul.f32.gmra.mxu0 %v3750
    %v3961 = vpop.f32.mrf.mxu0
    %v3962 = vadd.f32 0.0, %v3961
    %3963 = vmatmul.f32.gmra.mxu0 %v3753
    %v3964 = vpop.f32.mrf.mxu0
    %v3965 = vadd.f32 0.0, %v3964
    %3966 = vmatmul.f32.gmra.mxu0 %v3756
    %v3967 = vpop.f32.mrf.mxu0
    %v3968 = vadd.f32 0.0, %v3967
    %3969 = vmatmul.f32.gmra.mxu0 %v3759
    %v3970 = vpop.f32.mrf.mxu0
    %v3971 = vadd.f32 0.0, %v3970
    %3972 = vmatmul.f32.gmra.mxu0 %v3762
    %v3973 = vpop.f32.mrf.mxu0
    %v3974 = vadd.f32 0.0, %v3973
    %3975 = vmatmul.f32.gmra.mxu0 %v3765
    %v3976 = vpop.f32.mrf.mxu0
    %v3977 = vadd.f32 0.0, %v3976
    %3978 = vmatmul.f32.gmra.mxu0 %v3768
    %v3979 = vpop.f32.mrf.mxu0
    %v3980 = vadd.f32 0.0, %v3979
    %3981 = vmatmul.f32.gmra.mxu0 %v3771
    %v3982 = vpop.f32.mrf.mxu0
    %v3983 = vadd.f32 0.0, %v3982
    %3984 = vmatmul.f32.gmra.mxu0 %v3774
    %v3985 = vpop.f32.mrf.mxu0
    %v3986 = vadd.f32 0.0, %v3985
    %3987 = vmatmul.f32.gmra.mxu0 %v3777
    %v3988 = vpop.f32.mrf.mxu0
    %v3989 = vadd.f32 0.0, %v3988
    %3990 = vmatmul.f32.gmra.mxu0 %v3780
    %v3991 = vpop.f32.mrf.mxu0
    %v3992 = vadd.f32 0.0, %v3991
    %3993 = vmatmul.f32.gmra.mxu0 %v3783
    %v3994 = vpop.f32.mrf.mxu0
    %v3995 = vadd.f32 0.0, %v3994
    %3996 = vmatmul.f32.gmra.mxu0 %v3786
    %v3997 = vpop.f32.mrf.mxu0
    %v3998 = vadd.f32 0.0, %v3997
    %3999 = vmatmul.f32.gmra.mxu0 %v3789
    %v4000 = vpop.f32.mrf.mxu0
    %v4001 = vadd.f32 0.0, %v4000
    %4002 = vmatmul.f32.gmra.mxu0 %v3792
    %v4003 = vpop.f32.mrf.mxu0
    %v4004 = vadd.f32 0.0, %v4003
    %4005 = vmatmul.f32.gmra.mxu0 %v3795
    %v4006 = vpop.f32.mrf.mxu0
    %v4007 = vadd.f32 0.0, %v4006
    %4008 = vmatmul.f32.gmra.mxu0 %v3798
    %v4009 = vpop.f32.mrf.mxu0
    %v4010 = vadd.f32 0.0, %v4009
    %4011 = vmatmul.f32.gmra.mxu0 %v3801
    %v4012 = vpop.f32.mrf.mxu0
    %v4013 = vadd.f32 0.0, %v4012
    %4014 = vmatmul.f32.gmra.mxu0 %v3804
    %v4015 = vpop.f32.mrf.mxu0
    %v4016 = vadd.f32 0.0, %v4015
    %4017 = vmatmul.f32.gmra.mxu0 %v3807
    %v4018 = vpop.f32.mrf.mxu0
    %v4019 = vadd.f32 0.0, %v4018
    %4020 = vmatmul.f32.gmra.mxu0 %v3810
    %v4021 = vpop.f32.mrf.mxu0
    %v4022 = vadd.f32 0.0, %v4021
    %4023 = vmatmul.f32.gmra.mxu0 %v3813
    %v4024 = vpop.f32.mrf.mxu0
    %v4025 = vadd.f32 0.0, %v4024
    %4026 = vmatmul.f32.gmra.mxu0 %v3816
    %v4027 = vpop.f32.mrf.mxu0
    %v4028 = vadd.f32 0.0, %v4027
    %4029 = vmatmul.f32.gmra.mxu0 %v3819
    %v4030 = vpop.f32.mrf.mxu0
    %v4031 = vadd.f32 0.0, %v4030
    %4032 = vmatmul.f32.gmra.mxu0 %v3822
    %v4033 = vpop.f32.mrf.mxu0
    %v4034 = vadd.f32 0.0, %v4033
    %4035 = vmatmul.f32.gmra.mxu0 %v3825
    %v4036 = vpop.f32.mrf.mxu0
    %v4037 = vadd.f32 0.0, %v4036
    %4038 = vmatmul.f32.gmra.mxu0 %v3828
    %v4039 = vpop.f32.mrf.mxu0
    %v4040 = vadd.f32 0.0, %v4039
    %4041 = vmatmul.f32.gmra.mxu0 %v3831
    %v4042 = vpop.f32.mrf.mxu0
    %v4043 = vadd.f32 0.0, %v4042
    %4044 = vmatmul.f32.gmra.mxu0 %v3834
    %v4045 = vpop.f32.mrf.mxu0
    %v4046 = vadd.f32 0.0, %v4045
    %4047 = vmatmul.f32.gmra.mxu0 %v3837
    %v4048 = vpop.f32.mrf.mxu0
    %v4049 = vadd.f32 0.0, %v4048
    %4050 = vmatmul.f32.gmra.mxu0 %v3840
    %v4051 = vpop.f32.mrf.mxu0
    %v4052 = vadd.f32 0.0, %v4051
    %4053 = vmatmul.f32.gmra.mxu0 %v3843
    %v4054 = vpop.f32.mrf.mxu0
    %v4055 = vadd.f32 0.0, %v4054
    %4056 = vmatmul.f32.gmra.mxu0 %v3846
    %v4057 = vpop.f32.mrf.mxu0
    %v4058 = vadd.f32 0.0, %v4057
    %4059 = vmatmul.f32.gmra.mxu0 %v3849
    %v4060 = vpop.f32.mrf.mxu0
    %v4061 = vadd.f32 0.0, %v4060
    %4062 = vmatmul.f32.gmra.mxu0 %v3852
    %v4063 = vpop.f32.mrf.mxu0
    %v4064 = vadd.f32 0.0, %v4063
    %4065 = vmatmul.f32.gmra.mxu0 %v3855
    %v4066 = vpop.f32.mrf.mxu0
    %v4067 = vadd.f32 0.0, %v4066
    %4068 = vmatmul.f32.gmra.mxu0 %v3858
    %v4069 = vpop.f32.mrf.mxu0
    %v4070 = vadd.f32 0.0, %v4069
    %4071 = vmatmul.f32.gmra.mxu0 %v3861
    %v4072 = vpop.f32.mrf.mxu0
    %v4073 = vadd.f32 0.0, %v4072
    %4074 = vmatmul.f32.gmra.mxu0 %v3864
    %v4075 = vpop.f32.mrf.mxu0
    %v4076 = vadd.f32 0.0, %v4075
    %4077 = vmatmul.f32.gmra.mxu0 %v3867
    %v4078 = vpop.f32.mrf.mxu0
    %v4079 = vadd.f32 0.0, %v4078
    %4080 = vmatmul.f32.gmra.mxu0 %v3870
    %v4081 = vpop.f32.mrf.mxu0
    %v4082 = vadd.f32 0.0, %v4081
    %4083 = vmatmul.f32.gmra.mxu0 %v3873
    %v4084 = vpop.f32.mrf.mxu0
    %v4085 = vadd.f32 0.0, %v4084
    %4086 = vmatmul.f32.gmra.mxu0 %v3876
    %v4087 = vpop.f32.mrf.mxu0
    %v4088 = vadd.f32 0.0, %v4087
    %4089 = vmatmul.f32.gmra.mxu0 %v3879
    %v4090 = vpop.f32.mrf.mxu0
    %v4091 = vadd.f32 0.0, %v4090
    %4092 = vmatmul.f32.gmra.mxu0 %v3882
    %v4093 = vpop.f32.mrf.mxu0
    %v4094 = vadd.f32 0.0, %v4093
    %4095 = vmatmul.f32.gmra.mxu0 %v3885
    %v4096 = vpop.f32.mrf.mxu0
    %v4097 = vadd.f32 0.0, %v4096
    %4098 = vmatmul.f32.gmra.mxu0 %v3888
    %v4099 = vpop.f32.mrf.mxu0
    %v4100 = vadd.f32 0.0, %v4099
    %4101 = vmatmul.f32.gmra.mxu0 %v3891
    %v4102 = vpop.f32.mrf.mxu0
    %v4103 = vadd.f32 0.0, %v4102
    %4104 = vmatmul.f32.gmra.mxu0 %v3894
    %v4105 = vpop.f32.mrf.mxu0
    %v4106 = vadd.f32 0.0, %v4105
    %4107 = vmatmul.f32.gmra.mxu0 %v3897
    %v4108 = vpop.f32.mrf.mxu0
    %v4109 = vadd.f32 0.0, %v4108
    %4110 = vmatmul.f32.gmra.mxu0 %v3900
    %v4111 = vpop.f32.mrf.mxu0
    %v4112 = vadd.f32 0.0, %v4111
    %4113 = vmatmul.f32.gmra.mxu0 %v3903
    %v4114 = vpop.f32.mrf.mxu0
    %v4115 = vadd.f32 0.0, %v4114
    %4116 = vmatmul.f32.gmra.mxu0 %v3906
    %v4117 = vpop.f32.mrf.mxu0
    %v4118 = vadd.f32 0.0, %v4117
    %4119 = vmatmul.f32.gmra.mxu0 %v3909
    %v4120 = vpop.f32.mrf.mxu0
    %v4121 = vadd.f32 0.0, %v4120
    %4122 = vdwg.mxu0
    %v4123 = vadd.f32 %v3589, %v3932
    %v4124 = vadd.f32 %v3590, %v3935
    %v4125 = vadd.f32 %v3591, %v3938
    %v4126 = vadd.f32 %v3592, %v3941
    %v4127 = vadd.f32 %v3593, %v3944
    %v4128 = vadd.f32 %v3594, %v3947
    %v4129 = vadd.f32 %v3595, %v3950
    %v4130 = vadd.f32 %v3596, %v3953
    %v4131 = vadd.f32 %v3597, %v3956
    %v4132 = vadd.f32 %v3598, %v3959
    %v4133 = vadd.f32 %v3599, %v3962
    %v4134 = vadd.f32 %v3600, %v3965
    %v4135 = vadd.f32 %v3601, %v3968
    %v4136 = vadd.f32 %v3602, %v3971
    %v4137 = vadd.f32 %v3603, %v3974
    %v4138 = vadd.f32 %v3604, %v3977
    %v4139 = vadd.f32 %v3605, %v3980
    %v4140 = vadd.f32 %v3606, %v3983
    %v4141 = vadd.f32 %v3607, %v3986
    %v4142 = vadd.f32 %v3608, %v3989
    %v4143 = vadd.f32 %v3609, %v3992
    %v4144 = vadd.f32 %v3610, %v3995
    %v4145 = vadd.f32 %v3611, %v3998
    %v4146 = vadd.f32 %v3612, %v4001
    %v4147 = vadd.f32 %v3613, %v4004
    %v4148 = vadd.f32 %v3614, %v4007
    %v4149 = vadd.f32 %v3615, %v4010
    %v4150 = vadd.f32 %v3616, %v4013
    %v4151 = vadd.f32 %v3617, %v4016
    %v4152 = vadd.f32 %v3618, %v4019
    %v4153 = vadd.f32 %v3619, %v4022
    %v4154 = vadd.f32 %v3620, %v4025
    %v4155 = vadd.f32 %v3621, %v4028
    %v4156 = vadd.f32 %v3622, %v4031
    %v4157 = vadd.f32 %v3623, %v4034
    %v4158 = vadd.f32 %v3624, %v4037
    %v4159 = vadd.f32 %v3625, %v4040
    %v4160 = vadd.f32 %v3626, %v4043
    %v4161 = vadd.f32 %v3627, %v4046
    %v4162 = vadd.f32 %v3628, %v4049
    %v4163 = vadd.f32 %v3629, %v4052
    %v4164 = vadd.f32 %v3630, %v4055
    %v4165 = vadd.f32 %v3631, %v4058
    %v4166 = vadd.f32 %v3632, %v4061
    %v4167 = vadd.f32 %v3633, %v4064
    %v4168 = vadd.f32 %v3634, %v4067
    %v4169 = vadd.f32 %v3635, %v4070
    %v4170 = vadd.f32 %v3636, %v4073
    %v4171 = vadd.f32 %v3637, %v4076
    %v4172 = vadd.f32 %v3638, %v4079
    %v4173 = vadd.f32 %v3639, %v4082
    %v4174 = vadd.f32 %v3640, %v4085
    %v4175 = vadd.f32 %v3641, %v4088
    %v4176 = vadd.f32 %v3642, %v4091
    %v4177 = vadd.f32 %v3643, %v4094
    %v4178 = vadd.f32 %v3644, %v4097
    %v4179 = vadd.f32 %v3645, %v4100
    %v4180 = vadd.f32 %v3646, %v4103
    %v4181 = vadd.f32 %v3647, %v4106
    %v4182 = vadd.f32 %v3648, %v4109
    %v4183 = vadd.f32 %v3649, %v4112
    %v4184 = vadd.f32 %v3650, %v4115
    %v4185 = vadd.f32 %v3651, %v4118
    %v4186 = vadd.f32 %v3652, %v4121
    %s4187 = scalar_lea.vmem %s0, 48
    %v4188 = vld [vmem:[%s4187] sm:$0xff]
    %v4189 = vld [vmem:[%s4187 + $0x8] sm:$0xff]
    %v4190 = vld [vmem:[%s4187 + $0x18] sm:$0xff]
    %v4191 = vld [vmem:[%s4187 + $0x20] sm:$0xff]
    %v4192 = vld [vmem:[%s4187 + $0x30] sm:$0xff]
    %v4193 = vld [vmem:[%s4187 + $0x38] sm:$0xff]
    %v4194 = vld [vmem:[%s4187 + $0x48] sm:$0xff]
    %v4195 = vld [vmem:[%s4187 + $0x50] sm:$0xff]
    %v4196 = vld [vmem:[%s4187 + $0x60] sm:$0xff]
    %v4197 = vld [vmem:[%s4187 + $0x68] sm:$0xff]
    %v4198 = vld [vmem:[%s4187 + $0x78] sm:$0xff]
    %v4199 = vld [vmem:[%s4187 + $0x80] sm:$0xff]
    %v4200 = vld [vmem:[%s4187 + $0x90] sm:$0xff]
    %v4201 = vld [vmem:[%s4187 + $0x98] sm:$0xff]
    %v4202 = vld [vmem:[%s4187 + $0xa8] sm:$0xff]
    %v4203 = vld [vmem:[%s4187 + $0xb0] sm:$0xff]
    %v4204 = vld [vmem:[%s4187 + $0xc0] sm:$0xff]
    %v4205 = vld [vmem:[%s4187 + $0xc8] sm:$0xff]
    %v4206 = vld [vmem:[%s4187 + $0xd8] sm:$0xff]
    %v4207 = vld [vmem:[%s4187 + $0xe0] sm:$0xff]
    %v4208 = vld [vmem:[%s4187 + $0xf0] sm:$0xff]
    %v4209 = vld [vmem:[%s4187 + $0xf8] sm:$0xff]
    %v4210 = vld [vmem:[%s4187 + $0x108] sm:$0xff]
    %v4211 = vld [vmem:[%s4187 + $0x110] sm:$0xff]
    %v4212 = vld [vmem:[%s4187 + $0x120] sm:$0xff]
    %v4213 = vld [vmem:[%s4187 + $0x128] sm:$0xff]
    %v4214 = vld [vmem:[%s4187 + $0x138] sm:$0xff]
    %v4215 = vld [vmem:[%s4187 + $0x140] sm:$0xff]
    %v4216 = vld [vmem:[%s4187 + $0x150] sm:$0xff]
    %v4217 = vld [vmem:[%s4187 + $0x158] sm:$0xff]
    %v4218 = vld [vmem:[%s4187 + $0x168] sm:$0xff]
    %v4219 = vld [vmem:[%s4187 + $0x170] sm:$0xff]
    %v4220 = vld [vmem:[%s4187 + $0x1c8] sm:$0xff]
    %v4221 = vld [vmem:[%s4187 + $0x1d0] sm:$0xff]
    %v4222 = vld [vmem:[%s4187 + $0x1e0] sm:$0xff]
    %v4223 = vld [vmem:[%s4187 + $0x1e8] sm:$0xff]
    %v4224 = vld [vmem:[%s4187 + $0x1f8] sm:$0xff]
    %v4225 = vld [vmem:[%s4187 + $0x200] sm:$0xff]
    %v4226 = vld [vmem:[%s4187 + $0x210] sm:$0xff]
    %v4227 = vld [vmem:[%s4187 + $0x218] sm:$0xff]
    %v4228 = vld [vmem:[%s4187 + $0x228] sm:$0xff]
    %v4229 = vld [vmem:[%s4187 + $0x230] sm:$0xff]
    %v4230 = vld [vmem:[%s4187 + $0x240] sm:$0xff]
    %v4231 = vld [vmem:[%s4187 + $0x248] sm:$0xff]
    %v4232 = vld [vmem:[%s4187 + $0x258] sm:$0xff]
    %v4233 = vld [vmem:[%s4187 + $0x260] sm:$0xff]
    %v4234 = vld [vmem:[%s4187 + $0x270] sm:$0xff]
    %v4235 = vld [vmem:[%s4187 + $0x278] sm:$0xff]
    %v4236 = vld [vmem:[%s4187 + $0x288] sm:$0xff]
    %v4237 = vld [vmem:[%s4187 + $0x290] sm:$0xff]
    %v4238 = vld [vmem:[%s4187 + $0x2a0] sm:$0xff]
    %v4239 = vld [vmem:[%s4187 + $0x2a8] sm:$0xff]
    %v4240 = vld [vmem:[%s4187 + $0x2b8] sm:$0xff]
    %v4241 = vld [vmem:[%s4187 + $0x2c0] sm:$0xff]
    %v4242 = vld [vmem:[%s4187 + $0x2d0] sm:$0xff]
    %v4243 = vld [vmem:[%s4187 + $0x2d8] sm:$0xff]
    %v4244 = vld [vmem:[%s4187 + $0x2e8] sm:$0xff]
    %v4245 = vld [vmem:[%s4187 + $0x2f0] sm:$0xff]
    %v4246 = vld [vmem:[%s4187 + $0x300] sm:$0xff]
    %v4247 = vld [vmem:[%s4187 + $0x308] sm:$0xff]
    %v4248 = vld [vmem:[%s4187 + $0x318] sm:$0xff]
    %v4249 = vld [vmem:[%s4187 + $0x320] sm:$0xff]
    %v4250 = vld [vmem:[%s4187 + $0x330] sm:$0xff]
    %v4251 = vld [vmem:[%s4187 + $0x338] sm:$0xff]
    %s4252 = scalar_lea.vmem %s1, 32
    %v4253 = vld [vmem:[%s4252] sm:$0x7]
    %v4255 = vsel %vm172, %v4188, 0
    %v4258 = vsel %vm172, %v4189, 0
    %v4261 = vsel %vm172, %v4190, 0
    %v4264 = vsel %vm172, %v4191, 0
    %v4267 = vsel %vm172, %v4192, 0
    %v4270 = vsel %vm172, %v4193, 0
    %v4273 = vsel %vm172, %v4194, 0
    %v4276 = vsel %vm172, %v4195, 0
    %v4279 = vsel %vm172, %v4196, 0
    %v4282 = vsel %vm172, %v4197, 0
    %v4285 = vsel %vm172, %v4198, 0
    %v4288 = vsel %vm172, %v4199, 0
    %v4291 = vsel %vm172, %v4200, 0
    %v4294 = vsel %vm172, %v4201, 0
    %v4297 = vsel %vm172, %v4202, 0
    %v4300 = vsel %vm172, %v4203, 0
    %v4303 = vsel %vm172, %v4204, 0
    %v4306 = vsel %vm172, %v4205, 0
    %v4309 = vsel %vm172, %v4206, 0
    %v4312 = vsel %vm172, %v4207, 0
    %v4315 = vsel %vm172, %v4208, 0
    %v4318 = vsel %vm172, %v4209, 0
    %v4321 = vsel %vm172, %v4210, 0
    %v4324 = vsel %vm172, %v4211, 0
    %v4327 = vsel %vm172, %v4212, 0
    %v4330 = vsel %vm172, %v4213, 0
    %v4333 = vsel %vm172, %v4214, 0
    %v4336 = vsel %vm172, %v4215, 0
    %v4339 = vsel %vm172, %v4216, 0
    %v4342 = vsel %vm172, %v4217, 0
    %v4345 = vsel %vm172, %v4218, 0
    %v4348 = vsel %vm172, %v4219, 0
    %v4351 = vsel %vm172, %v4220, 0
    %v4354 = vsel %vm172, %v4221, 0
    %v4357 = vsel %vm172, %v4222, 0
    %v4360 = vsel %vm172, %v4223, 0
    %v4363 = vsel %vm172, %v4224, 0
    %v4366 = vsel %vm172, %v4225, 0
    %v4369 = vsel %vm172, %v4226, 0
    %v4372 = vsel %vm172, %v4227, 0
    %v4375 = vsel %vm172, %v4228, 0
    %v4378 = vsel %vm172, %v4229, 0
    %v4381 = vsel %vm172, %v4230, 0
    %v4384 = vsel %vm172, %v4231, 0
    %v4387 = vsel %vm172, %v4232, 0
    %v4390 = vsel %vm172, %v4233, 0
    %v4393 = vsel %vm172, %v4234, 0
    %v4396 = vsel %vm172, %v4235, 0
    %v4399 = vsel %vm172, %v4236, 0
    %v4402 = vsel %vm172, %v4237, 0
    %v4405 = vsel %vm172, %v4238, 0
    %v4408 = vsel %vm172, %v4239, 0
    %v4411 = vsel %vm172, %v4240, 0
    %v4414 = vsel %vm172, %v4241, 0
    %v4417 = vsel %vm172, %v4242, 0
    %v4420 = vsel %vm172, %v4243, 0
    %v4423 = vsel %vm172, %v4244, 0
    %v4426 = vsel %vm172, %v4245, 0
    %v4429 = vsel %vm172, %v4246, 0
    %v4432 = vsel %vm172, %v4247, 0
    %v4435 = vsel %vm172, %v4248, 0
    %v4438 = vsel %vm172, %v4249, 0
    %v4441 = vsel %vm172, %v4250, 0
    %v4444 = vsel %vm172, %v4251, 0
    %v4447 = vsel %vm365, %v4253, 0
    %4449 = vmatpush.msra.mxu0 0.0
    %4450 = vmatpush.msra.mxu0 0.0
    %4451 = vmatpush.msra.mxu0 0.0
    %4452 = vmatpush.msra.mxu0 0.0
    %4453 = vmatpush.msra.mxu0 0.0
    %4454 = vmatpush.msra.mxu0 0.0
    %4455 = vmatpush.msra.mxu0 0.0
    %4456 = vmatpush.msra.mxu0 0.0
    %4457 = vmatpush.msra.mxu0 0.0
    %4458 = vmatpush.msra.mxu0 0.0
    %4459 = vmatpush.msra.mxu0 0.0
    %4460 = vmatpush.msra.mxu0 0.0
    %4461 = vmatpush.msra.mxu0 0.0
    %4462 = vmatpush.msra.mxu0 0.0
    %4463 = vmatpush.msra.mxu0 0.0
    %4464 = vmatpush.msra.mxu0 %v4447
    %4465 = vmatmul.f32.gmra.mxu0 %v4255
    %v4466 = vpop.f32.mrf.mxu0
    %v4467 = vadd.f32 0.0, %v4466
    %4468 = vmatmul.f32.gmra.mxu0 %v4258
    %v4469 = vpop.f32.mrf.mxu0
    %v4470 = vadd.f32 0.0, %v4469
    %4471 = vmatmul.f32.gmra.mxu0 %v4261
    %v4472 = vpop.f32.mrf.mxu0
    %v4473 = vadd.f32 0.0, %v4472
    %4474 = vmatmul.f32.gmra.mxu0 %v4264
    %v4475 = vpop.f32.mrf.mxu0
    %v4476 = vadd.f32 0.0, %v4475
    %4477 = vmatmul.f32.gmra.mxu0 %v4267
    %v4478 = vpop.f32.mrf.mxu0
    %v4479 = vadd.f32 0.0, %v4478
    %4480 = vmatmul.f32.gmra.mxu0 %v4270
    %v4481 = vpop.f32.mrf.mxu0
    %v4482 = vadd.f32 0.0, %v4481
    %4483 = vmatmul.f32.gmra.mxu0 %v4273
    %v4484 = vpop.f32.mrf.mxu0
    %v4485 = vadd.f32 0.0, %v4484
    %4486 = vmatmul.f32.gmra.mxu0 %v4276
    %v4487 = vpop.f32.mrf.mxu0
    %v4488 = vadd.f32 0.0, %v4487
    %4489 = vmatmul.f32.gmra.mxu0 %v4279
    %v4490 = vpop.f32.mrf.mxu0
    %v4491 = vadd.f32 0.0, %v4490
    %4492 = vmatmul.f32.gmra.mxu0 %v4282
    %v4493 = vpop.f32.mrf.mxu0
    %v4494 = vadd.f32 0.0, %v4493
    %4495 = vmatmul.f32.gmra.mxu0 %v4285
    %v4496 = vpop.f32.mrf.mxu0
    %v4497 = vadd.f32 0.0, %v4496
    %4498 = vmatmul.f32.gmra.mxu0 %v4288
    %v4499 = vpop.f32.mrf.mxu0
    %v4500 = vadd.f32 0.0, %v4499
    %4501 = vmatmul.f32.gmra.mxu0 %v4291
    %v4502 = vpop.f32.mrf.mxu0
    %v4503 = vadd.f32 0.0, %v4502
    %4504 = vmatmul.f32.gmra.mxu0 %v4294
    %v4505 = vpop.f32.mrf.mxu0
    %v4506 = vadd.f32 0.0, %v4505
    %4507 = vmatmul.f32.gmra.mxu0 %v4297
    %v4508 = vpop.f32.mrf.mxu0
    %v4509 = vadd.f32 0.0, %v4508
    %4510 = vmatmul.f32.gmra.mxu0 %v4300
    %v4511 = vpop.f32.mrf.mxu0
    %v4512 = vadd.f32 0.0, %v4511
    %4513 = vmatmul.f32.gmra.mxu0 %v4303
    %v4514 = vpop.f32.mrf.mxu0
    %v4515 = vadd.f32 0.0, %v4514
    %4516 = vmatmul.f32.gmra.mxu0 %v4306
    %v4517 = vpop.f32.mrf.mxu0
    %v4518 = vadd.f32 0.0, %v4517
    %4519 = vmatmul.f32.gmra.mxu0 %v4309
    %v4520 = vpop.f32.mrf.mxu0
    %v4521 = vadd.f32 0.0, %v4520
    %4522 = vmatmul.f32.gmra.mxu0 %v4312
    %v4523 = vpop.f32.mrf.mxu0
    %v4524 = vadd.f32 0.0, %v4523
    %4525 = vmatmul.f32.gmra.mxu0 %v4315
    %v4526 = vpop.f32.mrf.mxu0
    %v4527 = vadd.f32 0.0, %v4526
    %4528 = vmatmul.f32.gmra.mxu0 %v4318
    %v4529 = vpop.f32.mrf.mxu0
    %v4530 = vadd.f32 0.0, %v4529
    %4531 = vmatmul.f32.gmra.mxu0 %v4321
    %v4532 = vpop.f32.mrf.mxu0
    %v4533 = vadd.f32 0.0, %v4532
    %4534 = vmatmul.f32.gmra.mxu0 %v4324
    %v4535 = vpop.f32.mrf.mxu0
    %v4536 = vadd.f32 0.0, %v4535
    %4537 = vmatmul.f32.gmra.mxu0 %v4327
    %v4538 = vpop.f32.mrf.mxu0
    %v4539 = vadd.f32 0.0, %v4538
    %4540 = vmatmul.f32.gmra.mxu0 %v4330
    %v4541 = vpop.f32.mrf.mxu0
    %v4542 = vadd.f32 0.0, %v4541
    %4543 = vmatmul.f32.gmra.mxu0 %v4333
    %v4544 = vpop.f32.mrf.mxu0
    %v4545 = vadd.f32 0.0, %v4544
    %4546 = vmatmul.f32.gmra.mxu0 %v4336
    %v4547 = vpop.f32.mrf.mxu0
    %v4548 = vadd.f32 0.0, %v4547
    %4549 = vmatmul.f32.gmra.mxu0 %v4339
    %v4550 = vpop.f32.mrf.mxu0
    %v4551 = vadd.f32 0.0, %v4550
    %4552 = vmatmul.f32.gmra.mxu0 %v4342
    %v4553 = vpop.f32.mrf.mxu0
    %v4554 = vadd.f32 0.0, %v4553
    %4555 = vmatmul.f32.gmra.mxu0 %v4345
    %v4556 = vpop.f32.mrf.mxu0
    %v4557 = vadd.f32 0.0, %v4556
    %4558 = vmatmul.f32.gmra.mxu0 %v4348
    %v4559 = vpop.f32.mrf.mxu0
    %v4560 = vadd.f32 0.0, %v4559
    %4561 = vmatmul.f32.gmra.mxu0 %v4351
    %v4562 = vpop.f32.mrf.mxu0
    %v4563 = vadd.f32 0.0, %v4562
    %4564 = vmatmul.f32.gmra.mxu0 %v4354
    %v4565 = vpop.f32.mrf.mxu0
    %v4566 = vadd.f32 0.0, %v4565
    %4567 = vmatmul.f32.gmra.mxu0 %v4357
    %v4568 = vpop.f32.mrf.mxu0
    %v4569 = vadd.f32 0.0, %v4568
    %4570 = vmatmul.f32.gmra.mxu0 %v4360
    %v4571 = vpop.f32.mrf.mxu0
    %v4572 = vadd.f32 0.0, %v4571
    %4573 = vmatmul.f32.gmra.mxu0 %v4363
    %v4574 = vpop.f32.mrf.mxu0
    %v4575 = vadd.f32 0.0, %v4574
    %4576 = vmatmul.f32.gmra.mxu0 %v4366
    %v4577 = vpop.f32.mrf.mxu0
    %v4578 = vadd.f32 0.0, %v4577
    %4579 = vmatmul.f32.gmra.mxu0 %v4369
    %v4580 = vpop.f32.mrf.mxu0
    %v4581 = vadd.f32 0.0, %v4580
    %4582 = vmatmul.f32.gmra.mxu0 %v4372
    %v4583 = vpop.f32.mrf.mxu0
    %v4584 = vadd.f32 0.0, %v4583
    %4585 = vmatmul.f32.gmra.mxu0 %v4375
    %v4586 = vpop.f32.mrf.mxu0
    %v4587 = vadd.f32 0.0, %v4586
    %4588 = vmatmul.f32.gmra.mxu0 %v4378
    %v4589 = vpop.f32.mrf.mxu0
    %v4590 = vadd.f32 0.0, %v4589
    %4591 = vmatmul.f32.gmra.mxu0 %v4381
    %v4592 = vpop.f32.mrf.mxu0
    %v4593 = vadd.f32 0.0, %v4592
    %4594 = vmatmul.f32.gmra.mxu0 %v4384
    %v4595 = vpop.f32.mrf.mxu0
    %v4596 = vadd.f32 0.0, %v4595
    %4597 = vmatmul.f32.gmra.mxu0 %v4387
    %v4598 = vpop.f32.mrf.mxu0
    %v4599 = vadd.f32 0.0, %v4598
    %4600 = vmatmul.f32.gmra.mxu0 %v4390
    %v4601 = vpop.f32.mrf.mxu0
    %v4602 = vadd.f32 0.0, %v4601
    %4603 = vmatmul.f32.gmra.mxu0 %v4393
    %v4604 = vpop.f32.mrf.mxu0
    %v4605 = vadd.f32 0.0, %v4604
    %4606 = vmatmul.f32.gmra.mxu0 %v4396
    %v4607 = vpop.f32.mrf.mxu0
    %v4608 = vadd.f32 0.0, %v4607
    %4609 = vmatmul.f32.gmra.mxu0 %v4399
    %v4610 = vpop.f32.mrf.mxu0
    %v4611 = vadd.f32 0.0, %v4610
    %4612 = vmatmul.f32.gmra.mxu0 %v4402
    %v4613 = vpop.f32.mrf.mxu0
    %v4614 = vadd.f32 0.0, %v4613
    %4615 = vmatmul.f32.gmra.mxu0 %v4405
    %v4616 = vpop.f32.mrf.mxu0
    %v4617 = vadd.f32 0.0, %v4616
    %4618 = vmatmul.f32.gmra.mxu0 %v4408
    %v4619 = vpop.f32.mrf.mxu0
    %v4620 = vadd.f32 0.0, %v4619
    %4621 = vmatmul.f32.gmra.mxu0 %v4411
    %v4622 = vpop.f32.mrf.mxu0
    %v4623 = vadd.f32 0.0, %v4622
    %4624 = vmatmul.f32.gmra.mxu0 %v4414
    %v4625 = vpop.f32.mrf.mxu0
    %v4626 = vadd.f32 0.0, %v4625
    %4627 = vmatmul.f32.gmra.mxu0 %v4417
    %v4628 = vpop.f32.mrf.mxu0
    %v4629 = vadd.f32 0.0, %v4628
    %4630 = vmatmul.f32.gmra.mxu0 %v4420
    %v4631 = vpop.f32.mrf.mxu0
    %v4632 = vadd.f32 0.0, %v4631
    %4633 = vmatmul.f32.gmra.mxu0 %v4423
    %v4634 = vpop.f32.mrf.mxu0
    %v4635 = vadd.f32 0.0, %v4634
    %4636 = vmatmul.f32.gmra.mxu0 %v4426
    %v4637 = vpop.f32.mrf.mxu0
    %v4638 = vadd.f32 0.0, %v4637
    %4639 = vmatmul.f32.gmra.mxu0 %v4429
    %v4640 = vpop.f32.mrf.mxu0
    %v4641 = vadd.f32 0.0, %v4640
    %4642 = vmatmul.f32.gmra.mxu0 %v4432
    %v4643 = vpop.f32.mrf.mxu0
    %v4644 = vadd.f32 0.0, %v4643
    %4645 = vmatmul.f32.gmra.mxu0 %v4435
    %v4646 = vpop.f32.mrf.mxu0
    %v4647 = vadd.f32 0.0, %v4646
    %4648 = vmatmul.f32.gmra.mxu0 %v4438
    %v4649 = vpop.f32.mrf.mxu0
    %v4650 = vadd.f32 0.0, %v4649
    %4651 = vmatmul.f32.gmra.mxu0 %v4441
    %v4652 = vpop.f32.mrf.mxu0
    %v4653 = vadd.f32 0.0, %v4652
    %4654 = vmatmul.f32.gmra.mxu0 %v4444
    %v4655 = vpop.f32.mrf.mxu0
    %v4656 = vadd.f32 0.0, %v4655
    %4657 = vdwg.mxu0
    %v4658 = vadd.f32 %v4123, %v4467
    %v4659 = vadd.f32 %v4124, %v4470
    %v4660 = vadd.f32 %v4125, %v4473
    %v4661 = vadd.f32 %v4126, %v4476
    %v4662 = vadd.f32 %v4127, %v4479
    %v4663 = vadd.f32 %v4128, %v4482
    %v4664 = vadd.f32 %v4129, %v4485
    %v4665 = vadd.f32 %v4130, %v4488
    %v4666 = vadd.f32 %v4131, %v4491
    %v4667 = vadd.f32 %v4132, %v4494
    %v4668 = vadd.f32 %v4133, %v4497
    %v4669 = vadd.f32 %v4134, %v4500
    %v4670 = vadd.f32 %v4135, %v4503
    %v4671 = vadd.f32 %v4136, %v4506
    %v4672 = vadd.f32 %v4137, %v4509
    %v4673 = vadd.f32 %v4138, %v4512
    %v4674 = vadd.f32 %v4139, %v4515
    %v4675 = vadd.f32 %v4140, %v4518
    %v4676 = vadd.f32 %v4141, %v4521
    %v4677 = vadd.f32 %v4142, %v4524
    %v4678 = vadd.f32 %v4143, %v4527
    %v4679 = vadd.f32 %v4144, %v4530
    %v4680 = vadd.f32 %v4145, %v4533
    %v4681 = vadd.f32 %v4146, %v4536
    %v4682 = vadd.f32 %v4147, %v4539
    %v4683 = vadd.f32 %v4148, %v4542
    %v4684 = vadd.f32 %v4149, %v4545
    %v4685 = vadd.f32 %v4150, %v4548
    %v4686 = vadd.f32 %v4151, %v4551
    %v4687 = vadd.f32 %v4152, %v4554
    %v4688 = vadd.f32 %v4153, %v4557
    %v4689 = vadd.f32 %v4154, %v4560
    %v4690 = vadd.f32 %v4155, %v4563
    %v4691 = vadd.f32 %v4156, %v4566
    %v4692 = vadd.f32 %v4157, %v4569
    %v4693 = vadd.f32 %v4158, %v4572
    %v4694 = vadd.f32 %v4159, %v4575
    %v4695 = vadd.f32 %v4160, %v4578
    %v4696 = vadd.f32 %v4161, %v4581
    %v4697 = vadd.f32 %v4162, %v4584
    %v4698 = vadd.f32 %v4163, %v4587
    %v4699 = vadd.f32 %v4164, %v4590
    %v4700 = vadd.f32 %v4165, %v4593
    %v4701 = vadd.f32 %v4166, %v4596
    %v4702 = vadd.f32 %v4167, %v4599
    %v4703 = vadd.f32 %v4168, %v4602
    %v4704 = vadd.f32 %v4169, %v4605
    %v4705 = vadd.f32 %v4170, %v4608
    %v4706 = vadd.f32 %v4171, %v4611
    %v4707 = vadd.f32 %v4172, %v4614
    %v4708 = vadd.f32 %v4173, %v4617
    %v4709 = vadd.f32 %v4174, %v4620
    %v4710 = vadd.f32 %v4175, %v4623
    %v4711 = vadd.f32 %v4176, %v4626
    %v4712 = vadd.f32 %v4177, %v4629
    %v4713 = vadd.f32 %v4178, %v4632
    %v4714 = vadd.f32 %v4179, %v4635
    %v4715 = vadd.f32 %v4180, %v4638
    %v4716 = vadd.f32 %v4181, %v4641
    %v4717 = vadd.f32 %v4182, %v4644
    %v4718 = vadd.f32 %v4183, %v4647
    %v4719 = vadd.f32 %v4184, %v4650
    %v4720 = vadd.f32 %v4185, %v4653
    %v4721 = vadd.f32 %v4186, %v4656
    %v4722 = vld [vmem:[%s4187 + $0x1] sm:$0xff]
    %v4723 = vld [vmem:[%s4187 + $0x9] sm:$0xff]
    %v4724 = vld [vmem:[%s4187 + $0x19] sm:$0xff]
    %v4725 = vld [vmem:[%s4187 + $0x21] sm:$0xff]
    %v4726 = vld [vmem:[%s4187 + $0x31] sm:$0xff]
    %v4727 = vld [vmem:[%s4187 + $0x39] sm:$0xff]
    %v4728 = vld [vmem:[%s4187 + $0x49] sm:$0xff]
    %v4729 = vld [vmem:[%s4187 + $0x51] sm:$0xff]
    %v4730 = vld [vmem:[%s4187 + $0x61] sm:$0xff]
    %v4731 = vld [vmem:[%s4187 + $0x69] sm:$0xff]
    %v4732 = vld [vmem:[%s4187 + $0x79] sm:$0xff]
    %v4733 = vld [vmem:[%s4187 + $0x81] sm:$0xff]
    %v4734 = vld [vmem:[%s4187 + $0x91] sm:$0xff]
    %v4735 = vld [vmem:[%s4187 + $0x99] sm:$0xff]
    %v4736 = vld [vmem:[%s4187 + $0xa9] sm:$0xff]
    %v4737 = vld [vmem:[%s4187 + $0xb1] sm:$0xff]
    %v4738 = vld [vmem:[%s4187 + $0xc1] sm:$0xff]
    %v4739 = vld [vmem:[%s4187 + $0xc9] sm:$0xff]
    %v4740 = vld [vmem:[%s4187 + $0xd9] sm:$0xff]
    %v4741 = vld [vmem:[%s4187 + $0xe1] sm:$0xff]
    %v4742 = vld [vmem:[%s4187 + $0xf1] sm:$0xff]
    %v4743 = vld [vmem:[%s4187 + $0xf9] sm:$0xff]
    %v4744 = vld [vmem:[%s4187 + $0x109] sm:$0xff]
    %v4745 = vld [vmem:[%s4187 + $0x111] sm:$0xff]
    %v4746 = vld [vmem:[%s4187 + $0x121] sm:$0xff]
    %v4747 = vld [vmem:[%s4187 + $0x129] sm:$0xff]
    %v4748 = vld [vmem:[%s4187 + $0x139] sm:$0xff]
    %v4749 = vld [vmem:[%s4187 + $0x141] sm:$0xff]
    %v4750 = vld [vmem:[%s4187 + $0x151] sm:$0xff]
    %v4751 = vld [vmem:[%s4187 + $0x159] sm:$0xff]
    %v4752 = vld [vmem:[%s4187 + $0x169] sm:$0xff]
    %v4753 = vld [vmem:[%s4187 + $0x171] sm:$0xff]
    %v4754 = vld [vmem:[%s4187 + $0x1c9] sm:$0xff]
    %v4755 = vld [vmem:[%s4187 + $0x1d1] sm:$0xff]
    %v4756 = vld [vmem:[%s4187 + $0x1e1] sm:$0xff]
    %v4757 = vld [vmem:[%s4187 + $0x1e9] sm:$0xff]
    %v4758 = vld [vmem:[%s4187 + $0x1f9] sm:$0xff]
    %v4759 = vld [vmem:[%s4187 + $0x201] sm:$0xff]
    %v4760 = vld [vmem:[%s4187 + $0x211] sm:$0xff]
    %v4761 = vld [vmem:[%s4187 + $0x219] sm:$0xff]
    %v4762 = vld [vmem:[%s4187 + $0x229] sm:$0xff]
    %v4763 = vld [vmem:[%s4187 + $0x231] sm:$0xff]
    %v4764 = vld [vmem:[%s4187 + $0x241] sm:$0xff]
    %v4765 = vld [vmem:[%s4187 + $0x249] sm:$0xff]
    %v4766 = vld [vmem:[%s4187 + $0x259] sm:$0xff]
    %v4767 = vld [vmem:[%s4187 + $0x261] sm:$0xff]
    %v4768 = vld [vmem:[%s4187 + $0x271] sm:$0xff]
    %v4769 = vld [vmem:[%s4187 + $0x279] sm:$0xff]
    %v4770 = vld [vmem:[%s4187 + $0x289] sm:$0xff]
    %v4771 = vld [vmem:[%s4187 + $0x291] sm:$0xff]
    %v4772 = vld [vmem:[%s4187 + $0x2a1] sm:$0xff]
    %v4773 = vld [vmem:[%s4187 + $0x2a9] sm:$0xff]
    %v4774 = vld [vmem:[%s4187 + $0x2b9] sm:$0xff]
    %v4775 = vld [vmem:[%s4187 + $0x2c1] sm:$0xff]
    %v4776 = vld [vmem:[%s4187 + $0x2d1] sm:$0xff]
    %v4777 = vld [vmem:[%s4187 + $0x2d9] sm:$0xff]
    %v4778 = vld [vmem:[%s4187 + $0x2e9] sm:$0xff]
    %v4779 = vld [vmem:[%s4187 + $0x2f1] sm:$0xff]
    %v4780 = vld [vmem:[%s4187 + $0x301] sm:$0xff]
    %v4781 = vld [vmem:[%s4187 + $0x309] sm:$0xff]
    %v4782 = vld [vmem:[%s4187 + $0x319] sm:$0xff]
    %v4783 = vld [vmem:[%s4187 + $0x321] sm:$0xff]
    %v4784 = vld [vmem:[%s4187 + $0x331] sm:$0xff]
    %v4785 = vld [vmem:[%s4187 + $0x339] sm:$0xff]
    %s4786 = scalar_lea.vmem %s1, 36
    %v4787 = vld [vmem:[%s4786] sm:$0x7]
    %v4789 = vsel %vm172, %v4722, 0
    %v4792 = vsel %vm172, %v4723, 0
    %v4795 = vsel %vm172, %v4724, 0
    %v4798 = vsel %vm172, %v4725, 0
    %v4801 = vsel %vm172, %v4726, 0
    %v4804 = vsel %vm172, %v4727, 0
    %v4807 = vsel %vm172, %v4728, 0
    %v4810 = vsel %vm172, %v4729, 0
    %v4813 = vsel %vm172, %v4730, 0
    %v4816 = vsel %vm172, %v4731, 0
    %v4819 = vsel %vm172, %v4732, 0
    %v4822 = vsel %vm172, %v4733, 0
    %v4825 = vsel %vm172, %v4734, 0
    %v4828 = vsel %vm172, %v4735, 0
    %v4831 = vsel %vm172, %v4736, 0
    %v4834 = vsel %vm172, %v4737, 0
    %v4837 = vsel %vm172, %v4738, 0
    %v4840 = vsel %vm172, %v4739, 0
    %v4843 = vsel %vm172, %v4740, 0
    %v4846 = vsel %vm172, %v4741, 0
    %v4849 = vsel %vm172, %v4742, 0
    %v4852 = vsel %vm172, %v4743, 0
    %v4855 = vsel %vm172, %v4744, 0
    %v4858 = vsel %vm172, %v4745, 0
    %v4861 = vsel %vm172, %v4746, 0
    %v4864 = vsel %vm172, %v4747, 0
    %v4867 = vsel %vm172, %v4748, 0
    %v4870 = vsel %vm172, %v4749, 0
    %v4873 = vsel %vm172, %v4750, 0
    %v4876 = vsel %vm172, %v4751, 0
    %v4879 = vsel %vm172, %v4752, 0
    %v4882 = vsel %vm172, %v4753, 0
    %v4885 = vsel %vm172, %v4754, 0
    %v4888 = vsel %vm172, %v4755, 0
    %v4891 = vsel %vm172, %v4756, 0
    %v4894 = vsel %vm172, %v4757, 0
    %v4897 = vsel %vm172, %v4758, 0
    %v4900 = vsel %vm172, %v4759, 0
    %v4903 = vsel %vm172, %v4760, 0
    %v4906 = vsel %vm172, %v4761, 0
    %v4909 = vsel %vm172, %v4762, 0
    %v4912 = vsel %vm172, %v4763, 0
    %v4915 = vsel %vm172, %v4764, 0
    %v4918 = vsel %vm172, %v4765, 0
    %v4921 = vsel %vm172, %v4766, 0
    %v4924 = vsel %vm172, %v4767, 0
    %v4927 = vsel %vm172, %v4768, 0
    %v4930 = vsel %vm172, %v4769, 0
    %v4933 = vsel %vm172, %v4770, 0
    %v4936 = vsel %vm172, %v4771, 0
    %v4939 = vsel %vm172, %v4772, 0
    %v4942 = vsel %vm172, %v4773, 0
    %v4945 = vsel %vm172, %v4774, 0
    %v4948 = vsel %vm172, %v4775, 0
    %v4951 = vsel %vm172, %v4776, 0
    %v4954 = vsel %vm172, %v4777, 0
    %v4957 = vsel %vm172, %v4778, 0
    %v4960 = vsel %vm172, %v4779, 0
    %v4963 = vsel %vm172, %v4780, 0
    %v4966 = vsel %vm172, %v4781, 0
    %v4969 = vsel %vm172, %v4782, 0
    %v4972 = vsel %vm172, %v4783, 0
    %v4975 = vsel %vm172, %v4784, 0
    %v4978 = vsel %vm172, %v4785, 0
    %v4981 = vsel %vm365, %v4787, 0
    %4983 = vmatpush.msra.mxu0 0.0
    %4984 = vmatpush.msra.mxu0 0.0
    %4985 = vmatpush.msra.mxu0 0.0
    %4986 = vmatpush.msra.mxu0 0.0
    %4987 = vmatpush.msra.mxu0 0.0
    %4988 = vmatpush.msra.mxu0 0.0
    %4989 = vmatpush.msra.mxu0 0.0
    %4990 = vmatpush.msra.mxu0 0.0
    %4991 = vmatpush.msra.mxu0 0.0
    %4992 = vmatpush.msra.mxu0 0.0
    %4993 = vmatpush.msra.mxu0 0.0
    %4994 = vmatpush.msra.mxu0 0.0
    %4995 = vmatpush.msra.mxu0 0.0
    %4996 = vmatpush.msra.mxu0 0.0
    %4997 = vmatpush.msra.mxu0 0.0
    %4998 = vmatpush.msra.mxu0 %v4981
    %4999 = vmatmul.f32.gmra.mxu0 %v4789
    %v5000 = vpop.f32.mrf.mxu0
    %v5001 = vadd.f32 0.0, %v5000
    %5002 = vmatmul.f32.gmra.mxu0 %v4792
    %v5003 = vpop.f32.mrf.mxu0
    %v5004 = vadd.f32 0.0, %v5003
    %5005 = vmatmul.f32.gmra.mxu0 %v4795
    %v5006 = vpop.f32.mrf.mxu0
    %v5007 = vadd.f32 0.0, %v5006
    %5008 = vmatmul.f32.gmra.mxu0 %v4798
    %v5009 = vpop.f32.mrf.mxu0
    %v5010 = vadd.f32 0.0, %v5009
    %5011 = vmatmul.f32.gmra.mxu0 %v4801
    %v5012 = vpop.f32.mrf.mxu0
    %v5013 = vadd.f32 0.0, %v5012
    %5014 = vmatmul.f32.gmra.mxu0 %v4804
    %v5015 = vpop.f32.mrf.mxu0
    %v5016 = vadd.f32 0.0, %v5015
    %5017 = vmatmul.f32.gmra.mxu0 %v4807
    %v5018 = vpop.f32.mrf.mxu0
    %v5019 = vadd.f32 0.0, %v5018
    %5020 = vmatmul.f32.gmra.mxu0 %v4810
    %v5021 = vpop.f32.mrf.mxu0
    %v5022 = vadd.f32 0.0, %v5021
    %5023 = vmatmul.f32.gmra.mxu0 %v4813
    %v5024 = vpop.f32.mrf.mxu0
    %v5025 = vadd.f32 0.0, %v5024
    %5026 = vmatmul.f32.gmra.mxu0 %v4816
    %v5027 = vpop.f32.mrf.mxu0
    %v5028 = vadd.f32 0.0, %v5027
    %5029 = vmatmul.f32.gmra.mxu0 %v4819
    %v5030 = vpop.f32.mrf.mxu0
    %v5031 = vadd.f32 0.0, %v5030
    %5032 = vmatmul.f32.gmra.mxu0 %v4822
    %v5033 = vpop.f32.mrf.mxu0
    %v5034 = vadd.f32 0.0, %v5033
    %5035 = vmatmul.f32.gmra.mxu0 %v4825
    %v5036 = vpop.f32.mrf.mxu0
    %v5037 = vadd.f32 0.0, %v5036
    %5038 = vmatmul.f32.gmra.mxu0 %v4828
    %v5039 = vpop.f32.mrf.mxu0
    %v5040 = vadd.f32 0.0, %v5039
    %5041 = vmatmul.f32.gmra.mxu0 %v4831
    %v5042 = vpop.f32.mrf.mxu0
    %v5043 = vadd.f32 0.0, %v5042
    %5044 = vmatmul.f32.gmra.mxu0 %v4834
    %v5045 = vpop.f32.mrf.mxu0
    %v5046 = vadd.f32 0.0, %v5045
    %5047 = vmatmul.f32.gmra.mxu0 %v4837
    %v5048 = vpop.f32.mrf.mxu0
    %v5049 = vadd.f32 0.0, %v5048
    %5050 = vmatmul.f32.gmra.mxu0 %v4840
    %v5051 = vpop.f32.mrf.mxu0
    %v5052 = vadd.f32 0.0, %v5051
    %5053 = vmatmul.f32.gmra.mxu0 %v4843
    %v5054 = vpop.f32.mrf.mxu0
    %v5055 = vadd.f32 0.0, %v5054
    %5056 = vmatmul.f32.gmra.mxu0 %v4846
    %v5057 = vpop.f32.mrf.mxu0
    %v5058 = vadd.f32 0.0, %v5057
    %5059 = vmatmul.f32.gmra.mxu0 %v4849
    %v5060 = vpop.f32.mrf.mxu0
    %v5061 = vadd.f32 0.0, %v5060
    %5062 = vmatmul.f32.gmra.mxu0 %v4852
    %v5063 = vpop.f32.mrf.mxu0
    %v5064 = vadd.f32 0.0, %v5063
    %5065 = vmatmul.f32.gmra.mxu0 %v4855
    %v5066 = vpop.f32.mrf.mxu0
    %v5067 = vadd.f32 0.0, %v5066
    %5068 = vmatmul.f32.gmra.mxu0 %v4858
    %v5069 = vpop.f32.mrf.mxu0
    %v5070 = vadd.f32 0.0, %v5069
    %5071 = vmatmul.f32.gmra.mxu0 %v4861
    %v5072 = vpop.f32.mrf.mxu0
    %v5073 = vadd.f32 0.0, %v5072
    %5074 = vmatmul.f32.gmra.mxu0 %v4864
    %v5075 = vpop.f32.mrf.mxu0
    %v5076 = vadd.f32 0.0, %v5075
    %5077 = vmatmul.f32.gmra.mxu0 %v4867
    %v5078 = vpop.f32.mrf.mxu0
    %v5079 = vadd.f32 0.0, %v5078
    %5080 = vmatmul.f32.gmra.mxu0 %v4870
    %v5081 = vpop.f32.mrf.mxu0
    %v5082 = vadd.f32 0.0, %v5081
    %5083 = vmatmul.f32.gmra.mxu0 %v4873
    %v5084 = vpop.f32.mrf.mxu0
    %v5085 = vadd.f32 0.0, %v5084
    %5086 = vmatmul.f32.gmra.mxu0 %v4876
    %v5087 = vpop.f32.mrf.mxu0
    %v5088 = vadd.f32 0.0, %v5087
    %5089 = vmatmul.f32.gmra.mxu0 %v4879
    %v5090 = vpop.f32.mrf.mxu0
    %v5091 = vadd.f32 0.0, %v5090
    %5092 = vmatmul.f32.gmra.mxu0 %v4882
    %v5093 = vpop.f32.mrf.mxu0
    %v5094 = vadd.f32 0.0, %v5093
    %5095 = vmatmul.f32.gmra.mxu0 %v4885
    %v5096 = vpop.f32.mrf.mxu0
    %v5097 = vadd.f32 0.0, %v5096
    %5098 = vmatmul.f32.gmra.mxu0 %v4888
    %v5099 = vpop.f32.mrf.mxu0
    %v5100 = vadd.f32 0.0, %v5099
    %5101 = vmatmul.f32.gmra.mxu0 %v4891
    %v5102 = vpop.f32.mrf.mxu0
    %v5103 = vadd.f32 0.0, %v5102
    %5104 = vmatmul.f32.gmra.mxu0 %v4894
    %v5105 = vpop.f32.mrf.mxu0
    %v5106 = vadd.f32 0.0, %v5105
    %5107 = vmatmul.f32.gmra.mxu0 %v4897
    %v5108 = vpop.f32.mrf.mxu0
    %v5109 = vadd.f32 0.0, %v5108
    %5110 = vmatmul.f32.gmra.mxu0 %v4900
    %v5111 = vpop.f32.mrf.mxu0
    %v5112 = vadd.f32 0.0, %v5111
    %5113 = vmatmul.f32.gmra.mxu0 %v4903
    %v5114 = vpop.f32.mrf.mxu0
    %v5115 = vadd.f32 0.0, %v5114
    %5116 = vmatmul.f32.gmra.mxu0 %v4906
    %v5117 = vpop.f32.mrf.mxu0
    %v5118 = vadd.f32 0.0, %v5117
    %5119 = vmatmul.f32.gmra.mxu0 %v4909
    %v5120 = vpop.f32.mrf.mxu0
    %v5121 = vadd.f32 0.0, %v5120
    %5122 = vmatmul.f32.gmra.mxu0 %v4912
    %v5123 = vpop.f32.mrf.mxu0
    %v5124 = vadd.f32 0.0, %v5123
    %5125 = vmatmul.f32.gmra.mxu0 %v4915
    %v5126 = vpop.f32.mrf.mxu0
    %v5127 = vadd.f32 0.0, %v5126
    %5128 = vmatmul.f32.gmra.mxu0 %v4918
    %v5129 = vpop.f32.mrf.mxu0
    %v5130 = vadd.f32 0.0, %v5129
    %5131 = vmatmul.f32.gmra.mxu0 %v4921
    %v5132 = vpop.f32.mrf.mxu0
    %v5133 = vadd.f32 0.0, %v5132
    %5134 = vmatmul.f32.gmra.mxu0 %v4924
    %v5135 = vpop.f32.mrf.mxu0
    %v5136 = vadd.f32 0.0, %v5135
    %5137 = vmatmul.f32.gmra.mxu0 %v4927
    %v5138 = vpop.f32.mrf.mxu0
    %v5139 = vadd.f32 0.0, %v5138
    %5140 = vmatmul.f32.gmra.mxu0 %v4930
    %v5141 = vpop.f32.mrf.mxu0
    %v5142 = vadd.f32 0.0, %v5141
    %5143 = vmatmul.f32.gmra.mxu0 %v4933
    %v5144 = vpop.f32.mrf.mxu0
    %v5145 = vadd.f32 0.0, %v5144
    %5146 = vmatmul.f32.gmra.mxu0 %v4936
    %v5147 = vpop.f32.mrf.mxu0
    %v5148 = vadd.f32 0.0, %v5147
    %5149 = vmatmul.f32.gmra.mxu0 %v4939
    %v5150 = vpop.f32.mrf.mxu0
    %v5151 = vadd.f32 0.0, %v5150
    %5152 = vmatmul.f32.gmra.mxu0 %v4942
    %v5153 = vpop.f32.mrf.mxu0
    %v5154 = vadd.f32 0.0, %v5153
    %5155 = vmatmul.f32.gmra.mxu0 %v4945
    %v5156 = vpop.f32.mrf.mxu0
    %v5157 = vadd.f32 0.0, %v5156
    %5158 = vmatmul.f32.gmra.mxu0 %v4948
    %v5159 = vpop.f32.mrf.mxu0
    %v5160 = vadd.f32 0.0, %v5159
    %5161 = vmatmul.f32.gmra.mxu0 %v4951
    %v5162 = vpop.f32.mrf.mxu0
    %v5163 = vadd.f32 0.0, %v5162
    %5164 = vmatmul.f32.gmra.mxu0 %v4954
    %v5165 = vpop.f32.mrf.mxu0
    %v5166 = vadd.f32 0.0, %v5165
    %5167 = vmatmul.f32.gmra.mxu0 %v4957
    %v5168 = vpop.f32.mrf.mxu0
    %v5169 = vadd.f32 0.0, %v5168
    %5170 = vmatmul.f32.gmra.mxu0 %v4960
    %v5171 = vpop.f32.mrf.mxu0
    %v5172 = vadd.f32 0.0, %v5171
    %5173 = vmatmul.f32.gmra.mxu0 %v4963
    %v5174 = vpop.f32.mrf.mxu0
    %v5175 = vadd.f32 0.0, %v5174
    %5176 = vmatmul.f32.gmra.mxu0 %v4966
    %v5177 = vpop.f32.mrf.mxu0
    %v5178 = vadd.f32 0.0, %v5177
    %5179 = vmatmul.f32.gmra.mxu0 %v4969
    %v5180 = vpop.f32.mrf.mxu0
    %v5181 = vadd.f32 0.0, %v5180
    %5182 = vmatmul.f32.gmra.mxu0 %v4972
    %v5183 = vpop.f32.mrf.mxu0
    %v5184 = vadd.f32 0.0, %v5183
    %5185 = vmatmul.f32.gmra.mxu0 %v4975
    %v5186 = vpop.f32.mrf.mxu0
    %v5187 = vadd.f32 0.0, %v5186
    %5188 = vmatmul.f32.gmra.mxu0 %v4978
    %v5189 = vpop.f32.mrf.mxu0
    %v5190 = vadd.f32 0.0, %v5189
    %5191 = vdwg.mxu0
    %v5192 = vadd.f32 %v4658, %v5001
    %v5193 = vadd.f32 %v4659, %v5004
    %v5194 = vadd.f32 %v4660, %v5007
    %v5195 = vadd.f32 %v4661, %v5010
    %v5196 = vadd.f32 %v4662, %v5013
    %v5197 = vadd.f32 %v4663, %v5016
    %v5198 = vadd.f32 %v4664, %v5019
    %v5199 = vadd.f32 %v4665, %v5022
    %v5200 = vadd.f32 %v4666, %v5025
    %v5201 = vadd.f32 %v4667, %v5028
    %v5202 = vadd.f32 %v4668, %v5031
    %v5203 = vadd.f32 %v4669, %v5034
    %v5204 = vadd.f32 %v4670, %v5037
    %v5205 = vadd.f32 %v4671, %v5040
    %v5206 = vadd.f32 %v4672, %v5043
    %v5207 = vadd.f32 %v4673, %v5046
    %v5208 = vadd.f32 %v4674, %v5049
    %v5209 = vadd.f32 %v4675, %v5052
    %v5210 = vadd.f32 %v4676, %v5055
    %v5211 = vadd.f32 %v4677, %v5058
    %v5212 = vadd.f32 %v4678, %v5061
    %v5213 = vadd.f32 %v4679, %v5064
    %v5214 = vadd.f32 %v4680, %v5067
    %v5215 = vadd.f32 %v4681, %v5070
    %v5216 = vadd.f32 %v4682, %v5073
    %v5217 = vadd.f32 %v4683, %v5076
    %v5218 = vadd.f32 %v4684, %v5079
    %v5219 = vadd.f32 %v4685, %v5082
    %v5220 = vadd.f32 %v4686, %v5085
    %v5221 = vadd.f32 %v4687, %v5088
    %v5222 = vadd.f32 %v4688, %v5091
    %v5223 = vadd.f32 %v4689, %v5094
    %v5224 = vadd.f32 %v4690, %v5097
    %v5225 = vadd.f32 %v4691, %v5100
    %v5226 = vadd.f32 %v4692, %v5103
    %v5227 = vadd.f32 %v4693, %v5106
    %v5228 = vadd.f32 %v4694, %v5109
    %v5229 = vadd.f32 %v4695, %v5112
    %v5230 = vadd.f32 %v4696, %v5115
    %v5231 = vadd.f32 %v4697, %v5118
    %v5232 = vadd.f32 %v4698, %v5121
    %v5233 = vadd.f32 %v4699, %v5124
    %v5234 = vadd.f32 %v4700, %v5127
    %v5235 = vadd.f32 %v4701, %v5130
    %v5236 = vadd.f32 %v4702, %v5133
    %v5237 = vadd.f32 %v4703, %v5136
    %v5238 = vadd.f32 %v4704, %v5139
    %v5239 = vadd.f32 %v4705, %v5142
    %v5240 = vadd.f32 %v4706, %v5145
    %v5241 = vadd.f32 %v4707, %v5148
    %v5242 = vadd.f32 %v4708, %v5151
    %v5243 = vadd.f32 %v4709, %v5154
    %v5244 = vadd.f32 %v4710, %v5157
    %v5245 = vadd.f32 %v4711, %v5160
    %v5246 = vadd.f32 %v4712, %v5163
    %v5247 = vadd.f32 %v4713, %v5166
    %v5248 = vadd.f32 %v4714, %v5169
    %v5249 = vadd.f32 %v4715, %v5172
    %v5250 = vadd.f32 %v4716, %v5175
    %v5251 = vadd.f32 %v4717, %v5178
    %v5252 = vadd.f32 %v4718, %v5181
    %v5253 = vadd.f32 %v4719, %v5184
    %v5254 = vadd.f32 %v4720, %v5187
    %v5255 = vadd.f32 %v4721, %v5190
    %v5256 = vld [vmem:[%s4187 + $0x2] sm:$0xff]
    %v5257 = vld [vmem:[%s4187 + $0xa] sm:$0xff]
    %v5258 = vld [vmem:[%s4187 + $0x1a] sm:$0xff]
    %v5259 = vld [vmem:[%s4187 + $0x22] sm:$0xff]
    %v5260 = vld [vmem:[%s4187 + $0x32] sm:$0xff]
    %v5261 = vld [vmem:[%s4187 + $0x3a] sm:$0xff]
    %v5262 = vld [vmem:[%s4187 + $0x4a] sm:$0xff]
    %v5263 = vld [vmem:[%s4187 + $0x52] sm:$0xff]
    %v5264 = vld [vmem:[%s4187 + $0x62] sm:$0xff]
    %v5265 = vld [vmem:[%s4187 + $0x6a] sm:$0xff]
    %v5266 = vld [vmem:[%s4187 + $0x7a] sm:$0xff]
    %v5267 = vld [vmem:[%s4187 + $0x82] sm:$0xff]
    %v5268 = vld [vmem:[%s4187 + $0x92] sm:$0xff]
    %v5269 = vld [vmem:[%s4187 + $0x9a] sm:$0xff]
    %v5270 = vld [vmem:[%s4187 + $0xaa] sm:$0xff]
    %v5271 = vld [vmem:[%s4187 + $0xb2] sm:$0xff]
    %v5272 = vld [vmem:[%s4187 + $0xc2] sm:$0xff]
    %v5273 = vld [vmem:[%s4187 + $0xca] sm:$0xff]
    %v5274 = vld [vmem:[%s4187 + $0xda] sm:$0xff]
    %v5275 = vld [vmem:[%s4187 + $0xe2] sm:$0xff]
    %v5276 = vld [vmem:[%s4187 + $0xf2] sm:$0xff]
    %v5277 = vld [vmem:[%s4187 + $0xfa] sm:$0xff]
    %v5278 = vld [vmem:[%s4187 + $0x10a] sm:$0xff]
    %v5279 = vld [vmem:[%s4187 + $0x112] sm:$0xff]
    %v5280 = vld [vmem:[%s4187 + $0x122] sm:$0xff]
    %v5281 = vld [vmem:[%s4187 + $0x12a] sm:$0xff]
    %v5282 = vld [vmem:[%s4187 + $0x13a] sm:$0xff]
    %v5283 = vld [vmem:[%s4187 + $0x142] sm:$0xff]
    %v5284 = vld [vmem:[%s4187 + $0x152] sm:$0xff]
    %v5285 = vld [vmem:[%s4187 + $0x15a] sm:$0xff]
    %v5286 = vld [vmem:[%s4187 + $0x16a] sm:$0xff]
    %v5287 = vld [vmem:[%s4187 + $0x172] sm:$0xff]
    %v5288 = vld [vmem:[%s4187 + $0x1ca] sm:$0xff]
    %v5289 = vld [vmem:[%s4187 + $0x1d2] sm:$0xff]
    %v5290 = vld [vmem:[%s4187 + $0x1e2] sm:$0xff]
    %v5291 = vld [vmem:[%s4187 + $0x1ea] sm:$0xff]
    %v5292 = vld [vmem:[%s4187 + $0x1fa] sm:$0xff]
    %v5293 = vld [vmem:[%s4187 + $0x202] sm:$0xff]
    %v5294 = vld [vmem:[%s4187 + $0x212] sm:$0xff]
    %v5295 = vld [vmem:[%s4187 + $0x21a] sm:$0xff]
    %v5296 = vld [vmem:[%s4187 + $0x22a] sm:$0xff]
    %v5297 = vld [vmem:[%s4187 + $0x232] sm:$0xff]
    %v5298 = vld [vmem:[%s4187 + $0x242] sm:$0xff]
    %v5299 = vld [vmem:[%s4187 + $0x24a] sm:$0xff]
    %v5300 = vld [vmem:[%s4187 + $0x25a] sm:$0xff]
    %v5301 = vld [vmem:[%s4187 + $0x262] sm:$0xff]
    %v5302 = vld [vmem:[%s4187 + $0x272] sm:$0xff]
    %v5303 = vld [vmem:[%s4187 + $0x27a] sm:$0xff]
    %v5304 = vld [vmem:[%s4187 + $0x28a] sm:$0xff]
    %v5305 = vld [vmem:[%s4187 + $0x292] sm:$0xff]
    %v5306 = vld [vmem:[%s4187 + $0x2a2] sm:$0xff]
    %v5307 = vld [vmem:[%s4187 + $0x2aa] sm:$0xff]
    %v5308 = vld [vmem:[%s4187 + $0x2ba] sm:$0xff]
    %v5309 = vld [vmem:[%s4187 + $0x2c2] sm:$0xff]
    %v5310 = vld [vmem:[%s4187 + $0x2d2] sm:$0xff]
    %v5311 = vld [vmem:[%s4187 + $0x2da] sm:$0xff]
    %v5312 = vld [vmem:[%s4187 + $0x2ea] sm:$0xff]
    %v5313 = vld [vmem:[%s4187 + $0x2f2] sm:$0xff]
    %v5314 = vld [vmem:[%s4187 + $0x302] sm:$0xff]
    %v5315 = vld [vmem:[%s4187 + $0x30a] sm:$0xff]
    %v5316 = vld [vmem:[%s4187 + $0x31a] sm:$0xff]
    %v5317 = vld [vmem:[%s4187 + $0x322] sm:$0xff]
    %v5318 = vld [vmem:[%s4187 + $0x332] sm:$0xff]
    %v5319 = vld [vmem:[%s4187 + $0x33a] sm:$0xff]
    %s5320 = scalar_lea.vmem %s1, 40
    %v5321 = vld [vmem:[%s5320] sm:$0x7]
    %v5323 = vsel %vm172, %v5256, 0
    %v5326 = vsel %vm172, %v5257, 0
    %v5329 = vsel %vm172, %v5258, 0
    %v5332 = vsel %vm172, %v5259, 0
    %v5335 = vsel %vm172, %v5260, 0
    %v5338 = vsel %vm172, %v5261, 0
    %v5341 = vsel %vm172, %v5262, 0
    %v5344 = vsel %vm172, %v5263, 0
    %v5347 = vsel %vm172, %v5264, 0
    %v5350 = vsel %vm172, %v5265, 0
    %v5353 = vsel %vm172, %v5266, 0
    %v5356 = vsel %vm172, %v5267, 0
    %v5359 = vsel %vm172, %v5268, 0
    %v5362 = vsel %vm172, %v5269, 0
    %v5365 = vsel %vm172, %v5270, 0
    %v5368 = vsel %vm172, %v5271, 0
    %v5371 = vsel %vm172, %v5272, 0
    %v5374 = vsel %vm172, %v5273, 0
    %v5377 = vsel %vm172, %v5274, 0
    %v5380 = vsel %vm172, %v5275, 0
    %v5383 = vsel %vm172, %v5276, 0
    %v5386 = vsel %vm172, %v5277, 0
    %v5389 = vsel %vm172, %v5278, 0
    %v5392 = vsel %vm172, %v5279, 0
    %v5395 = vsel %vm172, %v5280, 0
    %v5398 = vsel %vm172, %v5281, 0
    %v5401 = vsel %vm172, %v5282, 0
    %v5404 = vsel %vm172, %v5283, 0
    %v5407 = vsel %vm172, %v5284, 0
    %v5410 = vsel %vm172, %v5285, 0
    %v5413 = vsel %vm172, %v5286, 0
    %v5416 = vsel %vm172, %v5287, 0
    %v5419 = vsel %vm172, %v5288, 0
    %v5422 = vsel %vm172, %v5289, 0
    %v5425 = vsel %vm172, %v5290, 0
    %v5428 = vsel %vm172, %v5291, 0
    %v5431 = vsel %vm172, %v5292, 0
    %v5434 = vsel %vm172, %v5293, 0
    %v5437 = vsel %vm172, %v5294, 0
    %v5440 = vsel %vm172, %v5295, 0
    %v5443 = vsel %vm172, %v5296, 0
    %v5446 = vsel %vm172, %v5297, 0
    %v5449 = vsel %vm172, %v5298, 0
    %v5452 = vsel %vm172, %v5299, 0
    %v5455 = vsel %vm172, %v5300, 0
    %v5458 = vsel %vm172, %v5301, 0
    %v5461 = vsel %vm172, %v5302, 0
    %v5464 = vsel %vm172, %v5303, 0
    %v5467 = vsel %vm172, %v5304, 0
    %v5470 = vsel %vm172, %v5305, 0
    %v5473 = vsel %vm172, %v5306, 0
    %v5476 = vsel %vm172, %v5307, 0
    %v5479 = vsel %vm172, %v5308, 0
    %v5482 = vsel %vm172, %v5309, 0
    %v5485 = vsel %vm172, %v5310, 0
    %v5488 = vsel %vm172, %v5311, 0
    %v5491 = vsel %vm172, %v5312, 0
    %v5494 = vsel %vm172, %v5313, 0
    %v5497 = vsel %vm172, %v5314, 0
    %v5500 = vsel %vm172, %v5315, 0
    %v5503 = vsel %vm172, %v5316, 0
    %v5506 = vsel %vm172, %v5317, 0
    %v5509 = vsel %vm172, %v5318, 0
    %v5512 = vsel %vm172, %v5319, 0
    %v5515 = vsel %vm365, %v5321, 0
    %5517 = vmatpush.msra.mxu0 0.0
    %5518 = vmatpush.msra.mxu0 0.0
    %5519 = vmatpush.msra.mxu0 0.0
    %5520 = vmatpush.msra.mxu0 0.0
    %5521 = vmatpush.msra.mxu0 0.0
    %5522 = vmatpush.msra.mxu0 0.0
    %5523 = vmatpush.msra.mxu0 0.0
    %5524 = vmatpush.msra.mxu0 0.0
    %5525 = vmatpush.msra.mxu0 0.0
    %5526 = vmatpush.msra.mxu0 0.0
    %5527 = vmatpush.msra.mxu0 0.0
    %5528 = vmatpush.msra.mxu0 0.0
    %5529 = vmatpush.msra.mxu0 0.0
    %5530 = vmatpush.msra.mxu0 0.0
    %5531 = vmatpush.msra.mxu0 0.0
    %5532 = vmatpush.msra.mxu0 %v5515
    %5533 = vmatmul.f32.gmra.mxu0 %v5323
    %v5534 = vpop.f32.mrf.mxu0
    %v5535 = vadd.f32 0.0, %v5534
    %5536 = vmatmul.f32.gmra.mxu0 %v5326
    %v5537 = vpop.f32.mrf.mxu0
    %v5538 = vadd.f32 0.0, %v5537
    %5539 = vmatmul.f32.gmra.mxu0 %v5329
    %v5540 = vpop.f32.mrf.mxu0
    %v5541 = vadd.f32 0.0, %v5540
    %5542 = vmatmul.f32.gmra.mxu0 %v5332
    %v5543 = vpop.f32.mrf.mxu0
    %v5544 = vadd.f32 0.0, %v5543
    %5545 = vmatmul.f32.gmra.mxu0 %v5335
    %v5546 = vpop.f32.mrf.mxu0
    %v5547 = vadd.f32 0.0, %v5546
    %5548 = vmatmul.f32.gmra.mxu0 %v5338
    %v5549 = vpop.f32.mrf.mxu0
    %v5550 = vadd.f32 0.0, %v5549
    %5551 = vmatmul.f32.gmra.mxu0 %v5341
    %v5552 = vpop.f32.mrf.mxu0
    %v5553 = vadd.f32 0.0, %v5552
    %5554 = vmatmul.f32.gmra.mxu0 %v5344
    %v5555 = vpop.f32.mrf.mxu0
    %v5556 = vadd.f32 0.0, %v5555
    %5557 = vmatmul.f32.gmra.mxu0 %v5347
    %v5558 = vpop.f32.mrf.mxu0
    %v5559 = vadd.f32 0.0, %v5558
    %5560 = vmatmul.f32.gmra.mxu0 %v5350
    %v5561 = vpop.f32.mrf.mxu0
    %v5562 = vadd.f32 0.0, %v5561
    %5563 = vmatmul.f32.gmra.mxu0 %v5353
    %v5564 = vpop.f32.mrf.mxu0
    %v5565 = vadd.f32 0.0, %v5564
    %5566 = vmatmul.f32.gmra.mxu0 %v5356
    %v5567 = vpop.f32.mrf.mxu0
    %v5568 = vadd.f32 0.0, %v5567
    %5569 = vmatmul.f32.gmra.mxu0 %v5359
    %v5570 = vpop.f32.mrf.mxu0
    %v5571 = vadd.f32 0.0, %v5570
    %5572 = vmatmul.f32.gmra.mxu0 %v5362
    %v5573 = vpop.f32.mrf.mxu0
    %v5574 = vadd.f32 0.0, %v5573
    %5575 = vmatmul.f32.gmra.mxu0 %v5365
    %v5576 = vpop.f32.mrf.mxu0
    %v5577 = vadd.f32 0.0, %v5576
    %5578 = vmatmul.f32.gmra.mxu0 %v5368
    %v5579 = vpop.f32.mrf.mxu0
    %v5580 = vadd.f32 0.0, %v5579
    %5581 = vmatmul.f32.gmra.mxu0 %v5371
    %v5582 = vpop.f32.mrf.mxu0
    %v5583 = vadd.f32 0.0, %v5582
    %5584 = vmatmul.f32.gmra.mxu0 %v5374
    %v5585 = vpop.f32.mrf.mxu0
    %v5586 = vadd.f32 0.0, %v5585
    %5587 = vmatmul.f32.gmra.mxu0 %v5377
    %v5588 = vpop.f32.mrf.mxu0
    %v5589 = vadd.f32 0.0, %v5588
    %5590 = vmatmul.f32.gmra.mxu0 %v5380
    %v5591 = vpop.f32.mrf.mxu0
    %v5592 = vadd.f32 0.0, %v5591
    %5593 = vmatmul.f32.gmra.mxu0 %v5383
    %v5594 = vpop.f32.mrf.mxu0
    %v5595 = vadd.f32 0.0, %v5594
    %5596 = vmatmul.f32.gmra.mxu0 %v5386
    %v5597 = vpop.f32.mrf.mxu0
    %v5598 = vadd.f32 0.0, %v5597
    %5599 = vmatmul.f32.gmra.mxu0 %v5389
    %v5600 = vpop.f32.mrf.mxu0
    %v5601 = vadd.f32 0.0, %v5600
    %5602 = vmatmul.f32.gmra.mxu0 %v5392
    %v5603 = vpop.f32.mrf.mxu0
    %v5604 = vadd.f32 0.0, %v5603
    %5605 = vmatmul.f32.gmra.mxu0 %v5395
    %v5606 = vpop.f32.mrf.mxu0
    %v5607 = vadd.f32 0.0, %v5606
    %5608 = vmatmul.f32.gmra.mxu0 %v5398
    %v5609 = vpop.f32.mrf.mxu0
    %v5610 = vadd.f32 0.0, %v5609
    %5611 = vmatmul.f32.gmra.mxu0 %v5401
    %v5612 = vpop.f32.mrf.mxu0
    %v5613 = vadd.f32 0.0, %v5612
    %5614 = vmatmul.f32.gmra.mxu0 %v5404
    %v5615 = vpop.f32.mrf.mxu0
    %v5616 = vadd.f32 0.0, %v5615
    %5617 = vmatmul.f32.gmra.mxu0 %v5407
    %v5618 = vpop.f32.mrf.mxu0
    %v5619 = vadd.f32 0.0, %v5618
    %5620 = vmatmul.f32.gmra.mxu0 %v5410
    %v5621 = vpop.f32.mrf.mxu0
    %v5622 = vadd.f32 0.0, %v5621
    %5623 = vmatmul.f32.gmra.mxu0 %v5413
    %v5624 = vpop.f32.mrf.mxu0
    %v5625 = vadd.f32 0.0, %v5624
    %5626 = vmatmul.f32.gmra.mxu0 %v5416
    %v5627 = vpop.f32.mrf.mxu0
    %v5628 = vadd.f32 0.0, %v5627
    %5629 = vmatmul.f32.gmra.mxu0 %v5419
    %v5630 = vpop.f32.mrf.mxu0
    %v5631 = vadd.f32 0.0, %v5630
    %5632 = vmatmul.f32.gmra.mxu0 %v5422
    %v5633 = vpop.f32.mrf.mxu0
    %v5634 = vadd.f32 0.0, %v5633
    %5635 = vmatmul.f32.gmra.mxu0 %v5425
    %v5636 = vpop.f32.mrf.mxu0
    %v5637 = vadd.f32 0.0, %v5636
    %5638 = vmatmul.f32.gmra.mxu0 %v5428
    %v5639 = vpop.f32.mrf.mxu0
    %v5640 = vadd.f32 0.0, %v5639
    %5641 = vmatmul.f32.gmra.mxu0 %v5431
    %v5642 = vpop.f32.mrf.mxu0
    %v5643 = vadd.f32 0.0, %v5642
    %5644 = vmatmul.f32.gmra.mxu0 %v5434
    %v5645 = vpop.f32.mrf.mxu0
    %v5646 = vadd.f32 0.0, %v5645
    %5647 = vmatmul.f32.gmra.mxu0 %v5437
    %v5648 = vpop.f32.mrf.mxu0
    %v5649 = vadd.f32 0.0, %v5648
    %5650 = vmatmul.f32.gmra.mxu0 %v5440
    %v5651 = vpop.f32.mrf.mxu0
    %v5652 = vadd.f32 0.0, %v5651
    %5653 = vmatmul.f32.gmra.mxu0 %v5443
    %v5654 = vpop.f32.mrf.mxu0
    %v5655 = vadd.f32 0.0, %v5654
    %5656 = vmatmul.f32.gmra.mxu0 %v5446
    %v5657 = vpop.f32.mrf.mxu0
    %v5658 = vadd.f32 0.0, %v5657
    %5659 = vmatmul.f32.gmra.mxu0 %v5449
    %v5660 = vpop.f32.mrf.mxu0
    %v5661 = vadd.f32 0.0, %v5660
    %5662 = vmatmul.f32.gmra.mxu0 %v5452
    %v5663 = vpop.f32.mrf.mxu0
    %v5664 = vadd.f32 0.0, %v5663
    %5665 = vmatmul.f32.gmra.mxu0 %v5455
    %v5666 = vpop.f32.mrf.mxu0
    %v5667 = vadd.f32 0.0, %v5666
    %5668 = vmatmul.f32.gmra.mxu0 %v5458
    %v5669 = vpop.f32.mrf.mxu0
    %v5670 = vadd.f32 0.0, %v5669
    %5671 = vmatmul.f32.gmra.mxu0 %v5461
    %v5672 = vpop.f32.mrf.mxu0
    %v5673 = vadd.f32 0.0, %v5672
    %5674 = vmatmul.f32.gmra.mxu0 %v5464
    %v5675 = vpop.f32.mrf.mxu0
    %v5676 = vadd.f32 0.0, %v5675
    %5677 = vmatmul.f32.gmra.mxu0 %v5467
    %v5678 = vpop.f32.mrf.mxu0
    %v5679 = vadd.f32 0.0, %v5678
    %5680 = vmatmul.f32.gmra.mxu0 %v5470
    %v5681 = vpop.f32.mrf.mxu0
    %v5682 = vadd.f32 0.0, %v5681
    %5683 = vmatmul.f32.gmra.mxu0 %v5473
    %v5684 = vpop.f32.mrf.mxu0
    %v5685 = vadd.f32 0.0, %v5684
    %5686 = vmatmul.f32.gmra.mxu0 %v5476
    %v5687 = vpop.f32.mrf.mxu0
    %v5688 = vadd.f32 0.0, %v5687
    %5689 = vmatmul.f32.gmra.mxu0 %v5479
    %v5690 = vpop.f32.mrf.mxu0
    %v5691 = vadd.f32 0.0, %v5690
    %5692 = vmatmul.f32.gmra.mxu0 %v5482
    %v5693 = vpop.f32.mrf.mxu0
    %v5694 = vadd.f32 0.0, %v5693
    %5695 = vmatmul.f32.gmra.mxu0 %v5485
    %v5696 = vpop.f32.mrf.mxu0
    %v5697 = vadd.f32 0.0, %v5696
    %5698 = vmatmul.f32.gmra.mxu0 %v5488
    %v5699 = vpop.f32.mrf.mxu0
    %v5700 = vadd.f32 0.0, %v5699
    %5701 = vmatmul.f32.gmra.mxu0 %v5491
    %v5702 = vpop.f32.mrf.mxu0
    %v5703 = vadd.f32 0.0, %v5702
    %5704 = vmatmul.f32.gmra.mxu0 %v5494
    %v5705 = vpop.f32.mrf.mxu0
    %v5706 = vadd.f32 0.0, %v5705
    %5707 = vmatmul.f32.gmra.mxu0 %v5497
    %v5708 = vpop.f32.mrf.mxu0
    %v5709 = vadd.f32 0.0, %v5708
    %5710 = vmatmul.f32.gmra.mxu0 %v5500
    %v5711 = vpop.f32.mrf.mxu0
    %v5712 = vadd.f32 0.0, %v5711
    %5713 = vmatmul.f32.gmra.mxu0 %v5503
    %v5714 = vpop.f32.mrf.mxu0
    %v5715 = vadd.f32 0.0, %v5714
    %5716 = vmatmul.f32.gmra.mxu0 %v5506
    %v5717 = vpop.f32.mrf.mxu0
    %v5718 = vadd.f32 0.0, %v5717
    %5719 = vmatmul.f32.gmra.mxu0 %v5509
    %v5720 = vpop.f32.mrf.mxu0
    %v5721 = vadd.f32 0.0, %v5720
    %5722 = vmatmul.f32.gmra.mxu0 %v5512
    %v5723 = vpop.f32.mrf.mxu0
    %v5724 = vadd.f32 0.0, %v5723
    %5725 = vdwg.mxu0
    %v5726 = vadd.f32 %v5192, %v5535
    %v5727 = vadd.f32 %v5193, %v5538
    %v5728 = vadd.f32 %v5194, %v5541
    %v5729 = vadd.f32 %v5195, %v5544
    %v5730 = vadd.f32 %v5196, %v5547
    %v5731 = vadd.f32 %v5197, %v5550
    %v5732 = vadd.f32 %v5198, %v5553
    %v5733 = vadd.f32 %v5199, %v5556
    %v5734 = vadd.f32 %v5200, %v5559
    %v5735 = vadd.f32 %v5201, %v5562
    %v5736 = vadd.f32 %v5202, %v5565
    %v5737 = vadd.f32 %v5203, %v5568
    %v5738 = vadd.f32 %v5204, %v5571
    %v5739 = vadd.f32 %v5205, %v5574
    %v5740 = vadd.f32 %v5206, %v5577
    %v5741 = vadd.f32 %v5207, %v5580
    %v5742 = vadd.f32 %v5208, %v5583
    %v5743 = vadd.f32 %v5209, %v5586
    %v5744 = vadd.f32 %v5210, %v5589
    %v5745 = vadd.f32 %v5211, %v5592
    %v5746 = vadd.f32 %v5212, %v5595
    %v5747 = vadd.f32 %v5213, %v5598
    %v5748 = vadd.f32 %v5214, %v5601
    %v5749 = vadd.f32 %v5215, %v5604
    %v5750 = vadd.f32 %v5216, %v5607
    %v5751 = vadd.f32 %v5217, %v5610
    %v5752 = vadd.f32 %v5218, %v5613
    %v5753 = vadd.f32 %v5219, %v5616
    %v5754 = vadd.f32 %v5220, %v5619
    %v5755 = vadd.f32 %v5221, %v5622
    %v5756 = vadd.f32 %v5222, %v5625
    %v5757 = vadd.f32 %v5223, %v5628
    %v5758 = vadd.f32 %v5224, %v5631
    %v5759 = vadd.f32 %v5225, %v5634
    %v5760 = vadd.f32 %v5226, %v5637
    %v5761 = vadd.f32 %v5227, %v5640
    %v5762 = vadd.f32 %v5228, %v5643
    %v5763 = vadd.f32 %v5229, %v5646
    %v5764 = vadd.f32 %v5230, %v5649
    %v5765 = vadd.f32 %v5231, %v5652
    %v5766 = vadd.f32 %v5232, %v5655
    %v5767 = vadd.f32 %v5233, %v5658
    %v5768 = vadd.f32 %v5234, %v5661
    %v5769 = vadd.f32 %v5235, %v5664
    %v5770 = vadd.f32 %v5236, %v5667
    %v5771 = vadd.f32 %v5237, %v5670
    %v5772 = vadd.f32 %v5238, %v5673
    %v5773 = vadd.f32 %v5239, %v5676
    %v5774 = vadd.f32 %v5240, %v5679
    %v5775 = vadd.f32 %v5241, %v5682
    %v5776 = vadd.f32 %v5242, %v5685
    %v5777 = vadd.f32 %v5243, %v5688
    %v5778 = vadd.f32 %v5244, %v5691
    %v5779 = vadd.f32 %v5245, %v5694
    %v5780 = vadd.f32 %v5246, %v5697
    %v5781 = vadd.f32 %v5247, %v5700
    %v5782 = vadd.f32 %v5248, %v5703
    %v5783 = vadd.f32 %v5249, %v5706
    %v5784 = vadd.f32 %v5250, %v5709
    %v5785 = vadd.f32 %v5251, %v5712
    %v5786 = vadd.f32 %v5252, %v5715
    %v5787 = vadd.f32 %v5253, %v5718
    %v5788 = vadd.f32 %v5254, %v5721
    %v5789 = vadd.f32 %v5255, %v5724
    %v5790 = vld [vmem:[%s4187 + $0x3] sm:$0xff]
    %v5791 = vld [vmem:[%s4187 + $0xb] sm:$0xff]
    %v5792 = vld [vmem:[%s4187 + $0x1b] sm:$0xff]
    %v5793 = vld [vmem:[%s4187 + $0x23] sm:$0xff]
    %v5794 = vld [vmem:[%s4187 + $0x33] sm:$0xff]
    %v5795 = vld [vmem:[%s4187 + $0x3b] sm:$0xff]
    %v5796 = vld [vmem:[%s4187 + $0x4b] sm:$0xff]
    %v5797 = vld [vmem:[%s4187 + $0x53] sm:$0xff]
    %v5798 = vld [vmem:[%s4187 + $0x63] sm:$0xff]
    %v5799 = vld [vmem:[%s4187 + $0x6b] sm:$0xff]
    %v5800 = vld [vmem:[%s4187 + $0x7b] sm:$0xff]
    %v5801 = vld [vmem:[%s4187 + $0x83] sm:$0xff]
    %v5802 = vld [vmem:[%s4187 + $0x93] sm:$0xff]
    %v5803 = vld [vmem:[%s4187 + $0x9b] sm:$0xff]
    %v5804 = vld [vmem:[%s4187 + $0xab] sm:$0xff]
    %v5805 = vld [vmem:[%s4187 + $0xb3] sm:$0xff]
    %v5806 = vld [vmem:[%s4187 + $0xc3] sm:$0xff]
    %v5807 = vld [vmem:[%s4187 + $0xcb] sm:$0xff]
    %v5808 = vld [vmem:[%s4187 + $0xdb] sm:$0xff]
    %v5809 = vld [vmem:[%s4187 + $0xe3] sm:$0xff]
    %v5810 = vld [vmem:[%s4187 + $0xf3] sm:$0xff]
    %v5811 = vld [vmem:[%s4187 + $0xfb] sm:$0xff]
    %v5812 = vld [vmem:[%s4187 + $0x10b] sm:$0xff]
    %v5813 = vld [vmem:[%s4187 + $0x113] sm:$0xff]
    %v5814 = vld [vmem:[%s4187 + $0x123] sm:$0xff]
    %v5815 = vld [vmem:[%s4187 + $0x12b] sm:$0xff]
    %v5816 = vld [vmem:[%s4187 + $0x13b] sm:$0xff]
    %v5817 = vld [vmem:[%s4187 + $0x143] sm:$0xff]
    %v5818 = vld [vmem:[%s4187 + $0x153] sm:$0xff]
    %v5819 = vld [vmem:[%s4187 + $0x15b] sm:$0xff]
    %v5820 = vld [vmem:[%s4187 + $0x16b] sm:$0xff]
    %v5821 = vld [vmem:[%s4187 + $0x173] sm:$0xff]
    %v5822 = vld [vmem:[%s4187 + $0x1cb] sm:$0xff]
    %v5823 = vld [vmem:[%s4187 + $0x1d3] sm:$0xff]
    %v5824 = vld [vmem:[%s4187 + $0x1e3] sm:$0xff]
    %v5825 = vld [vmem:[%s4187 + $0x1eb] sm:$0xff]
    %v5826 = vld [vmem:[%s4187 + $0x1fb] sm:$0xff]
    %v5827 = vld [vmem:[%s4187 + $0x203] sm:$0xff]
    %v5828 = vld [vmem:[%s4187 + $0x213] sm:$0xff]
    %v5829 = vld [vmem:[%s4187 + $0x21b] sm:$0xff]
    %v5830 = vld [vmem:[%s4187 + $0x22b] sm:$0xff]
    %v5831 = vld [vmem:[%s4187 + $0x233] sm:$0xff]
    %v5832 = vld [vmem:[%s4187 + $0x243] sm:$0xff]
    %v5833 = vld [vmem:[%s4187 + $0x24b] sm:$0xff]
    %v5834 = vld [vmem:[%s4187 + $0x25b] sm:$0xff]
    %v5835 = vld [vmem:[%s4187 + $0x263] sm:$0xff]
    %v5836 = vld [vmem:[%s4187 + $0x273] sm:$0xff]
    %v5837 = vld [vmem:[%s4187 + $0x27b] sm:$0xff]
    %v5838 = vld [vmem:[%s4187 + $0x28b] sm:$0xff]
    %v5839 = vld [vmem:[%s4187 + $0x293] sm:$0xff]
    %v5840 = vld [vmem:[%s4187 + $0x2a3] sm:$0xff]
    %v5841 = vld [vmem:[%s4187 + $0x2ab] sm:$0xff]
    %v5842 = vld [vmem:[%s4187 + $0x2bb] sm:$0xff]
    %v5843 = vld [vmem:[%s4187 + $0x2c3] sm:$0xff]
    %v5844 = vld [vmem:[%s4187 + $0x2d3] sm:$0xff]
    %v5845 = vld [vmem:[%s4187 + $0x2db] sm:$0xff]
    %v5846 = vld [vmem:[%s4187 + $0x2eb] sm:$0xff]
    %v5847 = vld [vmem:[%s4187 + $0x2f3] sm:$0xff]
    %v5848 = vld [vmem:[%s4187 + $0x303] sm:$0xff]
    %v5849 = vld [vmem:[%s4187 + $0x30b] sm:$0xff]
    %v5850 = vld [vmem:[%s4187 + $0x31b] sm:$0xff]
    %v5851 = vld [vmem:[%s4187 + $0x323] sm:$0xff]
    %v5852 = vld [vmem:[%s4187 + $0x333] sm:$0xff]
    %v5853 = vld [vmem:[%s4187 + $0x33b] sm:$0xff]
    %s5854 = scalar_lea.vmem %s1, 44
    %v5855 = vld [vmem:[%s5854] sm:$0x7]
    %v5857 = vsel %vm172, %v5790, 0
    %v5860 = vsel %vm172, %v5791, 0
    %v5863 = vsel %vm172, %v5792, 0
    %v5866 = vsel %vm172, %v5793, 0
    %v5869 = vsel %vm172, %v5794, 0
    %v5872 = vsel %vm172, %v5795, 0
    %v5875 = vsel %vm172, %v5796, 0
    %v5878 = vsel %vm172, %v5797, 0
    %v5881 = vsel %vm172, %v5798, 0
    %v5884 = vsel %vm172, %v5799, 0
    %v5887 = vsel %vm172, %v5800, 0
    %v5890 = vsel %vm172, %v5801, 0
    %v5893 = vsel %vm172, %v5802, 0
    %v5896 = vsel %vm172, %v5803, 0
    %v5899 = vsel %vm172, %v5804, 0
    %v5902 = vsel %vm172, %v5805, 0
    %v5905 = vsel %vm172, %v5806, 0
    %v5908 = vsel %vm172, %v5807, 0
    %v5911 = vsel %vm172, %v5808, 0
    %v5914 = vsel %vm172, %v5809, 0
    %v5917 = vsel %vm172, %v5810, 0
    %v5920 = vsel %vm172, %v5811, 0
    %v5923 = vsel %vm172, %v5812, 0
    %v5926 = vsel %vm172, %v5813, 0
    %v5929 = vsel %vm172, %v5814, 0
    %v5932 = vsel %vm172, %v5815, 0
    %v5935 = vsel %vm172, %v5816, 0
    %v5938 = vsel %vm172, %v5817, 0
    %v5941 = vsel %vm172, %v5818, 0
    %v5944 = vsel %vm172, %v5819, 0
    %v5947 = vsel %vm172, %v5820, 0
    %v5950 = vsel %vm172, %v5821, 0
    %v5953 = vsel %vm172, %v5822, 0
    %v5956 = vsel %vm172, %v5823, 0
    %v5959 = vsel %vm172, %v5824, 0
    %v5962 = vsel %vm172, %v5825, 0
    %v5965 = vsel %vm172, %v5826, 0
    %v5968 = vsel %vm172, %v5827, 0
    %v5971 = vsel %vm172, %v5828, 0
    %v5974 = vsel %vm172, %v5829, 0
    %v5977 = vsel %vm172, %v5830, 0
    %v5980 = vsel %vm172, %v5831, 0
    %v5983 = vsel %vm172, %v5832, 0
    %v5986 = vsel %vm172, %v5833, 0
    %v5989 = vsel %vm172, %v5834, 0
    %v5992 = vsel %vm172, %v5835, 0
    %v5995 = vsel %vm172, %v5836, 0
    %v5998 = vsel %vm172, %v5837, 0
    %v6001 = vsel %vm172, %v5838, 0
    %v6004 = vsel %vm172, %v5839, 0
    %v6007 = vsel %vm172, %v5840, 0
    %v6010 = vsel %vm172, %v5841, 0
    %v6013 = vsel %vm172, %v5842, 0
    %v6016 = vsel %vm172, %v5843, 0
    %v6019 = vsel %vm172, %v5844, 0
    %v6022 = vsel %vm172, %v5845, 0
    %v6025 = vsel %vm172, %v5846, 0
    %v6028 = vsel %vm172, %v5847, 0
    %v6031 = vsel %vm172, %v5848, 0
    %v6034 = vsel %vm172, %v5849, 0
    %v6037 = vsel %vm172, %v5850, 0
    %v6040 = vsel %vm172, %v5851, 0
    %v6043 = vsel %vm172, %v5852, 0
    %v6046 = vsel %vm172, %v5853, 0
    %v6049 = vsel %vm365, %v5855, 0
    %6051 = vmatpush.msra.mxu0 0.0
    %6052 = vmatpush.msra.mxu0 0.0
    %6053 = vmatpush.msra.mxu0 0.0
    %6054 = vmatpush.msra.mxu0 0.0
    %6055 = vmatpush.msra.mxu0 0.0
    %6056 = vmatpush.msra.mxu0 0.0
    %6057 = vmatpush.msra.mxu0 0.0
    %6058 = vmatpush.msra.mxu0 0.0
    %6059 = vmatpush.msra.mxu0 0.0
    %6060 = vmatpush.msra.mxu0 0.0
    %6061 = vmatpush.msra.mxu0 0.0
    %6062 = vmatpush.msra.mxu0 0.0
    %6063 = vmatpush.msra.mxu0 0.0
    %6064 = vmatpush.msra.mxu0 0.0
    %6065 = vmatpush.msra.mxu0 0.0
    %6066 = vmatpush.msra.mxu0 %v6049
    %6067 = vmatmul.f32.gmra.mxu0 %v5857
    %v6068 = vpop.f32.mrf.mxu0
    %v6069 = vadd.f32 0.0, %v6068
    %6070 = vmatmul.f32.gmra.mxu0 %v5860
    %v6071 = vpop.f32.mrf.mxu0
    %v6072 = vadd.f32 0.0, %v6071
    %6073 = vmatmul.f32.gmra.mxu0 %v5863
    %v6074 = vpop.f32.mrf.mxu0
    %v6075 = vadd.f32 0.0, %v6074
    %6076 = vmatmul.f32.gmra.mxu0 %v5866
    %v6077 = vpop.f32.mrf.mxu0
    %v6078 = vadd.f32 0.0, %v6077
    %6079 = vmatmul.f32.gmra.mxu0 %v5869
    %v6080 = vpop.f32.mrf.mxu0
    %v6081 = vadd.f32 0.0, %v6080
    %6082 = vmatmul.f32.gmra.mxu0 %v5872
    %v6083 = vpop.f32.mrf.mxu0
    %v6084 = vadd.f32 0.0, %v6083
    %6085 = vmatmul.f32.gmra.mxu0 %v5875
    %v6086 = vpop.f32.mrf.mxu0
    %v6087 = vadd.f32 0.0, %v6086
    %6088 = vmatmul.f32.gmra.mxu0 %v5878
    %v6089 = vpop.f32.mrf.mxu0
    %v6090 = vadd.f32 0.0, %v6089
    %6091 = vmatmul.f32.gmra.mxu0 %v5881
    %v6092 = vpop.f32.mrf.mxu0
    %v6093 = vadd.f32 0.0, %v6092
    %6094 = vmatmul.f32.gmra.mxu0 %v5884
    %v6095 = vpop.f32.mrf.mxu0
    %v6096 = vadd.f32 0.0, %v6095
    %6097 = vmatmul.f32.gmra.mxu0 %v5887
    %v6098 = vpop.f32.mrf.mxu0
    %v6099 = vadd.f32 0.0, %v6098
    %6100 = vmatmul.f32.gmra.mxu0 %v5890
    %v6101 = vpop.f32.mrf.mxu0
    %v6102 = vadd.f32 0.0, %v6101
    %6103 = vmatmul.f32.gmra.mxu0 %v5893
    %v6104 = vpop.f32.mrf.mxu0
    %v6105 = vadd.f32 0.0, %v6104
    %6106 = vmatmul.f32.gmra.mxu0 %v5896
    %v6107 = vpop.f32.mrf.mxu0
    %v6108 = vadd.f32 0.0, %v6107
    %6109 = vmatmul.f32.gmra.mxu0 %v5899
    %v6110 = vpop.f32.mrf.mxu0
    %v6111 = vadd.f32 0.0, %v6110
    %6112 = vmatmul.f32.gmra.mxu0 %v5902
    %v6113 = vpop.f32.mrf.mxu0
    %v6114 = vadd.f32 0.0, %v6113
    %6115 = vmatmul.f32.gmra.mxu0 %v5905
    %v6116 = vpop.f32.mrf.mxu0
    %v6117 = vadd.f32 0.0, %v6116
    %6118 = vmatmul.f32.gmra.mxu0 %v5908
    %v6119 = vpop.f32.mrf.mxu0
    %v6120 = vadd.f32 0.0, %v6119
    %6121 = vmatmul.f32.gmra.mxu0 %v5911
    %v6122 = vpop.f32.mrf.mxu0
    %v6123 = vadd.f32 0.0, %v6122
    %6124 = vmatmul.f32.gmra.mxu0 %v5914
    %v6125 = vpop.f32.mrf.mxu0
    %v6126 = vadd.f32 0.0, %v6125
    %6127 = vmatmul.f32.gmra.mxu0 %v5917
    %v6128 = vpop.f32.mrf.mxu0
    %v6129 = vadd.f32 0.0, %v6128
    %6130 = vmatmul.f32.gmra.mxu0 %v5920
    %v6131 = vpop.f32.mrf.mxu0
    %v6132 = vadd.f32 0.0, %v6131
    %6133 = vmatmul.f32.gmra.mxu0 %v5923
    %v6134 = vpop.f32.mrf.mxu0
    %v6135 = vadd.f32 0.0, %v6134
    %6136 = vmatmul.f32.gmra.mxu0 %v5926
    %v6137 = vpop.f32.mrf.mxu0
    %v6138 = vadd.f32 0.0, %v6137
    %6139 = vmatmul.f32.gmra.mxu0 %v5929
    %v6140 = vpop.f32.mrf.mxu0
    %v6141 = vadd.f32 0.0, %v6140
    %6142 = vmatmul.f32.gmra.mxu0 %v5932
    %v6143 = vpop.f32.mrf.mxu0
    %v6144 = vadd.f32 0.0, %v6143
    %6145 = vmatmul.f32.gmra.mxu0 %v5935
    %v6146 = vpop.f32.mrf.mxu0
    %v6147 = vadd.f32 0.0, %v6146
    %6148 = vmatmul.f32.gmra.mxu0 %v5938
    %v6149 = vpop.f32.mrf.mxu0
    %v6150 = vadd.f32 0.0, %v6149
    %6151 = vmatmul.f32.gmra.mxu0 %v5941
    %v6152 = vpop.f32.mrf.mxu0
    %v6153 = vadd.f32 0.0, %v6152
    %6154 = vmatmul.f32.gmra.mxu0 %v5944
    %v6155 = vpop.f32.mrf.mxu0
    %v6156 = vadd.f32 0.0, %v6155
    %6157 = vmatmul.f32.gmra.mxu0 %v5947
    %v6158 = vpop.f32.mrf.mxu0
    %v6159 = vadd.f32 0.0, %v6158
    %6160 = vmatmul.f32.gmra.mxu0 %v5950
    %v6161 = vpop.f32.mrf.mxu0
    %v6162 = vadd.f32 0.0, %v6161
    %6163 = vmatmul.f32.gmra.mxu0 %v5953
    %v6164 = vpop.f32.mrf.mxu0
    %v6165 = vadd.f32 0.0, %v6164
    %6166 = vmatmul.f32.gmra.mxu0 %v5956
    %v6167 = vpop.f32.mrf.mxu0
    %v6168 = vadd.f32 0.0, %v6167
    %6169 = vmatmul.f32.gmra.mxu0 %v5959
    %v6170 = vpop.f32.mrf.mxu0
    %v6171 = vadd.f32 0.0, %v6170
    %6172 = vmatmul.f32.gmra.mxu0 %v5962
    %v6173 = vpop.f32.mrf.mxu0
    %v6174 = vadd.f32 0.0, %v6173
    %6175 = vmatmul.f32.gmra.mxu0 %v5965
    %v6176 = vpop.f32.mrf.mxu0
    %v6177 = vadd.f32 0.0, %v6176
    %6178 = vmatmul.f32.gmra.mxu0 %v5968
    %v6179 = vpop.f32.mrf.mxu0
    %v6180 = vadd.f32 0.0, %v6179
    %6181 = vmatmul.f32.gmra.mxu0 %v5971
    %v6182 = vpop.f32.mrf.mxu0
    %v6183 = vadd.f32 0.0, %v6182
    %6184 = vmatmul.f32.gmra.mxu0 %v5974
    %v6185 = vpop.f32.mrf.mxu0
    %v6186 = vadd.f32 0.0, %v6185
    %6187 = vmatmul.f32.gmra.mxu0 %v5977
    %v6188 = vpop.f32.mrf.mxu0
    %v6189 = vadd.f32 0.0, %v6188
    %6190 = vmatmul.f32.gmra.mxu0 %v5980
    %v6191 = vpop.f32.mrf.mxu0
    %v6192 = vadd.f32 0.0, %v6191
    %6193 = vmatmul.f32.gmra.mxu0 %v5983
    %v6194 = vpop.f32.mrf.mxu0
    %v6195 = vadd.f32 0.0, %v6194
    %6196 = vmatmul.f32.gmra.mxu0 %v5986
    %v6197 = vpop.f32.mrf.mxu0
    %v6198 = vadd.f32 0.0, %v6197
    %6199 = vmatmul.f32.gmra.mxu0 %v5989
    %v6200 = vpop.f32.mrf.mxu0
    %v6201 = vadd.f32 0.0, %v6200
    %6202 = vmatmul.f32.gmra.mxu0 %v5992
    %v6203 = vpop.f32.mrf.mxu0
    %v6204 = vadd.f32 0.0, %v6203
    %6205 = vmatmul.f32.gmra.mxu0 %v5995
    %v6206 = vpop.f32.mrf.mxu0
    %v6207 = vadd.f32 0.0, %v6206
    %6208 = vmatmul.f32.gmra.mxu0 %v5998
    %v6209 = vpop.f32.mrf.mxu0
    %v6210 = vadd.f32 0.0, %v6209
    %6211 = vmatmul.f32.gmra.mxu0 %v6001
    %v6212 = vpop.f32.mrf.mxu0
    %v6213 = vadd.f32 0.0, %v6212
    %6214 = vmatmul.f32.gmra.mxu0 %v6004
    %v6215 = vpop.f32.mrf.mxu0
    %v6216 = vadd.f32 0.0, %v6215
    %6217 = vmatmul.f32.gmra.mxu0 %v6007
    %v6218 = vpop.f32.mrf.mxu0
    %v6219 = vadd.f32 0.0, %v6218
    %6220 = vmatmul.f32.gmra.mxu0 %v6010
    %v6221 = vpop.f32.mrf.mxu0
    %v6222 = vadd.f32 0.0, %v6221
    %6223 = vmatmul.f32.gmra.mxu0 %v6013
    %v6224 = vpop.f32.mrf.mxu0
    %v6225 = vadd.f32 0.0, %v6224
    %6226 = vmatmul.f32.gmra.mxu0 %v6016
    %v6227 = vpop.f32.mrf.mxu0
    %v6228 = vadd.f32 0.0, %v6227
    %6229 = vmatmul.f32.gmra.mxu0 %v6019
    %v6230 = vpop.f32.mrf.mxu0
    %v6231 = vadd.f32 0.0, %v6230
    %6232 = vmatmul.f32.gmra.mxu0 %v6022
    %v6233 = vpop.f32.mrf.mxu0
    %v6234 = vadd.f32 0.0, %v6233
    %6235 = vmatmul.f32.gmra.mxu0 %v6025
    %v6236 = vpop.f32.mrf.mxu0
    %v6237 = vadd.f32 0.0, %v6236
    %6238 = vmatmul.f32.gmra.mxu0 %v6028
    %v6239 = vpop.f32.mrf.mxu0
    %v6240 = vadd.f32 0.0, %v6239
    %6241 = vmatmul.f32.gmra.mxu0 %v6031
    %v6242 = vpop.f32.mrf.mxu0
    %v6243 = vadd.f32 0.0, %v6242
    %6244 = vmatmul.f32.gmra.mxu0 %v6034
    %v6245 = vpop.f32.mrf.mxu0
    %v6246 = vadd.f32 0.0, %v6245
    %6247 = vmatmul.f32.gmra.mxu0 %v6037
    %v6248 = vpop.f32.mrf.mxu0
    %v6249 = vadd.f32 0.0, %v6248
    %6250 = vmatmul.f32.gmra.mxu0 %v6040
    %v6251 = vpop.f32.mrf.mxu0
    %v6252 = vadd.f32 0.0, %v6251
    %6253 = vmatmul.f32.gmra.mxu0 %v6043
    %v6254 = vpop.f32.mrf.mxu0
    %v6255 = vadd.f32 0.0, %v6254
    %6256 = vmatmul.f32.gmra.mxu0 %v6046
    %v6257 = vpop.f32.mrf.mxu0
    %v6258 = vadd.f32 0.0, %v6257
    %6259 = vdwg.mxu0
    %v6260 = vadd.f32 %v5726, %v6069
    %v6261 = vadd.f32 %v5727, %v6072
    %v6262 = vadd.f32 %v5728, %v6075
    %v6263 = vadd.f32 %v5729, %v6078
    %v6264 = vadd.f32 %v5730, %v6081
    %v6265 = vadd.f32 %v5731, %v6084
    %v6266 = vadd.f32 %v5732, %v6087
    %v6267 = vadd.f32 %v5733, %v6090
    %v6268 = vadd.f32 %v5734, %v6093
    %v6269 = vadd.f32 %v5735, %v6096
    %v6270 = vadd.f32 %v5736, %v6099
    %v6271 = vadd.f32 %v5737, %v6102
    %v6272 = vadd.f32 %v5738, %v6105
    %v6273 = vadd.f32 %v5739, %v6108
    %v6274 = vadd.f32 %v5740, %v6111
    %v6275 = vadd.f32 %v5741, %v6114
    %v6276 = vadd.f32 %v5742, %v6117
    %v6277 = vadd.f32 %v5743, %v6120
    %v6278 = vadd.f32 %v5744, %v6123
    %v6279 = vadd.f32 %v5745, %v6126
    %v6280 = vadd.f32 %v5746, %v6129
    %v6281 = vadd.f32 %v5747, %v6132
    %v6282 = vadd.f32 %v5748, %v6135
    %v6283 = vadd.f32 %v5749, %v6138
    %v6284 = vadd.f32 %v5750, %v6141
    %v6285 = vadd.f32 %v5751, %v6144
    %v6286 = vadd.f32 %v5752, %v6147
    %v6287 = vadd.f32 %v5753, %v6150
    %v6288 = vadd.f32 %v5754, %v6153
    %v6289 = vadd.f32 %v5755, %v6156
    %v6290 = vadd.f32 %v5756, %v6159
    %v6291 = vadd.f32 %v5757, %v6162
    %v6292 = vadd.f32 %v5758, %v6165
    %v6293 = vadd.f32 %v5759, %v6168
    %v6294 = vadd.f32 %v5760, %v6171
    %v6295 = vadd.f32 %v5761, %v6174
    %v6296 = vadd.f32 %v5762, %v6177
    %v6297 = vadd.f32 %v5763, %v6180
    %v6298 = vadd.f32 %v5764, %v6183
    %v6299 = vadd.f32 %v5765, %v6186
    %v6300 = vadd.f32 %v5766, %v6189
    %v6301 = vadd.f32 %v5767, %v6192
    %v6302 = vadd.f32 %v5768, %v6195
    %v6303 = vadd.f32 %v5769, %v6198
    %v6304 = vadd.f32 %v5770, %v6201
    %v6305 = vadd.f32 %v5771, %v6204
    %v6306 = vadd.f32 %v5772, %v6207
    %v6307 = vadd.f32 %v5773, %v6210
    %v6308 = vadd.f32 %v5774, %v6213
    %v6309 = vadd.f32 %v5775, %v6216
    %v6310 = vadd.f32 %v5776, %v6219
    %v6311 = vadd.f32 %v5777, %v6222
    %v6312 = vadd.f32 %v5778, %v6225
    %v6313 = vadd.f32 %v5779, %v6228
    %v6314 = vadd.f32 %v5780, %v6231
    %v6315 = vadd.f32 %v5781, %v6234
    %v6316 = vadd.f32 %v5782, %v6237
    %v6317 = vadd.f32 %v5783, %v6240
    %v6318 = vadd.f32 %v5784, %v6243
    %v6319 = vadd.f32 %v5785, %v6246
    %v6320 = vadd.f32 %v5786, %v6249
    %v6321 = vadd.f32 %v5787, %v6252
    %v6322 = vadd.f32 %v5788, %v6255
    %v6323 = vadd.f32 %v5789, %v6258
    %s6324 = scalar_lea.vmem %s0, 72
    %v6325 = vld [vmem:[%s6324] sm:$0xff]
    %v6326 = vld [vmem:[%s6324 + $0x8] sm:$0xff]
    %v6327 = vld [vmem:[%s6324 + $0x18] sm:$0xff]
    %v6328 = vld [vmem:[%s6324 + $0x20] sm:$0xff]
    %v6329 = vld [vmem:[%s6324 + $0x30] sm:$0xff]
    %v6330 = vld [vmem:[%s6324 + $0x38] sm:$0xff]
    %v6331 = vld [vmem:[%s6324 + $0x48] sm:$0xff]
    %v6332 = vld [vmem:[%s6324 + $0x50] sm:$0xff]
    %v6333 = vld [vmem:[%s6324 + $0x60] sm:$0xff]
    %v6334 = vld [vmem:[%s6324 + $0x68] sm:$0xff]
    %v6335 = vld [vmem:[%s6324 + $0x78] sm:$0xff]
    %v6336 = vld [vmem:[%s6324 + $0x80] sm:$0xff]
    %v6337 = vld [vmem:[%s6324 + $0x90] sm:$0xff]
    %v6338 = vld [vmem:[%s6324 + $0x98] sm:$0xff]
    %v6339 = vld [vmem:[%s6324 + $0xa8] sm:$0xff]
    %v6340 = vld [vmem:[%s6324 + $0xb0] sm:$0xff]
    %v6341 = vld [vmem:[%s6324 + $0xc0] sm:$0xff]
    %v6342 = vld [vmem:[%s6324 + $0xc8] sm:$0xff]
    %v6343 = vld [vmem:[%s6324 + $0xd8] sm:$0xff]
    %v6344 = vld [vmem:[%s6324 + $0xe0] sm:$0xff]
    %v6345 = vld [vmem:[%s6324 + $0xf0] sm:$0xff]
    %v6346 = vld [vmem:[%s6324 + $0xf8] sm:$0xff]
    %v6347 = vld [vmem:[%s6324 + $0x108] sm:$0xff]
    %v6348 = vld [vmem:[%s6324 + $0x110] sm:$0xff]
    %v6349 = vld [vmem:[%s6324 + $0x120] sm:$0xff]
    %v6350 = vld [vmem:[%s6324 + $0x128] sm:$0xff]
    %v6351 = vld [vmem:[%s6324 + $0x138] sm:$0xff]
    %v6352 = vld [vmem:[%s6324 + $0x140] sm:$0xff]
    %v6353 = vld [vmem:[%s6324 + $0x150] sm:$0xff]
    %v6354 = vld [vmem:[%s6324 + $0x158] sm:$0xff]
    %v6355 = vld [vmem:[%s6324 + $0x168] sm:$0xff]
    %v6356 = vld [vmem:[%s6324 + $0x170] sm:$0xff]
    %v6357 = vld [vmem:[%s6324 + $0x1c8] sm:$0xff]
    %v6358 = vld [vmem:[%s6324 + $0x1d0] sm:$0xff]
    %v6359 = vld [vmem:[%s6324 + $0x1e0] sm:$0xff]
    %v6360 = vld [vmem:[%s6324 + $0x1e8] sm:$0xff]
    %v6361 = vld [vmem:[%s6324 + $0x1f8] sm:$0xff]
    %v6362 = vld [vmem:[%s6324 + $0x200] sm:$0xff]
    %v6363 = vld [vmem:[%s6324 + $0x210] sm:$0xff]
    %v6364 = vld [vmem:[%s6324 + $0x218] sm:$0xff]
    %v6365 = vld [vmem:[%s6324 + $0x228] sm:$0xff]
    %v6366 = vld [vmem:[%s6324 + $0x230] sm:$0xff]
    %v6367 = vld [vmem:[%s6324 + $0x240] sm:$0xff]
    %v6368 = vld [vmem:[%s6324 + $0x248] sm:$0xff]
    %v6369 = vld [vmem:[%s6324 + $0x258] sm:$0xff]
    %v6370 = vld [vmem:[%s6324 + $0x260] sm:$0xff]
    %v6371 = vld [vmem:[%s6324 + $0x270] sm:$0xff]
    %v6372 = vld [vmem:[%s6324 + $0x278] sm:$0xff]
    %v6373 = vld [vmem:[%s6324 + $0x288] sm:$0xff]
    %v6374 = vld [vmem:[%s6324 + $0x290] sm:$0xff]
    %v6375 = vld [vmem:[%s6324 + $0x2a0] sm:$0xff]
    %v6376 = vld [vmem:[%s6324 + $0x2a8] sm:$0xff]
    %v6377 = vld [vmem:[%s6324 + $0x2b8] sm:$0xff]
    %v6378 = vld [vmem:[%s6324 + $0x2c0] sm:$0xff]
    %v6379 = vld [vmem:[%s6324 + $0x2d0] sm:$0xff]
    %v6380 = vld [vmem:[%s6324 + $0x2d8] sm:$0xff]
    %v6381 = vld [vmem:[%s6324 + $0x2e8] sm:$0xff]
    %v6382 = vld [vmem:[%s6324 + $0x2f0] sm:$0xff]
    %v6383 = vld [vmem:[%s6324 + $0x300] sm:$0xff]
    %v6384 = vld [vmem:[%s6324 + $0x308] sm:$0xff]
    %v6385 = vld [vmem:[%s6324 + $0x318] sm:$0xff]
    %v6386 = vld [vmem:[%s6324 + $0x320] sm:$0xff]
    %v6387 = vld [vmem:[%s6324 + $0x330] sm:$0xff]
    %v6388 = vld [vmem:[%s6324 + $0x338] sm:$0xff]
    %s6389 = scalar_lea.vmem %s1, 48
    %v6390 = vld [vmem:[%s6389] sm:$0x7]
    %v6392 = vsel %vm172, %v6325, 0
    %v6395 = vsel %vm172, %v6326, 0
    %v6398 = vsel %vm172, %v6327, 0
    %v6401 = vsel %vm172, %v6328, 0
    %v6404 = vsel %vm172, %v6329, 0
    %v6407 = vsel %vm172, %v6330, 0
    %v6410 = vsel %vm172, %v6331, 0
    %v6413 = vsel %vm172, %v6332, 0
    %v6416 = vsel %vm172, %v6333, 0
    %v6419 = vsel %vm172, %v6334, 0
    %v6422 = vsel %vm172, %v6335, 0
    %v6425 = vsel %vm172, %v6336, 0
    %v6428 = vsel %vm172, %v6337, 0
    %v6431 = vsel %vm172, %v6338, 0
    %v6434 = vsel %vm172, %v6339, 0
    %v6437 = vsel %vm172, %v6340, 0
    %v6440 = vsel %vm172, %v6341, 0
    %v6443 = vsel %vm172, %v6342, 0
    %v6446 = vsel %vm172, %v6343, 0
    %v6449 = vsel %vm172, %v6344, 0
    %v6452 = vsel %vm172, %v6345, 0
    %v6455 = vsel %vm172, %v6346, 0
    %v6458 = vsel %vm172, %v6347, 0
    %v6461 = vsel %vm172, %v6348, 0
    %v6464 = vsel %vm172, %v6349, 0
    %v6467 = vsel %vm172, %v6350, 0
    %v6470 = vsel %vm172, %v6351, 0
    %v6473 = vsel %vm172, %v6352, 0
    %v6476 = vsel %vm172, %v6353, 0
    %v6479 = vsel %vm172, %v6354, 0
    %v6482 = vsel %vm172, %v6355, 0
    %v6485 = vsel %vm172, %v6356, 0
    %v6488 = vsel %vm172, %v6357, 0
    %v6491 = vsel %vm172, %v6358, 0
    %v6494 = vsel %vm172, %v6359, 0
    %v6497 = vsel %vm172, %v6360, 0
    %v6500 = vsel %vm172, %v6361, 0
    %v6503 = vsel %vm172, %v6362, 0
    %v6506 = vsel %vm172, %v6363, 0
    %v6509 = vsel %vm172, %v6364, 0
    %v6512 = vsel %vm172, %v6365, 0
    %v6515 = vsel %vm172, %v6366, 0
    %v6518 = vsel %vm172, %v6367, 0
    %v6521 = vsel %vm172, %v6368, 0
    %v6524 = vsel %vm172, %v6369, 0
    %v6527 = vsel %vm172, %v6370, 0
    %v6530 = vsel %vm172, %v6371, 0
    %v6533 = vsel %vm172, %v6372, 0
    %v6536 = vsel %vm172, %v6373, 0
    %v6539 = vsel %vm172, %v6374, 0
    %v6542 = vsel %vm172, %v6375, 0
    %v6545 = vsel %vm172, %v6376, 0
    %v6548 = vsel %vm172, %v6377, 0
    %v6551 = vsel %vm172, %v6378, 0
    %v6554 = vsel %vm172, %v6379, 0
    %v6557 = vsel %vm172, %v6380, 0
    %v6560 = vsel %vm172, %v6381, 0
    %v6563 = vsel %vm172, %v6382, 0
    %v6566 = vsel %vm172, %v6383, 0
    %v6569 = vsel %vm172, %v6384, 0
    %v6572 = vsel %vm172, %v6385, 0
    %v6575 = vsel %vm172, %v6386, 0
    %v6578 = vsel %vm172, %v6387, 0
    %v6581 = vsel %vm172, %v6388, 0
    %v6584 = vsel %vm365, %v6390, 0
    %6586 = vmatpush.msra.mxu0 0.0
    %6587 = vmatpush.msra.mxu0 0.0
    %6588 = vmatpush.msra.mxu0 0.0
    %6589 = vmatpush.msra.mxu0 0.0
    %6590 = vmatpush.msra.mxu0 0.0
    %6591 = vmatpush.msra.mxu0 0.0
    %6592 = vmatpush.msra.mxu0 0.0
    %6593 = vmatpush.msra.mxu0 0.0
    %6594 = vmatpush.msra.mxu0 0.0
    %6595 = vmatpush.msra.mxu0 0.0
    %6596 = vmatpush.msra.mxu0 0.0
    %6597 = vmatpush.msra.mxu0 0.0
    %6598 = vmatpush.msra.mxu0 0.0
    %6599 = vmatpush.msra.mxu0 0.0
    %6600 = vmatpush.msra.mxu0 0.0
    %6601 = vmatpush.msra.mxu0 %v6584
    %6602 = vmatmul.f32.gmra.mxu0 %v6392
    %v6603 = vpop.f32.mrf.mxu0
    %v6604 = vadd.f32 0.0, %v6603
    %6605 = vmatmul.f32.gmra.mxu0 %v6395
    %v6606 = vpop.f32.mrf.mxu0
    %v6607 = vadd.f32 0.0, %v6606
    %6608 = vmatmul.f32.gmra.mxu0 %v6398
    %v6609 = vpop.f32.mrf.mxu0
    %v6610 = vadd.f32 0.0, %v6609
    %6611 = vmatmul.f32.gmra.mxu0 %v6401
    %v6612 = vpop.f32.mrf.mxu0
    %v6613 = vadd.f32 0.0, %v6612
    %6614 = vmatmul.f32.gmra.mxu0 %v6404
    %v6615 = vpop.f32.mrf.mxu0
    %v6616 = vadd.f32 0.0, %v6615
    %6617 = vmatmul.f32.gmra.mxu0 %v6407
    %v6618 = vpop.f32.mrf.mxu0
    %v6619 = vadd.f32 0.0, %v6618
    %6620 = vmatmul.f32.gmra.mxu0 %v6410
    %v6621 = vpop.f32.mrf.mxu0
    %v6622 = vadd.f32 0.0, %v6621
    %6623 = vmatmul.f32.gmra.mxu0 %v6413
    %v6624 = vpop.f32.mrf.mxu0
    %v6625 = vadd.f32 0.0, %v6624
    %6626 = vmatmul.f32.gmra.mxu0 %v6416
    %v6627 = vpop.f32.mrf.mxu0
    %v6628 = vadd.f32 0.0, %v6627
    %6629 = vmatmul.f32.gmra.mxu0 %v6419
    %v6630 = vpop.f32.mrf.mxu0
    %v6631 = vadd.f32 0.0, %v6630
    %6632 = vmatmul.f32.gmra.mxu0 %v6422
    %v6633 = vpop.f32.mrf.mxu0
    %v6634 = vadd.f32 0.0, %v6633
    %6635 = vmatmul.f32.gmra.mxu0 %v6425
    %v6636 = vpop.f32.mrf.mxu0
    %v6637 = vadd.f32 0.0, %v6636
    %6638 = vmatmul.f32.gmra.mxu0 %v6428
    %v6639 = vpop.f32.mrf.mxu0
    %v6640 = vadd.f32 0.0, %v6639
    %6641 = vmatmul.f32.gmra.mxu0 %v6431
    %v6642 = vpop.f32.mrf.mxu0
    %v6643 = vadd.f32 0.0, %v6642
    %6644 = vmatmul.f32.gmra.mxu0 %v6434
    %v6645 = vpop.f32.mrf.mxu0
    %v6646 = vadd.f32 0.0, %v6645
    %6647 = vmatmul.f32.gmra.mxu0 %v6437
    %v6648 = vpop.f32.mrf.mxu0
    %v6649 = vadd.f32 0.0, %v6648
    %6650 = vmatmul.f32.gmra.mxu0 %v6440
    %v6651 = vpop.f32.mrf.mxu0
    %v6652 = vadd.f32 0.0, %v6651
    %6653 = vmatmul.f32.gmra.mxu0 %v6443
    %v6654 = vpop.f32.mrf.mxu0
    %v6655 = vadd.f32 0.0, %v6654
    %6656 = vmatmul.f32.gmra.mxu0 %v6446
    %v6657 = vpop.f32.mrf.mxu0
    %v6658 = vadd.f32 0.0, %v6657
    %6659 = vmatmul.f32.gmra.mxu0 %v6449
    %v6660 = vpop.f32.mrf.mxu0
    %v6661 = vadd.f32 0.0, %v6660
    %6662 = vmatmul.f32.gmra.mxu0 %v6452
    %v6663 = vpop.f32.mrf.mxu0
    %v6664 = vadd.f32 0.0, %v6663
    %6665 = vmatmul.f32.gmra.mxu0 %v6455
    %v6666 = vpop.f32.mrf.mxu0
    %v6667 = vadd.f32 0.0, %v6666
    %6668 = vmatmul.f32.gmra.mxu0 %v6458
    %v6669 = vpop.f32.mrf.mxu0
    %v6670 = vadd.f32 0.0, %v6669
    %6671 = vmatmul.f32.gmra.mxu0 %v6461
    %v6672 = vpop.f32.mrf.mxu0
    %v6673 = vadd.f32 0.0, %v6672
    %6674 = vmatmul.f32.gmra.mxu0 %v6464
    %v6675 = vpop.f32.mrf.mxu0
    %v6676 = vadd.f32 0.0, %v6675
    %6677 = vmatmul.f32.gmra.mxu0 %v6467
    %v6678 = vpop.f32.mrf.mxu0
    %v6679 = vadd.f32 0.0, %v6678
    %6680 = vmatmul.f32.gmra.mxu0 %v6470
    %v6681 = vpop.f32.mrf.mxu0
    %v6682 = vadd.f32 0.0, %v6681
    %6683 = vmatmul.f32.gmra.mxu0 %v6473
    %v6684 = vpop.f32.mrf.mxu0
    %v6685 = vadd.f32 0.0, %v6684
    %6686 = vmatmul.f32.gmra.mxu0 %v6476
    %v6687 = vpop.f32.mrf.mxu0
    %v6688 = vadd.f32 0.0, %v6687
    %6689 = vmatmul.f32.gmra.mxu0 %v6479
    %v6690 = vpop.f32.mrf.mxu0
    %v6691 = vadd.f32 0.0, %v6690
    %6692 = vmatmul.f32.gmra.mxu0 %v6482
    %v6693 = vpop.f32.mrf.mxu0
    %v6694 = vadd.f32 0.0, %v6693
    %6695 = vmatmul.f32.gmra.mxu0 %v6485
    %v6696 = vpop.f32.mrf.mxu0
    %v6697 = vadd.f32 0.0, %v6696
    %6698 = vmatmul.f32.gmra.mxu0 %v6488
    %v6699 = vpop.f32.mrf.mxu0
    %v6700 = vadd.f32 0.0, %v6699
    %6701 = vmatmul.f32.gmra.mxu0 %v6491
    %v6702 = vpop.f32.mrf.mxu0
    %v6703 = vadd.f32 0.0, %v6702
    %6704 = vmatmul.f32.gmra.mxu0 %v6494
    %v6705 = vpop.f32.mrf.mxu0
    %v6706 = vadd.f32 0.0, %v6705
    %6707 = vmatmul.f32.gmra.mxu0 %v6497
    %v6708 = vpop.f32.mrf.mxu0
    %v6709 = vadd.f32 0.0, %v6708
    %6710 = vmatmul.f32.gmra.mxu0 %v6500
    %v6711 = vpop.f32.mrf.mxu0
    %v6712 = vadd.f32 0.0, %v6711
    %6713 = vmatmul.f32.gmra.mxu0 %v6503
    %v6714 = vpop.f32.mrf.mxu0
    %v6715 = vadd.f32 0.0, %v6714
    %6716 = vmatmul.f32.gmra.mxu0 %v6506
    %v6717 = vpop.f32.mrf.mxu0
    %v6718 = vadd.f32 0.0, %v6717
    %6719 = vmatmul.f32.gmra.mxu0 %v6509
    %v6720 = vpop.f32.mrf.mxu0
    %v6721 = vadd.f32 0.0, %v6720
    %6722 = vmatmul.f32.gmra.mxu0 %v6512
    %v6723 = vpop.f32.mrf.mxu0
    %v6724 = vadd.f32 0.0, %v6723
    %6725 = vmatmul.f32.gmra.mxu0 %v6515
    %v6726 = vpop.f32.mrf.mxu0
    %v6727 = vadd.f32 0.0, %v6726
    %6728 = vmatmul.f32.gmra.mxu0 %v6518
    %v6729 = vpop.f32.mrf.mxu0
    %v6730 = vadd.f32 0.0, %v6729
    %6731 = vmatmul.f32.gmra.mxu0 %v6521
    %v6732 = vpop.f32.mrf.mxu0
    %v6733 = vadd.f32 0.0, %v6732
    %6734 = vmatmul.f32.gmra.mxu0 %v6524
    %v6735 = vpop.f32.mrf.mxu0
    %v6736 = vadd.f32 0.0, %v6735
    %6737 = vmatmul.f32.gmra.mxu0 %v6527
    %v6738 = vpop.f32.mrf.mxu0
    %v6739 = vadd.f32 0.0, %v6738
    %6740 = vmatmul.f32.gmra.mxu0 %v6530
    %v6741 = vpop.f32.mrf.mxu0
    %v6742 = vadd.f32 0.0, %v6741
    %6743 = vmatmul.f32.gmra.mxu0 %v6533
    %v6744 = vpop.f32.mrf.mxu0
    %v6745 = vadd.f32 0.0, %v6744
    %6746 = vmatmul.f32.gmra.mxu0 %v6536
    %v6747 = vpop.f32.mrf.mxu0
    %v6748 = vadd.f32 0.0, %v6747
    %6749 = vmatmul.f32.gmra.mxu0 %v6539
    %v6750 = vpop.f32.mrf.mxu0
    %v6751 = vadd.f32 0.0, %v6750
    %6752 = vmatmul.f32.gmra.mxu0 %v6542
    %v6753 = vpop.f32.mrf.mxu0
    %v6754 = vadd.f32 0.0, %v6753
    %6755 = vmatmul.f32.gmra.mxu0 %v6545
    %v6756 = vpop.f32.mrf.mxu0
    %v6757 = vadd.f32 0.0, %v6756
    %6758 = vmatmul.f32.gmra.mxu0 %v6548
    %v6759 = vpop.f32.mrf.mxu0
    %v6760 = vadd.f32 0.0, %v6759
    %6761 = vmatmul.f32.gmra.mxu0 %v6551
    %v6762 = vpop.f32.mrf.mxu0
    %v6763 = vadd.f32 0.0, %v6762
    %6764 = vmatmul.f32.gmra.mxu0 %v6554
    %v6765 = vpop.f32.mrf.mxu0
    %v6766 = vadd.f32 0.0, %v6765
    %6767 = vmatmul.f32.gmra.mxu0 %v6557
    %v6768 = vpop.f32.mrf.mxu0
    %v6769 = vadd.f32 0.0, %v6768
    %6770 = vmatmul.f32.gmra.mxu0 %v6560
    %v6771 = vpop.f32.mrf.mxu0
    %v6772 = vadd.f32 0.0, %v6771
    %6773 = vmatmul.f32.gmra.mxu0 %v6563
    %v6774 = vpop.f32.mrf.mxu0
    %v6775 = vadd.f32 0.0, %v6774
    %6776 = vmatmul.f32.gmra.mxu0 %v6566
    %v6777 = vpop.f32.mrf.mxu0
    %v6778 = vadd.f32 0.0, %v6777
    %6779 = vmatmul.f32.gmra.mxu0 %v6569
    %v6780 = vpop.f32.mrf.mxu0
    %v6781 = vadd.f32 0.0, %v6780
    %6782 = vmatmul.f32.gmra.mxu0 %v6572
    %v6783 = vpop.f32.mrf.mxu0
    %v6784 = vadd.f32 0.0, %v6783
    %6785 = vmatmul.f32.gmra.mxu0 %v6575
    %v6786 = vpop.f32.mrf.mxu0
    %v6787 = vadd.f32 0.0, %v6786
    %6788 = vmatmul.f32.gmra.mxu0 %v6578
    %v6789 = vpop.f32.mrf.mxu0
    %v6790 = vadd.f32 0.0, %v6789
    %6791 = vmatmul.f32.gmra.mxu0 %v6581
    %v6792 = vpop.f32.mrf.mxu0
    %v6793 = vadd.f32 0.0, %v6792
    %6794 = vdwg.mxu0
    %v6795 = vadd.f32 %v6260, %v6604
    %v6796 = vadd.f32 %v6261, %v6607
    %v6797 = vadd.f32 %v6262, %v6610
    %v6798 = vadd.f32 %v6263, %v6613
    %v6799 = vadd.f32 %v6264, %v6616
    %v6800 = vadd.f32 %v6265, %v6619
    %v6801 = vadd.f32 %v6266, %v6622
    %v6802 = vadd.f32 %v6267, %v6625
    %v6803 = vadd.f32 %v6268, %v6628
    %v6804 = vadd.f32 %v6269, %v6631
    %v6805 = vadd.f32 %v6270, %v6634
    %v6806 = vadd.f32 %v6271, %v6637
    %v6807 = vadd.f32 %v6272, %v6640
    %v6808 = vadd.f32 %v6273, %v6643
    %v6809 = vadd.f32 %v6274, %v6646
    %v6810 = vadd.f32 %v6275, %v6649
    %v6811 = vadd.f32 %v6276, %v6652
    %v6812 = vadd.f32 %v6277, %v6655
    %v6813 = vadd.f32 %v6278, %v6658
    %v6814 = vadd.f32 %v6279, %v6661
    %v6815 = vadd.f32 %v6280, %v6664
    %v6816 = vadd.f32 %v6281, %v6667
    %v6817 = vadd.f32 %v6282, %v6670
    %v6818 = vadd.f32 %v6283, %v6673
    %v6819 = vadd.f32 %v6284, %v6676
    %v6820 = vadd.f32 %v6285, %v6679
    %v6821 = vadd.f32 %v6286, %v6682
    %v6822 = vadd.f32 %v6287, %v6685
    %v6823 = vadd.f32 %v6288, %v6688
    %v6824 = vadd.f32 %v6289, %v6691
    %v6825 = vadd.f32 %v6290, %v6694
    %v6826 = vadd.f32 %v6291, %v6697
    %v6827 = vadd.f32 %v6292, %v6700
    %v6828 = vadd.f32 %v6293, %v6703
    %v6829 = vadd.f32 %v6294, %v6706
    %v6830 = vadd.f32 %v6295, %v6709
    %v6831 = vadd.f32 %v6296, %v6712
    %v6832 = vadd.f32 %v6297, %v6715
    %v6833 = vadd.f32 %v6298, %v6718
    %v6834 = vadd.f32 %v6299, %v6721
    %v6835 = vadd.f32 %v6300, %v6724
    %v6836 = vadd.f32 %v6301, %v6727
    %v6837 = vadd.f32 %v6302, %v6730
    %v6838 = vadd.f32 %v6303, %v6733
    %v6839 = vadd.f32 %v6304, %v6736
    %v6840 = vadd.f32 %v6305, %v6739
    %v6841 = vadd.f32 %v6306, %v6742
    %v6842 = vadd.f32 %v6307, %v6745
    %v6843 = vadd.f32 %v6308, %v6748
    %v6844 = vadd.f32 %v6309, %v6751
    %v6845 = vadd.f32 %v6310, %v6754
    %v6846 = vadd.f32 %v6311, %v6757
    %v6847 = vadd.f32 %v6312, %v6760
    %v6848 = vadd.f32 %v6313, %v6763
    %v6849 = vadd.f32 %v6314, %v6766
    %v6850 = vadd.f32 %v6315, %v6769
    %v6851 = vadd.f32 %v6316, %v6772
    %v6852 = vadd.f32 %v6317, %v6775
    %v6853 = vadd.f32 %v6318, %v6778
    %v6854 = vadd.f32 %v6319, %v6781
    %v6855 = vadd.f32 %v6320, %v6784
    %v6856 = vadd.f32 %v6321, %v6787
    %v6857 = vadd.f32 %v6322, %v6790
    %v6858 = vadd.f32 %v6323, %v6793
    %v6859 = vld [vmem:[%s6324 + $0x1] sm:$0xff]
    %v6860 = vld [vmem:[%s6324 + $0x9] sm:$0xff]
    %v6861 = vld [vmem:[%s6324 + $0x19] sm:$0xff]
    %v6862 = vld [vmem:[%s6324 + $0x21] sm:$0xff]
    %v6863 = vld [vmem:[%s6324 + $0x31] sm:$0xff]
    %v6864 = vld [vmem:[%s6324 + $0x39] sm:$0xff]
    %v6865 = vld [vmem:[%s6324 + $0x49] sm:$0xff]
    %v6866 = vld [vmem:[%s6324 + $0x51] sm:$0xff]
    %v6867 = vld [vmem:[%s6324 + $0x61] sm:$0xff]
    %v6868 = vld [vmem:[%s6324 + $0x69] sm:$0xff]
    %v6869 = vld [vmem:[%s6324 + $0x79] sm:$0xff]
    %v6870 = vld [vmem:[%s6324 + $0x81] sm:$0xff]
    %v6871 = vld [vmem:[%s6324 + $0x91] sm:$0xff]
    %v6872 = vld [vmem:[%s6324 + $0x99] sm:$0xff]
    %v6873 = vld [vmem:[%s6324 + $0xa9] sm:$0xff]
    %v6874 = vld [vmem:[%s6324 + $0xb1] sm:$0xff]
    %v6875 = vld [vmem:[%s6324 + $0xc1] sm:$0xff]
    %v6876 = vld [vmem:[%s6324 + $0xc9] sm:$0xff]
    %v6877 = vld [vmem:[%s6324 + $0xd9] sm:$0xff]
    %v6878 = vld [vmem:[%s6324 + $0xe1] sm:$0xff]
    %v6879 = vld [vmem:[%s6324 + $0xf1] sm:$0xff]
    %v6880 = vld [vmem:[%s6324 + $0xf9] sm:$0xff]
    %v6881 = vld [vmem:[%s6324 + $0x109] sm:$0xff]
    %v6882 = vld [vmem:[%s6324 + $0x111] sm:$0xff]
    %v6883 = vld [vmem:[%s6324 + $0x121] sm:$0xff]
    %v6884 = vld [vmem:[%s6324 + $0x129] sm:$0xff]
    %v6885 = vld [vmem:[%s6324 + $0x139] sm:$0xff]
    %v6886 = vld [vmem:[%s6324 + $0x141] sm:$0xff]
    %v6887 = vld [vmem:[%s6324 + $0x151] sm:$0xff]
    %v6888 = vld [vmem:[%s6324 + $0x159] sm:$0xff]
    %v6889 = vld [vmem:[%s6324 + $0x169] sm:$0xff]
    %v6890 = vld [vmem:[%s6324 + $0x171] sm:$0xff]
    %v6891 = vld [vmem:[%s6324 + $0x1c9] sm:$0xff]
    %v6892 = vld [vmem:[%s6324 + $0x1d1] sm:$0xff]
    %v6893 = vld [vmem:[%s6324 + $0x1e1] sm:$0xff]
    %v6894 = vld [vmem:[%s6324 + $0x1e9] sm:$0xff]
    %v6895 = vld [vmem:[%s6324 + $0x1f9] sm:$0xff]
    %v6896 = vld [vmem:[%s6324 + $0x201] sm:$0xff]
    %v6897 = vld [vmem:[%s6324 + $0x211] sm:$0xff]
    %v6898 = vld [vmem:[%s6324 + $0x219] sm:$0xff]
    %v6899 = vld [vmem:[%s6324 + $0x229] sm:$0xff]
    %v6900 = vld [vmem:[%s6324 + $0x231] sm:$0xff]
    %v6901 = vld [vmem:[%s6324 + $0x241] sm:$0xff]
    %v6902 = vld [vmem:[%s6324 + $0x249] sm:$0xff]
    %v6903 = vld [vmem:[%s6324 + $0x259] sm:$0xff]
    %v6904 = vld [vmem:[%s6324 + $0x261] sm:$0xff]
    %v6905 = vld [vmem:[%s6324 + $0x271] sm:$0xff]
    %v6906 = vld [vmem:[%s6324 + $0x279] sm:$0xff]
    %v6907 = vld [vmem:[%s6324 + $0x289] sm:$0xff]
    %v6908 = vld [vmem:[%s6324 + $0x291] sm:$0xff]
    %v6909 = vld [vmem:[%s6324 + $0x2a1] sm:$0xff]
    %v6910 = vld [vmem:[%s6324 + $0x2a9] sm:$0xff]
    %v6911 = vld [vmem:[%s6324 + $0x2b9] sm:$0xff]
    %v6912 = vld [vmem:[%s6324 + $0x2c1] sm:$0xff]
    %v6913 = vld [vmem:[%s6324 + $0x2d1] sm:$0xff]
    %v6914 = vld [vmem:[%s6324 + $0x2d9] sm:$0xff]
    %v6915 = vld [vmem:[%s6324 + $0x2e9] sm:$0xff]
    %v6916 = vld [vmem:[%s6324 + $0x2f1] sm:$0xff]
    %v6917 = vld [vmem:[%s6324 + $0x301] sm:$0xff]
    %v6918 = vld [vmem:[%s6324 + $0x309] sm:$0xff]
    %v6919 = vld [vmem:[%s6324 + $0x319] sm:$0xff]
    %v6920 = vld [vmem:[%s6324 + $0x321] sm:$0xff]
    %v6921 = vld [vmem:[%s6324 + $0x331] sm:$0xff]
    %v6922 = vld [vmem:[%s6324 + $0x339] sm:$0xff]
    %s6923 = scalar_lea.vmem %s1, 52
    %v6924 = vld [vmem:[%s6923] sm:$0x7]
    %v6926 = vsel %vm172, %v6859, 0
    %v6929 = vsel %vm172, %v6860, 0
    %v6932 = vsel %vm172, %v6861, 0
    %v6935 = vsel %vm172, %v6862, 0
    %v6938 = vsel %vm172, %v6863, 0
    %v6941 = vsel %vm172, %v6864, 0
    %v6944 = vsel %vm172, %v6865, 0
    %v6947 = vsel %vm172, %v6866, 0
    %v6950 = vsel %vm172, %v6867, 0
    %v6953 = vsel %vm172, %v6868, 0
    %v6956 = vsel %vm172, %v6869, 0
    %v6959 = vsel %vm172, %v6870, 0
    %v6962 = vsel %vm172, %v6871, 0
    %v6965 = vsel %vm172, %v6872, 0
    %v6968 = vsel %vm172, %v6873, 0
    %v6971 = vsel %vm172, %v6874, 0
    %v6974 = vsel %vm172, %v6875, 0
    %v6977 = vsel %vm172, %v6876, 0
    %v6980 = vsel %vm172, %v6877, 0
    %v6983 = vsel %vm172, %v6878, 0
    %v6986 = vsel %vm172, %v6879, 0
    %v6989 = vsel %vm172, %v6880, 0
    %v6992 = vsel %vm172, %v6881, 0
    %v6995 = vsel %vm172, %v6882, 0
    %v6998 = vsel %vm172, %v6883, 0
    %v7001 = vsel %vm172, %v6884, 0
    %v7004 = vsel %vm172, %v6885, 0
    %v7007 = vsel %vm172, %v6886, 0
    %v7010 = vsel %vm172, %v6887, 0
    %v7013 = vsel %vm172, %v6888, 0
    %v7016 = vsel %vm172, %v6889, 0
    %v7019 = vsel %vm172, %v6890, 0
    %v7022 = vsel %vm172, %v6891, 0
    %v7025 = vsel %vm172, %v6892, 0
    %v7028 = vsel %vm172, %v6893, 0
    %v7031 = vsel %vm172, %v6894, 0
    %v7034 = vsel %vm172, %v6895, 0
    %v7037 = vsel %vm172, %v6896, 0
    %v7040 = vsel %vm172, %v6897, 0
    %v7043 = vsel %vm172, %v6898, 0
    %v7046 = vsel %vm172, %v6899, 0
    %v7049 = vsel %vm172, %v6900, 0
    %v7052 = vsel %vm172, %v6901, 0
    %v7055 = vsel %vm172, %v6902, 0
    %v7058 = vsel %vm172, %v6903, 0
    %v7061 = vsel %vm172, %v6904, 0
    %v7064 = vsel %vm172, %v6905, 0
    %v7067 = vsel %vm172, %v6906, 0
    %v7070 = vsel %vm172, %v6907, 0
    %v7073 = vsel %vm172, %v6908, 0
    %v7076 = vsel %vm172, %v6909, 0
    %v7079 = vsel %vm172, %v6910, 0
    %v7082 = vsel %vm172, %v6911, 0
    %v7085 = vsel %vm172, %v6912, 0
    %v7088 = vsel %vm172, %v6913, 0
    %v7091 = vsel %vm172, %v6914, 0
    %v7094 = vsel %vm172, %v6915, 0
    %v7097 = vsel %vm172, %v6916, 0
    %v7100 = vsel %vm172, %v6917, 0
    %v7103 = vsel %vm172, %v6918, 0
    %v7106 = vsel %vm172, %v6919, 0
    %v7109 = vsel %vm172, %v6920, 0
    %v7112 = vsel %vm172, %v6921, 0
    %v7115 = vsel %vm172, %v6922, 0
    %v7118 = vsel %vm365, %v6924, 0
    %7120 = vmatpush.msra.mxu0 0.0
    %7121 = vmatpush.msra.mxu0 0.0
    %7122 = vmatpush.msra.mxu0 0.0
    %7123 = vmatpush.msra.mxu0 0.0
    %7124 = vmatpush.msra.mxu0 0.0
    %7125 = vmatpush.msra.mxu0 0.0
    %7126 = vmatpush.msra.mxu0 0.0
    %7127 = vmatpush.msra.mxu0 0.0
    %7128 = vmatpush.msra.mxu0 0.0
    %7129 = vmatpush.msra.mxu0 0.0
    %7130 = vmatpush.msra.mxu0 0.0
    %7131 = vmatpush.msra.mxu0 0.0
    %7132 = vmatpush.msra.mxu0 0.0
    %7133 = vmatpush.msra.mxu0 0.0
    %7134 = vmatpush.msra.mxu0 0.0
    %7135 = vmatpush.msra.mxu0 %v7118
    %7136 = vmatmul.f32.gmra.mxu0 %v6926
    %v7137 = vpop.f32.mrf.mxu0
    %v7138 = vadd.f32 0.0, %v7137
    %7139 = vmatmul.f32.gmra.mxu0 %v6929
    %v7140 = vpop.f32.mrf.mxu0
    %v7141 = vadd.f32 0.0, %v7140
    %7142 = vmatmul.f32.gmra.mxu0 %v6932
    %v7143 = vpop.f32.mrf.mxu0
    %v7144 = vadd.f32 0.0, %v7143
    %7145 = vmatmul.f32.gmra.mxu0 %v6935
    %v7146 = vpop.f32.mrf.mxu0
    %v7147 = vadd.f32 0.0, %v7146
    %7148 = vmatmul.f32.gmra.mxu0 %v6938
    %v7149 = vpop.f32.mrf.mxu0
    %v7150 = vadd.f32 0.0, %v7149
    %7151 = vmatmul.f32.gmra.mxu0 %v6941
    %v7152 = vpop.f32.mrf.mxu0
    %v7153 = vadd.f32 0.0, %v7152
    %7154 = vmatmul.f32.gmra.mxu0 %v6944
    %v7155 = vpop.f32.mrf.mxu0
    %v7156 = vadd.f32 0.0, %v7155
    %7157 = vmatmul.f32.gmra.mxu0 %v6947
    %v7158 = vpop.f32.mrf.mxu0
    %v7159 = vadd.f32 0.0, %v7158
    %7160 = vmatmul.f32.gmra.mxu0 %v6950
    %v7161 = vpop.f32.mrf.mxu0
    %v7162 = vadd.f32 0.0, %v7161
    %7163 = vmatmul.f32.gmra.mxu0 %v6953
    %v7164 = vpop.f32.mrf.mxu0
    %v7165 = vadd.f32 0.0, %v7164
    %7166 = vmatmul.f32.gmra.mxu0 %v6956
    %v7167 = vpop.f32.mrf.mxu0
    %v7168 = vadd.f32 0.0, %v7167
    %7169 = vmatmul.f32.gmra.mxu0 %v6959
    %v7170 = vpop.f32.mrf.mxu0
    %v7171 = vadd.f32 0.0, %v7170
    %7172 = vmatmul.f32.gmra.mxu0 %v6962
    %v7173 = vpop.f32.mrf.mxu0
    %v7174 = vadd.f32 0.0, %v7173
    %7175 = vmatmul.f32.gmra.mxu0 %v6965
    %v7176 = vpop.f32.mrf.mxu0
    %v7177 = vadd.f32 0.0, %v7176
    %7178 = vmatmul.f32.gmra.mxu0 %v6968
    %v7179 = vpop.f32.mrf.mxu0
    %v7180 = vadd.f32 0.0, %v7179
    %7181 = vmatmul.f32.gmra.mxu0 %v6971
    %v7182 = vpop.f32.mrf.mxu0
    %v7183 = vadd.f32 0.0, %v7182
    %7184 = vmatmul.f32.gmra.mxu0 %v6974
    %v7185 = vpop.f32.mrf.mxu0
    %v7186 = vadd.f32 0.0, %v7185
    %7187 = vmatmul.f32.gmra.mxu0 %v6977
    %v7188 = vpop.f32.mrf.mxu0
    %v7189 = vadd.f32 0.0, %v7188
    %7190 = vmatmul.f32.gmra.mxu0 %v6980
    %v7191 = vpop.f32.mrf.mxu0
    %v7192 = vadd.f32 0.0, %v7191
    %7193 = vmatmul.f32.gmra.mxu0 %v6983
    %v7194 = vpop.f32.mrf.mxu0
    %v7195 = vadd.f32 0.0, %v7194
    %7196 = vmatmul.f32.gmra.mxu0 %v6986
    %v7197 = vpop.f32.mrf.mxu0
    %v7198 = vadd.f32 0.0, %v7197
    %7199 = vmatmul.f32.gmra.mxu0 %v6989
    %v7200 = vpop.f32.mrf.mxu0
    %v7201 = vadd.f32 0.0, %v7200
    %7202 = vmatmul.f32.gmra.mxu0 %v6992
    %v7203 = vpop.f32.mrf.mxu0
    %v7204 = vadd.f32 0.0, %v7203
    %7205 = vmatmul.f32.gmra.mxu0 %v6995
    %v7206 = vpop.f32.mrf.mxu0
    %v7207 = vadd.f32 0.0, %v7206
    %7208 = vmatmul.f32.gmra.mxu0 %v6998
    %v7209 = vpop.f32.mrf.mxu0
    %v7210 = vadd.f32 0.0, %v7209
    %7211 = vmatmul.f32.gmra.mxu0 %v7001
    %v7212 = vpop.f32.mrf.mxu0
    %v7213 = vadd.f32 0.0, %v7212
    %7214 = vmatmul.f32.gmra.mxu0 %v7004
    %v7215 = vpop.f32.mrf.mxu0
    %v7216 = vadd.f32 0.0, %v7215
    %7217 = vmatmul.f32.gmra.mxu0 %v7007
    %v7218 = vpop.f32.mrf.mxu0
    %v7219 = vadd.f32 0.0, %v7218
    %7220 = vmatmul.f32.gmra.mxu0 %v7010
    %v7221 = vpop.f32.mrf.mxu0
    %v7222 = vadd.f32 0.0, %v7221
    %7223 = vmatmul.f32.gmra.mxu0 %v7013
    %v7224 = vpop.f32.mrf.mxu0
    %v7225 = vadd.f32 0.0, %v7224
    %7226 = vmatmul.f32.gmra.mxu0 %v7016
    %v7227 = vpop.f32.mrf.mxu0
    %v7228 = vadd.f32 0.0, %v7227
    %7229 = vmatmul.f32.gmra.mxu0 %v7019
    %v7230 = vpop.f32.mrf.mxu0
    %v7231 = vadd.f32 0.0, %v7230
    %7232 = vmatmul.f32.gmra.mxu0 %v7022
    %v7233 = vpop.f32.mrf.mxu0
    %v7234 = vadd.f32 0.0, %v7233
    %7235 = vmatmul.f32.gmra.mxu0 %v7025
    %v7236 = vpop.f32.mrf.mxu0
    %v7237 = vadd.f32 0.0, %v7236
    %7238 = vmatmul.f32.gmra.mxu0 %v7028
    %v7239 = vpop.f32.mrf.mxu0
    %v7240 = vadd.f32 0.0, %v7239
    %7241 = vmatmul.f32.gmra.mxu0 %v7031
    %v7242 = vpop.f32.mrf.mxu0
    %v7243 = vadd.f32 0.0, %v7242
    %7244 = vmatmul.f32.gmra.mxu0 %v7034
    %v7245 = vpop.f32.mrf.mxu0
    %v7246 = vadd.f32 0.0, %v7245
    %7247 = vmatmul.f32.gmra.mxu0 %v7037
    %v7248 = vpop.f32.mrf.mxu0
    %v7249 = vadd.f32 0.0, %v7248
    %7250 = vmatmul.f32.gmra.mxu0 %v7040
    %v7251 = vpop.f32.mrf.mxu0
    %v7252 = vadd.f32 0.0, %v7251
    %7253 = vmatmul.f32.gmra.mxu0 %v7043
    %v7254 = vpop.f32.mrf.mxu0
    %v7255 = vadd.f32 0.0, %v7254
    %7256 = vmatmul.f32.gmra.mxu0 %v7046
    %v7257 = vpop.f32.mrf.mxu0
    %v7258 = vadd.f32 0.0, %v7257
    %7259 = vmatmul.f32.gmra.mxu0 %v7049
    %v7260 = vpop.f32.mrf.mxu0
    %v7261 = vadd.f32 0.0, %v7260
    %7262 = vmatmul.f32.gmra.mxu0 %v7052
    %v7263 = vpop.f32.mrf.mxu0
    %v7264 = vadd.f32 0.0, %v7263
    %7265 = vmatmul.f32.gmra.mxu0 %v7055
    %v7266 = vpop.f32.mrf.mxu0
    %v7267 = vadd.f32 0.0, %v7266
    %7268 = vmatmul.f32.gmra.mxu0 %v7058
    %v7269 = vpop.f32.mrf.mxu0
    %v7270 = vadd.f32 0.0, %v7269
    %7271 = vmatmul.f32.gmra.mxu0 %v7061
    %v7272 = vpop.f32.mrf.mxu0
    %v7273 = vadd.f32 0.0, %v7272
    %7274 = vmatmul.f32.gmra.mxu0 %v7064
    %v7275 = vpop.f32.mrf.mxu0
    %v7276 = vadd.f32 0.0, %v7275
    %7277 = vmatmul.f32.gmra.mxu0 %v7067
    %v7278 = vpop.f32.mrf.mxu0
    %v7279 = vadd.f32 0.0, %v7278
    %7280 = vmatmul.f32.gmra.mxu0 %v7070
    %v7281 = vpop.f32.mrf.mxu0
    %v7282 = vadd.f32 0.0, %v7281
    %7283 = vmatmul.f32.gmra.mxu0 %v7073
    %v7284 = vpop.f32.mrf.mxu0
    %v7285 = vadd.f32 0.0, %v7284
    %7286 = vmatmul.f32.gmra.mxu0 %v7076
    %v7287 = vpop.f32.mrf.mxu0
    %v7288 = vadd.f32 0.0, %v7287
    %7289 = vmatmul.f32.gmra.mxu0 %v7079
    %v7290 = vpop.f32.mrf.mxu0
    %v7291 = vadd.f32 0.0, %v7290
    %7292 = vmatmul.f32.gmra.mxu0 %v7082
    %v7293 = vpop.f32.mrf.mxu0
    %v7294 = vadd.f32 0.0, %v7293
    %7295 = vmatmul.f32.gmra.mxu0 %v7085
    %v7296 = vpop.f32.mrf.mxu0
    %v7297 = vadd.f32 0.0, %v7296
    %7298 = vmatmul.f32.gmra.mxu0 %v7088
    %v7299 = vpop.f32.mrf.mxu0
    %v7300 = vadd.f32 0.0, %v7299
    %7301 = vmatmul.f32.gmra.mxu0 %v7091
    %v7302 = vpop.f32.mrf.mxu0
    %v7303 = vadd.f32 0.0, %v7302
    %7304 = vmatmul.f32.gmra.mxu0 %v7094
    %v7305 = vpop.f32.mrf.mxu0
    %v7306 = vadd.f32 0.0, %v7305
    %7307 = vmatmul.f32.gmra.mxu0 %v7097
    %v7308 = vpop.f32.mrf.mxu0
    %v7309 = vadd.f32 0.0, %v7308
    %7310 = vmatmul.f32.gmra.mxu0 %v7100
    %v7311 = vpop.f32.mrf.mxu0
    %v7312 = vadd.f32 0.0, %v7311
    %7313 = vmatmul.f32.gmra.mxu0 %v7103
    %v7314 = vpop.f32.mrf.mxu0
    %v7315 = vadd.f32 0.0, %v7314
    %7316 = vmatmul.f32.gmra.mxu0 %v7106
    %v7317 = vpop.f32.mrf.mxu0
    %v7318 = vadd.f32 0.0, %v7317
    %7319 = vmatmul.f32.gmra.mxu0 %v7109
    %v7320 = vpop.f32.mrf.mxu0
    %v7321 = vadd.f32 0.0, %v7320
    %7322 = vmatmul.f32.gmra.mxu0 %v7112
    %v7323 = vpop.f32.mrf.mxu0
    %v7324 = vadd.f32 0.0, %v7323
    %7325 = vmatmul.f32.gmra.mxu0 %v7115
    %v7326 = vpop.f32.mrf.mxu0
    %v7327 = vadd.f32 0.0, %v7326
    %7328 = vdwg.mxu0
    %v7329 = vadd.f32 %v6795, %v7138
    %v7330 = vadd.f32 %v6796, %v7141
    %v7331 = vadd.f32 %v6797, %v7144
    %v7332 = vadd.f32 %v6798, %v7147
    %v7333 = vadd.f32 %v6799, %v7150
    %v7334 = vadd.f32 %v6800, %v7153
    %v7335 = vadd.f32 %v6801, %v7156
    %v7336 = vadd.f32 %v6802, %v7159
    %v7337 = vadd.f32 %v6803, %v7162
    %v7338 = vadd.f32 %v6804, %v7165
    %v7339 = vadd.f32 %v6805, %v7168
    %v7340 = vadd.f32 %v6806, %v7171
    %v7341 = vadd.f32 %v6807, %v7174
    %v7342 = vadd.f32 %v6808, %v7177
    %v7343 = vadd.f32 %v6809, %v7180
    %v7344 = vadd.f32 %v6810, %v7183
    %v7345 = vadd.f32 %v6811, %v7186
    %v7346 = vadd.f32 %v6812, %v7189
    %v7347 = vadd.f32 %v6813, %v7192
    %v7348 = vadd.f32 %v6814, %v7195
    %v7349 = vadd.f32 %v6815, %v7198
    %v7350 = vadd.f32 %v6816, %v7201
    %v7351 = vadd.f32 %v6817, %v7204
    %v7352 = vadd.f32 %v6818, %v7207
    %v7353 = vadd.f32 %v6819, %v7210
    %v7354 = vadd.f32 %v6820, %v7213
    %v7355 = vadd.f32 %v6821, %v7216
    %v7356 = vadd.f32 %v6822, %v7219
    %v7357 = vadd.f32 %v6823, %v7222
    %v7358 = vadd.f32 %v6824, %v7225
    %v7359 = vadd.f32 %v6825, %v7228
    %v7360 = vadd.f32 %v6826, %v7231
    %v7361 = vadd.f32 %v6827, %v7234
    %v7362 = vadd.f32 %v6828, %v7237
    %v7363 = vadd.f32 %v6829, %v7240
    %v7364 = vadd.f32 %v6830, %v7243
    %v7365 = vadd.f32 %v6831, %v7246
    %v7366 = vadd.f32 %v6832, %v7249
    %v7367 = vadd.f32 %v6833, %v7252
    %v7368 = vadd.f32 %v6834, %v7255
    %v7369 = vadd.f32 %v6835, %v7258
    %v7370 = vadd.f32 %v6836, %v7261
    %v7371 = vadd.f32 %v6837, %v7264
    %v7372 = vadd.f32 %v6838, %v7267
    %v7373 = vadd.f32 %v6839, %v7270
    %v7374 = vadd.f32 %v6840, %v7273
    %v7375 = vadd.f32 %v6841, %v7276
    %v7376 = vadd.f32 %v6842, %v7279
    %v7377 = vadd.f32 %v6843, %v7282
    %v7378 = vadd.f32 %v6844, %v7285
    %v7379 = vadd.f32 %v6845, %v7288
    %v7380 = vadd.f32 %v6846, %v7291
    %v7381 = vadd.f32 %v6847, %v7294
    %v7382 = vadd.f32 %v6848, %v7297
    %v7383 = vadd.f32 %v6849, %v7300
    %v7384 = vadd.f32 %v6850, %v7303
    %v7385 = vadd.f32 %v6851, %v7306
    %v7386 = vadd.f32 %v6852, %v7309
    %v7387 = vadd.f32 %v6853, %v7312
    %v7388 = vadd.f32 %v6854, %v7315
    %v7389 = vadd.f32 %v6855, %v7318
    %v7390 = vadd.f32 %v6856, %v7321
    %v7391 = vadd.f32 %v6857, %v7324
    %v7392 = vadd.f32 %v6858, %v7327
    %v7393 = vld [vmem:[%s6324 + $0x2] sm:$0xff]
    %v7394 = vld [vmem:[%s6324 + $0xa] sm:$0xff]
    %v7395 = vld [vmem:[%s6324 + $0x1a] sm:$0xff]
    %v7396 = vld [vmem:[%s6324 + $0x22] sm:$0xff]
    %v7397 = vld [vmem:[%s6324 + $0x32] sm:$0xff]
    %v7398 = vld [vmem:[%s6324 + $0x3a] sm:$0xff]
    %v7399 = vld [vmem:[%s6324 + $0x4a] sm:$0xff]
    %v7400 = vld [vmem:[%s6324 + $0x52] sm:$0xff]
    %v7401 = vld [vmem:[%s6324 + $0x62] sm:$0xff]
    %v7402 = vld [vmem:[%s6324 + $0x6a] sm:$0xff]
    %v7403 = vld [vmem:[%s6324 + $0x7a] sm:$0xff]
    %v7404 = vld [vmem:[%s6324 + $0x82] sm:$0xff]
    %v7405 = vld [vmem:[%s6324 + $0x92] sm:$0xff]
    %v7406 = vld [vmem:[%s6324 + $0x9a] sm:$0xff]
    %v7407 = vld [vmem:[%s6324 + $0xaa] sm:$0xff]
    %v7408 = vld [vmem:[%s6324 + $0xb2] sm:$0xff]
    %v7409 = vld [vmem:[%s6324 + $0xc2] sm:$0xff]
    %v7410 = vld [vmem:[%s6324 + $0xca] sm:$0xff]
    %v7411 = vld [vmem:[%s6324 + $0xda] sm:$0xff]
    %v7412 = vld [vmem:[%s6324 + $0xe2] sm:$0xff]
    %v7413 = vld [vmem:[%s6324 + $0xf2] sm:$0xff]
    %v7414 = vld [vmem:[%s6324 + $0xfa] sm:$0xff]
    %v7415 = vld [vmem:[%s6324 + $0x10a] sm:$0xff]
    %v7416 = vld [vmem:[%s6324 + $0x112] sm:$0xff]
    %v7417 = vld [vmem:[%s6324 + $0x122] sm:$0xff]
    %v7418 = vld [vmem:[%s6324 + $0x12a] sm:$0xff]
    %v7419 = vld [vmem:[%s6324 + $0x13a] sm:$0xff]
    %v7420 = vld [vmem:[%s6324 + $0x142] sm:$0xff]
    %v7421 = vld [vmem:[%s6324 + $0x152] sm:$0xff]
    %v7422 = vld [vmem:[%s6324 + $0x15a] sm:$0xff]
    %v7423 = vld [vmem:[%s6324 + $0x16a] sm:$0xff]
    %v7424 = vld [vmem:[%s6324 + $0x172] sm:$0xff]
    %v7425 = vld [vmem:[%s6324 + $0x1ca] sm:$0xff]
    %v7426 = vld [vmem:[%s6324 + $0x1d2] sm:$0xff]
    %v7427 = vld [vmem:[%s6324 + $0x1e2] sm:$0xff]
    %v7428 = vld [vmem:[%s6324 + $0x1ea] sm:$0xff]
    %v7429 = vld [vmem:[%s6324 + $0x1fa] sm:$0xff]
    %v7430 = vld [vmem:[%s6324 + $0x202] sm:$0xff]
    %v7431 = vld [vmem:[%s6324 + $0x212] sm:$0xff]
    %v7432 = vld [vmem:[%s6324 + $0x21a] sm:$0xff]
    %v7433 = vld [vmem:[%s6324 + $0x22a] sm:$0xff]
    %v7434 = vld [vmem:[%s6324 + $0x232] sm:$0xff]
    %v7435 = vld [vmem:[%s6324 + $0x242] sm:$0xff]
    %v7436 = vld [vmem:[%s6324 + $0x24a] sm:$0xff]
    %v7437 = vld [vmem:[%s6324 + $0x25a] sm:$0xff]
    %v7438 = vld [vmem:[%s6324 + $0x262] sm:$0xff]
    %v7439 = vld [vmem:[%s6324 + $0x272] sm:$0xff]
    %v7440 = vld [vmem:[%s6324 + $0x27a] sm:$0xff]
    %v7441 = vld [vmem:[%s6324 + $0x28a] sm:$0xff]
    %v7442 = vld [vmem:[%s6324 + $0x292] sm:$0xff]
    %v7443 = vld [vmem:[%s6324 + $0x2a2] sm:$0xff]
    %v7444 = vld [vmem:[%s6324 + $0x2aa] sm:$0xff]
    %v7445 = vld [vmem:[%s6324 + $0x2ba] sm:$0xff]
    %v7446 = vld [vmem:[%s6324 + $0x2c2] sm:$0xff]
    %v7447 = vld [vmem:[%s6324 + $0x2d2] sm:$0xff]
    %v7448 = vld [vmem:[%s6324 + $0x2da] sm:$0xff]
    %v7449 = vld [vmem:[%s6324 + $0x2ea] sm:$0xff]
    %v7450 = vld [vmem:[%s6324 + $0x2f2] sm:$0xff]
    %v7451 = vld [vmem:[%s6324 + $0x302] sm:$0xff]
    %v7452 = vld [vmem:[%s6324 + $0x30a] sm:$0xff]
    %v7453 = vld [vmem:[%s6324 + $0x31a] sm:$0xff]
    %v7454 = vld [vmem:[%s6324 + $0x322] sm:$0xff]
    %v7455 = vld [vmem:[%s6324 + $0x332] sm:$0xff]
    %v7456 = vld [vmem:[%s6324 + $0x33a] sm:$0xff]
    %s7457 = scalar_lea.vmem %s1, 56
    %v7458 = vld [vmem:[%s7457] sm:$0x7]
    %v7460 = vsel %vm172, %v7393, 0
    %v7463 = vsel %vm172, %v7394, 0
    %v7466 = vsel %vm172, %v7395, 0
    %v7469 = vsel %vm172, %v7396, 0
    %v7472 = vsel %vm172, %v7397, 0
    %v7475 = vsel %vm172, %v7398, 0
    %v7478 = vsel %vm172, %v7399, 0
    %v7481 = vsel %vm172, %v7400, 0
    %v7484 = vsel %vm172, %v7401, 0
    %v7487 = vsel %vm172, %v7402, 0
    %v7490 = vsel %vm172, %v7403, 0
    %v7493 = vsel %vm172, %v7404, 0
    %v7496 = vsel %vm172, %v7405, 0
    %v7499 = vsel %vm172, %v7406, 0
    %v7502 = vsel %vm172, %v7407, 0
    %v7505 = vsel %vm172, %v7408, 0
    %v7508 = vsel %vm172, %v7409, 0
    %v7511 = vsel %vm172, %v7410, 0
    %v7514 = vsel %vm172, %v7411, 0
    %v7517 = vsel %vm172, %v7412, 0
    %v7520 = vsel %vm172, %v7413, 0
    %v7523 = vsel %vm172, %v7414, 0
    %v7526 = vsel %vm172, %v7415, 0
    %v7529 = vsel %vm172, %v7416, 0
    %v7532 = vsel %vm172, %v7417, 0
    %v7535 = vsel %vm172, %v7418, 0
    %v7538 = vsel %vm172, %v7419, 0
    %v7541 = vsel %vm172, %v7420, 0
    %v7544 = vsel %vm172, %v7421, 0
    %v7547 = vsel %vm172, %v7422, 0
    %v7550 = vsel %vm172, %v7423, 0
    %v7553 = vsel %vm172, %v7424, 0
    %v7556 = vsel %vm172, %v7425, 0
    %v7559 = vsel %vm172, %v7426, 0
    %v7562 = vsel %vm172, %v7427, 0
    %v7565 = vsel %vm172, %v7428, 0
    %v7568 = vsel %vm172, %v7429, 0
    %v7571 = vsel %vm172, %v7430, 0
    %v7574 = vsel %vm172, %v7431, 0
    %v7577 = vsel %vm172, %v7432, 0
    %v7580 = vsel %vm172, %v7433, 0
    %v7583 = vsel %vm172, %v7434, 0
    %v7586 = vsel %vm172, %v7435, 0
    %v7589 = vsel %vm172, %v7436, 0
    %v7592 = vsel %vm172, %v7437, 0
    %v7595 = vsel %vm172, %v7438, 0
    %v7598 = vsel %vm172, %v7439, 0
    %v7601 = vsel %vm172, %v7440, 0
    %v7604 = vsel %vm172, %v7441, 0
    %v7607 = vsel %vm172, %v7442, 0
    %v7610 = vsel %vm172, %v7443, 0
    %v7613 = vsel %vm172, %v7444, 0
    %v7616 = vsel %vm172, %v7445, 0
    %v7619 = vsel %vm172, %v7446, 0
    %v7622 = vsel %vm172, %v7447, 0
    %v7625 = vsel %vm172, %v7448, 0
    %v7628 = vsel %vm172, %v7449, 0
    %v7631 = vsel %vm172, %v7450, 0
    %v7634 = vsel %vm172, %v7451, 0
    %v7637 = vsel %vm172, %v7452, 0
    %v7640 = vsel %vm172, %v7453, 0
    %v7643 = vsel %vm172, %v7454, 0
    %v7646 = vsel %vm172, %v7455, 0
    %v7649 = vsel %vm172, %v7456, 0
    %v7652 = vsel %vm365, %v7458, 0
    %7654 = vmatpush.msra.mxu0 0.0
    %7655 = vmatpush.msra.mxu0 0.0
    %7656 = vmatpush.msra.mxu0 0.0
    %7657 = vmatpush.msra.mxu0 0.0
    %7658 = vmatpush.msra.mxu0 0.0
    %7659 = vmatpush.msra.mxu0 0.0
    %7660 = vmatpush.msra.mxu0 0.0
    %7661 = vmatpush.msra.mxu0 0.0
    %7662 = vmatpush.msra.mxu0 0.0
    %7663 = vmatpush.msra.mxu0 0.0
    %7664 = vmatpush.msra.mxu0 0.0
    %7665 = vmatpush.msra.mxu0 0.0
    %7666 = vmatpush.msra.mxu0 0.0
    %7667 = vmatpush.msra.mxu0 0.0
    %7668 = vmatpush.msra.mxu0 0.0
    %7669 = vmatpush.msra.mxu0 %v7652
    %7670 = vmatmul.f32.gmra.mxu0 %v7460
    %v7671 = vpop.f32.mrf.mxu0
    %v7672 = vadd.f32 0.0, %v7671
    %7673 = vmatmul.f32.gmra.mxu0 %v7463
    %v7674 = vpop.f32.mrf.mxu0
    %v7675 = vadd.f32 0.0, %v7674
    %7676 = vmatmul.f32.gmra.mxu0 %v7466
    %v7677 = vpop.f32.mrf.mxu0
    %v7678 = vadd.f32 0.0, %v7677
    %7679 = vmatmul.f32.gmra.mxu0 %v7469
    %v7680 = vpop.f32.mrf.mxu0
    %v7681 = vadd.f32 0.0, %v7680
    %7682 = vmatmul.f32.gmra.mxu0 %v7472
    %v7683 = vpop.f32.mrf.mxu0
    %v7684 = vadd.f32 0.0, %v7683
    %7685 = vmatmul.f32.gmra.mxu0 %v7475
    %v7686 = vpop.f32.mrf.mxu0
    %v7687 = vadd.f32 0.0, %v7686
    %7688 = vmatmul.f32.gmra.mxu0 %v7478
    %v7689 = vpop.f32.mrf.mxu0
    %v7690 = vadd.f32 0.0, %v7689
    %7691 = vmatmul.f32.gmra.mxu0 %v7481
    %v7692 = vpop.f32.mrf.mxu0
    %v7693 = vadd.f32 0.0, %v7692
    %7694 = vmatmul.f32.gmra.mxu0 %v7484
    %v7695 = vpop.f32.mrf.mxu0
    %v7696 = vadd.f32 0.0, %v7695
    %7697 = vmatmul.f32.gmra.mxu0 %v7487
    %v7698 = vpop.f32.mrf.mxu0
    %v7699 = vadd.f32 0.0, %v7698
    %7700 = vmatmul.f32.gmra.mxu0 %v7490
    %v7701 = vpop.f32.mrf.mxu0
    %v7702 = vadd.f32 0.0, %v7701
    %7703 = vmatmul.f32.gmra.mxu0 %v7493
    %v7704 = vpop.f32.mrf.mxu0
    %v7705 = vadd.f32 0.0, %v7704
    %7706 = vmatmul.f32.gmra.mxu0 %v7496
    %v7707 = vpop.f32.mrf.mxu0
    %v7708 = vadd.f32 0.0, %v7707
    %7709 = vmatmul.f32.gmra.mxu0 %v7499
    %v7710 = vpop.f32.mrf.mxu0
    %v7711 = vadd.f32 0.0, %v7710
    %7712 = vmatmul.f32.gmra.mxu0 %v7502
    %v7713 = vpop.f32.mrf.mxu0
    %v7714 = vadd.f32 0.0, %v7713
    %7715 = vmatmul.f32.gmra.mxu0 %v7505
    %v7716 = vpop.f32.mrf.mxu0
    %v7717 = vadd.f32 0.0, %v7716
    %7718 = vmatmul.f32.gmra.mxu0 %v7508
    %v7719 = vpop.f32.mrf.mxu0
    %v7720 = vadd.f32 0.0, %v7719
    %7721 = vmatmul.f32.gmra.mxu0 %v7511
    %v7722 = vpop.f32.mrf.mxu0
    %v7723 = vadd.f32 0.0, %v7722
    %7724 = vmatmul.f32.gmra.mxu0 %v7514
    %v7725 = vpop.f32.mrf.mxu0
    %v7726 = vadd.f32 0.0, %v7725
    %7727 = vmatmul.f32.gmra.mxu0 %v7517
    %v7728 = vpop.f32.mrf.mxu0
    %v7729 = vadd.f32 0.0, %v7728
    %7730 = vmatmul.f32.gmra.mxu0 %v7520
    %v7731 = vpop.f32.mrf.mxu0
    %v7732 = vadd.f32 0.0, %v7731
    %7733 = vmatmul.f32.gmra.mxu0 %v7523
    %v7734 = vpop.f32.mrf.mxu0
    %v7735 = vadd.f32 0.0, %v7734
    %7736 = vmatmul.f32.gmra.mxu0 %v7526
    %v7737 = vpop.f32.mrf.mxu0
    %v7738 = vadd.f32 0.0, %v7737
    %7739 = vmatmul.f32.gmra.mxu0 %v7529
    %v7740 = vpop.f32.mrf.mxu0
    %v7741 = vadd.f32 0.0, %v7740
    %7742 = vmatmul.f32.gmra.mxu0 %v7532
    %v7743 = vpop.f32.mrf.mxu0
    %v7744 = vadd.f32 0.0, %v7743
    %7745 = vmatmul.f32.gmra.mxu0 %v7535
    %v7746 = vpop.f32.mrf.mxu0
    %v7747 = vadd.f32 0.0, %v7746
    %7748 = vmatmul.f32.gmra.mxu0 %v7538
    %v7749 = vpop.f32.mrf.mxu0
    %v7750 = vadd.f32 0.0, %v7749
    %7751 = vmatmul.f32.gmra.mxu0 %v7541
    %v7752 = vpop.f32.mrf.mxu0
    %v7753 = vadd.f32 0.0, %v7752
    %7754 = vmatmul.f32.gmra.mxu0 %v7544
    %v7755 = vpop.f32.mrf.mxu0
    %v7756 = vadd.f32 0.0, %v7755
    %7757 = vmatmul.f32.gmra.mxu0 %v7547
    %v7758 = vpop.f32.mrf.mxu0
    %v7759 = vadd.f32 0.0, %v7758
    %7760 = vmatmul.f32.gmra.mxu0 %v7550
    %v7761 = vpop.f32.mrf.mxu0
    %v7762 = vadd.f32 0.0, %v7761
    %7763 = vmatmul.f32.gmra.mxu0 %v7553
    %v7764 = vpop.f32.mrf.mxu0
    %v7765 = vadd.f32 0.0, %v7764
    %7766 = vmatmul.f32.gmra.mxu0 %v7556
    %v7767 = vpop.f32.mrf.mxu0
    %v7768 = vadd.f32 0.0, %v7767
    %7769 = vmatmul.f32.gmra.mxu0 %v7559
    %v7770 = vpop.f32.mrf.mxu0
    %v7771 = vadd.f32 0.0, %v7770
    %7772 = vmatmul.f32.gmra.mxu0 %v7562
    %v7773 = vpop.f32.mrf.mxu0
    %v7774 = vadd.f32 0.0, %v7773
    %7775 = vmatmul.f32.gmra.mxu0 %v7565
    %v7776 = vpop.f32.mrf.mxu0
    %v7777 = vadd.f32 0.0, %v7776
    %7778 = vmatmul.f32.gmra.mxu0 %v7568
    %v7779 = vpop.f32.mrf.mxu0
    %v7780 = vadd.f32 0.0, %v7779
    %7781 = vmatmul.f32.gmra.mxu0 %v7571
    %v7782 = vpop.f32.mrf.mxu0
    %v7783 = vadd.f32 0.0, %v7782
    %7784 = vmatmul.f32.gmra.mxu0 %v7574
    %v7785 = vpop.f32.mrf.mxu0
    %v7786 = vadd.f32 0.0, %v7785
    %7787 = vmatmul.f32.gmra.mxu0 %v7577
    %v7788 = vpop.f32.mrf.mxu0
    %v7789 = vadd.f32 0.0, %v7788
    %7790 = vmatmul.f32.gmra.mxu0 %v7580
    %v7791 = vpop.f32.mrf.mxu0
    %v7792 = vadd.f32 0.0, %v7791
    %7793 = vmatmul.f32.gmra.mxu0 %v7583
    %v7794 = vpop.f32.mrf.mxu0
    %v7795 = vadd.f32 0.0, %v7794
    %7796 = vmatmul.f32.gmra.mxu0 %v7586
    %v7797 = vpop.f32.mrf.mxu0
    %v7798 = vadd.f32 0.0, %v7797
    %7799 = vmatmul.f32.gmra.mxu0 %v7589
    %v7800 = vpop.f32.mrf.mxu0
    %v7801 = vadd.f32 0.0, %v7800
    %7802 = vmatmul.f32.gmra.mxu0 %v7592
    %v7803 = vpop.f32.mrf.mxu0
    %v7804 = vadd.f32 0.0, %v7803
    %7805 = vmatmul.f32.gmra.mxu0 %v7595
    %v7806 = vpop.f32.mrf.mxu0
    %v7807 = vadd.f32 0.0, %v7806
    %7808 = vmatmul.f32.gmra.mxu0 %v7598
    %v7809 = vpop.f32.mrf.mxu0
    %v7810 = vadd.f32 0.0, %v7809
    %7811 = vmatmul.f32.gmra.mxu0 %v7601
    %v7812 = vpop.f32.mrf.mxu0
    %v7813 = vadd.f32 0.0, %v7812
    %7814 = vmatmul.f32.gmra.mxu0 %v7604
    %v7815 = vpop.f32.mrf.mxu0
    %v7816 = vadd.f32 0.0, %v7815
    %7817 = vmatmul.f32.gmra.mxu0 %v7607
    %v7818 = vpop.f32.mrf.mxu0
    %v7819 = vadd.f32 0.0, %v7818
    %7820 = vmatmul.f32.gmra.mxu0 %v7610
    %v7821 = vpop.f32.mrf.mxu0
    %v7822 = vadd.f32 0.0, %v7821
    %7823 = vmatmul.f32.gmra.mxu0 %v7613
    %v7824 = vpop.f32.mrf.mxu0
    %v7825 = vadd.f32 0.0, %v7824
    %7826 = vmatmul.f32.gmra.mxu0 %v7616
    %v7827 = vpop.f32.mrf.mxu0
    %v7828 = vadd.f32 0.0, %v7827
    %7829 = vmatmul.f32.gmra.mxu0 %v7619
    %v7830 = vpop.f32.mrf.mxu0
    %v7831 = vadd.f32 0.0, %v7830
    %7832 = vmatmul.f32.gmra.mxu0 %v7622
    %v7833 = vpop.f32.mrf.mxu0
    %v7834 = vadd.f32 0.0, %v7833
    %7835 = vmatmul.f32.gmra.mxu0 %v7625
    %v7836 = vpop.f32.mrf.mxu0
    %v7837 = vadd.f32 0.0, %v7836
    %7838 = vmatmul.f32.gmra.mxu0 %v7628
    %v7839 = vpop.f32.mrf.mxu0
    %v7840 = vadd.f32 0.0, %v7839
    %7841 = vmatmul.f32.gmra.mxu0 %v7631
    %v7842 = vpop.f32.mrf.mxu0
    %v7843 = vadd.f32 0.0, %v7842
    %7844 = vmatmul.f32.gmra.mxu0 %v7634
    %v7845 = vpop.f32.mrf.mxu0
    %v7846 = vadd.f32 0.0, %v7845
    %7847 = vmatmul.f32.gmra.mxu0 %v7637
    %v7848 = vpop.f32.mrf.mxu0
    %v7849 = vadd.f32 0.0, %v7848
    %7850 = vmatmul.f32.gmra.mxu0 %v7640
    %v7851 = vpop.f32.mrf.mxu0
    %v7852 = vadd.f32 0.0, %v7851
    %7853 = vmatmul.f32.gmra.mxu0 %v7643
    %v7854 = vpop.f32.mrf.mxu0
    %v7855 = vadd.f32 0.0, %v7854
    %7856 = vmatmul.f32.gmra.mxu0 %v7646
    %v7857 = vpop.f32.mrf.mxu0
    %v7858 = vadd.f32 0.0, %v7857
    %7859 = vmatmul.f32.gmra.mxu0 %v7649
    %v7860 = vpop.f32.mrf.mxu0
    %v7861 = vadd.f32 0.0, %v7860
    %7862 = vdwg.mxu0
    %v7863 = vadd.f32 %v7329, %v7672
    %v7864 = vadd.f32 %v7330, %v7675
    %v7865 = vadd.f32 %v7331, %v7678
    %v7866 = vadd.f32 %v7332, %v7681
    %v7867 = vadd.f32 %v7333, %v7684
    %v7868 = vadd.f32 %v7334, %v7687
    %v7869 = vadd.f32 %v7335, %v7690
    %v7870 = vadd.f32 %v7336, %v7693
    %v7871 = vadd.f32 %v7337, %v7696
    %v7872 = vadd.f32 %v7338, %v7699
    %v7873 = vadd.f32 %v7339, %v7702
    %v7874 = vadd.f32 %v7340, %v7705
    %v7875 = vadd.f32 %v7341, %v7708
    %v7876 = vadd.f32 %v7342, %v7711
    %v7877 = vadd.f32 %v7343, %v7714
    %v7878 = vadd.f32 %v7344, %v7717
    %v7879 = vadd.f32 %v7345, %v7720
    %v7880 = vadd.f32 %v7346, %v7723
    %v7881 = vadd.f32 %v7347, %v7726
    %v7882 = vadd.f32 %v7348, %v7729
    %v7883 = vadd.f32 %v7349, %v7732
    %v7884 = vadd.f32 %v7350, %v7735
    %v7885 = vadd.f32 %v7351, %v7738
    %v7886 = vadd.f32 %v7352, %v7741
    %v7887 = vadd.f32 %v7353, %v7744
    %v7888 = vadd.f32 %v7354, %v7747
    %v7889 = vadd.f32 %v7355, %v7750
    %v7890 = vadd.f32 %v7356, %v7753
    %v7891 = vadd.f32 %v7357, %v7756
    %v7892 = vadd.f32 %v7358, %v7759
    %v7893 = vadd.f32 %v7359, %v7762
    %v7894 = vadd.f32 %v7360, %v7765
    %v7895 = vadd.f32 %v7361, %v7768
    %v7896 = vadd.f32 %v7362, %v7771
    %v7897 = vadd.f32 %v7363, %v7774
    %v7898 = vadd.f32 %v7364, %v7777
    %v7899 = vadd.f32 %v7365, %v7780
    %v7900 = vadd.f32 %v7366, %v7783
    %v7901 = vadd.f32 %v7367, %v7786
    %v7902 = vadd.f32 %v7368, %v7789
    %v7903 = vadd.f32 %v7369, %v7792
    %v7904 = vadd.f32 %v7370, %v7795
    %v7905 = vadd.f32 %v7371, %v7798
    %v7906 = vadd.f32 %v7372, %v7801
    %v7907 = vadd.f32 %v7373, %v7804
    %v7908 = vadd.f32 %v7374, %v7807
    %v7909 = vadd.f32 %v7375, %v7810
    %v7910 = vadd.f32 %v7376, %v7813
    %v7911 = vadd.f32 %v7377, %v7816
    %v7912 = vadd.f32 %v7378, %v7819
    %v7913 = vadd.f32 %v7379, %v7822
    %v7914 = vadd.f32 %v7380, %v7825
    %v7915 = vadd.f32 %v7381, %v7828
    %v7916 = vadd.f32 %v7382, %v7831
    %v7917 = vadd.f32 %v7383, %v7834
    %v7918 = vadd.f32 %v7384, %v7837
    %v7919 = vadd.f32 %v7385, %v7840
    %v7920 = vadd.f32 %v7386, %v7843
    %v7921 = vadd.f32 %v7387, %v7846
    %v7922 = vadd.f32 %v7388, %v7849
    %v7923 = vadd.f32 %v7389, %v7852
    %v7924 = vadd.f32 %v7390, %v7855
    %v7925 = vadd.f32 %v7391, %v7858
    %v7926 = vadd.f32 %v7392, %v7861
    %v7927 = vld [vmem:[%s6324 + $0x3] sm:$0xff]
    %v7928 = vld [vmem:[%s6324 + $0xb] sm:$0xff]
    %v7929 = vld [vmem:[%s6324 + $0x1b] sm:$0xff]
    %v7930 = vld [vmem:[%s6324 + $0x23] sm:$0xff]
    %v7931 = vld [vmem:[%s6324 + $0x33] sm:$0xff]
    %v7932 = vld [vmem:[%s6324 + $0x3b] sm:$0xff]
    %v7933 = vld [vmem:[%s6324 + $0x4b] sm:$0xff]
    %v7934 = vld [vmem:[%s6324 + $0x53] sm:$0xff]
    %v7935 = vld [vmem:[%s6324 + $0x63] sm:$0xff]
    %v7936 = vld [vmem:[%s6324 + $0x6b] sm:$0xff]
    %v7937 = vld [vmem:[%s6324 + $0x7b] sm:$0xff]
    %v7938 = vld [vmem:[%s6324 + $0x83] sm:$0xff]
    %v7939 = vld [vmem:[%s6324 + $0x93] sm:$0xff]
    %v7940 = vld [vmem:[%s6324 + $0x9b] sm:$0xff]
    %v7941 = vld [vmem:[%s6324 + $0xab] sm:$0xff]
    %v7942 = vld [vmem:[%s6324 + $0xb3] sm:$0xff]
    %v7943 = vld [vmem:[%s6324 + $0xc3] sm:$0xff]
    %v7944 = vld [vmem:[%s6324 + $0xcb] sm:$0xff]
    %v7945 = vld [vmem:[%s6324 + $0xdb] sm:$0xff]
    %v7946 = vld [vmem:[%s6324 + $0xe3] sm:$0xff]
    %v7947 = vld [vmem:[%s6324 + $0xf3] sm:$0xff]
    %v7948 = vld [vmem:[%s6324 + $0xfb] sm:$0xff]
    %v7949 = vld [vmem:[%s6324 + $0x10b] sm:$0xff]
    %v7950 = vld [vmem:[%s6324 + $0x113] sm:$0xff]
    %v7951 = vld [vmem:[%s6324 + $0x123] sm:$0xff]
    %v7952 = vld [vmem:[%s6324 + $0x12b] sm:$0xff]
    %v7953 = vld [vmem:[%s6324 + $0x13b] sm:$0xff]
    %v7954 = vld [vmem:[%s6324 + $0x143] sm:$0xff]
    %v7955 = vld [vmem:[%s6324 + $0x153] sm:$0xff]
    %v7956 = vld [vmem:[%s6324 + $0x15b] sm:$0xff]
    %v7957 = vld [vmem:[%s6324 + $0x16b] sm:$0xff]
    %v7958 = vld [vmem:[%s6324 + $0x173] sm:$0xff]
    %v7959 = vld [vmem:[%s6324 + $0x1cb] sm:$0xff]
    %v7960 = vld [vmem:[%s6324 + $0x1d3] sm:$0xff]
    %v7961 = vld [vmem:[%s6324 + $0x1e3] sm:$0xff]
    %v7962 = vld [vmem:[%s6324 + $0x1eb] sm:$0xff]
    %v7963 = vld [vmem:[%s6324 + $0x1fb] sm:$0xff]
    %v7964 = vld [vmem:[%s6324 + $0x203] sm:$0xff]
    %v7965 = vld [vmem:[%s6324 + $0x213] sm:$0xff]
    %v7966 = vld [vmem:[%s6324 + $0x21b] sm:$0xff]
    %v7967 = vld [vmem:[%s6324 + $0x22b] sm:$0xff]
    %v7968 = vld [vmem:[%s6324 + $0x233] sm:$0xff]
    %v7969 = vld [vmem:[%s6324 + $0x243] sm:$0xff]
    %v7970 = vld [vmem:[%s6324 + $0x24b] sm:$0xff]
    %v7971 = vld [vmem:[%s6324 + $0x25b] sm:$0xff]
    %v7972 = vld [vmem:[%s6324 + $0x263] sm:$0xff]
    %v7973 = vld [vmem:[%s6324 + $0x273] sm:$0xff]
    %v7974 = vld [vmem:[%s6324 + $0x27b] sm:$0xff]
    %v7975 = vld [vmem:[%s6324 + $0x28b] sm:$0xff]
    %v7976 = vld [vmem:[%s6324 + $0x293] sm:$0xff]
    %v7977 = vld [vmem:[%s6324 + $0x2a3] sm:$0xff]
    %v7978 = vld [vmem:[%s6324 + $0x2ab] sm:$0xff]
    %v7979 = vld [vmem:[%s6324 + $0x2bb] sm:$0xff]
    %v7980 = vld [vmem:[%s6324 + $0x2c3] sm:$0xff]
    %v7981 = vld [vmem:[%s6324 + $0x2d3] sm:$0xff]
    %v7982 = vld [vmem:[%s6324 + $0x2db] sm:$0xff]
    %v7983 = vld [vmem:[%s6324 + $0x2eb] sm:$0xff]
    %v7984 = vld [vmem:[%s6324 + $0x2f3] sm:$0xff]
    %v7985 = vld [vmem:[%s6324 + $0x303] sm:$0xff]
    %v7986 = vld [vmem:[%s6324 + $0x30b] sm:$0xff]
    %v7987 = vld [vmem:[%s6324 + $0x31b] sm:$0xff]
    %v7988 = vld [vmem:[%s6324 + $0x323] sm:$0xff]
    %v7989 = vld [vmem:[%s6324 + $0x333] sm:$0xff]
    %v7990 = vld [vmem:[%s6324 + $0x33b] sm:$0xff]
    %s7991 = scalar_lea.vmem %s1, 60
    %v7992 = vld [vmem:[%s7991] sm:$0x7]
    %v7994 = vsel %vm172, %v7927, 0
    %v7997 = vsel %vm172, %v7928, 0
    %v8000 = vsel %vm172, %v7929, 0
    %v8003 = vsel %vm172, %v7930, 0
    %v8006 = vsel %vm172, %v7931, 0
    %v8009 = vsel %vm172, %v7932, 0
    %v8012 = vsel %vm172, %v7933, 0
    %v8015 = vsel %vm172, %v7934, 0
    %v8018 = vsel %vm172, %v7935, 0
    %v8021 = vsel %vm172, %v7936, 0
    %v8024 = vsel %vm172, %v7937, 0
    %v8027 = vsel %vm172, %v7938, 0
    %v8030 = vsel %vm172, %v7939, 0
    %v8033 = vsel %vm172, %v7940, 0
    %v8036 = vsel %vm172, %v7941, 0
    %v8039 = vsel %vm172, %v7942, 0
    %v8042 = vsel %vm172, %v7943, 0
    %v8045 = vsel %vm172, %v7944, 0
    %v8048 = vsel %vm172, %v7945, 0
    %v8051 = vsel %vm172, %v7946, 0
    %v8054 = vsel %vm172, %v7947, 0
    %v8057 = vsel %vm172, %v7948, 0
    %v8060 = vsel %vm172, %v7949, 0
    %v8063 = vsel %vm172, %v7950, 0
    %v8066 = vsel %vm172, %v7951, 0
    %v8069 = vsel %vm172, %v7952, 0
    %v8072 = vsel %vm172, %v7953, 0
    %v8075 = vsel %vm172, %v7954, 0
    %v8078 = vsel %vm172, %v7955, 0
    %v8081 = vsel %vm172, %v7956, 0
    %v8084 = vsel %vm172, %v7957, 0
    %v8087 = vsel %vm172, %v7958, 0
    %v8090 = vsel %vm172, %v7959, 0
    %v8093 = vsel %vm172, %v7960, 0
    %v8096 = vsel %vm172, %v7961, 0
    %v8099 = vsel %vm172, %v7962, 0
    %v8102 = vsel %vm172, %v7963, 0
    %v8105 = vsel %vm172, %v7964, 0
    %v8108 = vsel %vm172, %v7965, 0
    %v8111 = vsel %vm172, %v7966, 0
    %v8114 = vsel %vm172, %v7967, 0
    %v8117 = vsel %vm172, %v7968, 0
    %v8120 = vsel %vm172, %v7969, 0
    %v8123 = vsel %vm172, %v7970, 0
    %v8126 = vsel %vm172, %v7971, 0
    %v8129 = vsel %vm172, %v7972, 0
    %v8132 = vsel %vm172, %v7973, 0
    %v8135 = vsel %vm172, %v7974, 0
    %v8138 = vsel %vm172, %v7975, 0
    %v8141 = vsel %vm172, %v7976, 0
    %v8144 = vsel %vm172, %v7977, 0
    %v8147 = vsel %vm172, %v7978, 0
    %v8150 = vsel %vm172, %v7979, 0
    %v8153 = vsel %vm172, %v7980, 0
    %v8156 = vsel %vm172, %v7981, 0
    %v8159 = vsel %vm172, %v7982, 0
    %v8162 = vsel %vm172, %v7983, 0
    %v8165 = vsel %vm172, %v7984, 0
    %v8168 = vsel %vm172, %v7985, 0
    %v8171 = vsel %vm172, %v7986, 0
    %v8174 = vsel %vm172, %v7987, 0
    %v8177 = vsel %vm172, %v7988, 0
    %v8180 = vsel %vm172, %v7989, 0
    %v8183 = vsel %vm172, %v7990, 0
    %v8186 = vsel %vm365, %v7992, 0
    %8188 = vmatpush.msra.mxu0 0.0
    %8189 = vmatpush.msra.mxu0 0.0
    %8190 = vmatpush.msra.mxu0 0.0
    %8191 = vmatpush.msra.mxu0 0.0
    %8192 = vmatpush.msra.mxu0 0.0
    %8193 = vmatpush.msra.mxu0 0.0
    %8194 = vmatpush.msra.mxu0 0.0
    %8195 = vmatpush.msra.mxu0 0.0
    %8196 = vmatpush.msra.mxu0 0.0
    %8197 = vmatpush.msra.mxu0 0.0
    %8198 = vmatpush.msra.mxu0 0.0
    %8199 = vmatpush.msra.mxu0 0.0
    %8200 = vmatpush.msra.mxu0 0.0
    %8201 = vmatpush.msra.mxu0 0.0
    %8202 = vmatpush.msra.mxu0 0.0
    %8203 = vmatpush.msra.mxu0 %v8186
    %8204 = vmatmul.f32.gmra.mxu0 %v7994
    %v8205 = vpop.f32.mrf.mxu0
    %v8206 = vadd.f32 0.0, %v8205
    %8207 = vmatmul.f32.gmra.mxu0 %v7997
    %v8208 = vpop.f32.mrf.mxu0
    %v8209 = vadd.f32 0.0, %v8208
    %8210 = vmatmul.f32.gmra.mxu0 %v8000
    %v8211 = vpop.f32.mrf.mxu0
    %v8212 = vadd.f32 0.0, %v8211
    %8213 = vmatmul.f32.gmra.mxu0 %v8003
    %v8214 = vpop.f32.mrf.mxu0
    %v8215 = vadd.f32 0.0, %v8214
    %8216 = vmatmul.f32.gmra.mxu0 %v8006
    %v8217 = vpop.f32.mrf.mxu0
    %v8218 = vadd.f32 0.0, %v8217
    %8219 = vmatmul.f32.gmra.mxu0 %v8009
    %v8220 = vpop.f32.mrf.mxu0
    %v8221 = vadd.f32 0.0, %v8220
    %8222 = vmatmul.f32.gmra.mxu0 %v8012
    %v8223 = vpop.f32.mrf.mxu0
    %v8224 = vadd.f32 0.0, %v8223
    %8225 = vmatmul.f32.gmra.mxu0 %v8015
    %v8226 = vpop.f32.mrf.mxu0
    %v8227 = vadd.f32 0.0, %v8226
    %8228 = vmatmul.f32.gmra.mxu0 %v8018
    %v8229 = vpop.f32.mrf.mxu0
    %v8230 = vadd.f32 0.0, %v8229
    %8231 = vmatmul.f32.gmra.mxu0 %v8021
    %v8232 = vpop.f32.mrf.mxu0
    %v8233 = vadd.f32 0.0, %v8232
    %8234 = vmatmul.f32.gmra.mxu0 %v8024
    %v8235 = vpop.f32.mrf.mxu0
    %v8236 = vadd.f32 0.0, %v8235
    %8237 = vmatmul.f32.gmra.mxu0 %v8027
    %v8238 = vpop.f32.mrf.mxu0
    %v8239 = vadd.f32 0.0, %v8238
    %8240 = vmatmul.f32.gmra.mxu0 %v8030
    %v8241 = vpop.f32.mrf.mxu0
    %v8242 = vadd.f32 0.0, %v8241
    %8243 = vmatmul.f32.gmra.mxu0 %v8033
    %v8244 = vpop.f32.mrf.mxu0
    %v8245 = vadd.f32 0.0, %v8244
    %8246 = vmatmul.f32.gmra.mxu0 %v8036
    %v8247 = vpop.f32.mrf.mxu0
    %v8248 = vadd.f32 0.0, %v8247
    %8249 = vmatmul.f32.gmra.mxu0 %v8039
    %v8250 = vpop.f32.mrf.mxu0
    %v8251 = vadd.f32 0.0, %v8250
    %8252 = vmatmul.f32.gmra.mxu0 %v8042
    %v8253 = vpop.f32.mrf.mxu0
    %v8254 = vadd.f32 0.0, %v8253
    %8255 = vmatmul.f32.gmra.mxu0 %v8045
    %v8256 = vpop.f32.mrf.mxu0
    %v8257 = vadd.f32 0.0, %v8256
    %8258 = vmatmul.f32.gmra.mxu0 %v8048
    %v8259 = vpop.f32.mrf.mxu0
    %v8260 = vadd.f32 0.0, %v8259
    %8261 = vmatmul.f32.gmra.mxu0 %v8051
    %v8262 = vpop.f32.mrf.mxu0
    %v8263 = vadd.f32 0.0, %v8262
    %8264 = vmatmul.f32.gmra.mxu0 %v8054
    %v8265 = vpop.f32.mrf.mxu0
    %v8266 = vadd.f32 0.0, %v8265
    %8267 = vmatmul.f32.gmra.mxu0 %v8057
    %v8268 = vpop.f32.mrf.mxu0
    %v8269 = vadd.f32 0.0, %v8268
    %8270 = vmatmul.f32.gmra.mxu0 %v8060
    %v8271 = vpop.f32.mrf.mxu0
    %v8272 = vadd.f32 0.0, %v8271
    %8273 = vmatmul.f32.gmra.mxu0 %v8063
    %v8274 = vpop.f32.mrf.mxu0
    %v8275 = vadd.f32 0.0, %v8274
    %8276 = vmatmul.f32.gmra.mxu0 %v8066
    %v8277 = vpop.f32.mrf.mxu0
    %v8278 = vadd.f32 0.0, %v8277
    %8279 = vmatmul.f32.gmra.mxu0 %v8069
    %v8280 = vpop.f32.mrf.mxu0
    %v8281 = vadd.f32 0.0, %v8280
    %8282 = vmatmul.f32.gmra.mxu0 %v8072
    %v8283 = vpop.f32.mrf.mxu0
    %v8284 = vadd.f32 0.0, %v8283
    %8285 = vmatmul.f32.gmra.mxu0 %v8075
    %v8286 = vpop.f32.mrf.mxu0
    %v8287 = vadd.f32 0.0, %v8286
    %8288 = vmatmul.f32.gmra.mxu0 %v8078
    %v8289 = vpop.f32.mrf.mxu0
    %v8290 = vadd.f32 0.0, %v8289
    %8291 = vmatmul.f32.gmra.mxu0 %v8081
    %v8292 = vpop.f32.mrf.mxu0
    %v8293 = vadd.f32 0.0, %v8292
    %8294 = vmatmul.f32.gmra.mxu0 %v8084
    %v8295 = vpop.f32.mrf.mxu0
    %v8296 = vadd.f32 0.0, %v8295
    %8297 = vmatmul.f32.gmra.mxu0 %v8087
    %v8298 = vpop.f32.mrf.mxu0
    %v8299 = vadd.f32 0.0, %v8298
    %8300 = vmatmul.f32.gmra.mxu0 %v8090
    %v8301 = vpop.f32.mrf.mxu0
    %v8302 = vadd.f32 0.0, %v8301
    %8303 = vmatmul.f32.gmra.mxu0 %v8093
    %v8304 = vpop.f32.mrf.mxu0
    %v8305 = vadd.f32 0.0, %v8304
    %8306 = vmatmul.f32.gmra.mxu0 %v8096
    %v8307 = vpop.f32.mrf.mxu0
    %v8308 = vadd.f32 0.0, %v8307
    %8309 = vmatmul.f32.gmra.mxu0 %v8099
    %v8310 = vpop.f32.mrf.mxu0
    %v8311 = vadd.f32 0.0, %v8310
    %8312 = vmatmul.f32.gmra.mxu0 %v8102
    %v8313 = vpop.f32.mrf.mxu0
    %v8314 = vadd.f32 0.0, %v8313
    %8315 = vmatmul.f32.gmra.mxu0 %v8105
    %v8316 = vpop.f32.mrf.mxu0
    %v8317 = vadd.f32 0.0, %v8316
    %8318 = vmatmul.f32.gmra.mxu0 %v8108
    %v8319 = vpop.f32.mrf.mxu0
    %v8320 = vadd.f32 0.0, %v8319
    %8321 = vmatmul.f32.gmra.mxu0 %v8111
    %v8322 = vpop.f32.mrf.mxu0
    %v8323 = vadd.f32 0.0, %v8322
    %8324 = vmatmul.f32.gmra.mxu0 %v8114
    %v8325 = vpop.f32.mrf.mxu0
    %v8326 = vadd.f32 0.0, %v8325
    %8327 = vmatmul.f32.gmra.mxu0 %v8117
    %v8328 = vpop.f32.mrf.mxu0
    %v8329 = vadd.f32 0.0, %v8328
    %8330 = vmatmul.f32.gmra.mxu0 %v8120
    %v8331 = vpop.f32.mrf.mxu0
    %v8332 = vadd.f32 0.0, %v8331
    %8333 = vmatmul.f32.gmra.mxu0 %v8123
    %v8334 = vpop.f32.mrf.mxu0
    %v8335 = vadd.f32 0.0, %v8334
    %8336 = vmatmul.f32.gmra.mxu0 %v8126
    %v8337 = vpop.f32.mrf.mxu0
    %v8338 = vadd.f32 0.0, %v8337
    %8339 = vmatmul.f32.gmra.mxu0 %v8129
    %v8340 = vpop.f32.mrf.mxu0
    %v8341 = vadd.f32 0.0, %v8340
    %8342 = vmatmul.f32.gmra.mxu0 %v8132
    %v8343 = vpop.f32.mrf.mxu0
    %v8344 = vadd.f32 0.0, %v8343
    %8345 = vmatmul.f32.gmra.mxu0 %v8135
    %v8346 = vpop.f32.mrf.mxu0
    %v8347 = vadd.f32 0.0, %v8346
    %8348 = vmatmul.f32.gmra.mxu0 %v8138
    %v8349 = vpop.f32.mrf.mxu0
    %v8350 = vadd.f32 0.0, %v8349
    %8351 = vmatmul.f32.gmra.mxu0 %v8141
    %v8352 = vpop.f32.mrf.mxu0
    %v8353 = vadd.f32 0.0, %v8352
    %8354 = vmatmul.f32.gmra.mxu0 %v8144
    %v8355 = vpop.f32.mrf.mxu0
    %v8356 = vadd.f32 0.0, %v8355
    %8357 = vmatmul.f32.gmra.mxu0 %v8147
    %v8358 = vpop.f32.mrf.mxu0
    %v8359 = vadd.f32 0.0, %v8358
    %8360 = vmatmul.f32.gmra.mxu0 %v8150
    %v8361 = vpop.f32.mrf.mxu0
    %v8362 = vadd.f32 0.0, %v8361
    %8363 = vmatmul.f32.gmra.mxu0 %v8153
    %v8364 = vpop.f32.mrf.mxu0
    %v8365 = vadd.f32 0.0, %v8364
    %8366 = vmatmul.f32.gmra.mxu0 %v8156
    %v8367 = vpop.f32.mrf.mxu0
    %v8368 = vadd.f32 0.0, %v8367
    %8369 = vmatmul.f32.gmra.mxu0 %v8159
    %v8370 = vpop.f32.mrf.mxu0
    %v8371 = vadd.f32 0.0, %v8370
    %8372 = vmatmul.f32.gmra.mxu0 %v8162
    %v8373 = vpop.f32.mrf.mxu0
    %v8374 = vadd.f32 0.0, %v8373
    %8375 = vmatmul.f32.gmra.mxu0 %v8165
    %v8376 = vpop.f32.mrf.mxu0
    %v8377 = vadd.f32 0.0, %v8376
    %8378 = vmatmul.f32.gmra.mxu0 %v8168
    %v8379 = vpop.f32.mrf.mxu0
    %v8380 = vadd.f32 0.0, %v8379
    %8381 = vmatmul.f32.gmra.mxu0 %v8171
    %v8382 = vpop.f32.mrf.mxu0
    %v8383 = vadd.f32 0.0, %v8382
    %8384 = vmatmul.f32.gmra.mxu0 %v8174
    %v8385 = vpop.f32.mrf.mxu0
    %v8386 = vadd.f32 0.0, %v8385
    %8387 = vmatmul.f32.gmra.mxu0 %v8177
    %v8388 = vpop.f32.mrf.mxu0
    %v8389 = vadd.f32 0.0, %v8388
    %8390 = vmatmul.f32.gmra.mxu0 %v8180
    %v8391 = vpop.f32.mrf.mxu0
    %v8392 = vadd.f32 0.0, %v8391
    %8393 = vmatmul.f32.gmra.mxu0 %v8183
    %v8394 = vpop.f32.mrf.mxu0
    %v8395 = vadd.f32 0.0, %v8394
    %8396 = vdwg.mxu0
    %v8397 = vadd.f32 %v7863, %v8206
    %v8398 = vadd.f32 %v7864, %v8209
    %v8399 = vadd.f32 %v7865, %v8212
    %v8400 = vadd.f32 %v7866, %v8215
    %v8401 = vadd.f32 %v7867, %v8218
    %v8402 = vadd.f32 %v7868, %v8221
    %v8403 = vadd.f32 %v7869, %v8224
    %v8404 = vadd.f32 %v7870, %v8227
    %v8405 = vadd.f32 %v7871, %v8230
    %v8406 = vadd.f32 %v7872, %v8233
    %v8407 = vadd.f32 %v7873, %v8236
    %v8408 = vadd.f32 %v7874, %v8239
    %v8409 = vadd.f32 %v7875, %v8242
    %v8410 = vadd.f32 %v7876, %v8245
    %v8411 = vadd.f32 %v7877, %v8248
    %v8412 = vadd.f32 %v7878, %v8251
    %v8413 = vadd.f32 %v7879, %v8254
    %v8414 = vadd.f32 %v7880, %v8257
    %v8415 = vadd.f32 %v7881, %v8260
    %v8416 = vadd.f32 %v7882, %v8263
    %v8417 = vadd.f32 %v7883, %v8266
    %v8418 = vadd.f32 %v7884, %v8269
    %v8419 = vadd.f32 %v7885, %v8272
    %v8420 = vadd.f32 %v7886, %v8275
    %v8421 = vadd.f32 %v7887, %v8278
    %v8422 = vadd.f32 %v7888, %v8281
    %v8423 = vadd.f32 %v7889, %v8284
    %v8424 = vadd.f32 %v7890, %v8287
    %v8425 = vadd.f32 %v7891, %v8290
    %v8426 = vadd.f32 %v7892, %v8293
    %v8427 = vadd.f32 %v7893, %v8296
    %v8428 = vadd.f32 %v7894, %v8299
    %v8429 = vadd.f32 %v7895, %v8302
    %v8430 = vadd.f32 %v7896, %v8305
    %v8431 = vadd.f32 %v7897, %v8308
    %v8432 = vadd.f32 %v7898, %v8311
    %v8433 = vadd.f32 %v7899, %v8314
    %v8434 = vadd.f32 %v7900, %v8317
    %v8435 = vadd.f32 %v7901, %v8320
    %v8436 = vadd.f32 %v7902, %v8323
    %v8437 = vadd.f32 %v7903, %v8326
    %v8438 = vadd.f32 %v7904, %v8329
    %v8439 = vadd.f32 %v7905, %v8332
    %v8440 = vadd.f32 %v7906, %v8335
    %v8441 = vadd.f32 %v7907, %v8338
    %v8442 = vadd.f32 %v7908, %v8341
    %v8443 = vadd.f32 %v7909, %v8344
    %v8444 = vadd.f32 %v7910, %v8347
    %v8445 = vadd.f32 %v7911, %v8350
    %v8446 = vadd.f32 %v7912, %v8353
    %v8447 = vadd.f32 %v7913, %v8356
    %v8448 = vadd.f32 %v7914, %v8359
    %v8449 = vadd.f32 %v7915, %v8362
    %v8450 = vadd.f32 %v7916, %v8365
    %v8451 = vadd.f32 %v7917, %v8368
    %v8452 = vadd.f32 %v7918, %v8371
    %v8453 = vadd.f32 %v7919, %v8374
    %v8454 = vadd.f32 %v7920, %v8377
    %v8455 = vadd.f32 %v7921, %v8380
    %v8456 = vadd.f32 %v7922, %v8383
    %v8457 = vadd.f32 %v7923, %v8386
    %v8458 = vadd.f32 %v7924, %v8389
    %v8459 = vadd.f32 %v7925, %v8392
    %v8460 = vadd.f32 %v7926, %v8395
    %v8461 = vld [vmem:[%s2] sm:$0xff]
    %v8462 = vld [vmem:[%s2 + $0x8] sm:$0xff]
    %v8463 = vld [vmem:[%s2 + $0x10] sm:$0xff]
    %v8464 = vld [vmem:[%s2 + $0x18] sm:$0xff]
    %v8465 = vld [vmem:[%s2 + $0x20] sm:$0xff]
    %v8466 = vld [vmem:[%s2 + $0x28] sm:$0xff]
    %v8467 = vld [vmem:[%s2 + $0x30] sm:$0xff]
    %v8468 = vld [vmem:[%s2 + $0x38] sm:$0xff]
    %v8469 = vld [vmem:[%s2 + $0x40] sm:$0xff]
    %v8470 = vld [vmem:[%s2 + $0x48] sm:$0xff]
    %v8471 = vld [vmem:[%s2 + $0x50] sm:$0xff]
    %v8472 = vld [vmem:[%s2 + $0x58] sm:$0xff]
    %v8473 = vld [vmem:[%s2 + $0x60] sm:$0xff]
    %v8474 = vld [vmem:[%s2 + $0x68] sm:$0xff]
    %v8475 = vld [vmem:[%s2 + $0x70] sm:$0xff]
    %v8476 = vld [vmem:[%s2 + $0x78] sm:$0xff]
    %v8477 = vld [vmem:[%s2 + $0x80] sm:$0xff]
    %v8478 = vld [vmem:[%s2 + $0x88] sm:$0xff]
    %v8479 = vld [vmem:[%s2 + $0x90] sm:$0xff]
    %v8480 = vld [vmem:[%s2 + $0x98] sm:$0xff]
    %v8481 = vld [vmem:[%s2 + $0xa0] sm:$0xff]
    %v8482 = vld [vmem:[%s2 + $0xa8] sm:$0xff]
    %v8483 = vld [vmem:[%s2 + $0xb0] sm:$0xff]
    %v8484 = vld [vmem:[%s2 + $0xb8] sm:$0xff]
    %v8485 = vld [vmem:[%s2 + $0xc0] sm:$0xff]
    %v8486 = vld [vmem:[%s2 + $0xc8] sm:$0xff]
    %v8487 = vld [vmem:[%s2 + $0xd0] sm:$0xff]
    %v8488 = vld [vmem:[%s2 + $0xd8] sm:$0xff]
    %v8489 = vld [vmem:[%s2 + $0xe0] sm:$0xff]
    %v8490 = vld [vmem:[%s2 + $0xe8] sm:$0xff]
    %v8491 = vld [vmem:[%s2 + $0xf0] sm:$0xff]
    %v8492 = vld [vmem:[%s2 + $0xf8] sm:$0xff]
    %v8493 = vld [vmem:[%s2 + $0x100] sm:$0xff]
    %v8494 = vld [vmem:[%s2 + $0x108] sm:$0xff]
    %v8495 = vld [vmem:[%s2 + $0x110] sm:$0xff]
    %v8496 = vld [vmem:[%s2 + $0x118] sm:$0xff]
    %v8497 = vld [vmem:[%s2 + $0x120] sm:$0xff]
    %v8498 = vld [vmem:[%s2 + $0x128] sm:$0xff]
    %v8499 = vld [vmem:[%s2 + $0x130] sm:$0xff]
    %v8500 = vld [vmem:[%s2 + $0x138] sm:$0xff]
    %v8501 = vld [vmem:[%s2 + $0x140] sm:$0xff]
    %v8502 = vld [vmem:[%s2 + $0x148] sm:$0xff]
    %v8503 = vld [vmem:[%s2 + $0x150] sm:$0xff]
    %v8504 = vld [vmem:[%s2 + $0x158] sm:$0xff]
    %v8505 = vld [vmem:[%s2 + $0x160] sm:$0xff]
    %v8506 = vld [vmem:[%s2 + $0x168] sm:$0xff]
    %v8507 = vld [vmem:[%s2 + $0x170] sm:$0xff]
    %v8508 = vld [vmem:[%s2 + $0x178] sm:$0xff]
    %v8509 = vld [vmem:[%s2 + $0x180] sm:$0xff]
    %v8510 = vld [vmem:[%s2 + $0x188] sm:$0xff]
    %v8511 = vld [vmem:[%s2 + $0x190] sm:$0xff]
    %v8512 = vld [vmem:[%s2 + $0x198] sm:$0xff]
    %v8513 = vld [vmem:[%s2 + $0x1a0] sm:$0xff]
    %v8514 = vld [vmem:[%s2 + $0x1a8] sm:$0xff]
    %v8515 = vld [vmem:[%s2 + $0x1b0] sm:$0xff]
    %v8516 = vld [vmem:[%s2 + $0x1b8] sm:$0xff]
    %v8517 = vld [vmem:[%s2 + $0x1c0] sm:$0xff]
    %v8518 = vld [vmem:[%s2 + $0x1c8] sm:$0xff]
    %v8519 = vld [vmem:[%s2 + $0x1d0] sm:$0xff]
    %v8520 = vld [vmem:[%s2 + $0x1d8] sm:$0xff]
    %v8521 = vld [vmem:[%s2 + $0x1e0] sm:$0xff]
    %v8522 = vld [vmem:[%s2 + $0x1e8] sm:$0xff]
    %v8523 = vld [vmem:[%s2 + $0x1f0] sm:$0xff]
    %v8524 = vld [vmem:[%s2 + $0x1f8] sm:$0xff]
    %8525 = vmatpush.msra.mxu0 %v8412
    %8526 = vmatpush.msra.mxu0 %v8411
    %8527 = vmatpush.msra.mxu0 %v8410
    %8528 = vmatpush.msra.mxu0 %v8409
    %8529 = vmatpush.msra.mxu0 %v8408
    %8530 = vmatpush.msra.mxu0 %v8407
    %8531 = vmatpush.msra.mxu0 %v8406
    %8532 = vmatpush.msra.mxu0 %v8405
    %8533 = vmatpush.msra.mxu0 %v8404
    %8534 = vmatpush.msra.mxu0 %v8403
    %8535 = vmatpush.msra.mxu0 %v8402
    %8536 = vmatpush.msra.mxu0 %v8401
    %8537 = vmatpush.msra.mxu0 %v8400
    %8538 = vmatpush.msra.mxu0 %v8399
    %8539 = vmatpush.msra.mxu0 %v8398
    %8540 = vmatpush.msra.mxu0 %v8397
    %8541 = vmatmul.f32.gmra.mxu0 %v8461
    %v8542 = vpop.f32.mrf.mxu0
    %v8543 = vadd.f32 0.0, %v8542
    %8544 = vmatmul.f32.gmra.mxu0 %v8465
    %v8545 = vpop.f32.mrf.mxu0
    %v8546 = vadd.f32 0.0, %v8545
    %8547 = vmatmul.f32.gmra.mxu0 %v8469
    %v8548 = vpop.f32.mrf.mxu0
    %v8549 = vadd.f32 0.0, %v8548
    %8550 = vmatmul.f32.gmra.mxu0 %v8473
    %v8551 = vpop.f32.mrf.mxu0
    %v8552 = vadd.f32 0.0, %v8551
    %8553 = vmatmul.f32.gmra.mxu0 %v8477
    %v8554 = vpop.f32.mrf.mxu0
    %v8555 = vadd.f32 0.0, %v8554
    %8556 = vmatmul.f32.gmra.mxu0 %v8481
    %v8557 = vpop.f32.mrf.mxu0
    %v8558 = vadd.f32 0.0, %v8557
    %8559 = vmatmul.f32.gmra.mxu0 %v8485
    %v8560 = vpop.f32.mrf.mxu0
    %v8561 = vadd.f32 0.0, %v8560
    %8562 = vmatmul.f32.gmra.mxu0 %v8489
    %v8563 = vpop.f32.mrf.mxu0
    %v8564 = vadd.f32 0.0, %v8563
    %8565 = vmatmul.f32.gmra.mxu0 %v8493
    %v8566 = vpop.f32.mrf.mxu0
    %v8567 = vadd.f32 0.0, %v8566
    %8568 = vmatmul.f32.gmra.mxu0 %v8497
    %v8569 = vpop.f32.mrf.mxu0
    %v8570 = vadd.f32 0.0, %v8569
    %8571 = vmatmul.f32.gmra.mxu0 %v8501
    %v8572 = vpop.f32.mrf.mxu0
    %v8573 = vadd.f32 0.0, %v8572
    %8574 = vmatmul.f32.gmra.mxu0 %v8505
    %v8575 = vpop.f32.mrf.mxu0
    %v8576 = vadd.f32 0.0, %v8575
    %8577 = vmatmul.f32.gmra.mxu0 %v8509
    %v8578 = vpop.f32.mrf.mxu0
    %v8579 = vadd.f32 0.0, %v8578
    %8580 = vmatmul.f32.gmra.mxu0 %v8513
    %v8581 = vpop.f32.mrf.mxu0
    %v8582 = vadd.f32 0.0, %v8581
    %8583 = vmatmul.f32.gmra.mxu0 %v8517
    %v8584 = vpop.f32.mrf.mxu0
    %v8585 = vadd.f32 0.0, %v8584
    %8586 = vmatmul.f32.gmra.mxu0 %v8521
    %v8587 = vpop.f32.mrf.mxu0
    %v8588 = vadd.f32 0.0, %v8587
    %8589 = vdwg.mxu0
    %8590 = vmatpush.msra.mxu0 %v8428
    %8591 = vmatpush.msra.mxu0 %v8427
    %8592 = vmatpush.msra.mxu0 %v8426
    %8593 = vmatpush.msra.mxu0 %v8425
    %8594 = vmatpush.msra.mxu0 %v8424
    %8595 = vmatpush.msra.mxu0 %v8423
    %8596 = vmatpush.msra.mxu0 %v8422
    %8597 = vmatpush.msra.mxu0 %v8421
    %8598 = vmatpush.msra.mxu0 %v8420
    %8599 = vmatpush.msra.mxu0 %v8419
    %8600 = vmatpush.msra.mxu0 %v8418
    %8601 = vmatpush.msra.mxu0 %v8417
    %8602 = vmatpush.msra.mxu0 %v8416
    %8603 = vmatpush.msra.mxu0 %v8415
    %8604 = vmatpush.msra.mxu0 %v8414
    %8605 = vmatpush.msra.mxu0 %v8413
    %8606 = vmatmul.f32.gmra.mxu0 %v8462
    %v8607 = vpop.f32.mrf.mxu0
    %v8608 = vadd.f32 %v8543, %v8607
    %8609 = vmatmul.f32.gmra.mxu0 %v8466
    %v8610 = vpop.f32.mrf.mxu0
    %v8611 = vadd.f32 %v8546, %v8610
    %8612 = vmatmul.f32.gmra.mxu0 %v8470
    %v8613 = vpop.f32.mrf.mxu0
    %v8614 = vadd.f32 %v8549, %v8613
    %8615 = vmatmul.f32.gmra.mxu0 %v8474
    %v8616 = vpop.f32.mrf.mxu0
    %v8617 = vadd.f32 %v8552, %v8616
    %8618 = vmatmul.f32.gmra.mxu0 %v8478
    %v8619 = vpop.f32.mrf.mxu0
    %v8620 = vadd.f32 %v8555, %v8619
    %8621 = vmatmul.f32.gmra.mxu0 %v8482
    %v8622 = vpop.f32.mrf.mxu0
    %v8623 = vadd.f32 %v8558, %v8622
    %8624 = vmatmul.f32.gmra.mxu0 %v8486
    %v8625 = vpop.f32.mrf.mxu0
    %v8626 = vadd.f32 %v8561, %v8625
    %8627 = vmatmul.f32.gmra.mxu0 %v8490
    %v8628 = vpop.f32.mrf.mxu0
    %v8629 = vadd.f32 %v8564, %v8628
    %8630 = vmatmul.f32.gmra.mxu0 %v8494
    %v8631 = vpop.f32.mrf.mxu0
    %v8632 = vadd.f32 %v8567, %v8631
    %8633 = vmatmul.f32.gmra.mxu0 %v8498
    %v8634 = vpop.f32.mrf.mxu0
    %v8635 = vadd.f32 %v8570, %v8634
    %8636 = vmatmul.f32.gmra.mxu0 %v8502
    %v8637 = vpop.f32.mrf.mxu0
    %v8638 = vadd.f32 %v8573, %v8637
    %8639 = vmatmul.f32.gmra.mxu0 %v8506
    %v8640 = vpop.f32.mrf.mxu0
    %v8641 = vadd.f32 %v8576, %v8640
    %8642 = vmatmul.f32.gmra.mxu0 %v8510
    %v8643 = vpop.f32.mrf.mxu0
    %v8644 = vadd.f32 %v8579, %v8643
    %8645 = vmatmul.f32.gmra.mxu0 %v8514
    %v8646 = vpop.f32.mrf.mxu0
    %v8647 = vadd.f32 %v8582, %v8646
    %8648 = vmatmul.f32.gmra.mxu0 %v8518
    %v8649 = vpop.f32.mrf.mxu0
    %v8650 = vadd.f32 %v8585, %v8649
    %8651 = vmatmul.f32.gmra.mxu0 %v8522
    %v8652 = vpop.f32.mrf.mxu0
    %v8653 = vadd.f32 %v8588, %v8652
    %8654 = vdwg.mxu0
    %8655 = vmatpush.msra.mxu0 %v8444
    %8656 = vmatpush.msra.mxu0 %v8443
    %8657 = vmatpush.msra.mxu0 %v8442
    %8658 = vmatpush.msra.mxu0 %v8441
    %8659 = vmatpush.msra.mxu0 %v8440
    %8660 = vmatpush.msra.mxu0 %v8439
    %8661 = vmatpush.msra.mxu0 %v8438
    %8662 = vmatpush.msra.mxu0 %v8437
    %8663 = vmatpush.msra.mxu0 %v8436
    %8664 = vmatpush.msra.mxu0 %v8435
    %8665 = vmatpush.msra.mxu0 %v8434
    %8666 = vmatpush.msra.mxu0 %v8433
    %8667 = vmatpush.msra.mxu0 %v8432
    %8668 = vmatpush.msra.mxu0 %v8431
    %8669 = vmatpush.msra.mxu0 %v8430
    %8670 = vmatpush.msra.mxu0 %v8429
    %8671 = vmatmul.f32.gmra.mxu0 %v8463
    %v8672 = vpop.f32.mrf.mxu0
    %v8673 = vadd.f32 %v8608, %v8672
    %8674 = vmatmul.f32.gmra.mxu0 %v8467
    %v8675 = vpop.f32.mrf.mxu0
    %v8676 = vadd.f32 %v8611, %v8675
    %8677 = vmatmul.f32.gmra.mxu0 %v8471
    %v8678 = vpop.f32.mrf.mxu0
    %v8679 = vadd.f32 %v8614, %v8678
    %8680 = vmatmul.f32.gmra.mxu0 %v8475
    %v8681 = vpop.f32.mrf.mxu0
    %v8682 = vadd.f32 %v8617, %v8681
    %8683 = vmatmul.f32.gmra.mxu0 %v8479
    %v8684 = vpop.f32.mrf.mxu0
    %v8685 = vadd.f32 %v8620, %v8684
    %8686 = vmatmul.f32.gmra.mxu0 %v8483
    %v8687 = vpop.f32.mrf.mxu0
    %v8688 = vadd.f32 %v8623, %v8687
    %8689 = vmatmul.f32.gmra.mxu0 %v8487
    %v8690 = vpop.f32.mrf.mxu0
    %v8691 = vadd.f32 %v8626, %v8690
    %8692 = vmatmul.f32.gmra.mxu0 %v8491
    %v8693 = vpop.f32.mrf.mxu0
    %v8694 = vadd.f32 %v8629, %v8693
    %8695 = vmatmul.f32.gmra.mxu0 %v8495
    %v8696 = vpop.f32.mrf.mxu0
    %v8697 = vadd.f32 %v8632, %v8696
    %8698 = vmatmul.f32.gmra.mxu0 %v8499
    %v8699 = vpop.f32.mrf.mxu0
    %v8700 = vadd.f32 %v8635, %v8699
    %8701 = vmatmul.f32.gmra.mxu0 %v8503
    %v8702 = vpop.f32.mrf.mxu0
    %v8703 = vadd.f32 %v8638, %v8702
    %8704 = vmatmul.f32.gmra.mxu0 %v8507
    %v8705 = vpop.f32.mrf.mxu0
    %v8706 = vadd.f32 %v8641, %v8705
    %8707 = vmatmul.f32.gmra.mxu0 %v8511
    %v8708 = vpop.f32.mrf.mxu0
    %v8709 = vadd.f32 %v8644, %v8708
    %8710 = vmatmul.f32.gmra.mxu0 %v8515
    %v8711 = vpop.f32.mrf.mxu0
    %v8712 = vadd.f32 %v8647, %v8711
    %8713 = vmatmul.f32.gmra.mxu0 %v8519
    %v8714 = vpop.f32.mrf.mxu0
    %v8715 = vadd.f32 %v8650, %v8714
    %8716 = vmatmul.f32.gmra.mxu0 %v8523
    %v8717 = vpop.f32.mrf.mxu0
    %v8718 = vadd.f32 %v8653, %v8717
    %8719 = vdwg.mxu0
    %8720 = vmatpush.msra.mxu0 %v8460
    %8721 = vmatpush.msra.mxu0 %v8459
    %8722 = vmatpush.msra.mxu0 %v8458
    %8723 = vmatpush.msra.mxu0 %v8457
    %8724 = vmatpush.msra.mxu0 %v8456
    %8725 = vmatpush.msra.mxu0 %v8455
    %8726 = vmatpush.msra.mxu0 %v8454
    %8727 = vmatpush.msra.mxu0 %v8453
    %8728 = vmatpush.msra.mxu0 %v8452
    %8729 = vmatpush.msra.mxu0 %v8451
    %8730 = vmatpush.msra.mxu0 %v8450
    %8731 = vmatpush.msra.mxu0 %v8449
    %8732 = vmatpush.msra.mxu0 %v8448
    %8733 = vmatpush.msra.mxu0 %v8447
    %8734 = vmatpush.msra.mxu0 %v8446
    %8735 = vmatpush.msra.mxu0 %v8445
    %8736 = vmatmul.f32.gmra.mxu0 %v8464
    %v8737 = vpop.f32.mrf.mxu0
    %v8738 = vadd.f32 %v8673, %v8737
    %8739 = vmatmul.f32.gmra.mxu0 %v8468
    %v8740 = vpop.f32.mrf.mxu0
    %v8741 = vadd.f32 %v8676, %v8740
    %8742 = vmatmul.f32.gmra.mxu0 %v8472
    %v8743 = vpop.f32.mrf.mxu0
    %v8744 = vadd.f32 %v8679, %v8743
    %8745 = vmatmul.f32.gmra.mxu0 %v8476
    %v8746 = vpop.f32.mrf.mxu0
    %v8747 = vadd.f32 %v8682, %v8746
    %8748 = vmatmul.f32.gmra.mxu0 %v8480
    %v8749 = vpop.f32.mrf.mxu0
    %v8750 = vadd.f32 %v8685, %v8749
    %8751 = vmatmul.f32.gmra.mxu0 %v8484
    %v8752 = vpop.f32.mrf.mxu0
    %v8753 = vadd.f32 %v8688, %v8752
    %8754 = vmatmul.f32.gmra.mxu0 %v8488
    %v8755 = vpop.f32.mrf.mxu0
    %v8756 = vadd.f32 %v8691, %v8755
    %8757 = vmatmul.f32.gmra.mxu0 %v8492
    %v8758 = vpop.f32.mrf.mxu0
    %v8759 = vadd.f32 %v8694, %v8758
    %8760 = vmatmul.f32.gmra.mxu0 %v8496
    %v8761 = vpop.f32.mrf.mxu0
    %v8762 = vadd.f32 %v8697, %v8761
    %8763 = vmatmul.f32.gmra.mxu0 %v8500
    %v8764 = vpop.f32.mrf.mxu0
    %v8765 = vadd.f32 %v8700, %v8764
    %8766 = vmatmul.f32.gmra.mxu0 %v8504
    %v8767 = vpop.f32.mrf.mxu0
    %v8768 = vadd.f32 %v8703, %v8767
    %8769 = vmatmul.f32.gmra.mxu0 %v8508
    %v8770 = vpop.f32.mrf.mxu0
    %v8771 = vadd.f32 %v8706, %v8770
    %8772 = vmatmul.f32.gmra.mxu0 %v8512
    %v8773 = vpop.f32.mrf.mxu0
    %v8774 = vadd.f32 %v8709, %v8773
    %8775 = vmatmul.f32.gmra.mxu0 %v8516
    %v8776 = vpop.f32.mrf.mxu0
    %v8777 = vadd.f32 %v8712, %v8776
    %8778 = vmatmul.f32.gmra.mxu0 %v8520
    %v8779 = vpop.f32.mrf.mxu0
    %v8780 = vadd.f32 %v8715, %v8779
    %8781 = vmatmul.f32.gmra.mxu0 %v8524
    %v8782 = vpop.f32.mrf.mxu0
    %v8783 = vadd.f32 %v8718, %v8782
    %8784 = vdwg.mxu0
    %vm8785 = vcmp.ge.f32.partialorder %v8738, 0.0
    %vm8786 = vcmp.ge.f32.partialorder %v8741, 0.0
    %vm8787 = vcmp.ge.f32.partialorder %v8744, 0.0
    %vm8788 = vcmp.ge.f32.partialorder %v8747, 0.0
    %vm8789 = vcmp.ge.f32.partialorder %v8750, 0.0
    %vm8790 = vcmp.ge.f32.partialorder %v8753, 0.0
    %vm8791 = vcmp.ge.f32.partialorder %v8756, 0.0
    %vm8792 = vcmp.ge.f32.partialorder %v8759, 0.0
    %vm8793 = vcmp.ge.f32.partialorder %v8762, 0.0
    %vm8794 = vcmp.ge.f32.partialorder %v8765, 0.0
    %vm8795 = vcmp.ge.f32.partialorder %v8768, 0.0
    %vm8796 = vcmp.ge.f32.partialorder %v8771, 0.0
    %vm8797 = vcmp.ge.f32.partialorder %v8774, 0.0
    %vm8798 = vcmp.ge.f32.partialorder %v8777, 0.0
    %vm8799 = vcmp.ge.f32.partialorder %v8780, 0.0
    %vm8800 = vcmp.ge.f32.partialorder %v8783, 0.0
    %v8801 = vmul.f32 %v8738, 0.2
    %v8802 = vmul.f32 %v8741, 0.2
    %v8803 = vmul.f32 %v8744, 0.2
    %v8804 = vmul.f32 %v8747, 0.2
    %v8805 = vmul.f32 %v8750, 0.2
    %v8806 = vmul.f32 %v8753, 0.2
    %v8807 = vmul.f32 %v8756, 0.2
    %v8808 = vmul.f32 %v8759, 0.2
    %v8809 = vmul.f32 %v8762, 0.2
    %v8810 = vmul.f32 %v8765, 0.2
    %v8811 = vmul.f32 %v8768, 0.2
    %v8812 = vmul.f32 %v8771, 0.2
    %v8813 = vmul.f32 %v8774, 0.2
    %v8814 = vmul.f32 %v8777, 0.2
    %v8815 = vmul.f32 %v8780, 0.2
    %v8816 = vmul.f32 %v8783, 0.2
    %v8817 = vsel %vm8785, %v8738, %v8801
    %v8818 = vsel %vm8786, %v8741, %v8802
    %v8819 = vsel %vm8787, %v8744, %v8803
    %v8820 = vsel %vm8788, %v8747, %v8804
    %v8821 = vsel %vm8789, %v8750, %v8805
    %v8822 = vsel %vm8790, %v8753, %v8806
    %v8823 = vsel %vm8791, %v8756, %v8807
    %v8824 = vsel %vm8792, %v8759, %v8808
    %v8825 = vsel %vm8793, %v8762, %v8809
    %v8826 = vsel %vm8794, %v8765, %v8810
    %v8827 = vsel %vm8795, %v8768, %v8811
    %v8828 = vsel %vm8796, %v8771, %v8812
    %v8829 = vsel %vm8797, %v8774, %v8813
    %v8830 = vsel %vm8798, %v8777, %v8814
    %v8831 = vsel %vm8799, %v8780, %v8815
    %v8832 = vsel %vm8800, %v8783, %v8816
    %vm8833 = vcmask 64512
    %8834 = vst.msk [vmem:[#allocation2] sm:$0xff] %vm8833, 0.0
    %vm8835 = vcmask 58368
    %8836 = vst.msk [vmem:[#allocation2 + $0x8] sm:$0x3] %vm8835, 0.0
    %8837 = vst.msk [vmem:[#allocation2 + $0x10] sm:$0xff] %vm8833, 0.0
    %8838 = vst.msk [vmem:[#allocation2 + $0x18] sm:$0x3] %vm8835, 0.0
    %8839 = vst.msk [vmem:[#allocation2 + $0x20] sm:$0xff] %vm8833, 0.0
    %8840 = vst.msk [vmem:[#allocation2 + $0x28] sm:$0x3] %vm8835, 0.0
    %8841 = vst.msk [vmem:[#allocation2 + $0x30] sm:$0xff] %vm8833, 0.0
    %8842 = vst.msk [vmem:[#allocation2 + $0x38] sm:$0x3] %vm8835, 0.0
    %8843 = vst.msk [vmem:[#allocation2 + $0x40] sm:$0xff] %vm8833, 0.0
    %8844 = vst.msk [vmem:[#allocation2 + $0x48] sm:$0x3] %vm8835, 0.0
    %8845 = vst.msk [vmem:[#allocation2 + $0x50] sm:$0xff] %vm8833, 0.0
    %8846 = vst.msk [vmem:[#allocation2 + $0x58] sm:$0x3] %vm8835, 0.0
    %8847 = vst.msk [vmem:[#allocation2 + $0x60] sm:$0xff] %vm8833, 0.0
    %8848 = vst.msk [vmem:[#allocation2 + $0x68] sm:$0x3] %vm8835, 0.0
    %8849 = vst.msk [vmem:[#allocation2 + $0x70] sm:$0xff] %vm8833, 0.0
    %8850 = vst.msk [vmem:[#allocation2 + $0x78] sm:$0x3] %vm8835, 0.0
    %8851 = vst.msk [vmem:[#allocation2 + $0x80] sm:$0xff] %vm8833, 0.0
    %8852 = vst.msk [vmem:[#allocation2 + $0x88] sm:$0x3] %vm8835, 0.0
    %8853 = vst.msk [vmem:[#allocation2 + $0x90] sm:$0xff] %vm8833, 0.0
    %8854 = vst.msk [vmem:[#allocation2 + $0x98] sm:$0x3] %vm8835, 0.0
    %8855 = vst.msk [vmem:[#allocation2 + $0xa0] sm:$0xff] %vm8833, 0.0
    %8856 = vst.msk [vmem:[#allocation2 + $0xa8] sm:$0x3] %vm8835, 0.0
    %8857 = vst.msk [vmem:[#allocation2 + $0xb0] sm:$0xff] %vm8833, 0.0
    %8858 = vst.msk [vmem:[#allocation2 + $0xb8] sm:$0x3] %vm8835, 0.0
    %8859 = vst.msk [vmem:[#allocation2 + $0xc0] sm:$0xff] %vm8833, 0.0
    %8860 = vst.msk [vmem:[#allocation2 + $0xc8] sm:$0x3] %vm8835, 0.0
    %8861 = vst.msk [vmem:[#allocation2 + $0xd0] sm:$0xff] %vm8833, 0.0
    %8862 = vst.msk [vmem:[#allocation2 + $0xd8] sm:$0x3] %vm8835, 0.0
    %8863 = vst.msk [vmem:[#allocation2 + $0xe0] sm:$0xff] %vm8833, 0.0
    %8864 = vst.msk [vmem:[#allocation2 + $0xe8] sm:$0x3] %vm8835, 0.0
    %8865 = vst.msk [vmem:[#allocation2 + $0xf0] sm:$0xff] %vm8833, 0.0
    %8866 = vst.msk [vmem:[#allocation2 + $0xf8] sm:$0x3] %vm8835, 0.0
    %8867 = vst.msk [vmem:[#allocation2 + $0x100] sm:$0xff] %vm8833, 0.0
    %8868 = vst.msk [vmem:[#allocation2 + $0x108] sm:$0x3] %vm8835, 0.0
    %8869 = vst.msk [vmem:[#allocation2 + $0x110] sm:$0xff] %vm8833, 0.0
    %8870 = vst.msk [vmem:[#allocation2 + $0x118] sm:$0x3] %vm8835, 0.0
    %8871 = vst.msk [vmem:[#allocation2 + $0x120] sm:$0xff] %vm8833, 0.0
    %8872 = vst.msk [vmem:[#allocation2 + $0x128] sm:$0x3] %vm8835, 0.0
    %8873 = vst.msk [vmem:[#allocation2 + $0x130] sm:$0xff] %vm8833, 0.0
    %8874 = vst.msk [vmem:[#allocation2 + $0x138] sm:$0x3] %vm8835, 0.0
    %s8875 = scalar_lea.vmem [#allocation2], 16
    %8876 = vst.msk [vmem:[%s8875 + $0x1] sm:$0xff] %vm8833, %v8817
    %8877 = vst.msk [vmem:[%s8875 + $0x11] sm:$0xff] %vm8833, %v8818
    %8878 = vst.msk [vmem:[%s8875 + $0x21] sm:$0xff] %vm8833, %v8819
    %8879 = vst.msk [vmem:[%s8875 + $0x31] sm:$0xff] %vm8833, %v8820
    %8880 = vst.msk [vmem:[%s8875 + $0x41] sm:$0xff] %vm8833, %v8821
    %8881 = vst.msk [vmem:[%s8875 + $0x51] sm:$0xff] %vm8833, %v8822
    %8882 = vst.msk [vmem:[%s8875 + $0x61] sm:$0xff] %vm8833, %v8823
    %8883 = vst.msk [vmem:[%s8875 + $0x71] sm:$0xff] %vm8833, %v8824
    %8884 = vst.msk [vmem:[%s8875 + $0xa1] sm:$0xff] %vm8833, %v8825
    %8885 = vst.msk [vmem:[%s8875 + $0xb1] sm:$0xff] %vm8833, %v8826
    %8886 = vst.msk [vmem:[%s8875 + $0xc1] sm:$0xff] %vm8833, %v8827
    %8887 = vst.msk [vmem:[%s8875 + $0xd1] sm:$0xff] %vm8833, %v8828
    %8888 = vst.msk [vmem:[%s8875 + $0xe1] sm:$0xff] %vm8833, %v8829
    %8889 = vst.msk [vmem:[%s8875 + $0xf1] sm:$0xff] %vm8833, %v8830
    %8890 = vst.msk [vmem:[%s8875 + $0x101] sm:$0xff] %vm8833, %v8831
    %8891 = vst.msk [vmem:[%s8875 + $0x111] sm:$0xff] %vm8833, %v8832
    %v8892 = vld [vmem:[#allocation2] sm:$0xff]
    %v8893 = vld [vmem:[#allocation2 + $0x10] sm:$0xff]
    %v8894 = vld [vmem:[#allocation2 + $0x20] sm:$0xff]
    %v8895 = vld [vmem:[#allocation2 + $0x30] sm:$0xff]
    %v8896 = vld [vmem:[#allocation2 + $0x40] sm:$0xff]
    %v8897 = vld [vmem:[#allocation2 + $0x50] sm:$0xff]
    %v8898 = vld [vmem:[#allocation2 + $0x60] sm:$0xff]
    %v8899 = vld [vmem:[#allocation2 + $0x70] sm:$0xff]
    %v8900 = vld [vmem:[#allocation2 + $0xa0] sm:$0xff]
    %v8901 = vld [vmem:[#allocation2 + $0xb0] sm:$0xff]
    %v8902 = vld [vmem:[#allocation2 + $0xc0] sm:$0xff]
    %v8903 = vld [vmem:[#allocation2 + $0xd0] sm:$0xff]
    %v8904 = vld [vmem:[#allocation2 + $0xe0] sm:$0xff]
    %v8905 = vld [vmem:[#allocation2 + $0xf0] sm:$0xff]
    %v8906 = vld [vmem:[#allocation2 + $0x100] sm:$0xff]
    %v8907 = vld [vmem:[#allocation2 + $0x110] sm:$0xff]
    %v8908 = vld [vmem:[%s3] sm:$0xff]
    %v8909 = vld [vmem:[#allocation2 + $0x1] sm:$0xff]
    %v8910 = vld [vmem:[#allocation2 + $0x11] sm:$0xff]
    %v8911 = vld [vmem:[#allocation2 + $0x21] sm:$0xff]
    %v8912 = vld [vmem:[#allocation2 + $0x31] sm:$0xff]
    %v8913 = vld [vmem:[#allocation2 + $0x41] sm:$0xff]
    %v8914 = vld [vmem:[#allocation2 + $0x51] sm:$0xff]
    %v8915 = vld [vmem:[#allocation2 + $0x61] sm:$0xff]
    %v8916 = vld [vmem:[#allocation2 + $0x71] sm:$0xff]
    %v8917 = vld [vmem:[#allocation2 + $0xa1] sm:$0xff]
    %v8918 = vld [vmem:[#allocation2 + $0xb1] sm:$0xff]
    %v8919 = vld [vmem:[#allocation2 + $0xc1] sm:$0xff]
    %v8920 = vld [vmem:[#allocation2 + $0xd1] sm:$0xff]
    %v8921 = vld [vmem:[#allocation2 + $0xe1] sm:$0xff]
    %v8922 = vld [vmem:[#allocation2 + $0xf1] sm:$0xff]
    %v8923 = vld [vmem:[#allocation2 + $0x101] sm:$0xff]
    %v8924 = vld [vmem:[#allocation2 + $0x111] sm:$0xff]
    %s8925 = scalar_lea.vmem %s3, 8
    %v8926 = vld [vmem:[%s8925] sm:$0xff]
    %v8928 = vsel %vm8833, %v8909, 0
    %v8931 = vsel %vm8833, %v8910, 0
    %v8934 = vsel %vm8833, %v8911, 0
    %v8937 = vsel %vm8833, %v8912, 0
    %v8940 = vsel %vm8833, %v8913, 0
    %v8943 = vsel %vm8833, %v8914, 0
    %v8946 = vsel %vm8833, %v8915, 0
    %v8949 = vsel %vm8833, %v8916, 0
    %v8952 = vsel %vm8833, %v8917, 0
    %v8955 = vsel %vm8833, %v8918, 0
    %v8958 = vsel %vm8833, %v8919, 0
    %v8961 = vsel %vm8833, %v8920, 0
    %v8964 = vsel %vm8833, %v8921, 0
    %v8967 = vsel %vm8833, %v8922, 0
    %v8970 = vsel %vm8833, %v8923, 0
    %v8973 = vsel %vm8833, %v8924, 0
    %8975 = vmatpush.msra.mxu0 0.0
    %8976 = vmatpush.msra.mxu0 0.0
    %8977 = vmatpush.msra.mxu0 0.0
    %8978 = vmatpush.msra.mxu0 0.0
    %8979 = vmatpush.msra.mxu0 0.0
    %8980 = vmatpush.msra.mxu0 0.0
    %8981 = vmatpush.msra.mxu0 0.0
    %8982 = vmatpush.msra.mxu0 0.0
    %8983 = vmatpush.msra.mxu0 0.0
    %8984 = vmatpush.msra.mxu0 0.0
    %8985 = vmatpush.msra.mxu0 0.0
    %8986 = vmatpush.msra.mxu0 0.0
    %8987 = vmatpush.msra.mxu0 0.0
    %8988 = vmatpush.msra.mxu0 0.0
    %8989 = vmatpush.msra.mxu0 0.0
    %8990 = vmatpush.msra.mxu0 %v8926
    %8991 = vmatmul.f32.gmra.mxu0 %v8928
    %v8992 = vpop.f32.mrf.mxu0
    %v8993 = vadd.f32 0.0, %v8992
    %8994 = vmatmul.f32.gmra.mxu0 %v8931
    %v8995 = vpop.f32.mrf.mxu0
    %v8996 = vadd.f32 0.0, %v8995
    %8997 = vmatmul.f32.gmra.mxu0 %v8934
    %v8998 = vpop.f32.mrf.mxu0
    %v8999 = vadd.f32 0.0, %v8998
    %9000 = vmatmul.f32.gmra.mxu0 %v8937
    %v9001 = vpop.f32.mrf.mxu0
    %v9002 = vadd.f32 0.0, %v9001
    %9003 = vmatmul.f32.gmra.mxu0 %v8940
    %v9004 = vpop.f32.mrf.mxu0
    %v9005 = vadd.f32 0.0, %v9004
    %9006 = vmatmul.f32.gmra.mxu0 %v8943
    %v9007 = vpop.f32.mrf.mxu0
    %v9008 = vadd.f32 0.0, %v9007
    %9009 = vmatmul.f32.gmra.mxu0 %v8946
    %v9010 = vpop.f32.mrf.mxu0
    %v9011 = vadd.f32 0.0, %v9010
    %9012 = vmatmul.f32.gmra.mxu0 %v8949
    %v9013 = vpop.f32.mrf.mxu0
    %v9014 = vadd.f32 0.0, %v9013
    %9015 = vmatmul.f32.gmra.mxu0 %v8952
    %v9016 = vpop.f32.mrf.mxu0
    %v9017 = vadd.f32 0.0, %v9016
    %9018 = vmatmul.f32.gmra.mxu0 %v8955
    %v9019 = vpop.f32.mrf.mxu0
    %v9020 = vadd.f32 0.0, %v9019
    %9021 = vmatmul.f32.gmra.mxu0 %v8958
    %v9022 = vpop.f32.mrf.mxu0
    %v9023 = vadd.f32 0.0, %v9022
    %9024 = vmatmul.f32.gmra.mxu0 %v8961
    %v9025 = vpop.f32.mrf.mxu0
    %v9026 = vadd.f32 0.0, %v9025
    %9027 = vmatmul.f32.gmra.mxu0 %v8964
    %v9028 = vpop.f32.mrf.mxu0
    %v9029 = vadd.f32 0.0, %v9028
    %9030 = vmatmul.f32.gmra.mxu0 %v8967
    %v9031 = vpop.f32.mrf.mxu0
    %v9032 = vadd.f32 0.0, %v9031
    %9033 = vmatmul.f32.gmra.mxu0 %v8970
    %v9034 = vpop.f32.mrf.mxu0
    %v9035 = vadd.f32 0.0, %v9034
    %9036 = vmatmul.f32.gmra.mxu0 %v8973
    %v9037 = vpop.f32.mrf.mxu0
    %v9038 = vadd.f32 0.0, %v9037
    %9039 = vdwg.mxu0
    %v9041 = vsel %vm8833, %v8892, 0
    %v9044 = vsel %vm8833, %v8893, 0
    %v9047 = vsel %vm8833, %v8894, 0
    %v9050 = vsel %vm8833, %v8895, 0
    %v9053 = vsel %vm8833, %v8896, 0
    %v9056 = vsel %vm8833, %v8897, 0
    %v9059 = vsel %vm8833, %v8898, 0
    %v9062 = vsel %vm8833, %v8899, 0
    %v9065 = vsel %vm8833, %v8900, 0
    %v9068 = vsel %vm8833, %v8901, 0
    %v9071 = vsel %vm8833, %v8902, 0
    %v9074 = vsel %vm8833, %v8903, 0
    %v9077 = vsel %vm8833, %v8904, 0
    %v9080 = vsel %vm8833, %v8905, 0
    %v9083 = vsel %vm8833, %v8906, 0
    %v9086 = vsel %vm8833, %v8907, 0
    %9088 = vmatpush.msra.mxu0 0.0
    %9089 = vmatpush.msra.mxu0 0.0
    %9090 = vmatpush.msra.mxu0 0.0
    %9091 = vmatpush.msra.mxu0 0.0
    %9092 = vmatpush.msra.mxu0 0.0
    %9093 = vmatpush.msra.mxu0 0.0
    %9094 = vmatpush.msra.mxu0 0.0
    %9095 = vmatpush.msra.mxu0 0.0
    %9096 = vmatpush.msra.mxu0 0.0
    %9097 = vmatpush.msra.mxu0 0.0
    %9098 = vmatpush.msra.mxu0 0.0
    %9099 = vmatpush.msra.mxu0 0.0
    %9100 = vmatpush.msra.mxu0 0.0
    %9101 = vmatpush.msra.mxu0 0.0
    %9102 = vmatpush.msra.mxu0 0.0
    %9103 = vmatpush.msra.mxu0 %v8908
    %9104 = vmatmul.f32.gmra.mxu0 %v9041
    %v9105 = vpop.f32.mrf.mxu0
    %v9106 = vadd.f32 %v8993, %v9105
    %9107 = vmatmul.f32.gmra.mxu0 %v9044
    %v9108 = vpop.f32.mrf.mxu0
    %v9109 = vadd.f32 %v8996, %v9108
    %9110 = vmatmul.f32.gmra.mxu0 %v9047
    %v9111 = vpop.f32.mrf.mxu0
    %v9112 = vadd.f32 %v8999, %v9111
    %9113 = vmatmul.f32.gmra.mxu0 %v9050
    %v9114 = vpop.f32.mrf.mxu0
    %v9115 = vadd.f32 %v9002, %v9114
    %9116 = vmatmul.f32.gmra.mxu0 %v9053
    %v9117 = vpop.f32.mrf.mxu0
    %v9118 = vadd.f32 %v9005, %v9117
    %9119 = vmatmul.f32.gmra.mxu0 %v9056
    %v9120 = vpop.f32.mrf.mxu0
    %v9121 = vadd.f32 %v9008, %v9120
    %9122 = vmatmul.f32.gmra.mxu0 %v9059
    %v9123 = vpop.f32.mrf.mxu0
    %v9124 = vadd.f32 %v9011, %v9123
    %9125 = vmatmul.f32.gmra.mxu0 %v9062
    %v9126 = vpop.f32.mrf.mxu0
    %v9127 = vadd.f32 %v9014, %v9126
    %9128 = vmatmul.f32.gmra.mxu0 %v9065
    %v9129 = vpop.f32.mrf.mxu0
    %v9130 = vadd.f32 %v9017, %v9129
    %9131 = vmatmul.f32.gmra.mxu0 %v9068
    %v9132 = vpop.f32.mrf.mxu0
    %v9133 = vadd.f32 %v9020, %v9132
    %9134 = vmatmul.f32.gmra.mxu0 %v9071
    %v9135 = vpop.f32.mrf.mxu0
    %v9136 = vadd.f32 %v9023, %v9135
    %9137 = vmatmul.f32.gmra.mxu0 %v9074
    %v9138 = vpop.f32.mrf.mxu0
    %v9139 = vadd.f32 %v9026, %v9138
    %9140 = vmatmul.f32.gmra.mxu0 %v9077
    %v9141 = vpop.f32.mrf.mxu0
    %v9142 = vadd.f32 %v9029, %v9141
    %9143 = vmatmul.f32.gmra.mxu0 %v9080
    %v9144 = vpop.f32.mrf.mxu0
    %v9145 = vadd.f32 %v9032, %v9144
    %9146 = vmatmul.f32.gmra.mxu0 %v9083
    %v9147 = vpop.f32.mrf.mxu0
    %v9148 = vadd.f32 %v9035, %v9147
    %9149 = vmatmul.f32.gmra.mxu0 %v9086
    %v9150 = vpop.f32.mrf.mxu0
    %v9151 = vadd.f32 %v9038, %v9150
    %9152 = vdwg.mxu0
    %v9153 = vld [vmem:[#allocation2 + $0x2] sm:$0xff]
    %v9154 = vld [vmem:[#allocation2 + $0x12] sm:$0xff]
    %v9155 = vld [vmem:[#allocation2 + $0x22] sm:$0xff]
    %v9156 = vld [vmem:[#allocation2 + $0x32] sm:$0xff]
    %v9157 = vld [vmem:[#allocation2 + $0x42] sm:$0xff]
    %v9158 = vld [vmem:[#allocation2 + $0x52] sm:$0xff]
    %v9159 = vld [vmem:[#allocation2 + $0x62] sm:$0xff]
    %v9160 = vld [vmem:[#allocation2 + $0x72] sm:$0xff]
    %v9161 = vld [vmem:[#allocation2 + $0xa2] sm:$0xff]
    %v9162 = vld [vmem:[#allocation2 + $0xb2] sm:$0xff]
    %v9163 = vld [vmem:[#allocation2 + $0xc2] sm:$0xff]
    %v9164 = vld [vmem:[#allocation2 + $0xd2] sm:$0xff]
    %v9165 = vld [vmem:[#allocation2 + $0xe2] sm:$0xff]
    %v9166 = vld [vmem:[#allocation2 + $0xf2] sm:$0xff]
    %v9167 = vld [vmem:[#allocation2 + $0x102] sm:$0xff]
    %v9168 = vld [vmem:[#allocation2 + $0x112] sm:$0xff]
    %s9169 = scalar_lea.vmem %s3, 16
    %v9170 = vld [vmem:[%s9169] sm:$0xff]
    %v9172 = vsel %vm8833, %v9153, 0
    %v9175 = vsel %vm8833, %v9154, 0
    %v9178 = vsel %vm8833, %v9155, 0
    %v9181 = vsel %vm8833, %v9156, 0
    %v9184 = vsel %vm8833, %v9157, 0
    %v9187 = vsel %vm8833, %v9158, 0
    %v9190 = vsel %vm8833, %v9159, 0
    %v9193 = vsel %vm8833, %v9160, 0
    %v9196 = vsel %vm8833, %v9161, 0
    %v9199 = vsel %vm8833, %v9162, 0
    %v9202 = vsel %vm8833, %v9163, 0
    %v9205 = vsel %vm8833, %v9164, 0
    %v9208 = vsel %vm8833, %v9165, 0
    %v9211 = vsel %vm8833, %v9166, 0
    %v9214 = vsel %vm8833, %v9167, 0
    %v9217 = vsel %vm8833, %v9168, 0
    %9219 = vmatpush.msra.mxu0 0.0
    %9220 = vmatpush.msra.mxu0 0.0
    %9221 = vmatpush.msra.mxu0 0.0
    %9222 = vmatpush.msra.mxu0 0.0
    %9223 = vmatpush.msra.mxu0 0.0
    %9224 = vmatpush.msra.mxu0 0.0
    %9225 = vmatpush.msra.mxu0 0.0
    %9226 = vmatpush.msra.mxu0 0.0
    %9227 = vmatpush.msra.mxu0 0.0
    %9228 = vmatpush.msra.mxu0 0.0
    %9229 = vmatpush.msra.mxu0 0.0
    %9230 = vmatpush.msra.mxu0 0.0
    %9231 = vmatpush.msra.mxu0 0.0
    %9232 = vmatpush.msra.mxu0 0.0
    %9233 = vmatpush.msra.mxu0 0.0
    %9234 = vmatpush.msra.mxu0 %v9170
    %9235 = vmatmul.f32.gmra.mxu0 %v9172
    %v9236 = vpop.f32.mrf.mxu0
    %v9237 = vadd.f32 0.0, %v9236
    %9238 = vmatmul.f32.gmra.mxu0 %v9175
    %v9239 = vpop.f32.mrf.mxu0
    %v9240 = vadd.f32 0.0, %v9239
    %9241 = vmatmul.f32.gmra.mxu0 %v9178
    %v9242 = vpop.f32.mrf.mxu0
    %v9243 = vadd.f32 0.0, %v9242
    %9244 = vmatmul.f32.gmra.mxu0 %v9181
    %v9245 = vpop.f32.mrf.mxu0
    %v9246 = vadd.f32 0.0, %v9245
    %9247 = vmatmul.f32.gmra.mxu0 %v9184
    %v9248 = vpop.f32.mrf.mxu0
    %v9249 = vadd.f32 0.0, %v9248
    %9250 = vmatmul.f32.gmra.mxu0 %v9187
    %v9251 = vpop.f32.mrf.mxu0
    %v9252 = vadd.f32 0.0, %v9251
    %9253 = vmatmul.f32.gmra.mxu0 %v9190
    %v9254 = vpop.f32.mrf.mxu0
    %v9255 = vadd.f32 0.0, %v9254
    %9256 = vmatmul.f32.gmra.mxu0 %v9193
    %v9257 = vpop.f32.mrf.mxu0
    %v9258 = vadd.f32 0.0, %v9257
    %9259 = vmatmul.f32.gmra.mxu0 %v9196
    %v9260 = vpop.f32.mrf.mxu0
    %v9261 = vadd.f32 0.0, %v9260
    %9262 = vmatmul.f32.gmra.mxu0 %v9199
    %v9263 = vpop.f32.mrf.mxu0
    %v9264 = vadd.f32 0.0, %v9263
    %9265 = vmatmul.f32.gmra.mxu0 %v9202
    %v9266 = vpop.f32.mrf.mxu0
    %v9267 = vadd.f32 0.0, %v9266
    %9268 = vmatmul.f32.gmra.mxu0 %v9205
    %v9269 = vpop.f32.mrf.mxu0
    %v9270 = vadd.f32 0.0, %v9269
    %9271 = vmatmul.f32.gmra.mxu0 %v9208
    %v9272 = vpop.f32.mrf.mxu0
    %v9273 = vadd.f32 0.0, %v9272
    %9274 = vmatmul.f32.gmra.mxu0 %v9211
    %v9275 = vpop.f32.mrf.mxu0
    %v9276 = vadd.f32 0.0, %v9275
    %9277 = vmatmul.f32.gmra.mxu0 %v9214
    %v9278 = vpop.f32.mrf.mxu0
    %v9279 = vadd.f32 0.0, %v9278
    %9280 = vmatmul.f32.gmra.mxu0 %v9217
    %v9281 = vpop.f32.mrf.mxu0
    %v9282 = vadd.f32 0.0, %v9281
    %9283 = vdwg.mxu0
    %v9284 = vadd.f32 %v9106, %v9237
    %v9285 = vadd.f32 %v9109, %v9240
    %v9286 = vadd.f32 %v9112, %v9243
    %v9287 = vadd.f32 %v9115, %v9246
    %v9288 = vadd.f32 %v9118, %v9249
    %v9289 = vadd.f32 %v9121, %v9252
    %v9290 = vadd.f32 %v9124, %v9255
    %v9291 = vadd.f32 %v9127, %v9258
    %v9292 = vadd.f32 %v9130, %v9261
    %v9293 = vadd.f32 %v9133, %v9264
    %v9294 = vadd.f32 %v9136, %v9267
    %v9295 = vadd.f32 %v9139, %v9270
    %v9296 = vadd.f32 %v9142, %v9273
    %v9297 = vadd.f32 %v9145, %v9276
    %v9298 = vadd.f32 %v9148, %v9279
    %v9299 = vadd.f32 %v9151, %v9282
    %v9300 = vld [vmem:[%s8875] sm:$0xff]
    %v9301 = vld [vmem:[%s8875 + $0x10] sm:$0xff]
    %v9302 = vld [vmem:[%s8875 + $0x20] sm:$0xff]
    %v9303 = vld [vmem:[%s8875 + $0x30] sm:$0xff]
    %v9304 = vld [vmem:[%s8875 + $0x40] sm:$0xff]
    %v9305 = vld [vmem:[%s8875 + $0x50] sm:$0xff]
    %v9306 = vld [vmem:[%s8875 + $0x60] sm:$0xff]
    %v9307 = vld [vmem:[%s8875 + $0x70] sm:$0xff]
    %v9308 = vld [vmem:[%s8875 + $0xa0] sm:$0xff]
    %v9309 = vld [vmem:[%s8875 + $0xb0] sm:$0xff]
    %v9310 = vld [vmem:[%s8875 + $0xc0] sm:$0xff]
    %v9311 = vld [vmem:[%s8875 + $0xd0] sm:$0xff]
    %v9312 = vld [vmem:[%s8875 + $0xe0] sm:$0xff]
    %v9313 = vld [vmem:[%s8875 + $0xf0] sm:$0xff]
    %v9314 = vld [vmem:[%s8875 + $0x100] sm:$0xff]
    %v9315 = vld [vmem:[%s8875 + $0x110] sm:$0xff]
    %s9316 = scalar_lea.vmem %s3, 24
    %v9317 = vld [vmem:[%s9316] sm:$0xff]
    %v9319 = vsel %vm8833, %v9300, 0
    %v9322 = vsel %vm8833, %v9301, 0
    %v9325 = vsel %vm8833, %v9302, 0
    %v9328 = vsel %vm8833, %v9303, 0
    %v9331 = vsel %vm8833, %v9304, 0
    %v9334 = vsel %vm8833, %v9305, 0
    %v9337 = vsel %vm8833, %v9306, 0
    %v9340 = vsel %vm8833, %v9307, 0
    %v9343 = vsel %vm8833, %v9308, 0
    %v9346 = vsel %vm8833, %v9309, 0
    %v9349 = vsel %vm8833, %v9310, 0
    %v9352 = vsel %vm8833, %v9311, 0
    %v9355 = vsel %vm8833, %v9312, 0
    %v9358 = vsel %vm8833, %v9313, 0
    %v9361 = vsel %vm8833, %v9314, 0
    %v9364 = vsel %vm8833, %v9315, 0
    %9366 = vmatpush.msra.mxu0 0.0
    %9367 = vmatpush.msra.mxu0 0.0
    %9368 = vmatpush.msra.mxu0 0.0
    %9369 = vmatpush.msra.mxu0 0.0
    %9370 = vmatpush.msra.mxu0 0.0
    %9371 = vmatpush.msra.mxu0 0.0
    %9372 = vmatpush.msra.mxu0 0.0
    %9373 = vmatpush.msra.mxu0 0.0
    %9374 = vmatpush.msra.mxu0 0.0
    %9375 = vmatpush.msra.mxu0 0.0
    %9376 = vmatpush.msra.mxu0 0.0
    %9377 = vmatpush.msra.mxu0 0.0
    %9378 = vmatpush.msra.mxu0 0.0
    %9379 = vmatpush.msra.mxu0 0.0
    %9380 = vmatpush.msra.mxu0 0.0
    %9381 = vmatpush.msra.mxu0 %v9317
    %9382 = vmatmul.f32.gmra.mxu0 %v9319
    %v9383 = vpop.f32.mrf.mxu0
    %v9384 = vadd.f32 0.0, %v9383
    %9385 = vmatmul.f32.gmra.mxu0 %v9322
    %v9386 = vpop.f32.mrf.mxu0
    %v9387 = vadd.f32 0.0, %v9386
    %9388 = vmatmul.f32.gmra.mxu0 %v9325
    %v9389 = vpop.f32.mrf.mxu0
    %v9390 = vadd.f32 0.0, %v9389
    %9391 = vmatmul.f32.gmra.mxu0 %v9328
    %v9392 = vpop.f32.mrf.mxu0
    %v9393 = vadd.f32 0.0, %v9392
    %9394 = vmatmul.f32.gmra.mxu0 %v9331
    %v9395 = vpop.f32.mrf.mxu0
    %v9396 = vadd.f32 0.0, %v9395
    %9397 = vmatmul.f32.gmra.mxu0 %v9334
    %v9398 = vpop.f32.mrf.mxu0
    %v9399 = vadd.f32 0.0, %v9398
    %9400 = vmatmul.f32.gmra.mxu0 %v9337
    %v9401 = vpop.f32.mrf.mxu0
    %v9402 = vadd.f32 0.0, %v9401
    %9403 = vmatmul.f32.gmra.mxu0 %v9340
    %v9404 = vpop.f32.mrf.mxu0
    %v9405 = vadd.f32 0.0, %v9404
    %9406 = vmatmul.f32.gmra.mxu0 %v9343
    %v9407 = vpop.f32.mrf.mxu0
    %v9408 = vadd.f32 0.0, %v9407
    %9409 = vmatmul.f32.gmra.mxu0 %v9346
    %v9410 = vpop.f32.mrf.mxu0
    %v9411 = vadd.f32 0.0, %v9410
    %9412 = vmatmul.f32.gmra.mxu0 %v9349
    %v9413 = vpop.f32.mrf.mxu0
    %v9414 = vadd.f32 0.0, %v9413
    %9415 = vmatmul.f32.gmra.mxu0 %v9352
    %v9416 = vpop.f32.mrf.mxu0
    %v9417 = vadd.f32 0.0, %v9416
    %9418 = vmatmul.f32.gmra.mxu0 %v9355
    %v9419 = vpop.f32.mrf.mxu0
    %v9420 = vadd.f32 0.0, %v9419
    %9421 = vmatmul.f32.gmra.mxu0 %v9358
    %v9422 = vpop.f32.mrf.mxu0
    %v9423 = vadd.f32 0.0, %v9422
    %9424 = vmatmul.f32.gmra.mxu0 %v9361
    %v9425 = vpop.f32.mrf.mxu0
    %v9426 = vadd.f32 0.0, %v9425
    %9427 = vmatmul.f32.gmra.mxu0 %v9364
    %v9428 = vpop.f32.mrf.mxu0
    %v9429 = vadd.f32 0.0, %v9428
    %9430 = vdwg.mxu0
    %v9431 = vadd.f32 %v9284, %v9384
    %v9432 = vadd.f32 %v9285, %v9387
    %v9433 = vadd.f32 %v9286, %v9390
    %v9434 = vadd.f32 %v9287, %v9393
    %v9435 = vadd.f32 %v9288, %v9396
    %v9436 = vadd.f32 %v9289, %v9399
    %v9437 = vadd.f32 %v9290, %v9402
    %v9438 = vadd.f32 %v9291, %v9405
    %v9439 = vadd.f32 %v9292, %v9408
    %v9440 = vadd.f32 %v9293, %v9411
    %v9441 = vadd.f32 %v9294, %v9414
    %v9442 = vadd.f32 %v9295, %v9417
    %v9443 = vadd.f32 %v9296, %v9420
    %v9444 = vadd.f32 %v9297, %v9423
    %v9445 = vadd.f32 %v9298, %v9426
    %v9446 = vadd.f32 %v9299, %v9429
    %v9447 = vld [vmem:[%s8875 + $0x1] sm:$0xff]
    %v9448 = vld [vmem:[%s8875 + $0x11] sm:$0xff]
    %v9449 = vld [vmem:[%s8875 + $0x21] sm:$0xff]
    %v9450 = vld [vmem:[%s8875 + $0x31] sm:$0xff]
    %v9451 = vld [vmem:[%s8875 + $0x41] sm:$0xff]
    %v9452 = vld [vmem:[%s8875 + $0x51] sm:$0xff]
    %v9453 = vld [vmem:[%s8875 + $0x61] sm:$0xff]
    %v9454 = vld [vmem:[%s8875 + $0x71] sm:$0xff]
    %v9455 = vld [vmem:[%s8875 + $0xa1] sm:$0xff]
    %v9456 = vld [vmem:[%s8875 + $0xb1] sm:$0xff]
    %v9457 = vld [vmem:[%s8875 + $0xc1] sm:$0xff]
    %v9458 = vld [vmem:[%s8875 + $0xd1] sm:$0xff]
    %v9459 = vld [vmem:[%s8875 + $0xe1] sm:$0xff]
    %v9460 = vld [vmem:[%s8875 + $0xf1] sm:$0xff]
    %v9461 = vld [vmem:[%s8875 + $0x101] sm:$0xff]
    %v9462 = vld [vmem:[%s8875 + $0x111] sm:$0xff]
    %s9463 = scalar_lea.vmem %s3, 32
    %v9464 = vld [vmem:[%s9463] sm:$0xff]
    %v9466 = vsel %vm8833, %v9447, 0
    %v9469 = vsel %vm8833, %v9448, 0
    %v9472 = vsel %vm8833, %v9449, 0
    %v9475 = vsel %vm8833, %v9450, 0
    %v9478 = vsel %vm8833, %v9451, 0
    %v9481 = vsel %vm8833, %v9452, 0
    %v9484 = vsel %vm8833, %v9453, 0
    %v9487 = vsel %vm8833, %v9454, 0
    %v9490 = vsel %vm8833, %v9455, 0
    %v9493 = vsel %vm8833, %v9456, 0
    %v9496 = vsel %vm8833, %v9457, 0
    %v9499 = vsel %vm8833, %v9458, 0
    %v9502 = vsel %vm8833, %v9459, 0
    %v9505 = vsel %vm8833, %v9460, 0
    %v9508 = vsel %vm8833, %v9461, 0
    %v9511 = vsel %vm8833, %v9462, 0
    %9513 = vmatpush.msra.mxu0 0.0
    %9514 = vmatpush.msra.mxu0 0.0
    %9515 = vmatpush.msra.mxu0 0.0
    %9516 = vmatpush.msra.mxu0 0.0
    %9517 = vmatpush.msra.mxu0 0.0
    %9518 = vmatpush.msra.mxu0 0.0
    %9519 = vmatpush.msra.mxu0 0.0
    %9520 = vmatpush.msra.mxu0 0.0
    %9521 = vmatpush.msra.mxu0 0.0
    %9522 = vmatpush.msra.mxu0 0.0
    %9523 = vmatpush.msra.mxu0 0.0
    %9524 = vmatpush.msra.mxu0 0.0
    %9525 = vmatpush.msra.mxu0 0.0
    %9526 = vmatpush.msra.mxu0 0.0
    %9527 = vmatpush.msra.mxu0 0.0
    %9528 = vmatpush.msra.mxu0 %v9464
    %9529 = vmatmul.f32.gmra.mxu0 %v9466
    %v9530 = vpop.f32.mrf.mxu0
    %v9531 = vadd.f32 0.0, %v9530
    %9532 = vmatmul.f32.gmra.mxu0 %v9469
    %v9533 = vpop.f32.mrf.mxu0
    %v9534 = vadd.f32 0.0, %v9533
    %9535 = vmatmul.f32.gmra.mxu0 %v9472
    %v9536 = vpop.f32.mrf.mxu0
    %v9537 = vadd.f32 0.0, %v9536
    %9538 = vmatmul.f32.gmra.mxu0 %v9475
    %v9539 = vpop.f32.mrf.mxu0
    %v9540 = vadd.f32 0.0, %v9539
    %9541 = vmatmul.f32.gmra.mxu0 %v9478
    %v9542 = vpop.f32.mrf.mxu0
    %v9543 = vadd.f32 0.0, %v9542
    %9544 = vmatmul.f32.gmra.mxu0 %v9481
    %v9545 = vpop.f32.mrf.mxu0
    %v9546 = vadd.f32 0.0, %v9545
    %9547 = vmatmul.f32.gmra.mxu0 %v9484
    %v9548 = vpop.f32.mrf.mxu0
    %v9549 = vadd.f32 0.0, %v9548
    %9550 = vmatmul.f32.gmra.mxu0 %v9487
    %v9551 = vpop.f32.mrf.mxu0
    %v9552 = vadd.f32 0.0, %v9551
    %9553 = vmatmul.f32.gmra.mxu0 %v9490
    %v9554 = vpop.f32.mrf.mxu0
    %v9555 = vadd.f32 0.0, %v9554
    %9556 = vmatmul.f32.gmra.mxu0 %v9493
    %v9557 = vpop.f32.mrf.mxu0
    %v9558 = vadd.f32 0.0, %v9557
    %9559 = vmatmul.f32.gmra.mxu0 %v9496
    %v9560 = vpop.f32.mrf.mxu0
    %v9561 = vadd.f32 0.0, %v9560
    %9562 = vmatmul.f32.gmra.mxu0 %v9499
    %v9563 = vpop.f32.mrf.mxu0
    %v9564 = vadd.f32 0.0, %v9563
    %9565 = vmatmul.f32.gmra.mxu0 %v9502
    %v9566 = vpop.f32.mrf.mxu0
    %v9567 = vadd.f32 0.0, %v9566
    %9568 = vmatmul.f32.gmra.mxu0 %v9505
    %v9569 = vpop.f32.mrf.mxu0
    %v9570 = vadd.f32 0.0, %v9569
    %9571 = vmatmul.f32.gmra.mxu0 %v9508
    %v9572 = vpop.f32.mrf.mxu0
    %v9573 = vadd.f32 0.0, %v9572
    %9574 = vmatmul.f32.gmra.mxu0 %v9511
    %v9575 = vpop.f32.mrf.mxu0
    %v9576 = vadd.f32 0.0, %v9575
    %9577 = vdwg.mxu0
    %v9578 = vadd.f32 %v9431, %v9531
    %v9579 = vadd.f32 %v9432, %v9534
    %v9580 = vadd.f32 %v9433, %v9537
    %v9581 = vadd.f32 %v9434, %v9540
    %v9582 = vadd.f32 %v9435, %v9543
    %v9583 = vadd.f32 %v9436, %v9546
    %v9584 = vadd.f32 %v9437, %v9549
    %v9585 = vadd.f32 %v9438, %v9552
    %v9586 = vadd.f32 %v9439, %v9555
    %v9587 = vadd.f32 %v9440, %v9558
    %v9588 = vadd.f32 %v9441, %v9561
    %v9589 = vadd.f32 %v9442, %v9564
    %v9590 = vadd.f32 %v9443, %v9567
    %v9591 = vadd.f32 %v9444, %v9570
    %v9592 = vadd.f32 %v9445, %v9573
    %v9593 = vadd.f32 %v9446, %v9576
    %v9594 = vld [vmem:[%s8875 + $0x2] sm:$0xff]
    %v9595 = vld [vmem:[%s8875 + $0x12] sm:$0xff]
    %v9596 = vld [vmem:[%s8875 + $0x22] sm:$0xff]
    %v9597 = vld [vmem:[%s8875 + $0x32] sm:$0xff]
    %v9598 = vld [vmem:[%s8875 + $0x42] sm:$0xff]
    %v9599 = vld [vmem:[%s8875 + $0x52] sm:$0xff]
    %v9600 = vld [vmem:[%s8875 + $0x62] sm:$0xff]
    %v9601 = vld [vmem:[%s8875 + $0x72] sm:$0xff]
    %v9602 = vld [vmem:[%s8875 + $0xa2] sm:$0xff]
    %v9603 = vld [vmem:[%s8875 + $0xb2] sm:$0xff]
    %v9604 = vld [vmem:[%s8875 + $0xc2] sm:$0xff]
    %v9605 = vld [vmem:[%s8875 + $0xd2] sm:$0xff]
    %v9606 = vld [vmem:[%s8875 + $0xe2] sm:$0xff]
    %v9607 = vld [vmem:[%s8875 + $0xf2] sm:$0xff]
    %v9608 = vld [vmem:[%s8875 + $0x102] sm:$0xff]
    %v9609 = vld [vmem:[%s8875 + $0x112] sm:$0xff]
    %s9610 = scalar_lea.vmem %s3, 40
    %v9611 = vld [vmem:[%s9610] sm:$0xff]
    %v9613 = vsel %vm8833, %v9594, 0
    %v9616 = vsel %vm8833, %v9595, 0
    %v9619 = vsel %vm8833, %v9596, 0
    %v9622 = vsel %vm8833, %v9597, 0
    %v9625 = vsel %vm8833, %v9598, 0
    %v9628 = vsel %vm8833, %v9599, 0
    %v9631 = vsel %vm8833, %v9600, 0
    %v9634 = vsel %vm8833, %v9601, 0
    %v9637 = vsel %vm8833, %v9602, 0
    %v9640 = vsel %vm8833, %v9603, 0
    %v9643 = vsel %vm8833, %v9604, 0
    %v9646 = vsel %vm8833, %v9605, 0
    %v9649 = vsel %vm8833, %v9606, 0
    %v9652 = vsel %vm8833, %v9607, 0
    %v9655 = vsel %vm8833, %v9608, 0
    %v9658 = vsel %vm8833, %v9609, 0
    %9660 = vmatpush.msra.mxu0 0.0
    %9661 = vmatpush.msra.mxu0 0.0
    %9662 = vmatpush.msra.mxu0 0.0
    %9663 = vmatpush.msra.mxu0 0.0
    %9664 = vmatpush.msra.mxu0 0.0
    %9665 = vmatpush.msra.mxu0 0.0
    %9666 = vmatpush.msra.mxu0 0.0
    %9667 = vmatpush.msra.mxu0 0.0
    %9668 = vmatpush.msra.mxu0 0.0
    %9669 = vmatpush.msra.mxu0 0.0
    %9670 = vmatpush.msra.mxu0 0.0
    %9671 = vmatpush.msra.mxu0 0.0
    %9672 = vmatpush.msra.mxu0 0.0
    %9673 = vmatpush.msra.mxu0 0.0
    %9674 = vmatpush.msra.mxu0 0.0
    %9675 = vmatpush.msra.mxu0 %v9611
    %9676 = vmatmul.f32.gmra.mxu0 %v9613
    %v9677 = vpop.f32.mrf.mxu0
    %v9678 = vadd.f32 0.0, %v9677
    %9679 = vmatmul.f32.gmra.mxu0 %v9616
    %v9680 = vpop.f32.mrf.mxu0
    %v9681 = vadd.f32 0.0, %v9680
    %9682 = vmatmul.f32.gmra.mxu0 %v9619
    %v9683 = vpop.f32.mrf.mxu0
    %v9684 = vadd.f32 0.0, %v9683
    %9685 = vmatmul.f32.gmra.mxu0 %v9622
    %v9686 = vpop.f32.mrf.mxu0
    %v9687 = vadd.f32 0.0, %v9686
    %9688 = vmatmul.f32.gmra.mxu0 %v9625
    %v9689 = vpop.f32.mrf.mxu0
    %v9690 = vadd.f32 0.0, %v9689
    %9691 = vmatmul.f32.gmra.mxu0 %v9628
    %v9692 = vpop.f32.mrf.mxu0
    %v9693 = vadd.f32 0.0, %v9692
    %9694 = vmatmul.f32.gmra.mxu0 %v9631
    %v9695 = vpop.f32.mrf.mxu0
    %v9696 = vadd.f32 0.0, %v9695
    %9697 = vmatmul.f32.gmra.mxu0 %v9634
    %v9698 = vpop.f32.mrf.mxu0
    %v9699 = vadd.f32 0.0, %v9698
    %9700 = vmatmul.f32.gmra.mxu0 %v9637
    %v9701 = vpop.f32.mrf.mxu0
    %v9702 = vadd.f32 0.0, %v9701
    %9703 = vmatmul.f32.gmra.mxu0 %v9640
    %v9704 = vpop.f32.mrf.mxu0
    %v9705 = vadd.f32 0.0, %v9704
    %9706 = vmatmul.f32.gmra.mxu0 %v9643
    %v9707 = vpop.f32.mrf.mxu0
    %v9708 = vadd.f32 0.0, %v9707
    %9709 = vmatmul.f32.gmra.mxu0 %v9646
    %v9710 = vpop.f32.mrf.mxu0
    %v9711 = vadd.f32 0.0, %v9710
    %9712 = vmatmul.f32.gmra.mxu0 %v9649
    %v9713 = vpop.f32.mrf.mxu0
    %v9714 = vadd.f32 0.0, %v9713
    %9715 = vmatmul.f32.gmra.mxu0 %v9652
    %v9716 = vpop.f32.mrf.mxu0
    %v9717 = vadd.f32 0.0, %v9716
    %9718 = vmatmul.f32.gmra.mxu0 %v9655
    %v9719 = vpop.f32.mrf.mxu0
    %v9720 = vadd.f32 0.0, %v9719
    %9721 = vmatmul.f32.gmra.mxu0 %v9658
    %v9722 = vpop.f32.mrf.mxu0
    %v9723 = vadd.f32 0.0, %v9722
    %9724 = vdwg.mxu0
    %v9725 = vadd.f32 %v9578, %v9678
    %v9726 = vadd.f32 %v9579, %v9681
    %v9727 = vadd.f32 %v9580, %v9684
    %v9728 = vadd.f32 %v9581, %v9687
    %v9729 = vadd.f32 %v9582, %v9690
    %v9730 = vadd.f32 %v9583, %v9693
    %v9731 = vadd.f32 %v9584, %v9696
    %v9732 = vadd.f32 %v9585, %v9699
    %v9733 = vadd.f32 %v9586, %v9702
    %v9734 = vadd.f32 %v9587, %v9705
    %v9735 = vadd.f32 %v9588, %v9708
    %v9736 = vadd.f32 %v9589, %v9711
    %v9737 = vadd.f32 %v9590, %v9714
    %v9738 = vadd.f32 %v9591, %v9717
    %v9739 = vadd.f32 %v9592, %v9720
    %v9740 = vadd.f32 %v9593, %v9723
    %s9741 = scalar_lea.vmem [#allocation2], 32
    %v9742 = vld [vmem:[%s9741] sm:$0xff]
    %v9743 = vld [vmem:[%s9741 + $0x10] sm:$0xff]
    %v9744 = vld [vmem:[%s9741 + $0x20] sm:$0xff]
    %v9745 = vld [vmem:[%s9741 + $0x30] sm:$0xff]
    %v9746 = vld [vmem:[%s9741 + $0x40] sm:$0xff]
    %v9747 = vld [vmem:[%s9741 + $0x50] sm:$0xff]
    %v9748 = vld [vmem:[%s9741 + $0x60] sm:$0xff]
    %v9749 = vld [vmem:[%s9741 + $0x70] sm:$0xff]
    %v9750 = vld [vmem:[%s9741 + $0xa0] sm:$0xff]
    %v9751 = vld [vmem:[%s9741 + $0xb0] sm:$0xff]
    %v9752 = vld [vmem:[%s9741 + $0xc0] sm:$0xff]
    %v9753 = vld [vmem:[%s9741 + $0xd0] sm:$0xff]
    %v9754 = vld [vmem:[%s9741 + $0xe0] sm:$0xff]
    %v9755 = vld [vmem:[%s9741 + $0xf0] sm:$0xff]
    %v9756 = vld [vmem:[%s9741 + $0x100] sm:$0xff]
    %v9757 = vld [vmem:[%s9741 + $0x110] sm:$0xff]
    %s9758 = scalar_lea.vmem %s3, 48
    %v9759 = vld [vmem:[%s9758] sm:$0xff]
    %v9761 = vsel %vm8833, %v9742, 0
    %v9764 = vsel %vm8833, %v9743, 0
    %v9767 = vsel %vm8833, %v9744, 0
    %v9770 = vsel %vm8833, %v9745, 0
    %v9773 = vsel %vm8833, %v9746, 0
    %v9776 = vsel %vm8833, %v9747, 0
    %v9779 = vsel %vm8833, %v9748, 0
    %v9782 = vsel %vm8833, %v9749, 0
    %v9785 = vsel %vm8833, %v9750, 0
    %v9788 = vsel %vm8833, %v9751, 0
    %v9791 = vsel %vm8833, %v9752, 0
    %v9794 = vsel %vm8833, %v9753, 0
    %v9797 = vsel %vm8833, %v9754, 0
    %v9800 = vsel %vm8833, %v9755, 0
    %v9803 = vsel %vm8833, %v9756, 0
    %v9806 = vsel %vm8833, %v9757, 0
    %9808 = vmatpush.msra.mxu0 0.0
    %9809 = vmatpush.msra.mxu0 0.0
    %9810 = vmatpush.msra.mxu0 0.0
    %9811 = vmatpush.msra.mxu0 0.0
    %9812 = vmatpush.msra.mxu0 0.0
    %9813 = vmatpush.msra.mxu0 0.0
    %9814 = vmatpush.msra.mxu0 0.0
    %9815 = vmatpush.msra.mxu0 0.0
    %9816 = vmatpush.msra.mxu0 0.0
    %9817 = vmatpush.msra.mxu0 0.0
    %9818 = vmatpush.msra.mxu0 0.0
    %9819 = vmatpush.msra.mxu0 0.0
    %9820 = vmatpush.msra.mxu0 0.0
    %9821 = vmatpush.msra.mxu0 0.0
    %9822 = vmatpush.msra.mxu0 0.0
    %9823 = vmatpush.msra.mxu0 %v9759
    %9824 = vmatmul.f32.gmra.mxu0 %v9761
    %v9825 = vpop.f32.mrf.mxu0
    %v9826 = vadd.f32 0.0, %v9825
    %9827 = vmatmul.f32.gmra.mxu0 %v9764
    %v9828 = vpop.f32.mrf.mxu0
    %v9829 = vadd.f32 0.0, %v9828
    %9830 = vmatmul.f32.gmra.mxu0 %v9767
    %v9831 = vpop.f32.mrf.mxu0
    %v9832 = vadd.f32 0.0, %v9831
    %9833 = vmatmul.f32.gmra.mxu0 %v9770
    %v9834 = vpop.f32.mrf.mxu0
    %v9835 = vadd.f32 0.0, %v9834
    %9836 = vmatmul.f32.gmra.mxu0 %v9773
    %v9837 = vpop.f32.mrf.mxu0
    %v9838 = vadd.f32 0.0, %v9837
    %9839 = vmatmul.f32.gmra.mxu0 %v9776
    %v9840 = vpop.f32.mrf.mxu0
    %v9841 = vadd.f32 0.0, %v9840
    %9842 = vmatmul.f32.gmra.mxu0 %v9779
    %v9843 = vpop.f32.mrf.mxu0
    %v9844 = vadd.f32 0.0, %v9843
    %9845 = vmatmul.f32.gmra.mxu0 %v9782
    %v9846 = vpop.f32.mrf.mxu0
    %v9847 = vadd.f32 0.0, %v9846
    %9848 = vmatmul.f32.gmra.mxu0 %v9785
    %v9849 = vpop.f32.mrf.mxu0
    %v9850 = vadd.f32 0.0, %v9849
    %9851 = vmatmul.f32.gmra.mxu0 %v9788
    %v9852 = vpop.f32.mrf.mxu0
    %v9853 = vadd.f32 0.0, %v9852
    %9854 = vmatmul.f32.gmra.mxu0 %v9791
    %v9855 = vpop.f32.mrf.mxu0
    %v9856 = vadd.f32 0.0, %v9855
    %9857 = vmatmul.f32.gmra.mxu0 %v9794
    %v9858 = vpop.f32.mrf.mxu0
    %v9859 = vadd.f32 0.0, %v9858
    %9860 = vmatmul.f32.gmra.mxu0 %v9797
    %v9861 = vpop.f32.mrf.mxu0
    %v9862 = vadd.f32 0.0, %v9861
    %9863 = vmatmul.f32.gmra.mxu0 %v9800
    %v9864 = vpop.f32.mrf.mxu0
    %v9865 = vadd.f32 0.0, %v9864
    %9866 = vmatmul.f32.gmra.mxu0 %v9803
    %v9867 = vpop.f32.mrf.mxu0
    %v9868 = vadd.f32 0.0, %v9867
    %9869 = vmatmul.f32.gmra.mxu0 %v9806
    %v9870 = vpop.f32.mrf.mxu0
    %v9871 = vadd.f32 0.0, %v9870
    %9872 = vdwg.mxu0
    %v9873 = vadd.f32 %v9725, %v9826
    %v9874 = vadd.f32 %v9726, %v9829
    %v9875 = vadd.f32 %v9727, %v9832
    %v9876 = vadd.f32 %v9728, %v9835
    %v9877 = vadd.f32 %v9729, %v9838
    %v9878 = vadd.f32 %v9730, %v9841
    %v9879 = vadd.f32 %v9731, %v9844
    %v9880 = vadd.f32 %v9732, %v9847
    %v9881 = vadd.f32 %v9733, %v9850
    %v9882 = vadd.f32 %v9734, %v9853
    %v9883 = vadd.f32 %v9735, %v9856
    %v9884 = vadd.f32 %v9736, %v9859
    %v9885 = vadd.f32 %v9737, %v9862
    %v9886 = vadd.f32 %v9738, %v9865
    %v9887 = vadd.f32 %v9739, %v9868
    %v9888 = vadd.f32 %v9740, %v9871
    %v9889 = vld [vmem:[%s9741 + $0x1] sm:$0xff]
    %v9890 = vld [vmem:[%s9741 + $0x11] sm:$0xff]
    %v9891 = vld [vmem:[%s9741 + $0x21] sm:$0xff]
    %v9892 = vld [vmem:[%s9741 + $0x31] sm:$0xff]
    %v9893 = vld [vmem:[%s9741 + $0x41] sm:$0xff]
    %v9894 = vld [vmem:[%s9741 + $0x51] sm:$0xff]
    %v9895 = vld [vmem:[%s9741 + $0x61] sm:$0xff]
    %v9896 = vld [vmem:[%s9741 + $0x71] sm:$0xff]
    %v9897 = vld [vmem:[%s9741 + $0xa1] sm:$0xff]
    %v9898 = vld [vmem:[%s9741 + $0xb1] sm:$0xff]
    %v9899 = vld [vmem:[%s9741 + $0xc1] sm:$0xff]
    %v9900 = vld [vmem:[%s9741 + $0xd1] sm:$0xff]
    %v9901 = vld [vmem:[%s9741 + $0xe1] sm:$0xff]
    %v9902 = vld [vmem:[%s9741 + $0xf1] sm:$0xff]
    %v9903 = vld [vmem:[%s9741 + $0x101] sm:$0xff]
    %v9904 = vld [vmem:[%s9741 + $0x111] sm:$0xff]
    %s9905 = scalar_lea.vmem %s3, 56
    %v9906 = vld [vmem:[%s9905] sm:$0xff]
    %v9908 = vsel %vm8833, %v9889, 0
    %v9911 = vsel %vm8833, %v9890, 0
    %v9914 = vsel %vm8833, %v9891, 0
    %v9917 = vsel %vm8833, %v9892, 0
    %v9920 = vsel %vm8833, %v9893, 0
    %v9923 = vsel %vm8833, %v9894, 0
    %v9926 = vsel %vm8833, %v9895, 0
    %v9929 = vsel %vm8833, %v9896, 0
    %v9932 = vsel %vm8833, %v9897, 0
    %v9935 = vsel %vm8833, %v9898, 0
    %v9938 = vsel %vm8833, %v9899, 0
    %v9941 = vsel %vm8833, %v9900, 0
    %v9944 = vsel %vm8833, %v9901, 0
    %v9947 = vsel %vm8833, %v9902, 0
    %v9950 = vsel %vm8833, %v9903, 0
    %v9953 = vsel %vm8833, %v9904, 0
    %9955 = vmatpush.msra.mxu0 0.0
    %9956 = vmatpush.msra.mxu0 0.0
    %9957 = vmatpush.msra.mxu0 0.0
    %9958 = vmatpush.msra.mxu0 0.0
    %9959 = vmatpush.msra.mxu0 0.0
    %9960 = vmatpush.msra.mxu0 0.0
    %9961 = vmatpush.msra.mxu0 0.0
    %9962 = vmatpush.msra.mxu0 0.0
    %9963 = vmatpush.msra.mxu0 0.0
    %9964 = vmatpush.msra.mxu0 0.0
    %9965 = vmatpush.msra.mxu0 0.0
    %9966 = vmatpush.msra.mxu0 0.0
    %9967 = vmatpush.msra.mxu0 0.0
    %9968 = vmatpush.msra.mxu0 0.0
    %9969 = vmatpush.msra.mxu0 0.0
    %9970 = vmatpush.msra.mxu0 %v9906
    %9971 = vmatmul.f32.gmra.mxu0 %v9908
    %v9972 = vpop.f32.mrf.mxu0
    %v9973 = vadd.f32 0.0, %v9972
    %9974 = vmatmul.f32.gmra.mxu0 %v9911
    %v9975 = vpop.f32.mrf.mxu0
    %v9976 = vadd.f32 0.0, %v9975
    %9977 = vmatmul.f32.gmra.mxu0 %v9914
    %v9978 = vpop.f32.mrf.mxu0
    %v9979 = vadd.f32 0.0, %v9978
    %9980 = vmatmul.f32.gmra.mxu0 %v9917
    %v9981 = vpop.f32.mrf.mxu0
    %v9982 = vadd.f32 0.0, %v9981
    %9983 = vmatmul.f32.gmra.mxu0 %v9920
    %v9984 = vpop.f32.mrf.mxu0
    %v9985 = vadd.f32 0.0, %v9984
    %9986 = vmatmul.f32.gmra.mxu0 %v9923
    %v9987 = vpop.f32.mrf.mxu0
    %v9988 = vadd.f32 0.0, %v9987
    %9989 = vmatmul.f32.gmra.mxu0 %v9926
    %v9990 = vpop.f32.mrf.mxu0
    %v9991 = vadd.f32 0.0, %v9990
    %9992 = vmatmul.f32.gmra.mxu0 %v9929
    %v9993 = vpop.f32.mrf.mxu0
    %v9994 = vadd.f32 0.0, %v9993
    %9995 = vmatmul.f32.gmra.mxu0 %v9932
    %v9996 = vpop.f32.mrf.mxu0
    %v9997 = vadd.f32 0.0, %v9996
    %9998 = vmatmul.f32.gmra.mxu0 %v9935
    %v9999 = vpop.f32.mrf.mxu0
    %v10000 = vadd.f32 0.0, %v9999
    %10001 = vmatmul.f32.gmra.mxu0 %v9938
    %v10002 = vpop.f32.mrf.mxu0
    %v10003 = vadd.f32 0.0, %v10002
    %10004 = vmatmul.f32.gmra.mxu0 %v9941
    %v10005 = vpop.f32.mrf.mxu0
    %v10006 = vadd.f32 0.0, %v10005
    %10007 = vmatmul.f32.gmra.mxu0 %v9944
    %v10008 = vpop.f32.mrf.mxu0
    %v10009 = vadd.f32 0.0, %v10008
    %10010 = vmatmul.f32.gmra.mxu0 %v9947
    %v10011 = vpop.f32.mrf.mxu0
    %v10012 = vadd.f32 0.0, %v10011
    %10013 = vmatmul.f32.gmra.mxu0 %v9950
    %v10014 = vpop.f32.mrf.mxu0
    %v10015 = vadd.f32 0.0, %v10014
    %10016 = vmatmul.f32.gmra.mxu0 %v9953
    %v10017 = vpop.f32.mrf.mxu0
    %v10018 = vadd.f32 0.0, %v10017
    %10019 = vdwg.mxu0
    %v10020 = vadd.f32 %v9873, %v9973
    %v10021 = vadd.f32 %v9874, %v9976
    %v10022 = vadd.f32 %v9875, %v9979
    %v10023 = vadd.f32 %v9876, %v9982
    %v10024 = vadd.f32 %v9877, %v9985
    %v10025 = vadd.f32 %v9878, %v9988
    %v10026 = vadd.f32 %v9879, %v9991
    %v10027 = vadd.f32 %v9880, %v9994
    %v10028 = vadd.f32 %v9881, %v9997
    %v10029 = vadd.f32 %v9882, %v10000
    %v10030 = vadd.f32 %v9883, %v10003
    %v10031 = vadd.f32 %v9884, %v10006
    %v10032 = vadd.f32 %v9885, %v10009
    %v10033 = vadd.f32 %v9886, %v10012
    %v10034 = vadd.f32 %v9887, %v10015
    %v10035 = vadd.f32 %v9888, %v10018
    %v10036 = vld [vmem:[%s9741 + $0x2] sm:$0xff]
    %v10037 = vld [vmem:[%s9741 + $0x12] sm:$0xff]
    %v10038 = vld [vmem:[%s9741 + $0x22] sm:$0xff]
    %v10039 = vld [vmem:[%s9741 + $0x32] sm:$0xff]
    %v10040 = vld [vmem:[%s9741 + $0x42] sm:$0xff]
    %v10041 = vld [vmem:[%s9741 + $0x52] sm:$0xff]
    %v10042 = vld [vmem:[%s9741 + $0x62] sm:$0xff]
    %v10043 = vld [vmem:[%s9741 + $0x72] sm:$0xff]
    %v10044 = vld [vmem:[%s9741 + $0xa2] sm:$0xff]
    %v10045 = vld [vmem:[%s9741 + $0xb2] sm:$0xff]
    %v10046 = vld [vmem:[%s9741 + $0xc2] sm:$0xff]
    %v10047 = vld [vmem:[%s9741 + $0xd2] sm:$0xff]
    %v10048 = vld [vmem:[%s9741 + $0xe2] sm:$0xff]
    %v10049 = vld [vmem:[%s9741 + $0xf2] sm:$0xff]
    %v10050 = vld [vmem:[%s9741 + $0x102] sm:$0xff]
    %v10051 = vld [vmem:[%s9741 + $0x112] sm:$0xff]
    %s10052 = scalar_lea.vmem %s3, 64
    %v10053 = vld [vmem:[%s10052] sm:$0xff]
    %v10055 = vsel %vm8833, %v10036, 0
    %v10058 = vsel %vm8833, %v10037, 0
    %v10061 = vsel %vm8833, %v10038, 0
    %v10064 = vsel %vm8833, %v10039, 0
    %v10067 = vsel %vm8833, %v10040, 0
    %v10070 = vsel %vm8833, %v10041, 0
    %v10073 = vsel %vm8833, %v10042, 0
    %v10076 = vsel %vm8833, %v10043, 0
    %v10079 = vsel %vm8833, %v10044, 0
    %v10082 = vsel %vm8833, %v10045, 0
    %v10085 = vsel %vm8833, %v10046, 0
    %v10088 = vsel %vm8833, %v10047, 0
    %v10091 = vsel %vm8833, %v10048, 0
    %v10094 = vsel %vm8833, %v10049, 0
    %v10097 = vsel %vm8833, %v10050, 0
    %v10100 = vsel %vm8833, %v10051, 0
    %10102 = vmatpush.msra.mxu0 0.0
    %10103 = vmatpush.msra.mxu0 0.0
    %10104 = vmatpush.msra.mxu0 0.0
    %10105 = vmatpush.msra.mxu0 0.0
    %10106 = vmatpush.msra.mxu0 0.0
    %10107 = vmatpush.msra.mxu0 0.0
    %10108 = vmatpush.msra.mxu0 0.0
    %10109 = vmatpush.msra.mxu0 0.0
    %10110 = vmatpush.msra.mxu0 0.0
    %10111 = vmatpush.msra.mxu0 0.0
    %10112 = vmatpush.msra.mxu0 0.0
    %10113 = vmatpush.msra.mxu0 0.0
    %10114 = vmatpush.msra.mxu0 0.0
    %10115 = vmatpush.msra.mxu0 0.0
    %10116 = vmatpush.msra.mxu0 0.0
    %10117 = vmatpush.msra.mxu0 %v10053
    %10118 = vmatmul.f32.gmra.mxu0 %v10055
    %v10119 = vpop.f32.mrf.mxu0
    %v10120 = vadd.f32 0.0, %v10119
    %10121 = vmatmul.f32.gmra.mxu0 %v10058
    %v10122 = vpop.f32.mrf.mxu0
    %v10123 = vadd.f32 0.0, %v10122
    %10124 = vmatmul.f32.gmra.mxu0 %v10061
    %v10125 = vpop.f32.mrf.mxu0
    %v10126 = vadd.f32 0.0, %v10125
    %10127 = vmatmul.f32.gmra.mxu0 %v10064
    %v10128 = vpop.f32.mrf.mxu0
    %v10129 = vadd.f32 0.0, %v10128
    %10130 = vmatmul.f32.gmra.mxu0 %v10067
    %v10131 = vpop.f32.mrf.mxu0
    %v10132 = vadd.f32 0.0, %v10131
    %10133 = vmatmul.f32.gmra.mxu0 %v10070
    %v10134 = vpop.f32.mrf.mxu0
    %v10135 = vadd.f32 0.0, %v10134
    %10136 = vmatmul.f32.gmra.mxu0 %v10073
    %v10137 = vpop.f32.mrf.mxu0
    %v10138 = vadd.f32 0.0, %v10137
    %10139 = vmatmul.f32.gmra.mxu0 %v10076
    %v10140 = vpop.f32.mrf.mxu0
    %v10141 = vadd.f32 0.0, %v10140
    %10142 = vmatmul.f32.gmra.mxu0 %v10079
    %v10143 = vpop.f32.mrf.mxu0
    %v10144 = vadd.f32 0.0, %v10143
    %10145 = vmatmul.f32.gmra.mxu0 %v10082
    %v10146 = vpop.f32.mrf.mxu0
    %v10147 = vadd.f32 0.0, %v10146
    %10148 = vmatmul.f32.gmra.mxu0 %v10085
    %v10149 = vpop.f32.mrf.mxu0
    %v10150 = vadd.f32 0.0, %v10149
    %10151 = vmatmul.f32.gmra.mxu0 %v10088
    %v10152 = vpop.f32.mrf.mxu0
    %v10153 = vadd.f32 0.0, %v10152
    %10154 = vmatmul.f32.gmra.mxu0 %v10091
    %v10155 = vpop.f32.mrf.mxu0
    %v10156 = vadd.f32 0.0, %v10155
    %10157 = vmatmul.f32.gmra.mxu0 %v10094
    %v10158 = vpop.f32.mrf.mxu0
    %v10159 = vadd.f32 0.0, %v10158
    %10160 = vmatmul.f32.gmra.mxu0 %v10097
    %v10161 = vpop.f32.mrf.mxu0
    %v10162 = vadd.f32 0.0, %v10161
    %10163 = vmatmul.f32.gmra.mxu0 %v10100
    %v10164 = vpop.f32.mrf.mxu0
    %v10165 = vadd.f32 0.0, %v10164
    %10166 = vdwg.mxu0
    %v10167 = vadd.f32 %v10020, %v10120
    %v10168 = vadd.f32 %v10021, %v10123
    %v10169 = vadd.f32 %v10022, %v10126
    %v10170 = vadd.f32 %v10023, %v10129
    %v10171 = vadd.f32 %v10024, %v10132
    %v10172 = vadd.f32 %v10025, %v10135
    %v10173 = vadd.f32 %v10026, %v10138
    %v10174 = vadd.f32 %v10027, %v10141
    %v10175 = vadd.f32 %v10028, %v10144
    %v10176 = vadd.f32 %v10029, %v10147
    %v10177 = vadd.f32 %v10030, %v10150
    %v10178 = vadd.f32 %v10031, %v10153
    %v10179 = vadd.f32 %v10032, %v10156
    %v10180 = vadd.f32 %v10033, %v10159
    %v10181 = vadd.f32 %v10034, %v10162
    %v10182 = vadd.f32 %v10035, %v10165
    %v10183 = vsel %vm8833, %v10167, 0.0
    %v10184 = vsel %vm8833, %v10168, 0.0
    %v10185 = vadd.f32 %v10183, %v10184
    %v10186 = vsel %vm8833, %v10169, 0.0
    %v10187 = vadd.f32 %v10185, %v10186
    %v10188 = vsel %vm8833, %v10170, 0.0
    %v10189 = vadd.f32 %v10187, %v10188
    %v10190 = vsel %vm8833, %v10171, 0.0
    %v10191 = vadd.f32 %v10189, %v10190
    %v10192 = vsel %vm8833, %v10172, 0.0
    %v10193 = vadd.f32 %v10191, %v10192
    %v10194 = vsel %vm8833, %v10173, 0.0
    %v10195 = vadd.f32 %v10193, %v10194
    %v10196 = vsel %vm8833, %v10174, 0.0
    %v10197 = vadd.f32 %v10195, %v10196
    %v10198 = vsel %vm8833, %v10175, 0.0
    %v10199 = vadd.f32 %v10197, %v10198
    %v10200 = vsel %vm8833, %v10176, 0.0
    %v10201 = vadd.f32 %v10199, %v10200
    %v10202 = vsel %vm8833, %v10177, 0.0
    %v10203 = vadd.f32 %v10201, %v10202
    %v10204 = vsel %vm8833, %v10178, 0.0
    %v10205 = vadd.f32 %v10203, %v10204
    %v10206 = vsel %vm8833, %v10179, 0.0
    %v10207 = vadd.f32 %v10205, %v10206
    %v10208 = vsel %vm8833, %v10180, 0.0
    %v10209 = vadd.f32 %v10207, %v10208
    %v10210 = vsel %vm8833, %v10181, 0.0
    %v10211 = vadd.f32 %v10209, %v10210
    %v10212 = vsel %vm8833, %v10182, 0.0
    %v10213 = vadd.f32 %v10211, %v10212
    %v10214 = vrot.slane %v10213, 4
    %v10215 = vadd.f32 %v10213, %v10214
    %v10216 = vrot.slane %v10215, 2
    %v10217 = vadd.f32 %v10215, %v10216
    %v10218 = vrot.slane %v10217, 1
    %v10219 = vadd.f32 %v10217, %v10218
    %v10220 = vrcp.pop 128.0
    %v10221 = vmul.f32 128.0, %v10220
    %v10222 = vsub.f32 1.0, %v10221
    %v10223 = vmul.f32 %v10220, %v10222
    %v10224 = vadd.f32 %v10220, %v10223
    %vm10225 = vweird.f32 %v10220
    %v10226 = vsel %vm10225, %v10220, %v10224
    %v10227 = vmul.f32 %v10219, %v10226
    %v10228 = vsub.f32 %v10167, %v10227
    %v10229 = vsub.f32 %v10168, %v10227
    %v10230 = vsub.f32 %v10169, %v10227
    %v10231 = vsub.f32 %v10170, %v10227
    %v10232 = vsub.f32 %v10171, %v10227
    %v10233 = vsub.f32 %v10172, %v10227
    %v10234 = vsub.f32 %v10173, %v10227
    %v10235 = vsub.f32 %v10174, %v10227
    %v10236 = vsub.f32 %v10175, %v10227
    %v10237 = vsub.f32 %v10176, %v10227
    %v10238 = vsub.f32 %v10177, %v10227
    %v10239 = vsub.f32 %v10178, %v10227
    %v10240 = vsub.f32 %v10179, %v10227
    %v10241 = vsub.f32 %v10180, %v10227
    %v10242 = vsub.f32 %v10181, %v10227
    %v10243 = vsub.f32 %v10182, %v10227
    %v10244 = vmul.f32 %v10228, %v10228
    %v10245 = vmul.f32 %v10229, %v10229
    %v10246 = vmul.f32 %v10230, %v10230
    %v10247 = vmul.f32 %v10231, %v10231
    %v10248 = vmul.f32 %v10232, %v10232
    %v10249 = vmul.f32 %v10233, %v10233
    %v10250 = vmul.f32 %v10234, %v10234
    %v10251 = vmul.f32 %v10235, %v10235
    %v10252 = vmul.f32 %v10236, %v10236
    %v10253 = vmul.f32 %v10237, %v10237
    %v10254 = vmul.f32 %v10238, %v10238
    %v10255 = vmul.f32 %v10239, %v10239
    %v10256 = vmul.f32 %v10240, %v10240
    %v10257 = vmul.f32 %v10241, %v10241
    %v10258 = vmul.f32 %v10242, %v10242
    %v10259 = vmul.f32 %v10243, %v10243
    %v10260 = vsel %vm8833, %v10244, 0.0
    %v10261 = vsel %vm8833, %v10245, 0.0
    %v10262 = vadd.f32 %v10260, %v10261
    %v10263 = vsel %vm8833, %v10246, 0.0
    %v10264 = vadd.f32 %v10262, %v10263
    %v10265 = vsel %vm8833, %v10247, 0.0
    %v10266 = vadd.f32 %v10264, %v10265
    %v10267 = vsel %vm8833, %v10248, 0.0
    %v10268 = vadd.f32 %v10266, %v10267
    %v10269 = vsel %vm8833, %v10249, 0.0
    %v10270 = vadd.f32 %v10268, %v10269
    %v10271 = vsel %vm8833, %v10250, 0.0
    %v10272 = vadd.f32 %v10270, %v10271
    %v10273 = vsel %vm8833, %v10251, 0.0
    %v10274 = vadd.f32 %v10272, %v10273
    %v10275 = vsel %vm8833, %v10252, 0.0
    %v10276 = vadd.f32 %v10274, %v10275
    %v10277 = vsel %vm8833, %v10253, 0.0
    %v10278 = vadd.f32 %v10276, %v10277
    %v10279 = vsel %vm8833, %v10254, 0.0
    %v10280 = vadd.f32 %v10278, %v10279
    %v10281 = vsel %vm8833, %v10255, 0.0
    %v10282 = vadd.f32 %v10280, %v10281
    %v10283 = vsel %vm8833, %v10256, 0.0
    %v10284 = vadd.f32 %v10282, %v10283
    %v10285 = vsel %vm8833, %v10257, 0.0
    %v10286 = vadd.f32 %v10284, %v10285
    %v10287 = vsel %vm8833, %v10258, 0.0
    %v10288 = vadd.f32 %v10286, %v10287
    %v10289 = vsel %vm8833, %v10259, 0.0
    %v10290 = vadd.f32 %v10288, %v10289
    %v10291 = vrot.slane %v10290, 4
    %v10292 = vadd.f32 %v10290, %v10291
    %v10293 = vrot.slane %v10292, 2
    %v10294 = vadd.f32 %v10292, %v10293
    %v10295 = vrot.slane %v10294, 1
    %v10296 = vadd.f32 %v10294, %v10295
    %v10297 = vmul.f32 %v10296, %v10226
    %v10298 = vadd.f32 %v10297, 1e-05
    %v10299 = vrsqrt.pop %v10298
    %v10300 = vmul.f32 %v10299, %v10298
    %v10301 = vmul.f32 %v10300, %v10299
    %v10302 = vmul.f32 0.5, %v10301
    %v10303 = vsub.f32 1.5, %v10302
    %v10304 = vmul.f32 %v10299, %v10303
    %vm10305 = vweird.f32 %v10298
    %vm10306 = vweird.f32 %v10299
    %vm10307 = vmor %vm10305, %vm10306
    %v10308 = vsel %vm10307, %v10299, %v10304
    %v10309 = vmul.f32 %v10228, %v10308
    %v10310 = vmul.f32 %v10229, %v10308
    %v10311 = vmul.f32 %v10230, %v10308
    %v10312 = vmul.f32 %v10231, %v10308
    %v10313 = vmul.f32 %v10232, %v10308
    %v10314 = vmul.f32 %v10233, %v10308
    %v10315 = vmul.f32 %v10234, %v10308
    %v10316 = vmul.f32 %v10235, %v10308
    %v10317 = vmul.f32 %v10236, %v10308
    %v10318 = vmul.f32 %v10237, %v10308
    %v10319 = vmul.f32 %v10238, %v10308
    %v10320 = vmul.f32 %v10239, %v10308
    %v10321 = vmul.f32 %v10240, %v10308
    %v10322 = vmul.f32 %v10241, %v10308
    %v10323 = vmul.f32 %v10242, %v10308
    %v10324 = vmul.f32 %v10243, %v10308
    %v10325 = vld [vmem:[%s4] sm:$0x1]
    %v10327 = vperm.slane %v10325, 0
    %v10329 = vmul.f32 %v10309, %v10327
    %v10330 = vmul.f32 %v10310, %v10327
    %v10331 = vmul.f32 %v10311, %v10327
    %v10332 = vmul.f32 %v10312, %v10327
    %v10333 = vmul.f32 %v10313, %v10327
    %v10334 = vmul.f32 %v10314, %v10327
    %v10335 = vmul.f32 %v10315, %v10327
    %v10336 = vmul.f32 %v10316, %v10327
    %v10337 = vmul.f32 %v10317, %v10327
    %v10338 = vmul.f32 %v10318, %v10327
    %v10339 = vmul.f32 %v10319, %v10327
    %v10340 = vmul.f32 %v10320, %v10327
    %v10341 = vmul.f32 %v10321, %v10327
    %v10342 = vmul.f32 %v10322, %v10327
    %v10343 = vmul.f32 %v10323, %v10327
    %v10344 = vmul.f32 %v10324, %v10327
    %v10345 = vld [vmem:[%s5] sm:$0x1]
    %v10347 = vperm.slane %v10345, 0
    %v10349 = vadd.f32 %v10329, %v10347
    %v10350 = vadd.f32 %v10330, %v10347
    %v10351 = vadd.f32 %v10331, %v10347
    %v10352 = vadd.f32 %v10332, %v10347
    %v10353 = vadd.f32 %v10333, %v10347
    %v10354 = vadd.f32 %v10334, %v10347
    %v10355 = vadd.f32 %v10335, %v10347
    %v10356 = vadd.f32 %v10336, %v10347
    %v10357 = vadd.f32 %v10337, %v10347
    %v10358 = vadd.f32 %v10338, %v10347
    %v10359 = vadd.f32 %v10339, %v10347
    %v10360 = vadd.f32 %v10340, %v10347
    %v10361 = vadd.f32 %v10341, %v10347
    %v10362 = vadd.f32 %v10342, %v10347
    %v10363 = vadd.f32 %v10343, %v10347
    %v10364 = vadd.f32 %v10344, %v10347
    %vm10365 = vcmp.ge.f32.partialorder %v10349, 0.0
    %vm10366 = vcmp.ge.f32.partialorder %v10350, 0.0
    %vm10367 = vcmp.ge.f32.partialorder %v10351, 0.0
    %vm10368 = vcmp.ge.f32.partialorder %v10352, 0.0
    %vm10369 = vcmp.ge.f32.partialorder %v10353, 0.0
    %vm10370 = vcmp.ge.f32.partialorder %v10354, 0.0
    %vm10371 = vcmp.ge.f32.partialorder %v10355, 0.0
    %vm10372 = vcmp.ge.f32.partialorder %v10356, 0.0
    %vm10373 = vcmp.ge.f32.partialorder %v10357, 0.0
    %vm10374 = vcmp.ge.f32.partialorder %v10358, 0.0
    %vm10375 = vcmp.ge.f32.partialorder %v10359, 0.0
    %vm10376 = vcmp.ge.f32.partialorder %v10360, 0.0
    %vm10377 = vcmp.ge.f32.partialorder %v10361, 0.0
    %vm10378 = vcmp.ge.f32.partialorder %v10362, 0.0
    %vm10379 = vcmp.ge.f32.partialorder %v10363, 0.0
    %vm10380 = vcmp.ge.f32.partialorder %v10364, 0.0
    %v10381 = vmul.f32 %v10349, 0.2
    %v10382 = vmul.f32 %v10350, 0.2
    %v10383 = vmul.f32 %v10351, 0.2
    %v10384 = vmul.f32 %v10352, 0.2
    %v10385 = vmul.f32 %v10353, 0.2
    %v10386 = vmul.f32 %v10354, 0.2
    %v10387 = vmul.f32 %v10355, 0.2
    %v10388 = vmul.f32 %v10356, 0.2
    %v10389 = vmul.f32 %v10357, 0.2
    %v10390 = vmul.f32 %v10358, 0.2
    %v10391 = vmul.f32 %v10359, 0.2
    %v10392 = vmul.f32 %v10360, 0.2
    %v10393 = vmul.f32 %v10361, 0.2
    %v10394 = vmul.f32 %v10362, 0.2
    %v10395 = vmul.f32 %v10363, 0.2
    %v10396 = vmul.f32 %v10364, 0.2
    %v10397 = vsel %vm10365, %v10349, %v10381
    %v10398 = vsel %vm10366, %v10350, %v10382
    %v10399 = vsel %vm10367, %v10351, %v10383
    %v10400 = vsel %vm10368, %v10352, %v10384
    %v10401 = vsel %vm10369, %v10353, %v10385
    %v10402 = vsel %vm10370, %v10354, %v10386
    %v10403 = vsel %vm10371, %v10355, %v10387
    %v10404 = vsel %vm10372, %v10356, %v10388
    %v10405 = vsel %vm10373, %v10357, %v10389
    %v10406 = vsel %vm10374, %v10358, %v10390
    %v10407 = vsel %vm10375, %v10359, %v10391
    %v10408 = vsel %vm10376, %v10360, %v10392
    %v10409 = vsel %vm10377, %v10361, %v10393
    %v10410 = vsel %vm10378, %v10362, %v10394
    %v10411 = vsel %vm10379, %v10363, %v10395
    %v10412 = vsel %vm10380, %v10364, %v10396
    %10413 = vst.msk [vmem:[#allocation3] sm:$0xff] %vm8833, 0.0
    %vm10414 = vcmask 59392
    %10415 = vst.msk [vmem:[#allocation3 + $0x8] sm:$0x7] %vm10414, 0.0
    %10416 = vst.msk [vmem:[#allocation3 + $0x10] sm:$0xff] %vm8833, 0.0
    %10417 = vst.msk [vmem:[#allocation3 + $0x18] sm:$0x7] %vm10414, 0.0
    %10418 = vst.msk [vmem:[#allocation3 + $0x20] sm:$0xff] %vm8833, 0.0
    %10419 = vst.msk [vmem:[#allocation3 + $0x28] sm:$0x7] %vm10414, 0.0
    %10420 = vst.msk [vmem:[#allocation3 + $0x30] sm:$0xff] %vm8833, 0.0
    %10421 = vst.msk [vmem:[#allocation3 + $0x38] sm:$0x7] %vm10414, 0.0
    %10422 = vst.msk [vmem:[#allocation3 + $0x40] sm:$0xff] %vm8833, 0.0
    %10423 = vst.msk [vmem:[#allocation3 + $0x48] sm:$0x7] %vm10414, 0.0
    %10424 = vst.msk [vmem:[#allocation3 + $0x50] sm:$0xff] %vm8833, 0.0
    %10425 = vst.msk [vmem:[#allocation3 + $0x58] sm:$0x7] %vm10414, 0.0
    %10426 = vst.msk [vmem:[#allocation3 + $0x60] sm:$0xff] %vm8833, 0.0
    %10427 = vst.msk [vmem:[#allocation3 + $0x68] sm:$0x7] %vm10414, 0.0
    %10428 = vst.msk [vmem:[#allocation3 + $0x70] sm:$0xff] %vm8833, 0.0
    %10429 = vst.msk [vmem:[#allocation3 + $0x78] sm:$0x7] %vm10414, 0.0
    %10430 = vst.msk [vmem:[#allocation3 + $0x80] sm:$0xff] %vm8833, 0.0
    %10431 = vst.msk [vmem:[#allocation3 + $0x88] sm:$0x7] %vm10414, 0.0
    %10432 = vst.msk [vmem:[#allocation3 + $0x90] sm:$0xff] %vm8833, 0.0
    %10433 = vst.msk [vmem:[#allocation3 + $0x98] sm:$0x7] %vm10414, 0.0
    %10434 = vst.msk [vmem:[#allocation3 + $0xa0] sm:$0xff] %vm8833, 0.0
    %10435 = vst.msk [vmem:[#allocation3 + $0xa8] sm:$0x7] %vm10414, 0.0
    %10436 = vst.msk [vmem:[#allocation3 + $0xb0] sm:$0xff] %vm8833, 0.0
    %10437 = vst.msk [vmem:[#allocation3 + $0xb8] sm:$0x7] %vm10414, 0.0
    %10438 = vst.msk [vmem:[#allocation3 + $0xc0] sm:$0xff] %vm8833, 0.0
    %10439 = vst.msk [vmem:[#allocation3 + $0xc8] sm:$0x7] %vm10414, 0.0
    %10440 = vst.msk [vmem:[#allocation3 + $0xd0] sm:$0xff] %vm8833, 0.0
    %10441 = vst.msk [vmem:[#allocation3 + $0xd8] sm:$0x7] %vm10414, 0.0
    %10442 = vst.msk [vmem:[#allocation3 + $0xe0] sm:$0xff] %vm8833, 0.0
    %10443 = vst.msk [vmem:[#allocation3 + $0xe8] sm:$0x7] %vm10414, 0.0
    %10444 = vst.msk [vmem:[#allocation3 + $0xf0] sm:$0xff] %vm8833, 0.0
    %10445 = vst.msk [vmem:[#allocation3 + $0xf8] sm:$0x7] %vm10414, 0.0
    %10446 = vst.msk [vmem:[#allocation3 + $0x100] sm:$0xff] %vm8833, 0.0
    %10447 = vst.msk [vmem:[#allocation3 + $0x108] sm:$0x7] %vm10414, 0.0
    %10448 = vst.msk [vmem:[#allocation3 + $0x110] sm:$0xff] %vm8833, 0.0
    %10449 = vst.msk [vmem:[#allocation3 + $0x118] sm:$0x7] %vm10414, 0.0
    %10450 = vst.msk [vmem:[#allocation3 + $0x120] sm:$0xff] %vm8833, 0.0
    %10451 = vst.msk [vmem:[#allocation3 + $0x128] sm:$0x7] %vm10414, 0.0
    %10452 = vst.msk [vmem:[#allocation3 + $0x130] sm:$0xff] %vm8833, 0.0
    %10453 = vst.msk [vmem:[#allocation3 + $0x138] sm:$0x7] %vm10414, 0.0
    %10454 = vst.msk [vmem:[#allocation3 + $0x140] sm:$0xff] %vm8833, 0.0
    %10455 = vst.msk [vmem:[#allocation3 + $0x148] sm:$0x7] %vm10414, 0.0
    %10456 = vst.msk [vmem:[#allocation3 + $0x150] sm:$0xff] %vm8833, 0.0
    %10457 = vst.msk [vmem:[#allocation3 + $0x158] sm:$0x7] %vm10414, 0.0
    %s10458 = scalar_lea.vmem [#allocation3], 16
    %10459 = vst.msk [vmem:[%s10458 + $0x1] sm:$0xff] %vm8833, %v10397
    %10460 = vst.msk [vmem:[%s10458 + $0x11] sm:$0xff] %vm8833, %v10398
    %10461 = vst.msk [vmem:[%s10458 + $0x21] sm:$0xff] %vm8833, %v10399
    %10462 = vst.msk [vmem:[%s10458 + $0x31] sm:$0xff] %vm8833, %v10400
    %10463 = vst.msk [vmem:[%s10458 + $0x41] sm:$0xff] %vm8833, %v10401
    %10464 = vst.msk [vmem:[%s10458 + $0x51] sm:$0xff] %vm8833, %v10402
    %10465 = vst.msk [vmem:[%s10458 + $0x61] sm:$0xff] %vm8833, %v10403
    %10466 = vst.msk [vmem:[%s10458 + $0x71] sm:$0xff] %vm8833, %v10404
    %10467 = vst.msk [vmem:[%s10458 + $0xb1] sm:$0xff] %vm8833, %v10405
    %10468 = vst.msk [vmem:[%s10458 + $0xc1] sm:$0xff] %vm8833, %v10406
    %10469 = vst.msk [vmem:[%s10458 + $0xd1] sm:$0xff] %vm8833, %v10407
    %10470 = vst.msk [vmem:[%s10458 + $0xe1] sm:$0xff] %vm8833, %v10408
    %10471 = vst.msk [vmem:[%s10458 + $0xf1] sm:$0xff] %vm8833, %v10409
    %10472 = vst.msk [vmem:[%s10458 + $0x101] sm:$0xff] %vm8833, %v10410
    %10473 = vst.msk [vmem:[%s10458 + $0x111] sm:$0xff] %vm8833, %v10411
    %10474 = vst.msk [vmem:[%s10458 + $0x121] sm:$0xff] %vm8833, %v10412
    %v10475 = vld [vmem:[#allocation3] sm:$0xff]
    %v10476 = vld [vmem:[#allocation3 + $0x10] sm:$0xff]
    %v10477 = vld [vmem:[#allocation3 + $0x20] sm:$0xff]
    %v10478 = vld [vmem:[#allocation3 + $0x30] sm:$0xff]
    %v10479 = vld [vmem:[#allocation3 + $0x40] sm:$0xff]
    %v10480 = vld [vmem:[#allocation3 + $0x50] sm:$0xff]
    %v10481 = vld [vmem:[#allocation3 + $0x60] sm:$0xff]
    %v10482 = vld [vmem:[#allocation3 + $0x70] sm:$0xff]
    %v10483 = vld [vmem:[#allocation3 + $0xb0] sm:$0xff]
    %v10484 = vld [vmem:[#allocation3 + $0xc0] sm:$0xff]
    %v10485 = vld [vmem:[#allocation3 + $0xd0] sm:$0xff]
    %v10486 = vld [vmem:[#allocation3 + $0xe0] sm:$0xff]
    %v10487 = vld [vmem:[#allocation3 + $0xf0] sm:$0xff]
    %v10488 = vld [vmem:[#allocation3 + $0x100] sm:$0xff]
    %v10489 = vld [vmem:[#allocation3 + $0x110] sm:$0xff]
    %v10490 = vld [vmem:[#allocation3 + $0x120] sm:$0xff]
    %v10491 = vld [vmem:[%s6] sm:$0xff]
    %v10492 = vld [vmem:[#allocation3 + $0x1] sm:$0xff]
    %v10493 = vld [vmem:[#allocation3 + $0x11] sm:$0xff]
    %v10494 = vld [vmem:[#allocation3 + $0x21] sm:$0xff]
    %v10495 = vld [vmem:[#allocation3 + $0x31] sm:$0xff]
    %v10496 = vld [vmem:[#allocation3 + $0x41] sm:$0xff]
    %v10497 = vld [vmem:[#allocation3 + $0x51] sm:$0xff]
    %v10498 = vld [vmem:[#allocation3 + $0x61] sm:$0xff]
    %v10499 = vld [vmem:[#allocation3 + $0x71] sm:$0xff]
    %v10500 = vld [vmem:[#allocation3 + $0xb1] sm:$0xff]
    %v10501 = vld [vmem:[#allocation3 + $0xc1] sm:$0xff]
    %v10502 = vld [vmem:[#allocation3 + $0xd1] sm:$0xff]
    %v10503 = vld [vmem:[#allocation3 + $0xe1] sm:$0xff]
    %v10504 = vld [vmem:[#allocation3 + $0xf1] sm:$0xff]
    %v10505 = vld [vmem:[#allocation3 + $0x101] sm:$0xff]
    %v10506 = vld [vmem:[#allocation3 + $0x111] sm:$0xff]
    %v10507 = vld [vmem:[#allocation3 + $0x121] sm:$0xff]
    %s10508 = scalar_lea.vmem %s6, 8
    %v10509 = vld [vmem:[%s10508] sm:$0xff]
    %v10511 = vsel %vm8833, %v10492, 0
    %v10514 = vsel %vm8833, %v10493, 0
    %v10517 = vsel %vm8833, %v10494, 0
    %v10520 = vsel %vm8833, %v10495, 0
    %v10523 = vsel %vm8833, %v10496, 0
    %v10526 = vsel %vm8833, %v10497, 0
    %v10529 = vsel %vm8833, %v10498, 0
    %v10532 = vsel %vm8833, %v10499, 0
    %v10535 = vsel %vm8833, %v10500, 0
    %v10538 = vsel %vm8833, %v10501, 0
    %v10541 = vsel %vm8833, %v10502, 0
    %v10544 = vsel %vm8833, %v10503, 0
    %v10547 = vsel %vm8833, %v10504, 0
    %v10550 = vsel %vm8833, %v10505, 0
    %v10553 = vsel %vm8833, %v10506, 0
    %v10556 = vsel %vm8833, %v10507, 0
    %10558 = vmatpush.msra.mxu0 0.0
    %10559 = vmatpush.msra.mxu0 0.0
    %10560 = vmatpush.msra.mxu0 0.0
    %10561 = vmatpush.msra.mxu0 0.0
    %10562 = vmatpush.msra.mxu0 0.0
    %10563 = vmatpush.msra.mxu0 0.0
    %10564 = vmatpush.msra.mxu0 0.0
    %10565 = vmatpush.msra.mxu0 0.0
    %10566 = vmatpush.msra.mxu0 0.0
    %10567 = vmatpush.msra.mxu0 0.0
    %10568 = vmatpush.msra.mxu0 0.0
    %10569 = vmatpush.msra.mxu0 0.0
    %10570 = vmatpush.msra.mxu0 0.0
    %10571 = vmatpush.msra.mxu0 0.0
    %10572 = vmatpush.msra.mxu0 0.0
    %10573 = vmatpush.msra.mxu0 %v10509
    %10574 = vmatmul.f32.gmra.mxu0 %v10511
    %v10575 = vpop.f32.mrf.mxu0
    %v10576 = vadd.f32 0.0, %v10575
    %10577 = vmatmul.f32.gmra.mxu0 %v10514
    %v10578 = vpop.f32.mrf.mxu0
    %v10579 = vadd.f32 0.0, %v10578
    %10580 = vmatmul.f32.gmra.mxu0 %v10517
    %v10581 = vpop.f32.mrf.mxu0
    %v10582 = vadd.f32 0.0, %v10581
    %10583 = vmatmul.f32.gmra.mxu0 %v10520
    %v10584 = vpop.f32.mrf.mxu0
    %v10585 = vadd.f32 0.0, %v10584
    %10586 = vmatmul.f32.gmra.mxu0 %v10523
    %v10587 = vpop.f32.mrf.mxu0
    %v10588 = vadd.f32 0.0, %v10587
    %10589 = vmatmul.f32.gmra.mxu0 %v10526
    %v10590 = vpop.f32.mrf.mxu0
    %v10591 = vadd.f32 0.0, %v10590
    %10592 = vmatmul.f32.gmra.mxu0 %v10529
    %v10593 = vpop.f32.mrf.mxu0
    %v10594 = vadd.f32 0.0, %v10593
    %10595 = vmatmul.f32.gmra.mxu0 %v10532
    %v10596 = vpop.f32.mrf.mxu0
    %v10597 = vadd.f32 0.0, %v10596
    %10598 = vmatmul.f32.gmra.mxu0 %v10535
    %v10599 = vpop.f32.mrf.mxu0
    %v10600 = vadd.f32 0.0, %v10599
    %10601 = vmatmul.f32.gmra.mxu0 %v10538
    %v10602 = vpop.f32.mrf.mxu0
    %v10603 = vadd.f32 0.0, %v10602
    %10604 = vmatmul.f32.gmra.mxu0 %v10541
    %v10605 = vpop.f32.mrf.mxu0
    %v10606 = vadd.f32 0.0, %v10605
    %10607 = vmatmul.f32.gmra.mxu0 %v10544
    %v10608 = vpop.f32.mrf.mxu0
    %v10609 = vadd.f32 0.0, %v10608
    %10610 = vmatmul.f32.gmra.mxu0 %v10547
    %v10611 = vpop.f32.mrf.mxu0
    %v10612 = vadd.f32 0.0, %v10611
    %10613 = vmatmul.f32.gmra.mxu0 %v10550
    %v10614 = vpop.f32.mrf.mxu0
    %v10615 = vadd.f32 0.0, %v10614
    %10616 = vmatmul.f32.gmra.mxu0 %v10553
    %v10617 = vpop.f32.mrf.mxu0
    %v10618 = vadd.f32 0.0, %v10617
    %10619 = vmatmul.f32.gmra.mxu0 %v10556
    %v10620 = vpop.f32.mrf.mxu0
    %v10621 = vadd.f32 0.0, %v10620
    %10622 = vdwg.mxu0
    %v10624 = vsel %vm8833, %v10475, 0
    %v10627 = vsel %vm8833, %v10476, 0
    %v10630 = vsel %vm8833, %v10477, 0
    %v10633 = vsel %vm8833, %v10478, 0
    %v10636 = vsel %vm8833, %v10479, 0
    %v10639 = vsel %vm8833, %v10480, 0
    %v10642 = vsel %vm8833, %v10481, 0
    %v10645 = vsel %vm8833, %v10482, 0
    %v10648 = vsel %vm8833, %v10483, 0
    %v10651 = vsel %vm8833, %v10484, 0
    %v10654 = vsel %vm8833, %v10485, 0
    %v10657 = vsel %vm8833, %v10486, 0
    %v10660 = vsel %vm8833, %v10487, 0
    %v10663 = vsel %vm8833, %v10488, 0
    %v10666 = vsel %vm8833, %v10489, 0
    %v10669 = vsel %vm8833, %v10490, 0
    %10671 = vmatpush.msra.mxu0 0.0
    %10672 = vmatpush.msra.mxu0 0.0
    %10673 = vmatpush.msra.mxu0 0.0
    %10674 = vmatpush.msra.mxu0 0.0
    %10675 = vmatpush.msra.mxu0 0.0
    %10676 = vmatpush.msra.mxu0 0.0
    %10677 = vmatpush.msra.mxu0 0.0
    %10678 = vmatpush.msra.mxu0 0.0
    %10679 = vmatpush.msra.mxu0 0.0
    %10680 = vmatpush.msra.mxu0 0.0
    %10681 = vmatpush.msra.mxu0 0.0
    %10682 = vmatpush.msra.mxu0 0.0
    %10683 = vmatpush.msra.mxu0 0.0
    %10684 = vmatpush.msra.mxu0 0.0
    %10685 = vmatpush.msra.mxu0 0.0
    %10686 = vmatpush.msra.mxu0 %v10491
    %10687 = vmatmul.f32.gmra.mxu0 %v10624
    %v10688 = vpop.f32.mrf.mxu0
    %v10689 = vadd.f32 %v10576, %v10688
    %10690 = vmatmul.f32.gmra.mxu0 %v10627
    %v10691 = vpop.f32.mrf.mxu0
    %v10692 = vadd.f32 %v10579, %v10691
    %10693 = vmatmul.f32.gmra.mxu0 %v10630
    %v10694 = vpop.f32.mrf.mxu0
    %v10695 = vadd.f32 %v10582, %v10694
    %10696 = vmatmul.f32.gmra.mxu0 %v10633
    %v10697 = vpop.f32.mrf.mxu0
    %v10698 = vadd.f32 %v10585, %v10697
    %10699 = vmatmul.f32.gmra.mxu0 %v10636
    %v10700 = vpop.f32.mrf.mxu0
    %v10701 = vadd.f32 %v10588, %v10700
    %10702 = vmatmul.f32.gmra.mxu0 %v10639
    %v10703 = vpop.f32.mrf.mxu0
    %v10704 = vadd.f32 %v10591, %v10703
    %10705 = vmatmul.f32.gmra.mxu0 %v10642
    %v10706 = vpop.f32.mrf.mxu0
    %v10707 = vadd.f32 %v10594, %v10706
    %10708 = vmatmul.f32.gmra.mxu0 %v10645
    %v10709 = vpop.f32.mrf.mxu0
    %v10710 = vadd.f32 %v10597, %v10709
    %10711 = vmatmul.f32.gmra.mxu0 %v10648
    %v10712 = vpop.f32.mrf.mxu0
    %v10713 = vadd.f32 %v10600, %v10712
    %10714 = vmatmul.f32.gmra.mxu0 %v10651
    %v10715 = vpop.f32.mrf.mxu0
    %v10716 = vadd.f32 %v10603, %v10715
    %10717 = vmatmul.f32.gmra.mxu0 %v10654
    %v10718 = vpop.f32.mrf.mxu0
    %v10719 = vadd.f32 %v10606, %v10718
    %10720 = vmatmul.f32.gmra.mxu0 %v10657
    %v10721 = vpop.f32.mrf.mxu0
    %v10722 = vadd.f32 %v10609, %v10721
    %10723 = vmatmul.f32.gmra.mxu0 %v10660
    %v10724 = vpop.f32.mrf.mxu0
    %v10725 = vadd.f32 %v10612, %v10724
    %10726 = vmatmul.f32.gmra.mxu0 %v10663
    %v10727 = vpop.f32.mrf.mxu0
    %v10728 = vadd.f32 %v10615, %v10727
    %10729 = vmatmul.f32.gmra.mxu0 %v10666
    %v10730 = vpop.f32.mrf.mxu0
    %v10731 = vadd.f32 %v10618, %v10730
    %10732 = vmatmul.f32.gmra.mxu0 %v10669
    %v10733 = vpop.f32.mrf.mxu0
    %v10734 = vadd.f32 %v10621, %v10733
    %10735 = vdwg.mxu0
    %v10736 = vld [vmem:[#allocation3 + $0x2] sm:$0xff]
    %v10737 = vld [vmem:[#allocation3 + $0x12] sm:$0xff]
    %v10738 = vld [vmem:[#allocation3 + $0x22] sm:$0xff]
    %v10739 = vld [vmem:[#allocation3 + $0x32] sm:$0xff]
    %v10740 = vld [vmem:[#allocation3 + $0x42] sm:$0xff]
    %v10741 = vld [vmem:[#allocation3 + $0x52] sm:$0xff]
    %v10742 = vld [vmem:[#allocation3 + $0x62] sm:$0xff]
    %v10743 = vld [vmem:[#allocation3 + $0x72] sm:$0xff]
    %v10744 = vld [vmem:[#allocation3 + $0xb2] sm:$0xff]
    %v10745 = vld [vmem:[#allocation3 + $0xc2] sm:$0xff]
    %v10746 = vld [vmem:[#allocation3 + $0xd2] sm:$0xff]
    %v10747 = vld [vmem:[#allocation3 + $0xe2] sm:$0xff]
    %v10748 = vld [vmem:[#allocation3 + $0xf2] sm:$0xff]
    %v10749 = vld [vmem:[#allocation3 + $0x102] sm:$0xff]
    %v10750 = vld [vmem:[#allocation3 + $0x112] sm:$0xff]
    %v10751 = vld [vmem:[#allocation3 + $0x122] sm:$0xff]
    %s10752 = scalar_lea.vmem %s6, 16
    %v10753 = vld [vmem:[%s10752] sm:$0xff]
    %v10755 = vsel %vm8833, %v10736, 0
    %v10758 = vsel %vm8833, %v10737, 0
    %v10761 = vsel %vm8833, %v10738, 0
    %v10764 = vsel %vm8833, %v10739, 0
    %v10767 = vsel %vm8833, %v10740, 0
    %v10770 = vsel %vm8833, %v10741, 0
    %v10773 = vsel %vm8833, %v10742, 0
    %v10776 = vsel %vm8833, %v10743, 0
    %v10779 = vsel %vm8833, %v10744, 0
    %v10782 = vsel %vm8833, %v10745, 0
    %v10785 = vsel %vm8833, %v10746, 0
    %v10788 = vsel %vm8833, %v10747, 0
    %v10791 = vsel %vm8833, %v10748, 0
    %v10794 = vsel %vm8833, %v10749, 0
    %v10797 = vsel %vm8833, %v10750, 0
    %v10800 = vsel %vm8833, %v10751, 0
    %10802 = vmatpush.msra.mxu0 0.0
    %10803 = vmatpush.msra.mxu0 0.0
    %10804 = vmatpush.msra.mxu0 0.0
    %10805 = vmatpush.msra.mxu0 0.0
    %10806 = vmatpush.msra.mxu0 0.0
    %10807 = vmatpush.msra.mxu0 0.0
    %10808 = vmatpush.msra.mxu0 0.0
    %10809 = vmatpush.msra.mxu0 0.0
    %10810 = vmatpush.msra.mxu0 0.0
    %10811 = vmatpush.msra.mxu0 0.0
    %10812 = vmatpush.msra.mxu0 0.0
    %10813 = vmatpush.msra.mxu0 0.0
    %10814 = vmatpush.msra.mxu0 0.0
    %10815 = vmatpush.msra.mxu0 0.0
    %10816 = vmatpush.msra.mxu0 0.0
    %10817 = vmatpush.msra.mxu0 %v10753
    %10818 = vmatmul.f32.gmra.mxu0 %v10755
    %v10819 = vpop.f32.mrf.mxu0
    %v10820 = vadd.f32 0.0, %v10819
    %10821 = vmatmul.f32.gmra.mxu0 %v10758
    %v10822 = vpop.f32.mrf.mxu0
    %v10823 = vadd.f32 0.0, %v10822
    %10824 = vmatmul.f32.gmra.mxu0 %v10761
    %v10825 = vpop.f32.mrf.mxu0
    %v10826 = vadd.f32 0.0, %v10825
    %10827 = vmatmul.f32.gmra.mxu0 %v10764
    %v10828 = vpop.f32.mrf.mxu0
    %v10829 = vadd.f32 0.0, %v10828
    %10830 = vmatmul.f32.gmra.mxu0 %v10767
    %v10831 = vpop.f32.mrf.mxu0
    %v10832 = vadd.f32 0.0, %v10831
    %10833 = vmatmul.f32.gmra.mxu0 %v10770
    %v10834 = vpop.f32.mrf.mxu0
    %v10835 = vadd.f32 0.0, %v10834
    %10836 = vmatmul.f32.gmra.mxu0 %v10773
    %v10837 = vpop.f32.mrf.mxu0
    %v10838 = vadd.f32 0.0, %v10837
    %10839 = vmatmul.f32.gmra.mxu0 %v10776
    %v10840 = vpop.f32.mrf.mxu0
    %v10841 = vadd.f32 0.0, %v10840
    %10842 = vmatmul.f32.gmra.mxu0 %v10779
    %v10843 = vpop.f32.mrf.mxu0
    %v10844 = vadd.f32 0.0, %v10843
    %10845 = vmatmul.f32.gmra.mxu0 %v10782
    %v10846 = vpop.f32.mrf.mxu0
    %v10847 = vadd.f32 0.0, %v10846
    %10848 = vmatmul.f32.gmra.mxu0 %v10785
    %v10849 = vpop.f32.mrf.mxu0
    %v10850 = vadd.f32 0.0, %v10849
    %10851 = vmatmul.f32.gmra.mxu0 %v10788
    %v10852 = vpop.f32.mrf.mxu0
    %v10853 = vadd.f32 0.0, %v10852
    %10854 = vmatmul.f32.gmra.mxu0 %v10791
    %v10855 = vpop.f32.mrf.mxu0
    %v10856 = vadd.f32 0.0, %v10855
    %10857 = vmatmul.f32.gmra.mxu0 %v10794
    %v10858 = vpop.f32.mrf.mxu0
    %v10859 = vadd.f32 0.0, %v10858
    %10860 = vmatmul.f32.gmra.mxu0 %v10797
    %v10861 = vpop.f32.mrf.mxu0
    %v10862 = vadd.f32 0.0, %v10861
    %10863 = vmatmul.f32.gmra.mxu0 %v10800
    %v10864 = vpop.f32.mrf.mxu0
    %v10865 = vadd.f32 0.0, %v10864
    %10866 = vdwg.mxu0
    %v10867 = vadd.f32 %v10689, %v10820
    %v10868 = vadd.f32 %v10692, %v10823
    %v10869 = vadd.f32 %v10695, %v10826
    %v10870 = vadd.f32 %v10698, %v10829
    %v10871 = vadd.f32 %v10701, %v10832
    %v10872 = vadd.f32 %v10704, %v10835
    %v10873 = vadd.f32 %v10707, %v10838
    %v10874 = vadd.f32 %v10710, %v10841
    %v10875 = vadd.f32 %v10713, %v10844
    %v10876 = vadd.f32 %v10716, %v10847
    %v10877 = vadd.f32 %v10719, %v10850
    %v10878 = vadd.f32 %v10722, %v10853
    %v10879 = vadd.f32 %v10725, %v10856
    %v10880 = vadd.f32 %v10728, %v10859
    %v10881 = vadd.f32 %v10731, %v10862
    %v10882 = vadd.f32 %v10734, %v10865
    %v10883 = vld [vmem:[#allocation3 + $0x3] sm:$0xff]
    %v10884 = vld [vmem:[#allocation3 + $0x13] sm:$0xff]
    %v10885 = vld [vmem:[#allocation3 + $0x23] sm:$0xff]
    %v10886 = vld [vmem:[#allocation3 + $0x33] sm:$0xff]
    %v10887 = vld [vmem:[#allocation3 + $0x43] sm:$0xff]
    %v10888 = vld [vmem:[#allocation3 + $0x53] sm:$0xff]
    %v10889 = vld [vmem:[#allocation3 + $0x63] sm:$0xff]
    %v10890 = vld [vmem:[#allocation3 + $0x73] sm:$0xff]
    %v10891 = vld [vmem:[#allocation3 + $0xb3] sm:$0xff]
    %v10892 = vld [vmem:[#allocation3 + $0xc3] sm:$0xff]
    %v10893 = vld [vmem:[#allocation3 + $0xd3] sm:$0xff]
    %v10894 = vld [vmem:[#allocation3 + $0xe3] sm:$0xff]
    %v10895 = vld [vmem:[#allocation3 + $0xf3] sm:$0xff]
    %v10896 = vld [vmem:[#allocation3 + $0x103] sm:$0xff]
    %v10897 = vld [vmem:[#allocation3 + $0x113] sm:$0xff]
    %v10898 = vld [vmem:[#allocation3 + $0x123] sm:$0xff]
    %s10899 = scalar_lea.vmem %s6, 24
    %v10900 = vld [vmem:[%s10899] sm:$0xff]
    %v10902 = vsel %vm8833, %v10883, 0
    %v10905 = vsel %vm8833, %v10884, 0
    %v10908 = vsel %vm8833, %v10885, 0
    %v10911 = vsel %vm8833, %v10886, 0
    %v10914 = vsel %vm8833, %v10887, 0
    %v10917 = vsel %vm8833, %v10888, 0
    %v10920 = vsel %vm8833, %v10889, 0
    %v10923 = vsel %vm8833, %v10890, 0
    %v10926 = vsel %vm8833, %v10891, 0
    %v10929 = vsel %vm8833, %v10892, 0
    %v10932 = vsel %vm8833, %v10893, 0
    %v10935 = vsel %vm8833, %v10894, 0
    %v10938 = vsel %vm8833, %v10895, 0
    %v10941 = vsel %vm8833, %v10896, 0
    %v10944 = vsel %vm8833, %v10897, 0
    %v10947 = vsel %vm8833, %v10898, 0
    %10949 = vmatpush.msra.mxu0 0.0
    %10950 = vmatpush.msra.mxu0 0.0
    %10951 = vmatpush.msra.mxu0 0.0
    %10952 = vmatpush.msra.mxu0 0.0
    %10953 = vmatpush.msra.mxu0 0.0
    %10954 = vmatpush.msra.mxu0 0.0
    %10955 = vmatpush.msra.mxu0 0.0
    %10956 = vmatpush.msra.mxu0 0.0
    %10957 = vmatpush.msra.mxu0 0.0
    %10958 = vmatpush.msra.mxu0 0.0
    %10959 = vmatpush.msra.mxu0 0.0
    %10960 = vmatpush.msra.mxu0 0.0
    %10961 = vmatpush.msra.mxu0 0.0
    %10962 = vmatpush.msra.mxu0 0.0
    %10963 = vmatpush.msra.mxu0 0.0
    %10964 = vmatpush.msra.mxu0 %v10900
    %10965 = vmatmul.f32.gmra.mxu0 %v10902
    %v10966 = vpop.f32.mrf.mxu0
    %v10967 = vadd.f32 0.0, %v10966
    %10968 = vmatmul.f32.gmra.mxu0 %v10905
    %v10969 = vpop.f32.mrf.mxu0
    %v10970 = vadd.f32 0.0, %v10969
    %10971 = vmatmul.f32.gmra.mxu0 %v10908
    %v10972 = vpop.f32.mrf.mxu0
    %v10973 = vadd.f32 0.0, %v10972
    %10974 = vmatmul.f32.gmra.mxu0 %v10911
    %v10975 = vpop.f32.mrf.mxu0
    %v10976 = vadd.f32 0.0, %v10975
    %10977 = vmatmul.f32.gmra.mxu0 %v10914
    %v10978 = vpop.f32.mrf.mxu0
    %v10979 = vadd.f32 0.0, %v10978
    %10980 = vmatmul.f32.gmra.mxu0 %v10917
    %v10981 = vpop.f32.mrf.mxu0
    %v10982 = vadd.f32 0.0, %v10981
    %10983 = vmatmul.f32.gmra.mxu0 %v10920
    %v10984 = vpop.f32.mrf.mxu0
    %v10985 = vadd.f32 0.0, %v10984
    %10986 = vmatmul.f32.gmra.mxu0 %v10923
    %v10987 = vpop.f32.mrf.mxu0
    %v10988 = vadd.f32 0.0, %v10987
    %10989 = vmatmul.f32.gmra.mxu0 %v10926
    %v10990 = vpop.f32.mrf.mxu0
    %v10991 = vadd.f32 0.0, %v10990
    %10992 = vmatmul.f32.gmra.mxu0 %v10929
    %v10993 = vpop.f32.mrf.mxu0
    %v10994 = vadd.f32 0.0, %v10993
    %10995 = vmatmul.f32.gmra.mxu0 %v10932
    %v10996 = vpop.f32.mrf.mxu0
    %v10997 = vadd.f32 0.0, %v10996
    %10998 = vmatmul.f32.gmra.mxu0 %v10935
    %v10999 = vpop.f32.mrf.mxu0
    %v11000 = vadd.f32 0.0, %v10999
    %11001 = vmatmul.f32.gmra.mxu0 %v10938
    %v11002 = vpop.f32.mrf.mxu0
    %v11003 = vadd.f32 0.0, %v11002
    %11004 = vmatmul.f32.gmra.mxu0 %v10941
    %v11005 = vpop.f32.mrf.mxu0
    %v11006 = vadd.f32 0.0, %v11005
    %11007 = vmatmul.f32.gmra.mxu0 %v10944
    %v11008 = vpop.f32.mrf.mxu0
    %v11009 = vadd.f32 0.0, %v11008
    %11010 = vmatmul.f32.gmra.mxu0 %v10947
    %v11011 = vpop.f32.mrf.mxu0
    %v11012 = vadd.f32 0.0, %v11011
    %11013 = vdwg.mxu0
    %v11014 = vadd.f32 %v10867, %v10967
    %v11015 = vadd.f32 %v10868, %v10970
    %v11016 = vadd.f32 %v10869, %v10973
    %v11017 = vadd.f32 %v10870, %v10976
    %v11018 = vadd.f32 %v10871, %v10979
    %v11019 = vadd.f32 %v10872, %v10982
    %v11020 = vadd.f32 %v10873, %v10985
    %v11021 = vadd.f32 %v10874, %v10988
    %v11022 = vadd.f32 %v10875, %v10991
    %v11023 = vadd.f32 %v10876, %v10994
    %v11024 = vadd.f32 %v10877, %v10997
    %v11025 = vadd.f32 %v10878, %v11000
    %v11026 = vadd.f32 %v10879, %v11003
    %v11027 = vadd.f32 %v10880, %v11006
    %v11028 = vadd.f32 %v10881, %v11009
    %v11029 = vadd.f32 %v10882, %v11012
    %v11030 = vld [vmem:[%s10458] sm:$0xff]
    %v11031 = vld [vmem:[%s10458 + $0x10] sm:$0xff]
    %v11032 = vld [vmem:[%s10458 + $0x20] sm:$0xff]
    %v11033 = vld [vmem:[%s10458 + $0x30] sm:$0xff]
    %v11034 = vld [vmem:[%s10458 + $0x40] sm:$0xff]
    %v11035 = vld [vmem:[%s10458 + $0x50] sm:$0xff]
    %v11036 = vld [vmem:[%s10458 + $0x60] sm:$0xff]
    %v11037 = vld [vmem:[%s10458 + $0x70] sm:$0xff]
    %v11038 = vld [vmem:[%s10458 + $0xb0] sm:$0xff]
    %v11039 = vld [vmem:[%s10458 + $0xc0] sm:$0xff]
    %v11040 = vld [vmem:[%s10458 + $0xd0] sm:$0xff]
    %v11041 = vld [vmem:[%s10458 + $0xe0] sm:$0xff]
    %v11042 = vld [vmem:[%s10458 + $0xf0] sm:$0xff]
    %v11043 = vld [vmem:[%s10458 + $0x100] sm:$0xff]
    %v11044 = vld [vmem:[%s10458 + $0x110] sm:$0xff]
    %v11045 = vld [vmem:[%s10458 + $0x120] sm:$0xff]
    %s11046 = scalar_lea.vmem %s6, 32
    %v11047 = vld [vmem:[%s11046] sm:$0xff]
    %v11049 = vsel %vm8833, %v11030, 0
    %v11052 = vsel %vm8833, %v11031, 0
    %v11055 = vsel %vm8833, %v11032, 0
    %v11058 = vsel %vm8833, %v11033, 0
    %v11061 = vsel %vm8833, %v11034, 0
    %v11064 = vsel %vm8833, %v11035, 0
    %v11067 = vsel %vm8833, %v11036, 0
    %v11070 = vsel %vm8833, %v11037, 0
    %v11073 = vsel %vm8833, %v11038, 0
    %v11076 = vsel %vm8833, %v11039, 0
    %v11079 = vsel %vm8833, %v11040, 0
    %v11082 = vsel %vm8833, %v11041, 0
    %v11085 = vsel %vm8833, %v11042, 0
    %v11088 = vsel %vm8833, %v11043, 0
    %v11091 = vsel %vm8833, %v11044, 0
    %v11094 = vsel %vm8833, %v11045, 0
    %11096 = vmatpush.msra.mxu0 0.0
    %11097 = vmatpush.msra.mxu0 0.0
    %11098 = vmatpush.msra.mxu0 0.0
    %11099 = vmatpush.msra.mxu0 0.0
    %11100 = vmatpush.msra.mxu0 0.0
    %11101 = vmatpush.msra.mxu0 0.0
    %11102 = vmatpush.msra.mxu0 0.0
    %11103 = vmatpush.msra.mxu0 0.0
    %11104 = vmatpush.msra.mxu0 0.0
    %11105 = vmatpush.msra.mxu0 0.0
    %11106 = vmatpush.msra.mxu0 0.0
    %11107 = vmatpush.msra.mxu0 0.0
    %11108 = vmatpush.msra.mxu0 0.0
    %11109 = vmatpush.msra.mxu0 0.0
    %11110 = vmatpush.msra.mxu0 0.0
    %11111 = vmatpush.msra.mxu0 %v11047
    %11112 = vmatmul.f32.gmra.mxu0 %v11049
    %v11113 = vpop.f32.mrf.mxu0
    %v11114 = vadd.f32 0.0, %v11113
    %11115 = vmatmul.f32.gmra.mxu0 %v11052
    %v11116 = vpop.f32.mrf.mxu0
    %v11117 = vadd.f32 0.0, %v11116
    %11118 = vmatmul.f32.gmra.mxu0 %v11055
    %v11119 = vpop.f32.mrf.mxu0
    %v11120 = vadd.f32 0.0, %v11119
    %11121 = vmatmul.f32.gmra.mxu0 %v11058
    %v11122 = vpop.f32.mrf.mxu0
    %v11123 = vadd.f32 0.0, %v11122
    %11124 = vmatmul.f32.gmra.mxu0 %v11061
    %v11125 = vpop.f32.mrf.mxu0
    %v11126 = vadd.f32 0.0, %v11125
    %11127 = vmatmul.f32.gmra.mxu0 %v11064
    %v11128 = vpop.f32.mrf.mxu0
    %v11129 = vadd.f32 0.0, %v11128
    %11130 = vmatmul.f32.gmra.mxu0 %v11067
    %v11131 = vpop.f32.mrf.mxu0
    %v11132 = vadd.f32 0.0, %v11131
    %11133 = vmatmul.f32.gmra.mxu0 %v11070
    %v11134 = vpop.f32.mrf.mxu0
    %v11135 = vadd.f32 0.0, %v11134
    %11136 = vmatmul.f32.gmra.mxu0 %v11073
    %v11137 = vpop.f32.mrf.mxu0
    %v11138 = vadd.f32 0.0, %v11137
    %11139 = vmatmul.f32.gmra.mxu0 %v11076
    %v11140 = vpop.f32.mrf.mxu0
    %v11141 = vadd.f32 0.0, %v11140
    %11142 = vmatmul.f32.gmra.mxu0 %v11079
    %v11143 = vpop.f32.mrf.mxu0
    %v11144 = vadd.f32 0.0, %v11143
    %11145 = vmatmul.f32.gmra.mxu0 %v11082
    %v11146 = vpop.f32.mrf.mxu0
    %v11147 = vadd.f32 0.0, %v11146
    %11148 = vmatmul.f32.gmra.mxu0 %v11085
    %v11149 = vpop.f32.mrf.mxu0
    %v11150 = vadd.f32 0.0, %v11149
    %11151 = vmatmul.f32.gmra.mxu0 %v11088
    %v11152 = vpop.f32.mrf.mxu0
    %v11153 = vadd.f32 0.0, %v11152
    %11154 = vmatmul.f32.gmra.mxu0 %v11091
    %v11155 = vpop.f32.mrf.mxu0
    %v11156 = vadd.f32 0.0, %v11155
    %11157 = vmatmul.f32.gmra.mxu0 %v11094
    %v11158 = vpop.f32.mrf.mxu0
    %v11159 = vadd.f32 0.0, %v11158
    %11160 = vdwg.mxu0
    %v11161 = vadd.f32 %v11014, %v11114
    %v11162 = vadd.f32 %v11015, %v11117
    %v11163 = vadd.f32 %v11016, %v11120
    %v11164 = vadd.f32 %v11017, %v11123
    %v11165 = vadd.f32 %v11018, %v11126
    %v11166 = vadd.f32 %v11019, %v11129
    %v11167 = vadd.f32 %v11020, %v11132
    %v11168 = vadd.f32 %v11021, %v11135
    %v11169 = vadd.f32 %v11022, %v11138
    %v11170 = vadd.f32 %v11023, %v11141
    %v11171 = vadd.f32 %v11024, %v11144
    %v11172 = vadd.f32 %v11025, %v11147
    %v11173 = vadd.f32 %v11026, %v11150
    %v11174 = vadd.f32 %v11027, %v11153
    %v11175 = vadd.f32 %v11028, %v11156
    %v11176 = vadd.f32 %v11029, %v11159
    %v11177 = vld [vmem:[%s10458 + $0x1] sm:$0xff]
    %v11178 = vld [vmem:[%s10458 + $0x11] sm:$0xff]
    %v11179 = vld [vmem:[%s10458 + $0x21] sm:$0xff]
    %v11180 = vld [vmem:[%s10458 + $0x31] sm:$0xff]
    %v11181 = vld [vmem:[%s10458 + $0x41] sm:$0xff]
    %v11182 = vld [vmem:[%s10458 + $0x51] sm:$0xff]
    %v11183 = vld [vmem:[%s10458 + $0x61] sm:$0xff]
    %v11184 = vld [vmem:[%s10458 + $0x71] sm:$0xff]
    %v11185 = vld [vmem:[%s10458 + $0xb1] sm:$0xff]
    %v11186 = vld [vmem:[%s10458 + $0xc1] sm:$0xff]
    %v11187 = vld [vmem:[%s10458 + $0xd1] sm:$0xff]
    %v11188 = vld [vmem:[%s10458 + $0xe1] sm:$0xff]
    %v11189 = vld [vmem:[%s10458 + $0xf1] sm:$0xff]
    %v11190 = vld [vmem:[%s10458 + $0x101] sm:$0xff]
    %v11191 = vld [vmem:[%s10458 + $0x111] sm:$0xff]
    %v11192 = vld [vmem:[%s10458 + $0x121] sm:$0xff]
    %s11193 = scalar_lea.vmem %s6, 40
    %v11194 = vld [vmem:[%s11193] sm:$0xff]
    %v11196 = vsel %vm8833, %v11177, 0
    %v11199 = vsel %vm8833, %v11178, 0
    %v11202 = vsel %vm8833, %v11179, 0
    %v11205 = vsel %vm8833, %v11180, 0
    %v11208 = vsel %vm8833, %v11181, 0
    %v11211 = vsel %vm8833, %v11182, 0
    %v11214 = vsel %vm8833, %v11183, 0
    %v11217 = vsel %vm8833, %v11184, 0
    %v11220 = vsel %vm8833, %v11185, 0
    %v11223 = vsel %vm8833, %v11186, 0
    %v11226 = vsel %vm8833, %v11187, 0
    %v11229 = vsel %vm8833, %v11188, 0
    %v11232 = vsel %vm8833, %v11189, 0
    %v11235 = vsel %vm8833, %v11190, 0
    %v11238 = vsel %vm8833, %v11191, 0
    %v11241 = vsel %vm8833, %v11192, 0
    %11243 = vmatpush.msra.mxu0 0.0
    %11244 = vmatpush.msra.mxu0 0.0
    %11245 = vmatpush.msra.mxu0 0.0
    %11246 = vmatpush.msra.mxu0 0.0
    %11247 = vmatpush.msra.mxu0 0.0
    %11248 = vmatpush.msra.mxu0 0.0
    %11249 = vmatpush.msra.mxu0 0.0
    %11250 = vmatpush.msra.mxu0 0.0
    %11251 = vmatpush.msra.mxu0 0.0
    %11252 = vmatpush.msra.mxu0 0.0
    %11253 = vmatpush.msra.mxu0 0.0
    %11254 = vmatpush.msra.mxu0 0.0
    %11255 = vmatpush.msra.mxu0 0.0
    %11256 = vmatpush.msra.mxu0 0.0
    %11257 = vmatpush.msra.mxu0 0.0
    %11258 = vmatpush.msra.mxu0 %v11194
    %11259 = vmatmul.f32.gmra.mxu0 %v11196
    %v11260 = vpop.f32.mrf.mxu0
    %v11261 = vadd.f32 0.0, %v11260
    %11262 = vmatmul.f32.gmra.mxu0 %v11199
    %v11263 = vpop.f32.mrf.mxu0
    %v11264 = vadd.f32 0.0, %v11263
    %11265 = vmatmul.f32.gmra.mxu0 %v11202
    %v11266 = vpop.f32.mrf.mxu0
    %v11267 = vadd.f32 0.0, %v11266
    %11268 = vmatmul.f32.gmra.mxu0 %v11205
    %v11269 = vpop.f32.mrf.mxu0
    %v11270 = vadd.f32 0.0, %v11269
    %11271 = vmatmul.f32.gmra.mxu0 %v11208
    %v11272 = vpop.f32.mrf.mxu0
    %v11273 = vadd.f32 0.0, %v11272
    %11274 = vmatmul.f32.gmra.mxu0 %v11211
    %v11275 = vpop.f32.mrf.mxu0
    %v11276 = vadd.f32 0.0, %v11275
    %11277 = vmatmul.f32.gmra.mxu0 %v11214
    %v11278 = vpop.f32.mrf.mxu0
    %v11279 = vadd.f32 0.0, %v11278
    %11280 = vmatmul.f32.gmra.mxu0 %v11217
    %v11281 = vpop.f32.mrf.mxu0
    %v11282 = vadd.f32 0.0, %v11281
    %11283 = vmatmul.f32.gmra.mxu0 %v11220
    %v11284 = vpop.f32.mrf.mxu0
    %v11285 = vadd.f32 0.0, %v11284
    %11286 = vmatmul.f32.gmra.mxu0 %v11223
    %v11287 = vpop.f32.mrf.mxu0
    %v11288 = vadd.f32 0.0, %v11287
    %11289 = vmatmul.f32.gmra.mxu0 %v11226
    %v11290 = vpop.f32.mrf.mxu0
    %v11291 = vadd.f32 0.0, %v11290
    %11292 = vmatmul.f32.gmra.mxu0 %v11229
    %v11293 = vpop.f32.mrf.mxu0
    %v11294 = vadd.f32 0.0, %v11293
    %11295 = vmatmul.f32.gmra.mxu0 %v11232
    %v11296 = vpop.f32.mrf.mxu0
    %v11297 = vadd.f32 0.0, %v11296
    %11298 = vmatmul.f32.gmra.mxu0 %v11235
    %v11299 = vpop.f32.mrf.mxu0
    %v11300 = vadd.f32 0.0, %v11299
    %11301 = vmatmul.f32.gmra.mxu0 %v11238
    %v11302 = vpop.f32.mrf.mxu0
    %v11303 = vadd.f32 0.0, %v11302
    %11304 = vmatmul.f32.gmra.mxu0 %v11241
    %v11305 = vpop.f32.mrf.mxu0
    %v11306 = vadd.f32 0.0, %v11305
    %11307 = vdwg.mxu0
    %v11308 = vadd.f32 %v11161, %v11261
    %v11309 = vadd.f32 %v11162, %v11264
    %v11310 = vadd.f32 %v11163, %v11267
    %v11311 = vadd.f32 %v11164, %v11270
    %v11312 = vadd.f32 %v11165, %v11273
    %v11313 = vadd.f32 %v11166, %v11276
    %v11314 = vadd.f32 %v11167, %v11279
    %v11315 = vadd.f32 %v11168, %v11282
    %v11316 = vadd.f32 %v11169, %v11285
    %v11317 = vadd.f32 %v11170, %v11288
    %v11318 = vadd.f32 %v11171, %v11291
    %v11319 = vadd.f32 %v11172, %v11294
    %v11320 = vadd.f32 %v11173, %v11297
    %v11321 = vadd.f32 %v11174, %v11300
    %v11322 = vadd.f32 %v11175, %v11303
    %v11323 = vadd.f32 %v11176, %v11306
    %v11324 = vld [vmem:[%s10458 + $0x2] sm:$0xff]
    %v11325 = vld [vmem:[%s10458 + $0x12] sm:$0xff]
    %v11326 = vld [vmem:[%s10458 + $0x22] sm:$0xff]
    %v11327 = vld [vmem:[%s10458 + $0x32] sm:$0xff]
    %v11328 = vld [vmem:[%s10458 + $0x42] sm:$0xff]
    %v11329 = vld [vmem:[%s10458 + $0x52] sm:$0xff]
    %v11330 = vld [vmem:[%s10458 + $0x62] sm:$0xff]
    %v11331 = vld [vmem:[%s10458 + $0x72] sm:$0xff]
    %v11332 = vld [vmem:[%s10458 + $0xb2] sm:$0xff]
    %v11333 = vld [vmem:[%s10458 + $0xc2] sm:$0xff]
    %v11334 = vld [vmem:[%s10458 + $0xd2] sm:$0xff]
    %v11335 = vld [vmem:[%s10458 + $0xe2] sm:$0xff]
    %v11336 = vld [vmem:[%s10458 + $0xf2] sm:$0xff]
    %v11337 = vld [vmem:[%s10458 + $0x102] sm:$0xff]
    %v11338 = vld [vmem:[%s10458 + $0x112] sm:$0xff]
    %v11339 = vld [vmem:[%s10458 + $0x122] sm:$0xff]
    %s11340 = scalar_lea.vmem %s6, 48
    %v11341 = vld [vmem:[%s11340] sm:$0xff]
    %v11343 = vsel %vm8833, %v11324, 0
    %v11346 = vsel %vm8833, %v11325, 0
    %v11349 = vsel %vm8833, %v11326, 0
    %v11352 = vsel %vm8833, %v11327, 0
    %v11355 = vsel %vm8833, %v11328, 0
    %v11358 = vsel %vm8833, %v11329, 0
    %v11361 = vsel %vm8833, %v11330, 0
    %v11364 = vsel %vm8833, %v11331, 0
    %v11367 = vsel %vm8833, %v11332, 0
    %v11370 = vsel %vm8833, %v11333, 0
    %v11373 = vsel %vm8833, %v11334, 0
    %v11376 = vsel %vm8833, %v11335, 0
    %v11379 = vsel %vm8833, %v11336, 0
    %v11382 = vsel %vm8833, %v11337, 0
    %v11385 = vsel %vm8833, %v11338, 0
    %v11388 = vsel %vm8833, %v11339, 0
    %11390 = vmatpush.msra.mxu0 0.0
    %11391 = vmatpush.msra.mxu0 0.0
    %11392 = vmatpush.msra.mxu0 0.0
    %11393 = vmatpush.msra.mxu0 0.0
    %11394 = vmatpush.msra.mxu0 0.0
    %11395 = vmatpush.msra.mxu0 0.0
    %11396 = vmatpush.msra.mxu0 0.0
    %11397 = vmatpush.msra.mxu0 0.0
    %11398 = vmatpush.msra.mxu0 0.0
    %11399 = vmatpush.msra.mxu0 0.0
    %11400 = vmatpush.msra.mxu0 0.0
    %11401 = vmatpush.msra.mxu0 0.0
    %11402 = vmatpush.msra.mxu0 0.0
    %11403 = vmatpush.msra.mxu0 0.0
    %11404 = vmatpush.msra.mxu0 0.0
    %11405 = vmatpush.msra.mxu0 %v11341
    %11406 = vmatmul.f32.gmra.mxu0 %v11343
    %v11407 = vpop.f32.mrf.mxu0
    %v11408 = vadd.f32 0.0, %v11407
    %11409 = vmatmul.f32.gmra.mxu0 %v11346
    %v11410 = vpop.f32.mrf.mxu0
    %v11411 = vadd.f32 0.0, %v11410
    %11412 = vmatmul.f32.gmra.mxu0 %v11349
    %v11413 = vpop.f32.mrf.mxu0
    %v11414 = vadd.f32 0.0, %v11413
    %11415 = vmatmul.f32.gmra.mxu0 %v11352
    %v11416 = vpop.f32.mrf.mxu0
    %v11417 = vadd.f32 0.0, %v11416
    %11418 = vmatmul.f32.gmra.mxu0 %v11355
    %v11419 = vpop.f32.mrf.mxu0
    %v11420 = vadd.f32 0.0, %v11419
    %11421 = vmatmul.f32.gmra.mxu0 %v11358
    %v11422 = vpop.f32.mrf.mxu0
    %v11423 = vadd.f32 0.0, %v11422
    %11424 = vmatmul.f32.gmra.mxu0 %v11361
    %v11425 = vpop.f32.mrf.mxu0
    %v11426 = vadd.f32 0.0, %v11425
    %11427 = vmatmul.f32.gmra.mxu0 %v11364
    %v11428 = vpop.f32.mrf.mxu0
    %v11429 = vadd.f32 0.0, %v11428
    %11430 = vmatmul.f32.gmra.mxu0 %v11367
    %v11431 = vpop.f32.mrf.mxu0
    %v11432 = vadd.f32 0.0, %v11431
    %11433 = vmatmul.f32.gmra.mxu0 %v11370
    %v11434 = vpop.f32.mrf.mxu0
    %v11435 = vadd.f32 0.0, %v11434
    %11436 = vmatmul.f32.gmra.mxu0 %v11373
    %v11437 = vpop.f32.mrf.mxu0
    %v11438 = vadd.f32 0.0, %v11437
    %11439 = vmatmul.f32.gmra.mxu0 %v11376
    %v11440 = vpop.f32.mrf.mxu0
    %v11441 = vadd.f32 0.0, %v11440
    %11442 = vmatmul.f32.gmra.mxu0 %v11379
    %v11443 = vpop.f32.mrf.mxu0
    %v11444 = vadd.f32 0.0, %v11443
    %11445 = vmatmul.f32.gmra.mxu0 %v11382
    %v11446 = vpop.f32.mrf.mxu0
    %v11447 = vadd.f32 0.0, %v11446
    %11448 = vmatmul.f32.gmra.mxu0 %v11385
    %v11449 = vpop.f32.mrf.mxu0
    %v11450 = vadd.f32 0.0, %v11449
    %11451 = vmatmul.f32.gmra.mxu0 %v11388
    %v11452 = vpop.f32.mrf.mxu0
    %v11453 = vadd.f32 0.0, %v11452
    %11454 = vdwg.mxu0
    %v11455 = vadd.f32 %v11308, %v11408
    %v11456 = vadd.f32 %v11309, %v11411
    %v11457 = vadd.f32 %v11310, %v11414
    %v11458 = vadd.f32 %v11311, %v11417
    %v11459 = vadd.f32 %v11312, %v11420
    %v11460 = vadd.f32 %v11313, %v11423
    %v11461 = vadd.f32 %v11314, %v11426
    %v11462 = vadd.f32 %v11315, %v11429
    %v11463 = vadd.f32 %v11316, %v11432
    %v11464 = vadd.f32 %v11317, %v11435
    %v11465 = vadd.f32 %v11318, %v11438
    %v11466 = vadd.f32 %v11319, %v11441
    %v11467 = vadd.f32 %v11320, %v11444
    %v11468 = vadd.f32 %v11321, %v11447
    %v11469 = vadd.f32 %v11322, %v11450
    %v11470 = vadd.f32 %v11323, %v11453
    %v11471 = vld [vmem:[%s10458 + $0x3] sm:$0xff]
    %v11472 = vld [vmem:[%s10458 + $0x13] sm:$0xff]
    %v11473 = vld [vmem:[%s10458 + $0x23] sm:$0xff]
    %v11474 = vld [vmem:[%s10458 + $0x33] sm:$0xff]
    %v11475 = vld [vmem:[%s10458 + $0x43] sm:$0xff]
    %v11476 = vld [vmem:[%s10458 + $0x53] sm:$0xff]
    %v11477 = vld [vmem:[%s10458 + $0x63] sm:$0xff]
    %v11478 = vld [vmem:[%s10458 + $0x73] sm:$0xff]
    %v11479 = vld [vmem:[%s10458 + $0xb3] sm:$0xff]
    %v11480 = vld [vmem:[%s10458 + $0xc3] sm:$0xff]
    %v11481 = vld [vmem:[%s10458 + $0xd3] sm:$0xff]
    %v11482 = vld [vmem:[%s10458 + $0xe3] sm:$0xff]
    %v11483 = vld [vmem:[%s10458 + $0xf3] sm:$0xff]
    %v11484 = vld [vmem:[%s10458 + $0x103] sm:$0xff]
    %v11485 = vld [vmem:[%s10458 + $0x113] sm:$0xff]
    %v11486 = vld [vmem:[%s10458 + $0x123] sm:$0xff]
    %s11487 = scalar_lea.vmem %s6, 56
    %v11488 = vld [vmem:[%s11487] sm:$0xff]
    %v11490 = vsel %vm8833, %v11471, 0
    %v11493 = vsel %vm8833, %v11472, 0
    %v11496 = vsel %vm8833, %v11473, 0
    %v11499 = vsel %vm8833, %v11474, 0
    %v11502 = vsel %vm8833, %v11475, 0
    %v11505 = vsel %vm8833, %v11476, 0
    %v11508 = vsel %vm8833, %v11477, 0
    %v11511 = vsel %vm8833, %v11478, 0
    %v11514 = vsel %vm8833, %v11479, 0
    %v11517 = vsel %vm8833, %v11480, 0
    %v11520 = vsel %vm8833, %v11481, 0
    %v11523 = vsel %vm8833, %v11482, 0
    %v11526 = vsel %vm8833, %v11483, 0
    %v11529 = vsel %vm8833, %v11484, 0
    %v11532 = vsel %vm8833, %v11485, 0
    %v11535 = vsel %vm8833, %v11486, 0
    %11537 = vmatpush.msra.mxu0 0.0
    %11538 = vmatpush.msra.mxu0 0.0
    %11539 = vmatpush.msra.mxu0 0.0
    %11540 = vmatpush.msra.mxu0 0.0
    %11541 = vmatpush.msra.mxu0 0.0
    %11542 = vmatpush.msra.mxu0 0.0
    %11543 = vmatpush.msra.mxu0 0.0
    %11544 = vmatpush.msra.mxu0 0.0
    %11545 = vmatpush.msra.mxu0 0.0
    %11546 = vmatpush.msra.mxu0 0.0
    %11547 = vmatpush.msra.mxu0 0.0
    %11548 = vmatpush.msra.mxu0 0.0
    %11549 = vmatpush.msra.mxu0 0.0
    %11550 = vmatpush.msra.mxu0 0.0
    %11551 = vmatpush.msra.mxu0 0.0
    %11552 = vmatpush.msra.mxu0 %v11488
    %11553 = vmatmul.f32.gmra.mxu0 %v11490
    %v11554 = vpop.f32.mrf.mxu0
    %v11555 = vadd.f32 0.0, %v11554
    %11556 = vmatmul.f32.gmra.mxu0 %v11493
    %v11557 = vpop.f32.mrf.mxu0
    %v11558 = vadd.f32 0.0, %v11557
    %11559 = vmatmul.f32.gmra.mxu0 %v11496
    %v11560 = vpop.f32.mrf.mxu0
    %v11561 = vadd.f32 0.0, %v11560
    %11562 = vmatmul.f32.gmra.mxu0 %v11499
    %v11563 = vpop.f32.mrf.mxu0
    %v11564 = vadd.f32 0.0, %v11563
    %11565 = vmatmul.f32.gmra.mxu0 %v11502
    %v11566 = vpop.f32.mrf.mxu0
    %v11567 = vadd.f32 0.0, %v11566
    %11568 = vmatmul.f32.gmra.mxu0 %v11505
    %v11569 = vpop.f32.mrf.mxu0
    %v11570 = vadd.f32 0.0, %v11569
    %11571 = vmatmul.f32.gmra.mxu0 %v11508
    %v11572 = vpop.f32.mrf.mxu0
    %v11573 = vadd.f32 0.0, %v11572
    %11574 = vmatmul.f32.gmra.mxu0 %v11511
    %v11575 = vpop.f32.mrf.mxu0
    %v11576 = vadd.f32 0.0, %v11575
    %11577 = vmatmul.f32.gmra.mxu0 %v11514
    %v11578 = vpop.f32.mrf.mxu0
    %v11579 = vadd.f32 0.0, %v11578
    %11580 = vmatmul.f32.gmra.mxu0 %v11517
    %v11581 = vpop.f32.mrf.mxu0
    %v11582 = vadd.f32 0.0, %v11581
    %11583 = vmatmul.f32.gmra.mxu0 %v11520
    %v11584 = vpop.f32.mrf.mxu0
    %v11585 = vadd.f32 0.0, %v11584
    %11586 = vmatmul.f32.gmra.mxu0 %v11523
    %v11587 = vpop.f32.mrf.mxu0
    %v11588 = vadd.f32 0.0, %v11587
    %11589 = vmatmul.f32.gmra.mxu0 %v11526
    %v11590 = vpop.f32.mrf.mxu0
    %v11591 = vadd.f32 0.0, %v11590
    %11592 = vmatmul.f32.gmra.mxu0 %v11529
    %v11593 = vpop.f32.mrf.mxu0
    %v11594 = vadd.f32 0.0, %v11593
    %11595 = vmatmul.f32.gmra.mxu0 %v11532
    %v11596 = vpop.f32.mrf.mxu0
    %v11597 = vadd.f32 0.0, %v11596
    %11598 = vmatmul.f32.gmra.mxu0 %v11535
    %v11599 = vpop.f32.mrf.mxu0
    %v11600 = vadd.f32 0.0, %v11599
    %11601 = vdwg.mxu0
    %v11602 = vadd.f32 %v11455, %v11555
    %v11603 = vadd.f32 %v11456, %v11558
    %v11604 = vadd.f32 %v11457, %v11561
    %v11605 = vadd.f32 %v11458, %v11564
    %v11606 = vadd.f32 %v11459, %v11567
    %v11607 = vadd.f32 %v11460, %v11570
    %v11608 = vadd.f32 %v11461, %v11573
    %v11609 = vadd.f32 %v11462, %v11576
    %v11610 = vadd.f32 %v11463, %v11579
    %v11611 = vadd.f32 %v11464, %v11582
    %v11612 = vadd.f32 %v11465, %v11585
    %v11613 = vadd.f32 %v11466, %v11588
    %v11614 = vadd.f32 %v11467, %v11591
    %v11615 = vadd.f32 %v11468, %v11594
    %v11616 = vadd.f32 %v11469, %v11597
    %v11617 = vadd.f32 %v11470, %v11600
    %s11618 = scalar_lea.vmem [#allocation3], 32
    %v11619 = vld [vmem:[%s11618] sm:$0xff]
    %v11620 = vld [vmem:[%s11618 + $0x10] sm:$0xff]
    %v11621 = vld [vmem:[%s11618 + $0x20] sm:$0xff]
    %v11622 = vld [vmem:[%s11618 + $0x30] sm:$0xff]
    %v11623 = vld [vmem:[%s11618 + $0x40] sm:$0xff]
    %v11624 = vld [vmem:[%s11618 + $0x50] sm:$0xff]
    %v11625 = vld [vmem:[%s11618 + $0x60] sm:$0xff]
    %v11626 = vld [vmem:[%s11618 + $0x70] sm:$0xff]
    %v11627 = vld [vmem:[%s11618 + $0xb0] sm:$0xff]
    %v11628 = vld [vmem:[%s11618 + $0xc0] sm:$0xff]
    %v11629 = vld [vmem:[%s11618 + $0xd0] sm:$0xff]
    %v11630 = vld [vmem:[%s11618 + $0xe0] sm:$0xff]
    %v11631 = vld [vmem:[%s11618 + $0xf0] sm:$0xff]
    %v11632 = vld [vmem:[%s11618 + $0x100] sm:$0xff]
    %v11633 = vld [vmem:[%s11618 + $0x110] sm:$0xff]
    %v11634 = vld [vmem:[%s11618 + $0x120] sm:$0xff]
    %s11635 = scalar_lea.vmem %s6, 64
    %v11636 = vld [vmem:[%s11635] sm:$0xff]
    %v11638 = vsel %vm8833, %v11619, 0
    %v11641 = vsel %vm8833, %v11620, 0
    %v11644 = vsel %vm8833, %v11621, 0
    %v11647 = vsel %vm8833, %v11622, 0
    %v11650 = vsel %vm8833, %v11623, 0
    %v11653 = vsel %vm8833, %v11624, 0
    %v11656 = vsel %vm8833, %v11625, 0
    %v11659 = vsel %vm8833, %v11626, 0
    %v11662 = vsel %vm8833, %v11627, 0
    %v11665 = vsel %vm8833, %v11628, 0
    %v11668 = vsel %vm8833, %v11629, 0
    %v11671 = vsel %vm8833, %v11630, 0
    %v11674 = vsel %vm8833, %v11631, 0
    %v11677 = vsel %vm8833, %v11632, 0
    %v11680 = vsel %vm8833, %v11633, 0
    %v11683 = vsel %vm8833, %v11634, 0
    %11685 = vmatpush.msra.mxu0 0.0
    %11686 = vmatpush.msra.mxu0 0.0
    %11687 = vmatpush.msra.mxu0 0.0
    %11688 = vmatpush.msra.mxu0 0.0
    %11689 = vmatpush.msra.mxu0 0.0
    %11690 = vmatpush.msra.mxu0 0.0
    %11691 = vmatpush.msra.mxu0 0.0
    %11692 = vmatpush.msra.mxu0 0.0
    %11693 = vmatpush.msra.mxu0 0.0
    %11694 = vmatpush.msra.mxu0 0.0
    %11695 = vmatpush.msra.mxu0 0.0
    %11696 = vmatpush.msra.mxu0 0.0
    %11697 = vmatpush.msra.mxu0 0.0
    %11698 = vmatpush.msra.mxu0 0.0
    %11699 = vmatpush.msra.mxu0 0.0
    %11700 = vmatpush.msra.mxu0 %v11636
    %11701 = vmatmul.f32.gmra.mxu0 %v11638
    %v11702 = vpop.f32.mrf.mxu0
    %v11703 = vadd.f32 0.0, %v11702
    %11704 = vmatmul.f32.gmra.mxu0 %v11641
    %v11705 = vpop.f32.mrf.mxu0
    %v11706 = vadd.f32 0.0, %v11705
    %11707 = vmatmul.f32.gmra.mxu0 %v11644
    %v11708 = vpop.f32.mrf.mxu0
    %v11709 = vadd.f32 0.0, %v11708
    %11710 = vmatmul.f32.gmra.mxu0 %v11647
    %v11711 = vpop.f32.mrf.mxu0
    %v11712 = vadd.f32 0.0, %v11711
    %11713 = vmatmul.f32.gmra.mxu0 %v11650
    %v11714 = vpop.f32.mrf.mxu0
    %v11715 = vadd.f32 0.0, %v11714
    %11716 = vmatmul.f32.gmra.mxu0 %v11653
    %v11717 = vpop.f32.mrf.mxu0
    %v11718 = vadd.f32 0.0, %v11717
    %11719 = vmatmul.f32.gmra.mxu0 %v11656
    %v11720 = vpop.f32.mrf.mxu0
    %v11721 = vadd.f32 0.0, %v11720
    %11722 = vmatmul.f32.gmra.mxu0 %v11659
    %v11723 = vpop.f32.mrf.mxu0
    %v11724 = vadd.f32 0.0, %v11723
    %11725 = vmatmul.f32.gmra.mxu0 %v11662
    %v11726 = vpop.f32.mrf.mxu0
    %v11727 = vadd.f32 0.0, %v11726
    %11728 = vmatmul.f32.gmra.mxu0 %v11665
    %v11729 = vpop.f32.mrf.mxu0
    %v11730 = vadd.f32 0.0, %v11729
    %11731 = vmatmul.f32.gmra.mxu0 %v11668
    %v11732 = vpop.f32.mrf.mxu0
    %v11733 = vadd.f32 0.0, %v11732
    %11734 = vmatmul.f32.gmra.mxu0 %v11671
    %v11735 = vpop.f32.mrf.mxu0
    %v11736 = vadd.f32 0.0, %v11735
    %11737 = vmatmul.f32.gmra.mxu0 %v11674
    %v11738 = vpop.f32.mrf.mxu0
    %v11739 = vadd.f32 0.0, %v11738
    %11740 = vmatmul.f32.gmra.mxu0 %v11677
    %v11741 = vpop.f32.mrf.mxu0
    %v11742 = vadd.f32 0.0, %v11741
    %11743 = vmatmul.f32.gmra.mxu0 %v11680
    %v11744 = vpop.f32.mrf.mxu0
    %v11745 = vadd.f32 0.0, %v11744
    %11746 = vmatmul.f32.gmra.mxu0 %v11683
    %v11747 = vpop.f32.mrf.mxu0
    %v11748 = vadd.f32 0.0, %v11747
    %11749 = vdwg.mxu0
    %v11750 = vadd.f32 %v11602, %v11703
    %v11751 = vadd.f32 %v11603, %v11706
    %v11752 = vadd.f32 %v11604, %v11709
    %v11753 = vadd.f32 %v11605, %v11712
    %v11754 = vadd.f32 %v11606, %v11715
    %v11755 = vadd.f32 %v11607, %v11718
    %v11756 = vadd.f32 %v11608, %v11721
    %v11757 = vadd.f32 %v11609, %v11724
    %v11758 = vadd.f32 %v11610, %v11727
    %v11759 = vadd.f32 %v11611, %v11730
    %v11760 = vadd.f32 %v11612, %v11733
    %v11761 = vadd.f32 %v11613, %v11736
    %v11762 = vadd.f32 %v11614, %v11739
    %v11763 = vadd.f32 %v11615, %v11742
    %v11764 = vadd.f32 %v11616, %v11745
    %v11765 = vadd.f32 %v11617, %v11748
    %v11766 = vld [vmem:[%s11618 + $0x1] sm:$0xff]
    %v11767 = vld [vmem:[%s11618 + $0x11] sm:$0xff]
    %v11768 = vld [vmem:[%s11618 + $0x21] sm:$0xff]
    %v11769 = vld [vmem:[%s11618 + $0x31] sm:$0xff]
    %v11770 = vld [vmem:[%s11618 + $0x41] sm:$0xff]
    %v11771 = vld [vmem:[%s11618 + $0x51] sm:$0xff]
    %v11772 = vld [vmem:[%s11618 + $0x61] sm:$0xff]
    %v11773 = vld [vmem:[%s11618 + $0x71] sm:$0xff]
    %v11774 = vld [vmem:[%s11618 + $0xb1] sm:$0xff]
    %v11775 = vld [vmem:[%s11618 + $0xc1] sm:$0xff]
    %v11776 = vld [vmem:[%s11618 + $0xd1] sm:$0xff]
    %v11777 = vld [vmem:[%s11618 + $0xe1] sm:$0xff]
    %v11778 = vld [vmem:[%s11618 + $0xf1] sm:$0xff]
    %v11779 = vld [vmem:[%s11618 + $0x101] sm:$0xff]
    %v11780 = vld [vmem:[%s11618 + $0x111] sm:$0xff]
    %v11781 = vld [vmem:[%s11618 + $0x121] sm:$0xff]
    %s11782 = scalar_lea.vmem %s6, 72
    %v11783 = vld [vmem:[%s11782] sm:$0xff]
    %v11785 = vsel %vm8833, %v11766, 0
    %v11788 = vsel %vm8833, %v11767, 0
    %v11791 = vsel %vm8833, %v11768, 0
    %v11794 = vsel %vm8833, %v11769, 0
    %v11797 = vsel %vm8833, %v11770, 0
    %v11800 = vsel %vm8833, %v11771, 0
    %v11803 = vsel %vm8833, %v11772, 0
    %v11806 = vsel %vm8833, %v11773, 0
    %v11809 = vsel %vm8833, %v11774, 0
    %v11812 = vsel %vm8833, %v11775, 0
    %v11815 = vsel %vm8833, %v11776, 0
    %v11818 = vsel %vm8833, %v11777, 0
    %v11821 = vsel %vm8833, %v11778, 0
    %v11824 = vsel %vm8833, %v11779, 0
    %v11827 = vsel %vm8833, %v11780, 0
    %v11830 = vsel %vm8833, %v11781, 0
    %11832 = vmatpush.msra.mxu0 0.0
    %11833 = vmatpush.msra.mxu0 0.0
    %11834 = vmatpush.msra.mxu0 0.0
    %11835 = vmatpush.msra.mxu0 0.0
    %11836 = vmatpush.msra.mxu0 0.0
    %11837 = vmatpush.msra.mxu0 0.0
    %11838 = vmatpush.msra.mxu0 0.0
    %11839 = vmatpush.msra.mxu0 0.0
    %11840 = vmatpush.msra.mxu0 0.0
    %11841 = vmatpush.msra.mxu0 0.0
    %11842 = vmatpush.msra.mxu0 0.0
    %11843 = vmatpush.msra.mxu0 0.0
    %11844 = vmatpush.msra.mxu0 0.0
    %11845 = vmatpush.msra.mxu0 0.0
    %11846 = vmatpush.msra.mxu0 0.0
    %11847 = vmatpush.msra.mxu0 %v11783
    %11848 = vmatmul.f32.gmra.mxu0 %v11785
    %v11849 = vpop.f32.mrf.mxu0
    %v11850 = vadd.f32 0.0, %v11849
    %11851 = vmatmul.f32.gmra.mxu0 %v11788
    %v11852 = vpop.f32.mrf.mxu0
    %v11853 = vadd.f32 0.0, %v11852
    %11854 = vmatmul.f32.gmra.mxu0 %v11791
    %v11855 = vpop.f32.mrf.mxu0
    %v11856 = vadd.f32 0.0, %v11855
    %11857 = vmatmul.f32.gmra.mxu0 %v11794
    %v11858 = vpop.f32.mrf.mxu0
    %v11859 = vadd.f32 0.0, %v11858
    %11860 = vmatmul.f32.gmra.mxu0 %v11797
    %v11861 = vpop.f32.mrf.mxu0
    %v11862 = vadd.f32 0.0, %v11861
    %11863 = vmatmul.f32.gmra.mxu0 %v11800
    %v11864 = vpop.f32.mrf.mxu0
    %v11865 = vadd.f32 0.0, %v11864
    %11866 = vmatmul.f32.gmra.mxu0 %v11803
    %v11867 = vpop.f32.mrf.mxu0
    %v11868 = vadd.f32 0.0, %v11867
    %11869 = vmatmul.f32.gmra.mxu0 %v11806
    %v11870 = vpop.f32.mrf.mxu0
    %v11871 = vadd.f32 0.0, %v11870
    %11872 = vmatmul.f32.gmra.mxu0 %v11809
    %v11873 = vpop.f32.mrf.mxu0
    %v11874 = vadd.f32 0.0, %v11873
    %11875 = vmatmul.f32.gmra.mxu0 %v11812
    %v11876 = vpop.f32.mrf.mxu0
    %v11877 = vadd.f32 0.0, %v11876
    %11878 = vmatmul.f32.gmra.mxu0 %v11815
    %v11879 = vpop.f32.mrf.mxu0
    %v11880 = vadd.f32 0.0, %v11879
    %11881 = vmatmul.f32.gmra.mxu0 %v11818
    %v11882 = vpop.f32.mrf.mxu0
    %v11883 = vadd.f32 0.0, %v11882
    %11884 = vmatmul.f32.gmra.mxu0 %v11821
    %v11885 = vpop.f32.mrf.mxu0
    %v11886 = vadd.f32 0.0, %v11885
    %11887 = vmatmul.f32.gmra.mxu0 %v11824
    %v11888 = vpop.f32.mrf.mxu0
    %v11889 = vadd.f32 0.0, %v11888
    %11890 = vmatmul.f32.gmra.mxu0 %v11827
    %v11891 = vpop.f32.mrf.mxu0
    %v11892 = vadd.f32 0.0, %v11891
    %11893 = vmatmul.f32.gmra.mxu0 %v11830
    %v11894 = vpop.f32.mrf.mxu0
    %v11895 = vadd.f32 0.0, %v11894
    %11896 = vdwg.mxu0
    %v11897 = vadd.f32 %v11750, %v11850
    %v11898 = vadd.f32 %v11751, %v11853
    %v11899 = vadd.f32 %v11752, %v11856
    %v11900 = vadd.f32 %v11753, %v11859
    %v11901 = vadd.f32 %v11754, %v11862
    %v11902 = vadd.f32 %v11755, %v11865
    %v11903 = vadd.f32 %v11756, %v11868
    %v11904 = vadd.f32 %v11757, %v11871
    %v11905 = vadd.f32 %v11758, %v11874
    %v11906 = vadd.f32 %v11759, %v11877
    %v11907 = vadd.f32 %v11760, %v11880
    %v11908 = vadd.f32 %v11761, %v11883
    %v11909 = vadd.f32 %v11762, %v11886
    %v11910 = vadd.f32 %v11763, %v11889
    %v11911 = vadd.f32 %v11764, %v11892
    %v11912 = vadd.f32 %v11765, %v11895
    %v11913 = vld [vmem:[%s11618 + $0x2] sm:$0xff]
    %v11914 = vld [vmem:[%s11618 + $0x12] sm:$0xff]
    %v11915 = vld [vmem:[%s11618 + $0x22] sm:$0xff]
    %v11916 = vld [vmem:[%s11618 + $0x32] sm:$0xff]
    %v11917 = vld [vmem:[%s11618 + $0x42] sm:$0xff]
    %v11918 = vld [vmem:[%s11618 + $0x52] sm:$0xff]
    %v11919 = vld [vmem:[%s11618 + $0x62] sm:$0xff]
    %v11920 = vld [vmem:[%s11618 + $0x72] sm:$0xff]
    %v11921 = vld [vmem:[%s11618 + $0xb2] sm:$0xff]
    %v11922 = vld [vmem:[%s11618 + $0xc2] sm:$0xff]
    %v11923 = vld [vmem:[%s11618 + $0xd2] sm:$0xff]
    %v11924 = vld [vmem:[%s11618 + $0xe2] sm:$0xff]
    %v11925 = vld [vmem:[%s11618 + $0xf2] sm:$0xff]
    %v11926 = vld [vmem:[%s11618 + $0x102] sm:$0xff]
    %v11927 = vld [vmem:[%s11618 + $0x112] sm:$0xff]
    %v11928 = vld [vmem:[%s11618 + $0x122] sm:$0xff]
    %s11929 = scalar_lea.vmem %s6, 80
    %v11930 = vld [vmem:[%s11929] sm:$0xff]
    %v11932 = vsel %vm8833, %v11913, 0
    %v11935 = vsel %vm8833, %v11914, 0
    %v11938 = vsel %vm8833, %v11915, 0
    %v11941 = vsel %vm8833, %v11916, 0
    %v11944 = vsel %vm8833, %v11917, 0
    %v11947 = vsel %vm8833, %v11918, 0
    %v11950 = vsel %vm8833, %v11919, 0
    %v11953 = vsel %vm8833, %v11920, 0
    %v11956 = vsel %vm8833, %v11921, 0
    %v11959 = vsel %vm8833, %v11922, 0
    %v11962 = vsel %vm8833, %v11923, 0
    %v11965 = vsel %vm8833, %v11924, 0
    %v11968 = vsel %vm8833, %v11925, 0
    %v11971 = vsel %vm8833, %v11926, 0
    %v11974 = vsel %vm8833, %v11927, 0
    %v11977 = vsel %vm8833, %v11928, 0
    %11979 = vmatpush.msra.mxu0 0.0
    %11980 = vmatpush.msra.mxu0 0.0
    %11981 = vmatpush.msra.mxu0 0.0
    %11982 = vmatpush.msra.mxu0 0.0
    %11983 = vmatpush.msra.mxu0 0.0
    %11984 = vmatpush.msra.mxu0 0.0
    %11985 = vmatpush.msra.mxu0 0.0
    %11986 = vmatpush.msra.mxu0 0.0
    %11987 = vmatpush.msra.mxu0 0.0
    %11988 = vmatpush.msra.mxu0 0.0
    %11989 = vmatpush.msra.mxu0 0.0
    %11990 = vmatpush.msra.mxu0 0.0
    %11991 = vmatpush.msra.mxu0 0.0
    %11992 = vmatpush.msra.mxu0 0.0
    %11993 = vmatpush.msra.mxu0 0.0
    %11994 = vmatpush.msra.mxu0 %v11930
    %11995 = vmatmul.f32.gmra.mxu0 %v11932
    %v11996 = vpop.f32.mrf.mxu0
    %v11997 = vadd.f32 0.0, %v11996
    %11998 = vmatmul.f32.gmra.mxu0 %v11935
    %v11999 = vpop.f32.mrf.mxu0
    %v12000 = vadd.f32 0.0, %v11999
    %12001 = vmatmul.f32.gmra.mxu0 %v11938
    %v12002 = vpop.f32.mrf.mxu0
    %v12003 = vadd.f32 0.0, %v12002
    %12004 = vmatmul.f32.gmra.mxu0 %v11941
    %v12005 = vpop.f32.mrf.mxu0
    %v12006 = vadd.f32 0.0, %v12005
    %12007 = vmatmul.f32.gmra.mxu0 %v11944
    %v12008 = vpop.f32.mrf.mxu0
    %v12009 = vadd.f32 0.0, %v12008
    %12010 = vmatmul.f32.gmra.mxu0 %v11947
    %v12011 = vpop.f32.mrf.mxu0
    %v12012 = vadd.f32 0.0, %v12011
    %12013 = vmatmul.f32.gmra.mxu0 %v11950
    %v12014 = vpop.f32.mrf.mxu0
    %v12015 = vadd.f32 0.0, %v12014
    %12016 = vmatmul.f32.gmra.mxu0 %v11953
    %v12017 = vpop.f32.mrf.mxu0
    %v12018 = vadd.f32 0.0, %v12017
    %12019 = vmatmul.f32.gmra.mxu0 %v11956
    %v12020 = vpop.f32.mrf.mxu0
    %v12021 = vadd.f32 0.0, %v12020
    %12022 = vmatmul.f32.gmra.mxu0 %v11959
    %v12023 = vpop.f32.mrf.mxu0
    %v12024 = vadd.f32 0.0, %v12023
    %12025 = vmatmul.f32.gmra.mxu0 %v11962
    %v12026 = vpop.f32.mrf.mxu0
    %v12027 = vadd.f32 0.0, %v12026
    %12028 = vmatmul.f32.gmra.mxu0 %v11965
    %v12029 = vpop.f32.mrf.mxu0
    %v12030 = vadd.f32 0.0, %v12029
    %12031 = vmatmul.f32.gmra.mxu0 %v11968
    %v12032 = vpop.f32.mrf.mxu0
    %v12033 = vadd.f32 0.0, %v12032
    %12034 = vmatmul.f32.gmra.mxu0 %v11971
    %v12035 = vpop.f32.mrf.mxu0
    %v12036 = vadd.f32 0.0, %v12035
    %12037 = vmatmul.f32.gmra.mxu0 %v11974
    %v12038 = vpop.f32.mrf.mxu0
    %v12039 = vadd.f32 0.0, %v12038
    %12040 = vmatmul.f32.gmra.mxu0 %v11977
    %v12041 = vpop.f32.mrf.mxu0
    %v12042 = vadd.f32 0.0, %v12041
    %12043 = vdwg.mxu0
    %v12044 = vadd.f32 %v11897, %v11997
    %v12045 = vadd.f32 %v11898, %v12000
    %v12046 = vadd.f32 %v11899, %v12003
    %v12047 = vadd.f32 %v11900, %v12006
    %v12048 = vadd.f32 %v11901, %v12009
    %v12049 = vadd.f32 %v11902, %v12012
    %v12050 = vadd.f32 %v11903, %v12015
    %v12051 = vadd.f32 %v11904, %v12018
    %v12052 = vadd.f32 %v11905, %v12021
    %v12053 = vadd.f32 %v11906, %v12024
    %v12054 = vadd.f32 %v11907, %v12027
    %v12055 = vadd.f32 %v11908, %v12030
    %v12056 = vadd.f32 %v11909, %v12033
    %v12057 = vadd.f32 %v11910, %v12036
    %v12058 = vadd.f32 %v11911, %v12039
    %v12059 = vadd.f32 %v11912, %v12042
    %v12060 = vld [vmem:[%s11618 + $0x3] sm:$0xff]
    %v12061 = vld [vmem:[%s11618 + $0x13] sm:$0xff]
    %v12062 = vld [vmem:[%s11618 + $0x23] sm:$0xff]
    %v12063 = vld [vmem:[%s11618 + $0x33] sm:$0xff]
    %v12064 = vld [vmem:[%s11618 + $0x43] sm:$0xff]
    %v12065 = vld [vmem:[%s11618 + $0x53] sm:$0xff]
    %v12066 = vld [vmem:[%s11618 + $0x63] sm:$0xff]
    %v12067 = vld [vmem:[%s11618 + $0x73] sm:$0xff]
    %v12068 = vld [vmem:[%s11618 + $0xb3] sm:$0xff]
    %v12069 = vld [vmem:[%s11618 + $0xc3] sm:$0xff]
    %v12070 = vld [vmem:[%s11618 + $0xd3] sm:$0xff]
    %v12071 = vld [vmem:[%s11618 + $0xe3] sm:$0xff]
    %v12072 = vld [vmem:[%s11618 + $0xf3] sm:$0xff]
    %v12073 = vld [vmem:[%s11618 + $0x103] sm:$0xff]
    %v12074 = vld [vmem:[%s11618 + $0x113] sm:$0xff]
    %v12075 = vld [vmem:[%s11618 + $0x123] sm:$0xff]
    %s12076 = scalar_lea.vmem %s6, 88
    %v12077 = vld [vmem:[%s12076] sm:$0xff]
    %v12079 = vsel %vm8833, %v12060, 0
    %v12082 = vsel %vm8833, %v12061, 0
    %v12085 = vsel %vm8833, %v12062, 0
    %v12088 = vsel %vm8833, %v12063, 0
    %v12091 = vsel %vm8833, %v12064, 0
    %v12094 = vsel %vm8833, %v12065, 0
    %v12097 = vsel %vm8833, %v12066, 0
    %v12100 = vsel %vm8833, %v12067, 0
    %v12103 = vsel %vm8833, %v12068, 0
    %v12106 = vsel %vm8833, %v12069, 0
    %v12109 = vsel %vm8833, %v12070, 0
    %v12112 = vsel %vm8833, %v12071, 0
    %v12115 = vsel %vm8833, %v12072, 0
    %v12118 = vsel %vm8833, %v12073, 0
    %v12121 = vsel %vm8833, %v12074, 0
    %v12124 = vsel %vm8833, %v12075, 0
    %12126 = vmatpush.msra.mxu0 0.0
    %12127 = vmatpush.msra.mxu0 0.0
    %12128 = vmatpush.msra.mxu0 0.0
    %12129 = vmatpush.msra.mxu0 0.0
    %12130 = vmatpush.msra.mxu0 0.0
    %12131 = vmatpush.msra.mxu0 0.0
    %12132 = vmatpush.msra.mxu0 0.0
    %12133 = vmatpush.msra.mxu0 0.0
    %12134 = vmatpush.msra.mxu0 0.0
    %12135 = vmatpush.msra.mxu0 0.0
    %12136 = vmatpush.msra.mxu0 0.0
    %12137 = vmatpush.msra.mxu0 0.0
    %12138 = vmatpush.msra.mxu0 0.0
    %12139 = vmatpush.msra.mxu0 0.0
    %12140 = vmatpush.msra.mxu0 0.0
    %12141 = vmatpush.msra.mxu0 %v12077
    %12142 = vmatmul.f32.gmra.mxu0 %v12079
    %v12143 = vpop.f32.mrf.mxu0
    %v12144 = vadd.f32 0.0, %v12143
    %12145 = vmatmul.f32.gmra.mxu0 %v12082
    %v12146 = vpop.f32.mrf.mxu0
    %v12147 = vadd.f32 0.0, %v12146
    %12148 = vmatmul.f32.gmra.mxu0 %v12085
    %v12149 = vpop.f32.mrf.mxu0
    %v12150 = vadd.f32 0.0, %v12149
    %12151 = vmatmul.f32.gmra.mxu0 %v12088
    %v12152 = vpop.f32.mrf.mxu0
    %v12153 = vadd.f32 0.0, %v12152
    %12154 = vmatmul.f32.gmra.mxu0 %v12091
    %v12155 = vpop.f32.mrf.mxu0
    %v12156 = vadd.f32 0.0, %v12155
    %12157 = vmatmul.f32.gmra.mxu0 %v12094
    %v12158 = vpop.f32.mrf.mxu0
    %v12159 = vadd.f32 0.0, %v12158
    %12160 = vmatmul.f32.gmra.mxu0 %v12097
    %v12161 = vpop.f32.mrf.mxu0
    %v12162 = vadd.f32 0.0, %v12161
    %12163 = vmatmul.f32.gmra.mxu0 %v12100
    %v12164 = vpop.f32.mrf.mxu0
    %v12165 = vadd.f32 0.0, %v12164
    %12166 = vmatmul.f32.gmra.mxu0 %v12103
    %v12167 = vpop.f32.mrf.mxu0
    %v12168 = vadd.f32 0.0, %v12167
    %12169 = vmatmul.f32.gmra.mxu0 %v12106
    %v12170 = vpop.f32.mrf.mxu0
    %v12171 = vadd.f32 0.0, %v12170
    %12172 = vmatmul.f32.gmra.mxu0 %v12109
    %v12173 = vpop.f32.mrf.mxu0
    %v12174 = vadd.f32 0.0, %v12173
    %12175 = vmatmul.f32.gmra.mxu0 %v12112
    %v12176 = vpop.f32.mrf.mxu0
    %v12177 = vadd.f32 0.0, %v12176
    %12178 = vmatmul.f32.gmra.mxu0 %v12115
    %v12179 = vpop.f32.mrf.mxu0
    %v12180 = vadd.f32 0.0, %v12179
    %12181 = vmatmul.f32.gmra.mxu0 %v12118
    %v12182 = vpop.f32.mrf.mxu0
    %v12183 = vadd.f32 0.0, %v12182
    %12184 = vmatmul.f32.gmra.mxu0 %v12121
    %v12185 = vpop.f32.mrf.mxu0
    %v12186 = vadd.f32 0.0, %v12185
    %12187 = vmatmul.f32.gmra.mxu0 %v12124
    %v12188 = vpop.f32.mrf.mxu0
    %v12189 = vadd.f32 0.0, %v12188
    %12190 = vdwg.mxu0
    %v12191 = vadd.f32 %v12044, %v12144
    %v12192 = vadd.f32 %v12045, %v12147
    %v12193 = vadd.f32 %v12046, %v12150
    %v12194 = vadd.f32 %v12047, %v12153
    %v12195 = vadd.f32 %v12048, %v12156
    %v12196 = vadd.f32 %v12049, %v12159
    %v12197 = vadd.f32 %v12050, %v12162
    %v12198 = vadd.f32 %v12051, %v12165
    %v12199 = vadd.f32 %v12052, %v12168
    %v12200 = vadd.f32 %v12053, %v12171
    %v12201 = vadd.f32 %v12054, %v12174
    %v12202 = vadd.f32 %v12055, %v12177
    %v12203 = vadd.f32 %v12056, %v12180
    %v12204 = vadd.f32 %v12057, %v12183
    %v12205 = vadd.f32 %v12058, %v12186
    %v12206 = vadd.f32 %v12059, %v12189
    %s12207 = scalar_lea.vmem [#allocation3], 48
    %v12208 = vld [vmem:[%s12207] sm:$0xff]
    %v12209 = vld [vmem:[%s12207 + $0x10] sm:$0xff]
    %v12210 = vld [vmem:[%s12207 + $0x20] sm:$0xff]
    %v12211 = vld [vmem:[%s12207 + $0x30] sm:$0xff]
    %v12212 = vld [vmem:[%s12207 + $0x40] sm:$0xff]
    %v12213 = vld [vmem:[%s12207 + $0x50] sm:$0xff]
    %v12214 = vld [vmem:[%s12207 + $0x60] sm:$0xff]
    %v12215 = vld [vmem:[%s12207 + $0x70] sm:$0xff]
    %v12216 = vld [vmem:[%s12207 + $0xb0] sm:$0xff]
    %v12217 = vld [vmem:[%s12207 + $0xc0] sm:$0xff]
    %v12218 = vld [vmem:[%s12207 + $0xd0] sm:$0xff]
    %v12219 = vld [vmem:[%s12207 + $0xe0] sm:$0xff]
    %v12220 = vld [vmem:[%s12207 + $0xf0] sm:$0xff]
    %v12221 = vld [vmem:[%s12207 + $0x100] sm:$0xff]
    %v12222 = vld [vmem:[%s12207 + $0x110] sm:$0xff]
    %v12223 = vld [vmem:[%s12207 + $0x120] sm:$0xff]
    %s12224 = scalar_lea.vmem %s6, 96
    %v12225 = vld [vmem:[%s12224] sm:$0xff]
    %v12227 = vsel %vm8833, %v12208, 0
    %v12230 = vsel %vm8833, %v12209, 0
    %v12233 = vsel %vm8833, %v12210, 0
    %v12236 = vsel %vm8833, %v12211, 0
    %v12239 = vsel %vm8833, %v12212, 0
    %v12242 = vsel %vm8833, %v12213, 0
    %v12245 = vsel %vm8833, %v12214, 0
    %v12248 = vsel %vm8833, %v12215, 0
    %v12251 = vsel %vm8833, %v12216, 0
    %v12254 = vsel %vm8833, %v12217, 0
    %v12257 = vsel %vm8833, %v12218, 0
    %v12260 = vsel %vm8833, %v12219, 0
    %v12263 = vsel %vm8833, %v12220, 0
    %v12266 = vsel %vm8833, %v12221, 0
    %v12269 = vsel %vm8833, %v12222, 0
    %v12272 = vsel %vm8833, %v12223, 0
    %12274 = vmatpush.msra.mxu0 0.0
    %12275 = vmatpush.msra.mxu0 0.0
    %12276 = vmatpush.msra.mxu0 0.0
    %12277 = vmatpush.msra.mxu0 0.0
    %12278 = vmatpush.msra.mxu0 0.0
    %12279 = vmatpush.msra.mxu0 0.0
    %12280 = vmatpush.msra.mxu0 0.0
    %12281 = vmatpush.msra.mxu0 0.0
    %12282 = vmatpush.msra.mxu0 0.0
    %12283 = vmatpush.msra.mxu0 0.0
    %12284 = vmatpush.msra.mxu0 0.0
    %12285 = vmatpush.msra.mxu0 0.0
    %12286 = vmatpush.msra.mxu0 0.0
    %12287 = vmatpush.msra.mxu0 0.0
    %12288 = vmatpush.msra.mxu0 0.0
    %12289 = vmatpush.msra.mxu0 %v12225
    %12290 = vmatmul.f32.gmra.mxu0 %v12227
    %v12291 = vpop.f32.mrf.mxu0
    %v12292 = vadd.f32 0.0, %v12291
    %12293 = vmatmul.f32.gmra.mxu0 %v12230
    %v12294 = vpop.f32.mrf.mxu0
    %v12295 = vadd.f32 0.0, %v12294
    %12296 = vmatmul.f32.gmra.mxu0 %v12233
    %v12297 = vpop.f32.mrf.mxu0
    %v12298 = vadd.f32 0.0, %v12297
    %12299 = vmatmul.f32.gmra.mxu0 %v12236
    %v12300 = vpop.f32.mrf.mxu0
    %v12301 = vadd.f32 0.0, %v12300
    %12302 = vmatmul.f32.gmra.mxu0 %v12239
    %v12303 = vpop.f32.mrf.mxu0
    %v12304 = vadd.f32 0.0, %v12303
    %12305 = vmatmul.f32.gmra.mxu0 %v12242
    %v12306 = vpop.f32.mrf.mxu0
    %v12307 = vadd.f32 0.0, %v12306
    %12308 = vmatmul.f32.gmra.mxu0 %v12245
    %v12309 = vpop.f32.mrf.mxu0
    %v12310 = vadd.f32 0.0, %v12309
    %12311 = vmatmul.f32.gmra.mxu0 %v12248
    %v12312 = vpop.f32.mrf.mxu0
    %v12313 = vadd.f32 0.0, %v12312
    %12314 = vmatmul.f32.gmra.mxu0 %v12251
    %v12315 = vpop.f32.mrf.mxu0
    %v12316 = vadd.f32 0.0, %v12315
    %12317 = vmatmul.f32.gmra.mxu0 %v12254
    %v12318 = vpop.f32.mrf.mxu0
    %v12319 = vadd.f32 0.0, %v12318
    %12320 = vmatmul.f32.gmra.mxu0 %v12257
    %v12321 = vpop.f32.mrf.mxu0
    %v12322 = vadd.f32 0.0, %v12321
    %12323 = vmatmul.f32.gmra.mxu0 %v12260
    %v12324 = vpop.f32.mrf.mxu0
    %v12325 = vadd.f32 0.0, %v12324
    %12326 = vmatmul.f32.gmra.mxu0 %v12263
    %v12327 = vpop.f32.mrf.mxu0
    %v12328 = vadd.f32 0.0, %v12327
    %12329 = vmatmul.f32.gmra.mxu0 %v12266
    %v12330 = vpop.f32.mrf.mxu0
    %v12331 = vadd.f32 0.0, %v12330
    %12332 = vmatmul.f32.gmra.mxu0 %v12269
    %v12333 = vpop.f32.mrf.mxu0
    %v12334 = vadd.f32 0.0, %v12333
    %12335 = vmatmul.f32.gmra.mxu0 %v12272
    %v12336 = vpop.f32.mrf.mxu0
    %v12337 = vadd.f32 0.0, %v12336
    %12338 = vdwg.mxu0
    %v12339 = vadd.f32 %v12191, %v12292
    %v12340 = vadd.f32 %v12192, %v12295
    %v12341 = vadd.f32 %v12193, %v12298
    %v12342 = vadd.f32 %v12194, %v12301
    %v12343 = vadd.f32 %v12195, %v12304
    %v12344 = vadd.f32 %v12196, %v12307
    %v12345 = vadd.f32 %v12197, %v12310
    %v12346 = vadd.f32 %v12198, %v12313
    %v12347 = vadd.f32 %v12199, %v12316
    %v12348 = vadd.f32 %v12200, %v12319
    %v12349 = vadd.f32 %v12201, %v12322
    %v12350 = vadd.f32 %v12202, %v12325
    %v12351 = vadd.f32 %v12203, %v12328
    %v12352 = vadd.f32 %v12204, %v12331
    %v12353 = vadd.f32 %v12205, %v12334
    %v12354 = vadd.f32 %v12206, %v12337
    %v12355 = vld [vmem:[%s12207 + $0x1] sm:$0xff]
    %v12356 = vld [vmem:[%s12207 + $0x11] sm:$0xff]
    %v12357 = vld [vmem:[%s12207 + $0x21] sm:$0xff]
    %v12358 = vld [vmem:[%s12207 + $0x31] sm:$0xff]
    %v12359 = vld [vmem:[%s12207 + $0x41] sm:$0xff]
    %v12360 = vld [vmem:[%s12207 + $0x51] sm:$0xff]
    %v12361 = vld [vmem:[%s12207 + $0x61] sm:$0xff]
    %v12362 = vld [vmem:[%s12207 + $0x71] sm:$0xff]
    %v12363 = vld [vmem:[%s12207 + $0xb1] sm:$0xff]
    %v12364 = vld [vmem:[%s12207 + $0xc1] sm:$0xff]
    %v12365 = vld [vmem:[%s12207 + $0xd1] sm:$0xff]
    %v12366 = vld [vmem:[%s12207 + $0xe1] sm:$0xff]
    %v12367 = vld [vmem:[%s12207 + $0xf1] sm:$0xff]
    %v12368 = vld [vmem:[%s12207 + $0x101] sm:$0xff]
    %v12369 = vld [vmem:[%s12207 + $0x111] sm:$0xff]
    %v12370 = vld [vmem:[%s12207 + $0x121] sm:$0xff]
    %s12371 = scalar_lea.vmem %s6, 104
    %v12372 = vld [vmem:[%s12371] sm:$0xff]
    %v12374 = vsel %vm8833, %v12355, 0
    %v12377 = vsel %vm8833, %v12356, 0
    %v12380 = vsel %vm8833, %v12357, 0
    %v12383 = vsel %vm8833, %v12358, 0
    %v12386 = vsel %vm8833, %v12359, 0
    %v12389 = vsel %vm8833, %v12360, 0
    %v12392 = vsel %vm8833, %v12361, 0
    %v12395 = vsel %vm8833, %v12362, 0
    %v12398 = vsel %vm8833, %v12363, 0
    %v12401 = vsel %vm8833, %v12364, 0
    %v12404 = vsel %vm8833, %v12365, 0
    %v12407 = vsel %vm8833, %v12366, 0
    %v12410 = vsel %vm8833, %v12367, 0
    %v12413 = vsel %vm8833, %v12368, 0
    %v12416 = vsel %vm8833, %v12369, 0
    %v12419 = vsel %vm8833, %v12370, 0
    %12421 = vmatpush.msra.mxu0 0.0
    %12422 = vmatpush.msra.mxu0 0.0
    %12423 = vmatpush.msra.mxu0 0.0
    %12424 = vmatpush.msra.mxu0 0.0
    %12425 = vmatpush.msra.mxu0 0.0
    %12426 = vmatpush.msra.mxu0 0.0
    %12427 = vmatpush.msra.mxu0 0.0
    %12428 = vmatpush.msra.mxu0 0.0
    %12429 = vmatpush.msra.mxu0 0.0
    %12430 = vmatpush.msra.mxu0 0.0
    %12431 = vmatpush.msra.mxu0 0.0
    %12432 = vmatpush.msra.mxu0 0.0
    %12433 = vmatpush.msra.mxu0 0.0
    %12434 = vmatpush.msra.mxu0 0.0
    %12435 = vmatpush.msra.mxu0 0.0
    %12436 = vmatpush.msra.mxu0 %v12372
    %12437 = vmatmul.f32.gmra.mxu0 %v12374
    %v12438 = vpop.f32.mrf.mxu0
    %v12439 = vadd.f32 0.0, %v12438
    %12440 = vmatmul.f32.gmra.mxu0 %v12377
    %v12441 = vpop.f32.mrf.mxu0
    %v12442 = vadd.f32 0.0, %v12441
    %12443 = vmatmul.f32.gmra.mxu0 %v12380
    %v12444 = vpop.f32.mrf.mxu0
    %v12445 = vadd.f32 0.0, %v12444
    %12446 = vmatmul.f32.gmra.mxu0 %v12383
    %v12447 = vpop.f32.mrf.mxu0
    %v12448 = vadd.f32 0.0, %v12447
    %12449 = vmatmul.f32.gmra.mxu0 %v12386
    %v12450 = vpop.f32.mrf.mxu0
    %v12451 = vadd.f32 0.0, %v12450
    %12452 = vmatmul.f32.gmra.mxu0 %v12389
    %v12453 = vpop.f32.mrf.mxu0
    %v12454 = vadd.f32 0.0, %v12453
    %12455 = vmatmul.f32.gmra.mxu0 %v12392
    %v12456 = vpop.f32.mrf.mxu0
    %v12457 = vadd.f32 0.0, %v12456
    %12458 = vmatmul.f32.gmra.mxu0 %v12395
    %v12459 = vpop.f32.mrf.mxu0
    %v12460 = vadd.f32 0.0, %v12459
    %12461 = vmatmul.f32.gmra.mxu0 %v12398
    %v12462 = vpop.f32.mrf.mxu0
    %v12463 = vadd.f32 0.0, %v12462
    %12464 = vmatmul.f32.gmra.mxu0 %v12401
    %v12465 = vpop.f32.mrf.mxu0
    %v12466 = vadd.f32 0.0, %v12465
    %12467 = vmatmul.f32.gmra.mxu0 %v12404
    %v12468 = vpop.f32.mrf.mxu0
    %v12469 = vadd.f32 0.0, %v12468
    %12470 = vmatmul.f32.gmra.mxu0 %v12407
    %v12471 = vpop.f32.mrf.mxu0
    %v12472 = vadd.f32 0.0, %v12471
    %12473 = vmatmul.f32.gmra.mxu0 %v12410
    %v12474 = vpop.f32.mrf.mxu0
    %v12475 = vadd.f32 0.0, %v12474
    %12476 = vmatmul.f32.gmra.mxu0 %v12413
    %v12477 = vpop.f32.mrf.mxu0
    %v12478 = vadd.f32 0.0, %v12477
    %12479 = vmatmul.f32.gmra.mxu0 %v12416
    %v12480 = vpop.f32.mrf.mxu0
    %v12481 = vadd.f32 0.0, %v12480
    %12482 = vmatmul.f32.gmra.mxu0 %v12419
    %v12483 = vpop.f32.mrf.mxu0
    %v12484 = vadd.f32 0.0, %v12483
    %12485 = vdwg.mxu0
    %v12486 = vadd.f32 %v12339, %v12439
    %v12487 = vadd.f32 %v12340, %v12442
    %v12488 = vadd.f32 %v12341, %v12445
    %v12489 = vadd.f32 %v12342, %v12448
    %v12490 = vadd.f32 %v12343, %v12451
    %v12491 = vadd.f32 %v12344, %v12454
    %v12492 = vadd.f32 %v12345, %v12457
    %v12493 = vadd.f32 %v12346, %v12460
    %v12494 = vadd.f32 %v12347, %v12463
    %v12495 = vadd.f32 %v12348, %v12466
    %v12496 = vadd.f32 %v12349, %v12469
    %v12497 = vadd.f32 %v12350, %v12472
    %v12498 = vadd.f32 %v12351, %v12475
    %v12499 = vadd.f32 %v12352, %v12478
    %v12500 = vadd.f32 %v12353, %v12481
    %v12501 = vadd.f32 %v12354, %v12484
    %v12502 = vld [vmem:[%s12207 + $0x2] sm:$0xff]
    %v12503 = vld [vmem:[%s12207 + $0x12] sm:$0xff]
    %v12504 = vld [vmem:[%s12207 + $0x22] sm:$0xff]
    %v12505 = vld [vmem:[%s12207 + $0x32] sm:$0xff]
    %v12506 = vld [vmem:[%s12207 + $0x42] sm:$0xff]
    %v12507 = vld [vmem:[%s12207 + $0x52] sm:$0xff]
    %v12508 = vld [vmem:[%s12207 + $0x62] sm:$0xff]
    %v12509 = vld [vmem:[%s12207 + $0x72] sm:$0xff]
    %v12510 = vld [vmem:[%s12207 + $0xb2] sm:$0xff]
    %v12511 = vld [vmem:[%s12207 + $0xc2] sm:$0xff]
    %v12512 = vld [vmem:[%s12207 + $0xd2] sm:$0xff]
    %v12513 = vld [vmem:[%s12207 + $0xe2] sm:$0xff]
    %v12514 = vld [vmem:[%s12207 + $0xf2] sm:$0xff]
    %v12515 = vld [vmem:[%s12207 + $0x102] sm:$0xff]
    %v12516 = vld [vmem:[%s12207 + $0x112] sm:$0xff]
    %v12517 = vld [vmem:[%s12207 + $0x122] sm:$0xff]
    %s12518 = scalar_lea.vmem %s6, 112
    %v12519 = vld [vmem:[%s12518] sm:$0xff]
    %v12521 = vsel %vm8833, %v12502, 0
    %v12524 = vsel %vm8833, %v12503, 0
    %v12527 = vsel %vm8833, %v12504, 0
    %v12530 = vsel %vm8833, %v12505, 0
    %v12533 = vsel %vm8833, %v12506, 0
    %v12536 = vsel %vm8833, %v12507, 0
    %v12539 = vsel %vm8833, %v12508, 0
    %v12542 = vsel %vm8833, %v12509, 0
    %v12545 = vsel %vm8833, %v12510, 0
    %v12548 = vsel %vm8833, %v12511, 0
    %v12551 = vsel %vm8833, %v12512, 0
    %v12554 = vsel %vm8833, %v12513, 0
    %v12557 = vsel %vm8833, %v12514, 0
    %v12560 = vsel %vm8833, %v12515, 0
    %v12563 = vsel %vm8833, %v12516, 0
    %v12566 = vsel %vm8833, %v12517, 0
    %12568 = vmatpush.msra.mxu0 0.0
    %12569 = vmatpush.msra.mxu0 0.0
    %12570 = vmatpush.msra.mxu0 0.0
    %12571 = vmatpush.msra.mxu0 0.0
    %12572 = vmatpush.msra.mxu0 0.0
    %12573 = vmatpush.msra.mxu0 0.0
    %12574 = vmatpush.msra.mxu0 0.0
    %12575 = vmatpush.msra.mxu0 0.0
    %12576 = vmatpush.msra.mxu0 0.0
    %12577 = vmatpush.msra.mxu0 0.0
    %12578 = vmatpush.msra.mxu0 0.0
    %12579 = vmatpush.msra.mxu0 0.0
    %12580 = vmatpush.msra.mxu0 0.0
    %12581 = vmatpush.msra.mxu0 0.0
    %12582 = vmatpush.msra.mxu0 0.0
    %12583 = vmatpush.msra.mxu0 %v12519
    %12584 = vmatmul.f32.gmra.mxu0 %v12521
    %v12585 = vpop.f32.mrf.mxu0
    %v12586 = vadd.f32 0.0, %v12585
    %12587 = vmatmul.f32.gmra.mxu0 %v12524
    %v12588 = vpop.f32.mrf.mxu0
    %v12589 = vadd.f32 0.0, %v12588
    %12590 = vmatmul.f32.gmra.mxu0 %v12527
    %v12591 = vpop.f32.mrf.mxu0
    %v12592 = vadd.f32 0.0, %v12591
    %12593 = vmatmul.f32.gmra.mxu0 %v12530
    %v12594 = vpop.f32.mrf.mxu0
    %v12595 = vadd.f32 0.0, %v12594
    %12596 = vmatmul.f32.gmra.mxu0 %v12533
    %v12597 = vpop.f32.mrf.mxu0
    %v12598 = vadd.f32 0.0, %v12597
    %12599 = vmatmul.f32.gmra.mxu0 %v12536
    %v12600 = vpop.f32.mrf.mxu0
    %v12601 = vadd.f32 0.0, %v12600
    %12602 = vmatmul.f32.gmra.mxu0 %v12539
    %v12603 = vpop.f32.mrf.mxu0
    %v12604 = vadd.f32 0.0, %v12603
    %12605 = vmatmul.f32.gmra.mxu0 %v12542
    %v12606 = vpop.f32.mrf.mxu0
    %v12607 = vadd.f32 0.0, %v12606
    %12608 = vmatmul.f32.gmra.mxu0 %v12545
    %v12609 = vpop.f32.mrf.mxu0
    %v12610 = vadd.f32 0.0, %v12609
    %12611 = vmatmul.f32.gmra.mxu0 %v12548
    %v12612 = vpop.f32.mrf.mxu0
    %v12613 = vadd.f32 0.0, %v12612
    %12614 = vmatmul.f32.gmra.mxu0 %v12551
    %v12615 = vpop.f32.mrf.mxu0
    %v12616 = vadd.f32 0.0, %v12615
    %12617 = vmatmul.f32.gmra.mxu0 %v12554
    %v12618 = vpop.f32.mrf.mxu0
    %v12619 = vadd.f32 0.0, %v12618
    %12620 = vmatmul.f32.gmra.mxu0 %v12557
    %v12621 = vpop.f32.mrf.mxu0
    %v12622 = vadd.f32 0.0, %v12621
    %12623 = vmatmul.f32.gmra.mxu0 %v12560
    %v12624 = vpop.f32.mrf.mxu0
    %v12625 = vadd.f32 0.0, %v12624
    %12626 = vmatmul.f32.gmra.mxu0 %v12563
    %v12627 = vpop.f32.mrf.mxu0
    %v12628 = vadd.f32 0.0, %v12627
    %12629 = vmatmul.f32.gmra.mxu0 %v12566
    %v12630 = vpop.f32.mrf.mxu0
    %v12631 = vadd.f32 0.0, %v12630
    %12632 = vdwg.mxu0
    %v12633 = vadd.f32 %v12486, %v12586
    %v12634 = vadd.f32 %v12487, %v12589
    %v12635 = vadd.f32 %v12488, %v12592
    %v12636 = vadd.f32 %v12489, %v12595
    %v12637 = vadd.f32 %v12490, %v12598
    %v12638 = vadd.f32 %v12491, %v12601
    %v12639 = vadd.f32 %v12492, %v12604
    %v12640 = vadd.f32 %v12493, %v12607
    %v12641 = vadd.f32 %v12494, %v12610
    %v12642 = vadd.f32 %v12495, %v12613
    %v12643 = vadd.f32 %v12496, %v12616
    %v12644 = vadd.f32 %v12497, %v12619
    %v12645 = vadd.f32 %v12498, %v12622
    %v12646 = vadd.f32 %v12499, %v12625
    %v12647 = vadd.f32 %v12500, %v12628
    %v12648 = vadd.f32 %v12501, %v12631
    %v12649 = vld [vmem:[%s12207 + $0x3] sm:$0xff]
    %v12650 = vld [vmem:[%s12207 + $0x13] sm:$0xff]
    %v12651 = vld [vmem:[%s12207 + $0x23] sm:$0xff]
    %v12652 = vld [vmem:[%s12207 + $0x33] sm:$0xff]
    %v12653 = vld [vmem:[%s12207 + $0x43] sm:$0xff]
    %v12654 = vld [vmem:[%s12207 + $0x53] sm:$0xff]
    %v12655 = vld [vmem:[%s12207 + $0x63] sm:$0xff]
    %v12656 = vld [vmem:[%s12207 + $0x73] sm:$0xff]
    %v12657 = vld [vmem:[%s12207 + $0xb3] sm:$0xff]
    %v12658 = vld [vmem:[%s12207 + $0xc3] sm:$0xff]
    %v12659 = vld [vmem:[%s12207 + $0xd3] sm:$0xff]
    %v12660 = vld [vmem:[%s12207 + $0xe3] sm:$0xff]
    %v12661 = vld [vmem:[%s12207 + $0xf3] sm:$0xff]
    %v12662 = vld [vmem:[%s12207 + $0x103] sm:$0xff]
    %v12663 = vld [vmem:[%s12207 + $0x113] sm:$0xff]
    %v12664 = vld [vmem:[%s12207 + $0x123] sm:$0xff]
    %s12665 = scalar_lea.vmem %s6, 120
    %v12666 = vld [vmem:[%s12665] sm:$0xff]
    %v12668 = vsel %vm8833, %v12649, 0
    %v12671 = vsel %vm8833, %v12650, 0
    %v12674 = vsel %vm8833, %v12651, 0
    %v12677 = vsel %vm8833, %v12652, 0
    %v12680 = vsel %vm8833, %v12653, 0
    %v12683 = vsel %vm8833, %v12654, 0
    %v12686 = vsel %vm8833, %v12655, 0
    %v12689 = vsel %vm8833, %v12656, 0
    %v12692 = vsel %vm8833, %v12657, 0
    %v12695 = vsel %vm8833, %v12658, 0
    %v12698 = vsel %vm8833, %v12659, 0
    %v12701 = vsel %vm8833, %v12660, 0
    %v12704 = vsel %vm8833, %v12661, 0
    %v12707 = vsel %vm8833, %v12662, 0
    %v12710 = vsel %vm8833, %v12663, 0
    %v12713 = vsel %vm8833, %v12664, 0
    %12715 = vmatpush.msra.mxu0 0.0
    %12716 = vmatpush.msra.mxu0 0.0
    %12717 = vmatpush.msra.mxu0 0.0
    %12718 = vmatpush.msra.mxu0 0.0
    %12719 = vmatpush.msra.mxu0 0.0
    %12720 = vmatpush.msra.mxu0 0.0
    %12721 = vmatpush.msra.mxu0 0.0
    %12722 = vmatpush.msra.mxu0 0.0
    %12723 = vmatpush.msra.mxu0 0.0
    %12724 = vmatpush.msra.mxu0 0.0
    %12725 = vmatpush.msra.mxu0 0.0
    %12726 = vmatpush.msra.mxu0 0.0
    %12727 = vmatpush.msra.mxu0 0.0
    %12728 = vmatpush.msra.mxu0 0.0
    %12729 = vmatpush.msra.mxu0 0.0
    %12730 = vmatpush.msra.mxu0 %v12666
    %12731 = vmatmul.f32.gmra.mxu0 %v12668
    %v12732 = vpop.f32.mrf.mxu0
    %v12733 = vadd.f32 0.0, %v12732
    %12734 = vmatmul.f32.gmra.mxu0 %v12671
    %v12735 = vpop.f32.mrf.mxu0
    %v12736 = vadd.f32 0.0, %v12735
    %12737 = vmatmul.f32.gmra.mxu0 %v12674
    %v12738 = vpop.f32.mrf.mxu0
    %v12739 = vadd.f32 0.0, %v12738
    %12740 = vmatmul.f32.gmra.mxu0 %v12677
    %v12741 = vpop.f32.mrf.mxu0
    %v12742 = vadd.f32 0.0, %v12741
    %12743 = vmatmul.f32.gmra.mxu0 %v12680
    %v12744 = vpop.f32.mrf.mxu0
    %v12745 = vadd.f32 0.0, %v12744
    %12746 = vmatmul.f32.gmra.mxu0 %v12683
    %v12747 = vpop.f32.mrf.mxu0
    %v12748 = vadd.f32 0.0, %v12747
    %12749 = vmatmul.f32.gmra.mxu0 %v12686
    %v12750 = vpop.f32.mrf.mxu0
    %v12751 = vadd.f32 0.0, %v12750
    %12752 = vmatmul.f32.gmra.mxu0 %v12689
    %v12753 = vpop.f32.mrf.mxu0
    %v12754 = vadd.f32 0.0, %v12753
    %12755 = vmatmul.f32.gmra.mxu0 %v12692
    %v12756 = vpop.f32.mrf.mxu0
    %v12757 = vadd.f32 0.0, %v12756
    %12758 = vmatmul.f32.gmra.mxu0 %v12695
    %v12759 = vpop.f32.mrf.mxu0
    %v12760 = vadd.f32 0.0, %v12759
    %12761 = vmatmul.f32.gmra.mxu0 %v12698
    %v12762 = vpop.f32.mrf.mxu0
    %v12763 = vadd.f32 0.0, %v12762
    %12764 = vmatmul.f32.gmra.mxu0 %v12701
    %v12765 = vpop.f32.mrf.mxu0
    %v12766 = vadd.f32 0.0, %v12765
    %12767 = vmatmul.f32.gmra.mxu0 %v12704
    %v12768 = vpop.f32.mrf.mxu0
    %v12769 = vadd.f32 0.0, %v12768
    %12770 = vmatmul.f32.gmra.mxu0 %v12707
    %v12771 = vpop.f32.mrf.mxu0
    %v12772 = vadd.f32 0.0, %v12771
    %12773 = vmatmul.f32.gmra.mxu0 %v12710
    %v12774 = vpop.f32.mrf.mxu0
    %v12775 = vadd.f32 0.0, %v12774
    %12776 = vmatmul.f32.gmra.mxu0 %v12713
    %v12777 = vpop.f32.mrf.mxu0
    %v12778 = vadd.f32 0.0, %v12777
    %12779 = vdwg.mxu0
    %v12780 = vadd.f32 %v12633, %v12733
    %v12781 = vadd.f32 %v12634, %v12736
    %v12782 = vadd.f32 %v12635, %v12739
    %v12783 = vadd.f32 %v12636, %v12742
    %v12784 = vadd.f32 %v12637, %v12745
    %v12785 = vadd.f32 %v12638, %v12748
    %v12786 = vadd.f32 %v12639, %v12751
    %v12787 = vadd.f32 %v12640, %v12754
    %v12788 = vadd.f32 %v12641, %v12757
    %v12789 = vadd.f32 %v12642, %v12760
    %v12790 = vadd.f32 %v12643, %v12763
    %v12791 = vadd.f32 %v12644, %v12766
    %v12792 = vadd.f32 %v12645, %v12769
    %v12793 = vadd.f32 %v12646, %v12772
    %v12794 = vadd.f32 %v12647, %v12775
    %v12795 = vadd.f32 %v12648, %v12778
    %v12796 = vld [vmem:[%s9] sm:$0xff]
    %v12797 = vld [vmem:[%s9 + $0x8] sm:$0xff]
    %v12798 = vld [vmem:[%s9 + $0x10] sm:$0xff]
    %v12799 = vld [vmem:[%s9 + $0x18] sm:$0xff]
    %12800 = vmatpush.msra.mxu0 %v12795
    %12801 = vmatpush.msra.mxu0 %v12794
    %12802 = vmatpush.msra.mxu0 %v12793
    %12803 = vmatpush.msra.mxu0 %v12792
    %12804 = vmatpush.msra.mxu0 %v12791
    %12805 = vmatpush.msra.mxu0 %v12790
    %12806 = vmatpush.msra.mxu0 %v12789
    %12807 = vmatpush.msra.mxu0 %v12788
    %12808 = vmatpush.msra.mxu0 %v12787
    %12809 = vmatpush.msra.mxu0 %v12786
    %12810 = vmatpush.msra.mxu0 %v12785
    %12811 = vmatpush.msra.mxu0 %v12784
    %12812 = vmatpush.msra.mxu0 %v12783
    %12813 = vmatpush.msra.mxu0 %v12782
    %12814 = vmatpush.msra.mxu0 %v12781
    %12815 = vmatpush.msra.mxu0 %v12780
    %12816 = vmatmul.f32.gmra.mxu0 %v12796
    %v12817 = vpop.f32.mrf.mxu0
    %v12818 = vadd.f32 0.0, %v12817
    %12819 = vmatmul.f32.gmra.mxu0 %v12797
    %v12820 = vpop.f32.mrf.mxu0
    %v12821 = vadd.f32 0.0, %v12820
    %12822 = vmatmul.f32.gmra.mxu0 %v12798
    %v12823 = vpop.f32.mrf.mxu0
    %v12824 = vadd.f32 0.0, %v12823
    %12825 = vmatmul.f32.gmra.mxu0 %v12799
    %v12826 = vpop.f32.mrf.mxu0
    %v12827 = vadd.f32 0.0, %v12826
    %12828 = vdwg.mxu0
    %vm12829 = vcmask 130048
    %v12830 = vsel %vm12829, %v12818, 0.0
    %v12831 = vsel %vm12829, %v12821, 0.0
    %v12832 = vadd.f32 %v12830, %v12831
    %v12833 = vsel %vm12829, %v12824, 0.0
    %v12834 = vadd.f32 %v12832, %v12833
    %v12835 = vsel %vm12829, %v12827, 0.0
    %v12836 = vadd.f32 %v12834, %v12835
    %v12837 = vrot.slane %v12836, 4
    %v12838 = vadd.f32 %v12836, %v12837
    %v12839 = vrot.slane %v12838, 2
    %v12840 = vadd.f32 %v12838, %v12839
    %v12841 = vrot.slane %v12840, 1
    %v12842 = vadd.f32 %v12840, %v12841
    %v12843 = vrcp.pop 32.0
    %v12844 = vmul.f32 32.0, %v12843
    %v12845 = vsub.f32 1.0, %v12844
    %v12846 = vmul.f32 %v12843, %v12845
    %v12847 = vadd.f32 %v12843, %v12846
    %vm12848 = vweird.f32 %v12843
    %v12849 = vsel %vm12848, %v12843, %v12847
    %v12850 = vmul.f32 %v12842, %v12849
    %v12851 = vsub.f32 %v12818, %v12850
    %v12852 = vsub.f32 %v12821, %v12850
    %v12853 = vsub.f32 %v12824, %v12850
    %v12854 = vsub.f32 %v12827, %v12850
    %v12855 = vmul.f32 %v12851, %v12851
    %v12856 = vmul.f32 %v12852, %v12852
    %v12857 = vmul.f32 %v12853, %v12853
    %v12858 = vmul.f32 %v12854, %v12854
    %v12859 = vsel %vm12829, %v12855, 0.0
    %v12860 = vsel %vm12829, %v12856, 0.0
    %v12861 = vadd.f32 %v12859, %v12860
    %v12862 = vsel %vm12829, %v12857, 0.0
    %v12863 = vadd.f32 %v12861, %v12862
    %v12864 = vsel %vm12829, %v12858, 0.0
    %v12865 = vadd.f32 %v12863, %v12864
    %v12866 = vrot.slane %v12865, 4
    %v12867 = vadd.f32 %v12865, %v12866
    %v12868 = vrot.slane %v12867, 2
    %v12869 = vadd.f32 %v12867, %v12868
    %v12870 = vrot.slane %v12869, 1
    %v12871 = vadd.f32 %v12869, %v12870
    %v12872 = vmul.f32 %v12871, %v12849
    %v12873 = vadd.f32 %v12872, 1e-05
    %v12874 = vrsqrt.pop %v12873
    %v12875 = vmul.f32 %v12874, %v12873
    %v12876 = vmul.f32 %v12875, %v12874
    %v12877 = vmul.f32 0.5, %v12876
    %v12878 = vsub.f32 1.5, %v12877
    %v12879 = vmul.f32 %v12874, %v12878
    %vm12880 = vweird.f32 %v12873
    %vm12881 = vweird.f32 %v12874
    %vm12882 = vmor %vm12880, %vm12881
    %v12883 = vsel %vm12882, %v12874, %v12879
    %v12884 = vmul.f32 %v12851, %v12883
    %v12885 = vmul.f32 %v12852, %v12883
    %v12886 = vmul.f32 %v12853, %v12883
    %v12887 = vmul.f32 %v12854, %v12883
    %v12888 = vld [vmem:[%s7] sm:$0x1]
    %v12890 = vperm.slane %v12888, 0
    %v12892 = vmul.f32 %v12884, %v12890
    %v12893 = vmul.f32 %v12885, %v12890
    %v12894 = vmul.f32 %v12886, %v12890
    %v12895 = vmul.f32 %v12887, %v12890
    %v12896 = vld [vmem:[%s8] sm:$0x1]
    %v12898 = vperm.slane %v12896, 0
    %v12900 = vadd.f32 %v12892, %v12898
    %v12901 = vadd.f32 %v12893, %v12898
    %v12902 = vadd.f32 %v12894, %v12898
    %v12903 = vadd.f32 %v12895, %v12898
    %vm12904 = vcmp.ge.f32.partialorder %v12900, 0.0
    %vm12905 = vcmp.ge.f32.partialorder %v12901, 0.0
    %vm12906 = vcmp.ge.f32.partialorder %v12902, 0.0
    %vm12907 = vcmp.ge.f32.partialorder %v12903, 0.0
    %v12908 = vmul.f32 %v12900, 0.2
    %v12909 = vmul.f32 %v12901, 0.2
    %v12910 = vmul.f32 %v12902, 0.2
    %v12911 = vmul.f32 %v12903, 0.2
    %v12912 = vsel %vm12904, %v12900, %v12908
    %v12913 = vsel %vm12905, %v12901, %v12909
    %v12914 = vsel %vm12906, %v12902, %v12910
    %v12915 = vsel %vm12907, %v12903, %v12911
    %12916 = vst.msk [vmem:[#allocation4] sm:$0xff] %vm12829, %v12912
    %12917 = vst.msk [vmem:[#allocation4 + $0x8] sm:$0xff] %vm12829, %v12913
    %12918 = vst.msk [vmem:[#allocation4 + $0x10] sm:$0xff] %vm12829, %v12914
    %12919 = vst.msk [vmem:[#allocation4 + $0x18] sm:$0xff] %vm12829, %v12915
    %v12920 = vld [vmem:[%s10] sm:$0xff]
    %v12921 = vld [vmem:[%s10 + $0x8] sm:$0xff]
    %v12922 = vmul.f32 %v12912, %v12920
    %v12923 = vmul.f32 %v12913, %v12921
    %v12924 = vmul.f32 %v12914, %v12920
    %v12925 = vmul.f32 %v12915, %v12921
    %v12926 = vsel %vm12829, %v12922, 0.0
    %12927 = vadd.xlane.f32.xlu0 %v12926
    %v12928 = vpop.xlane.xlu0 %12927
    %v12929 = vsel %vm12829, %v12923, 0.0
    %12930 = vadd.xlane.f32.xlu0 %v12929
    %v12931 = vpop.xlane.xlu0 %12930
    %v12932 = vsel %vm12829, %v12924, 0.0
    %12933 = vadd.xlane.f32.xlu0 %v12932
    %v12934 = vpop.xlane.xlu0 %12933
    %v12935 = vsel %vm12829, %v12925, 0.0
    %12936 = vadd.xlane.f32.xlu0 %v12935
    %v12937 = vpop.xlane.xlu0 %12936
    %v12938 = vadd.f32 %v12928, %v12931
    %v12939 = vrot.slane %v12938, 4
    %v12940 = vadd.f32 %v12938, %v12939
    %v12941 = vrot.slane %v12940, 2
    %v12942 = vadd.f32 %v12940, %v12941
    %v12943 = vrot.slane %v12942, 1
    %v12944 = vadd.f32 %v12942, %v12943
    %v12945 = vadd.f32 %v12934, %v12937
    %v12946 = vrot.slane %v12945, 4
    %v12947 = vadd.f32 %v12945, %v12946
    %v12948 = vrot.slane %v12947, 2
    %v12949 = vadd.f32 %v12947, %v12948
    %v12950 = vrot.slane %v12949, 1
    %v12951 = vadd.f32 %v12949, %v12950
    %v12952 = vxor.u32 %v12944, 2147483648
    %v12953 = vxor.u32 %v12951, 2147483648
    %v12954 = vmul.f32 %v12952, 1.442695
    %v12955 = vpow.pop %v12954
    %v12956 = vmul.f32 %v12953, 1.442695
    %v12957 = vpow.pop %v12956
    %v12958 = vadd.f32 %v12955, 1.0
    %v12959 = vadd.f32 %v12957, 1.0
    %v12960 = vrcp.pop %v12958
    %v12961 = vmul.f32 %v12958, %v12960
    %v12962 = vsub.f32 1.0, %v12961
    %v12963 = vmul.f32 %v12960, %v12962
    %v12964 = vadd.f32 %v12960, %v12963
    %vm12965 = vweird.f32 %v12958
    %vm12966 = vweird.f32 %v12960
    %vm12967 = vmor %vm12965, %vm12966
    %v12968 = vsel %vm12967, %v12960, %v12964
    %v12969 = vand.u32 2147483647, %v12958
    %vm12970 = vcmp.eq.f32.partialorder %v12969, 8.507059e+37
    %v12971 = vand.u32 %v12958, 2147483648
    %v12972 = vor.u32 1.1754944e-38, %v12971
    %v12973 = vsel %vm12970, %v12972, %v12968
    %v12974 = vmul.f32 1.0, %v12973
    %v12975 = vrcp.pop %v12959
    %v12976 = vmul.f32 %v12959, %v12975
    %v12977 = vsub.f32 1.0, %v12976
    %v12978 = vmul.f32 %v12975, %v12977
    %v12979 = vadd.f32 %v12975, %v12978
    %vm12980 = vweird.f32 %v12959
    %vm12981 = vweird.f32 %v12975
    %vm12982 = vmor %vm12980, %vm12981
    %v12983 = vsel %vm12982, %v12975, %v12979
    %v12984 = vand.u32 2147483647, %v12959
    %vm12985 = vcmp.eq.f32.partialorder %v12984, 8.507059e+37
    %v12986 = vand.u32 %v12959, 2147483648
    %v12987 = vor.u32 1.1754944e-38, %v12986
    %v12988 = vsel %vm12985, %v12987, %v12983
    %v12989 = vmul.f32 1.0, %v12988
    %vm12992 = vcmask 1041409
    %v12993 = vsel %vm12992, %v12989, %v12974
    %vm12995 = vcmask 1024
    %12996 = vst.msk [vmem:[%s12] sm:$0x3] %vm12995, %v12993
    // Predicated region
    $region46: #{netd_forward.1} parent=1 // pred_check
      _
    $region47: #{netd_forward.1} parent=1 // pred_check_branch
      %12998 = sbr.rel (0) target = $region49
    $region48: #{netd_forward.1} parent=1 // pred_region
      %13000 = vsyncadd [#allocation5], 0
      %s13001 = sshll.u32 [#allocation4], 4
      %s13002 = int_to_ptr.vmem [resolvable:$true] %s13001
      %s13003 = sshll.u32 %s11, 4
      %s13004 = int_to_ptr.hbm [resolvable:$true] %s13003
      %13009 = dma.vmem_to_hbm [thread:$0]  %s13002, 512, %s13004, [#allocation5], 128, 128, 8
    $region49: #{netd_forward.1} parent=1 // pred_fallthru
      _
    // Predicated region
    $region50: #{netd_forward.1} parent=1 // pred_check
      _
    $region51: #{netd_forward.1} parent=1 // pred_check_branch
      %13011 = sbr.rel (0) target = $region53
    $region52: #{netd_forward.1} parent=1 // pred_region
      _
    $region53: #{netd_forward.1} parent=1 // pred_fallthru
      _
    // Predicated region
    $region54: #{netd_forward.1} parent=1 // pred_check
      _
    $region55: #{netd_forward.1} parent=1 // pred_check_branch
      %13013 = sbr.rel (0) target = $region57
    $region56: #{netd_forward.1} parent=1 // pred_region
      %13015 = dma.done [#allocation5], 512
    $region57: #{netd_forward.1} parent=1 // pred_fallthru
      _
    // Predicated region
    $region58: #{netd_forward.1} parent=1 // pred_check
      _
    $region59: #{netd_forward.1} parent=1 // pred_check_branch
      %13017 = sbr.rel (0) target = $region61
    $region60: #{netd_forward.1} parent=1 // pred_region
      _
    $region61: #{netd_forward.1} parent=1 // pred_fallthru
      _
    %13018 = vsyncpa [#allocation5], 1

</llo_original>
